<compile_context>
chip_gen: v7x
topology: tpu7x:2x2x1
jax: 0.10.0
libtpu: 0.0.40
codegen_flags: <defaults>
</compile_context>

<pallas_src>
import functools
import math

import jax
import jax.numpy as jnp
from jax import lax
from jax.experimental import pallas as pl
from jax.experimental.pallas import tpu as pltpu


_VMEM_LIMIT = 48 * 1024 * 1024  # safe on v5e/v6e (128 MiB VMEM) and v7x (64 MiB VMEM)


def _round_up(x, m):
    return (x + m - 1) // m * m


# ---------------------------------------------------------------------------
# Fused matmul (+ matmul) + bias kernels — used for the LSTM input projections
# ---------------------------------------------------------------------------
def _mm1_bias_kernel(x_ref, w_ref, b_ref, o_ref):
    y = jnp.dot(x_ref[...], w_ref[...], preferred_element_type=jnp.float32)
    y = y + b_ref[...]
    o_ref[...] = y.astype(o_ref.dtype)


def _mm2_bias_kernel(x1_ref, w1_ref, x2_ref, w2_ref, b_ref, o_ref):
    y = jnp.dot(x1_ref[...], w1_ref[...], preferred_element_type=jnp.float32)
    y = y + jnp.dot(x2_ref[...], w2_ref[...], preferred_element_type=jnp.float32)
    y = y + b_ref[...]
    o_ref[...] = y.astype(o_ref.dtype)


def fused_matmul_bias(pairs, b, out_dtype=jnp.bfloat16, tile_m=512):
    """sum_i (x_i @ w_i) + b.  `pairs` is a list of 1 or 2 (x (M,K_i), w (K_i,N)) bf16 pairs."""
    M = pairs[0][0].shape[0]
    N = pairs[0][1].shape[1]
    tm = min(tile_m, _round_up(M, 8))      # multiple of 8 -> valid sublane tiling
    Mp = _round_up(M, tm)
    ins, specs = [], []
    for x, w in pairs:
        if Mp != M:
            x = jnp.pad(x, ((0, Mp - M), (0, 0)))
        K = x.shape[1]
        ins += [x, w]
        specs += [pl.BlockSpec((tm, K), lambda i: (i, 0)),
                  pl.BlockSpec((K, N), lambda i: (0, 0))]
    ins.append(b.reshape(1, N).astype(jnp.float32))
    specs.append(pl.BlockSpec((1, N), lambda i: (0, 0)))
    kernel = _mm1_bias_kernel if len(pairs) == 1 else _mm2_bias_kernel
    out = pl.pallas_call(
        kernel,
        out_shape=jax.ShapeDtypeStruct((Mp, N), out_dtype),
        grid=(Mp // tm,),
        in_specs=specs,
        out_specs=pl.BlockSpec((tm, N), lambda i: (i, 0)),
        compiler_params=pltpu.CompilerParams(
            dimension_semantics=("parallel",), vmem_limit_bytes=_VMEM_LIMIT),
    )(*ins)
    return out[:M]


# ---------------------------------------------------------------------------
# 3x3 / stride-2 / pad-1 conv + SiLU, no im2col: taps accumulated in VMEM
# ---------------------------------------------------------------------------
def _conv3x3_s2_silu_kernel(x_ref, w01_ref, w2_ref, b_ref, o_ref, *, HO, WO, C):
    """One batch element.  x_ref: (HP, WO+1, 2C) width-phase-packed padded input."""
    bias = b_ref[...]                       # (1, Cout) f32
    w01 = w01_ref[...]                      # (3, 2C, Cout) bf16  (taps kw=0,1)
    w2 = w2_ref[...]                        # (3,  C, Cout) bf16  (tap  kw=2)
    cout = o_ref.shape[-1]

    def row(ho, _):
        acc = jnp.zeros((WO, cout), jnp.float32)
        for kh in range(3):
            slab = x_ref[2 * ho + kh]       # (WO+1, 2C): lanes = [even col chans, odd col chans]
            # taps (kh, kw=0) and (kh, kw=1): even/odd width phases of the same rows
            acc = acc + jnp.dot(slab[:WO, :], w01[kh],
                                preferred_element_type=jnp.float32)
            # tap (kh, kw=2): next even column = packed position shifted by one
            acc = acc + jnp.dot(slab[1:, :C], w2[kh],
                                preferred_element_type=jnp.float32)
        y = acc + bias
        o_ref[ho] = (y * jax.nn.sigmoid(y)).astype(o_ref.dtype)   # fused SiLU
        return 0

    lax.fori_loop(0, HO, row, 0)


def conv3x3_s2_silu(x_nhwc, w, bias):
    """x: (B,H,W,C) bf16, w: (3,3,C,Cout) f32, bias: (Cout,) f32 -> (B,ceil(H/2),ceil(W/2),Cout) bf16."""
    B, H, W, C = x_nhwc.shape
    cout = w.shape[-1]
    HO, WO = -(-H // 2), -(-W // 2)
    HP, WQ = 2 * HO + 2, WO + 1
    xp = jnp.pad(x_nhwc, ((0, 0), (1, HP - 1 - H), (1, 2 * WQ - 1 - W), (0, 0)))
    xw = xp.reshape(B, HP, WQ, 2 * C)       # pack width parity into the channel (lane) dim
    w01 = jnp.concatenate([w[:, 0], w[:, 1]], axis=1).astype(jnp.bfloat16)  # (3, 2C, Cout)
    w2 = w[:, 2].astype(jnp.bfloat16)                                       # (3,  C, Cout)
    kernel = functools.partial(_conv3x3_s2_silu_kernel, HO=HO, WO=WO, C=C)
    return pl.pallas_call(
        kernel,
        out_shape=jax.ShapeDtypeStruct((B, HO, WO, cout), jnp.bfloat16),
        grid=(B,),
        in_specs=[pl.BlockSpec((None, HP, WQ, 2 * C), lambda b: (b, 0, 0, 0)),
                  pl.BlockSpec((3, 2 * C, cout), lambda b: (0, 0, 0)),
                  pl.BlockSpec((3, C, cout), lambda b: (0, 0, 0)),
                  pl.BlockSpec((1, cout), lambda b: (0, 0))],
        out_specs=pl.BlockSpec((None, HO, WO, cout), lambda b: (b, 0, 0, 0)),
        compiler_params=pltpu.CompilerParams(
            dimension_semantics=("parallel",), vmem_limit_bytes=_VMEM_LIMIT),
    )(xw, w01, w2, bias.reshape(1, cout))


# ---------------------------------------------------------------------------
# Fused bidirectional LSTM layer (both recurrence chains in one kernel)
# ---------------------------------------------------------------------------
def _bilstm_kernel(xf_ref, xb_ref, whf_ref, whb_ref,
                   hfseq_ref, hbseq_ref, hlast_ref,
                   hf, cf, hb, cb, *, ct, H):
    @pl.when(pl.program_id(0) == 0)
    def _init():
        hf[...] = jnp.zeros_like(hf)
        cf[...] = jnp.zeros_like(cf)
        hb[...] = jnp.zeros_like(hb)
        cb[...] = jnp.zeros_like(cb)

    def gate_update(gates, c_prev):
        # PyTorch gate order i, f, g, o.  (Lane slices are tile-aligned when H >= 128.)
        i_g = jax.nn.sigmoid(gates[:, 0 * H:1 * H])
        f_g = jax.nn.sigmoid(gates[:, 1 * H:2 * H])
        g_g = jnp.tanh(gates[:, 2 * H:3 * H])
        o_g = jax.nn.sigmoid(gates[:, 3 * H:4 * H])
        c_new = f_g * c_prev + i_g * g_g
        return o_g * jnp.tanh(c_new), c_new

    def step(t, _):
        tb = ct - 1 - t  # backward chain walks its (chunk-reversed) block backwards
        gf = xf_ref[t].astype(jnp.float32) + jnp.dot(
            hf[...].astype(jnp.bfloat16), whf_ref[...],
            preferred_element_type=jnp.float32)
        gb = xb_ref[tb].astype(jnp.float32) + jnp.dot(
            hb[...].astype(jnp.bfloat16), whb_ref[...],
            preferred_element_type=jnp.float32)
        hf_new, cf_new = gate_update(gf, cf[...])
        hb_new, cb_new = gate_update(gb, cb[...])
        hf[...] = hf_new
        cf[...] = cf_new
        hb[...] = hb_new
        cb[...] = cb_new
        hfseq_ref[t] = hf_new.astype(hfseq_ref.dtype)
        hbseq_ref[tb] = hb_new.astype(hbseq_ref.dtype)
        return 0

    lax.fori_loop(0, ct, step, 0, unroll=min(8, ct))
    hlast_ref[0] = hf[...]
    hlast_ref[1] = hb[...]


def _choose_chunk(T, B, H, budget_bytes=8 * 1024 * 1024):
    # double-buffered xproj (fwd+bwd, bf16) + hseq (fwd+bwd, bf16) per time step
    per_t = 2 * 2 * B * (4 * H + H) * 2
    max_ct = max(1, budget_bytes // max(per_t, 1))
    ct = 1
    for d in range(1, T + 1):
        if T % d == 0 and d <= max_ct:
            ct = d
    return ct


def bilstm_layer(xproj_f, xproj_b, whh_f, whh_b):
    """Fused bi-LSTM layer.  xproj_*: (T, B, 4H) bf16 (x @ W_ih^T + b_ih + b_hh, time-ordered)."""
    T, B, G = xproj_f.shape
    H = G // 4
    ct = _choose_chunk(T, B, H)
    nc = T // ct
    kernel = functools.partial(_bilstm_kernel, ct=ct, H=H)
    hseq_f, hseq_b, hlast = pl.pallas_call(
        kernel,
        out_shape=(jax.ShapeDtypeStruct((T, B, H), jnp.bfloat16),
                   jax.ShapeDtypeStruct((T, B, H), jnp.bfloat16),
                   jax.ShapeDtypeStruct((2, B, H), jnp.float32)),
        grid=(nc,),
        in_specs=[pl.BlockSpec((ct, B, G), lambda i: (i, 0, 0)),
                  pl.BlockSpec((ct, B, G), lambda i: (nc - 1 - i, 0, 0)),   # reversed chunks, no [::-1]
                  pl.BlockSpec((H, G), lambda i: (0, 0)),
                  pl.BlockSpec((H, G), lambda i: (0, 0))],
        out_specs=[pl.BlockSpec((ct, B, H), lambda i: (i, 0, 0)),
                   pl.BlockSpec((ct, B, H), lambda i: (nc - 1 - i, 0, 0)),
                   pl.BlockSpec((2, B, H), lambda i: (0, 0, 0))],
        scratch_shapes=[pltpu.VMEM((B, H), jnp.float32)] * 4,   # h_f, c_f, h_b, c_b persist
        compiler_params=pltpu.CompilerParams(
            dimension_semantics=("arbitrary",), vmem_limit_bytes=_VMEM_LIMIT),
    )(xproj_f, xproj_b, whh_f, whh_b)
    return hseq_f, hseq_b, hlast


# ---------------------------------------------------------------------------
# Encoder forward (CRNN)
# ---------------------------------------------------------------------------
def cnn_forward(x_nchw, conv_params):
    # TODO(synk): the timm EfficientNetV2 backbone (MBConv blocks, SE, BatchNorm, stochastic
    # depth) is replaced by a simplified 5-stage stride-2 3x3 conv + SiLU stack with the same
    # overall /32 time-frequency downsampling.
    x = jnp.transpose(x_nchw, (0, 2, 3, 1)).astype(jnp.bfloat16)   # NCHW -> NHWC
    for w, bias in conv_params:
        x = conv3x3_s2_silu(x, w, bias)
    return x                                                        # (B, F', T', C) bf16


def encoder_forward(x_nchw, params):
    # TODO(synk): variable-length list[Tensor] (packed-sequence) input is not handled; only
    # the fixed-length batched-tensor path is implemented.
    feat = cnn_forward(x_nchw, params["conv"])
    B, Fp, Tp, C = feat.shape
    # CRNN glue: flatten (C, F') into the feature axis, T' is the sequence (seq-first).
    seq = jnp.transpose(feat, (2, 0, 3, 1)).reshape(Tp, B, C * Fp)
    x2d = seq.reshape(Tp * B, C * Fp)

    hseq_f = hseq_b = None
    hlast = None
    for li, layer in enumerate(params["lstm"]):
        w_ih_f, whh_f, b_f = layer["fwd"]
        w_ih_b, whh_b, b_b = layer["bwd"]
        H = whh_f.shape[0]
        if li == 0:
            pairs_f = [(x2d, w_ih_f.astype(jnp.bfloat16))]
            pairs_b = [(x2d, w_ih_b.astype(jnp.bfloat16))]
        else:
            hf2d = hseq_f.reshape(Tp * B, H)
            hb2d = hseq_b.reshape(Tp * B, H)
            # concat(h_fwd, h_bwd) @ W_ih  ==  h_fwd @ W_ih[:H] + h_bwd @ W_ih[H:]  (no concat copy)
            pairs_f = [(hf2d, w_ih_f[:H].astype(jnp.bfloat16)),
                       (hb2d, w_ih_f[H:].astype(jnp.bfloat16))]
            pairs_b = [(hf2d, w_ih_b[:H].astype(jnp.bfloat16)),
                       (hb2d, w_ih_b[H:].astype(jnp.bfloat16))]
        xproj_f = fused_matmul_bias(pairs_f, b_f).reshape(Tp, B, 4 * H)
        xproj_b = fused_matmul_bias(pairs_b, b_b).reshape(Tp, B, 4 * H)
        hseq_f, hseq_b, hlast = bilstm_layer(
            xproj_f, xproj_b,
            whh_f.astype(jnp.bfloat16), whh_b.astype(jnp.bfloat16))
        # rnn_drop_rate / inter_drop_rate default to 0.0 (eval) -> identity.

    # LastLSTM: final hidden state of the last layer, fwd & bwd concatenated.
    return jnp.concatenate([hlast[0], hlast[1]], axis=-1)            # (B, 2H) f32


# ---------------------------------------------------------------------------
# Deterministic parameter initialization (PyTorch-like uniform fan-in bounds)
# ---------------------------------------------------------------------------
def init_params(key, cnn_in_channels, channels, rnn_input_size, hidden, num_layers):
    params = {"conv": [], "lstm": []}
    cin = cnn_in_channels
    for cout in channels:
        key, k1, k2 = jax.random.split(key, 3)
        bound = 1.0 / math.sqrt(3 * 3 * cin)
        w = jax.random.uniform(k1, (3, 3, cin, cout), jnp.float32, -bound, bound)
        b = jax.random.uniform(k2, (cout,), jnp.float32, -bound, bound)
        params["conv"].append((w, b))
        cin = cout
    in_size = rnn_input_size
    for _ in range(num_layers):
        layer = {}
        for d in ("fwd", "bwd"):
            key, k1, k2, k3, k4 = jax.random.split(key, 5)
            bound = 1.0 / math.sqrt(hidden)
            w_ih = jax.random.uniform(k1, (in_size, 4 * hidden), jnp.float32, -bound, bound)
            w_hh = jax.random.uniform(k2, (hidden, 4 * hidden), jnp.float32, -bound, bound)
            b_ih = jax.random.uniform(k3, (4 * hidden,), jnp.float32, -bound, bound)
            b_hh = jax.random.uniform(k4, (4 * hidden,), jnp.float32, -bound, bound)
            layer[d] = (w_ih, w_hh, b_ih + b_hh)   # biases fused once
        params["lstm"].append(layer)
        in_size = 2 * hidden
    return params


if __name__ == "__main__":
    B = 2
    CIN = 3                          # cnn_in_channels
    NUM_BINS = 64                    # num_filters analogue (kept small)
    NUM_FRAMES = 128
    CHANNELS = (8, 12, 16, 24, 32)   # 5 stride-2 stages -> /32 downsampling
    HIDDEN = 32                      # rnn_hidden_size (small)
    NUM_LAYERS = 2                   # rnn_num_layers, bidirectional

    key = jax.random.PRNGKey(0)
    key, kx = jax.random.split(key)
    x = jax.random.normal(kx, (B, CIN, NUM_BINS, NUM_FRAMES), jnp.float32)

    # input_size = C_feat * ceil(num_bins / 32), as in the PyTorch __init__.
    rnn_input_size = CHANNELS[-1] * math.ceil(NUM_BINS / 32)
    params = init_params(key, CIN, CHANNELS, rnn_input_size, HIDDEN, NUM_LAYERS)

    out = jax.jit(encoder_forward)(x, params)
    out = jax.block_until_ready(out)

    assert out.shape == (B, 2 * HIDDEN), out.shape
    assert bool(jnp.all(jnp.isfinite(out)))
    print("KERNEL_OK")
</pallas_src>

<mosaic_0001>
module attributes {stable_mosaic.version = 11 : i64} {
  func.func @_conv3x3_s2_silu_kernel(%arg0: i32, %arg1: memref<1x66x65x6xbf16, #tpu.memory_space<vmem>>, %arg2: memref<3x6x8xbf16, #tpu.memory_space<vmem>>, %arg3: memref<3x3x8xbf16, #tpu.memory_space<vmem>>, %arg4: memref<1x8xf32, #tpu.memory_space<vmem>>, %arg5: memref<1x32x64x8xbf16, #tpu.memory_space<vmem>>) attributes {dimension_semantics = [#tpu.dimension_semantics<parallel>], iteration_bounds = array<i64: 2>, scalar_prefetch = 0 : i64, scratch_operands = 0 : i64, tpu.core_type = #tpu.core_type<tc>, window_params = [{transform_indices = @transform_0, window_bounds = array<i64: 1, 66, 65, 6>}, {pipeline_mode = #tpu.pipeline_mode<synchronous>, transform_indices = @transform_1, window_bounds = array<i64: 3, 6, 8>}, {pipeline_mode = #tpu.pipeline_mode<synchronous>, transform_indices = @transform_2, window_bounds = array<i64: 3, 3, 8>}, {pipeline_mode = #tpu.pipeline_mode<synchronous>, transform_indices = @transform_3, window_bounds = array<i64: 1, 8>}, {transform_indices = @transform_4, window_bounds = array<i64: 1, 32, 64, 8>}]} {
    %c0 = arith.constant 0 : index
    %c0_0 = arith.constant 0 : index
    %0 = vector.load %arg4[%c0, %c0_0] : memref<1x8xf32, #tpu.memory_space<vmem>>, vector<1x8xf32>
    %c0_1 = arith.constant 0 : index
    %c0_2 = arith.constant 0 : index
    %c0_3 = arith.constant 0 : index
    %1 = vector.load %arg2[%c0_1, %c0_2, %c0_3] : memref<3x6x8xbf16, #tpu.memory_space<vmem>>, vector<3x6x8xbf16>
    %c0_4 = arith.constant 0 : index
    %c0_5 = arith.constant 0 : index
    %c0_6 = arith.constant 0 : index
    %2 = vector.load %arg3[%c0_4, %c0_5, %c0_6] : memref<3x3x8xbf16, #tpu.memory_space<vmem>>, vector<3x3x8xbf16>
    %c0_i32 = arith.constant 0 : i32
    %c32_i32 = arith.constant 32 : i32
    %3 = arith.addi %c0_i32, %c32_i32 : i32
    %c1_i32 = arith.constant 1 : i32
    scf.for %arg6 = %c0_i32 to %3 step %c1_i32  : i32 {
      %cst = arith.constant 0.000000e+00 : f32
      %4 = vector.broadcast %cst : f32 to vector<64x8xf32>
      %c2_i32 = arith.constant 2 : i32
      %5 = arith.muli %c2_i32, %arg6 : i32
      %c0_i32_8 = arith.constant 0 : i32
      %6 = arith.addi %5, %c0_i32_8 : i32
      %c0_9 = arith.constant 0 : index
      %7 = arith.index_cast %6 : i32 to index
      %c0_10 = arith.constant 0 : index
      %c0_11 = arith.constant 0 : index
      %8 = vector.load %arg1[%c0_9, %7, %c0_10, %c0_11] : memref<1x66x65x6xbf16, #tpu.memory_space<vmem>>, vector<1x1x65x6xbf16>
      %9 = vector.shape_cast %8 : vector<1x1x65x6xbf16> to vector<65x6xbf16>
      %10 = vector.extract_strided_slice %9 {offsets = [0, 0], sizes = [64, 6], strides = [1, 1]} : vector<65x6xbf16> to vector<64x6xbf16>
      %11 = vector.extract_strided_slice %1 {offsets = [0, 0, 0], sizes = [1, 6, 8], strides = [1, 1, 1]} : vector<3x6x8xbf16> to vector<1x6x8xbf16>
      %12 = vector.shape_cast %11 : vector<1x6x8xbf16> to vector<6x8xbf16>
      %cst_12 = arith.constant dense<0.000000e+00> : vector<64x8xf32>
      %13 = tpu.matmul %10, %12, %cst_12 {dimension_numbers = #tpu.dot_dimension_numbers<[1], [0], [0], [1], [0, 0, 1, 1], [], []>} : vector<64x6xbf16>, vector<6x8xbf16>, vector<64x8xf32> -> vector<64x8xf32>
      %14 = arith.addf %4, %13 : vector<64x8xf32>
      %15 = vector.extract_strided_slice %9 {offsets = [1, 0], sizes = [64, 3], strides = [1, 1]} : vector<65x6xbf16> to vector<64x3xbf16>
      %16 = vector.extract_strided_slice %2 {offsets = [0, 0, 0], sizes = [1, 3, 8], strides = [1, 1, 1]} : vector<3x3x8xbf16> to vector<1x3x8xbf16>
      %17 = vector.shape_cast %16 : vector<1x3x8xbf16> to vector<3x8xbf16>
      %cst_13 = arith.constant dense<0.000000e+00> : vector<64x8xf32>
      %18 = tpu.matmul %15, %17, %cst_13 {dimension_numbers = #tpu.dot_dimension_numbers<[1], [0], [0], [1], [0, 0, 1, 1], [], []>} : vector<64x3xbf16>, vector<3x8xbf16>, vector<64x8xf32> -> vector<64x8xf32>
      %19 = arith.addf %14, %18 : vector<64x8xf32>
      %c2_i32_14 = arith.constant 2 : i32
      %20 = arith.muli %c2_i32_14, %arg6 : i32
      %c1_i32_15 = arith.constant 1 : i32
      %21 = arith.addi %20, %c1_i32_15 : i32
      %c0_16 = arith.constant 0 : index
      %22 = arith.index_cast %21 : i32 to index
      %c0_17 = arith.constant 0 : index
      %c0_18 = arith.constant 0 : index
      %23 = vector.load %arg1[%c0_16, %22, %c0_17, %c0_18] : memref<1x66x65x6xbf16, #tpu.memory_space<vmem>>, vector<1x1x65x6xbf16>
      %24 = vector.shape_cast %23 : vector<1x1x65x6xbf16> to vector<65x6xbf16>
      %25 = vector.extract_strided_slice %24 {offsets = [0, 0], sizes = [64, 6], strides = [1, 1]} : vector<65x6xbf16> to vector<64x6xbf16>
      %26 = vector.extract_strided_slice %1 {offsets = [1, 0, 0], sizes = [1, 6, 8], strides = [1, 1, 1]} : vector<3x6x8xbf16> to vector<1x6x8xbf16>
      %27 = vector.shape_cast %26 : vector<1x6x8xbf16> to vector<6x8xbf16>
      %cst_19 = arith.constant dense<0.000000e+00> : vector<64x8xf32>
      %28 = tpu.matmul %25, %27, %cst_19 {dimension_numbers = #tpu.dot_dimension_numbers<[1], [0], [0], [1], [0, 0, 1, 1], [], []>} : vector<64x6xbf16>, vector<6x8xbf16>, vector<64x8xf32> -> vector<64x8xf32>
      %29 = arith.addf %19, %28 : vector<64x8xf32>
      %30 = vector.extract_strided_slice %24 {offsets = [1, 0], sizes = [64, 3], strides = [1, 1]} : vector<65x6xbf16> to vector<64x3xbf16>
      %31 = vector.extract_strided_slice %2 {offsets = [1, 0, 0], sizes = [1, 3, 8], strides = [1, 1, 1]} : vector<3x3x8xbf16> to vector<1x3x8xbf16>
      %32 = vector.shape_cast %31 : vector<1x3x8xbf16> to vector<3x8xbf16>
      %cst_20 = arith.constant dense<0.000000e+00> : vector<64x8xf32>
      %33 = tpu.matmul %30, %32, %cst_20 {dimension_numbers = #tpu.dot_dimension_numbers<[1], [0], [0], [1], [0, 0, 1, 1], [], []>} : vector<64x3xbf16>, vector<3x8xbf16>, vector<64x8xf32> -> vector<64x8xf32>
      %34 = arith.addf %29, %33 : vector<64x8xf32>
      %c2_i32_21 = arith.constant 2 : i32
      %35 = arith.muli %c2_i32_21, %arg6 : i32
      %c2_i32_22 = arith.constant 2 : i32
      %36 = arith.addi %35, %c2_i32_22 : i32
      %c0_23 = arith.constant 0 : index
      %37 = arith.index_cast %36 : i32 to index
      %c0_24 = arith.constant 0 : index
      %c0_25 = arith.constant 0 : index
      %38 = vector.load %arg1[%c0_23, %37, %c0_24, %c0_25] : memref<1x66x65x6xbf16, #tpu.memory_space<vmem>>, vector<1x1x65x6xbf16>
      %39 = vector.shape_cast %38 : vector<1x1x65x6xbf16> to vector<65x6xbf16>
      %40 = vector.extract_strided_slice %39 {offsets = [0, 0], sizes = [64, 6], strides = [1, 1]} : vector<65x6xbf16> to vector<64x6xbf16>
      %41 = vector.extract_strided_slice %1 {offsets = [2, 0, 0], sizes = [1, 6, 8], strides = [1, 1, 1]} : vector<3x6x8xbf16> to vector<1x6x8xbf16>
      %42 = vector.shape_cast %41 : vector<1x6x8xbf16> to vector<6x8xbf16>
      %cst_26 = arith.constant dense<0.000000e+00> : vector<64x8xf32>
      %43 = tpu.matmul %40, %42, %cst_26 {dimension_numbers = #tpu.dot_dimension_numbers<[1], [0], [0], [1], [0, 0, 1, 1], [], []>} : vector<64x6xbf16>, vector<6x8xbf16>, vector<64x8xf32> -> vector<64x8xf32>
      %44 = arith.addf %34, %43 : vector<64x8xf32>
      %45 = vector.extract_strided_slice %39 {offsets = [1, 0], sizes = [64, 3], strides = [1, 1]} : vector<65x6xbf16> to vector<64x3xbf16>
      %46 = vector.extract_strided_slice %2 {offsets = [2, 0, 0], sizes = [1, 3, 8], strides = [1, 1, 1]} : vector<3x3x8xbf16> to vector<1x3x8xbf16>
      %47 = vector.shape_cast %46 : vector<1x3x8xbf16> to vector<3x8xbf16>
      %cst_27 = arith.constant dense<0.000000e+00> : vector<64x8xf32>
      %48 = tpu.matmul %45, %47, %cst_27 {dimension_numbers = #tpu.dot_dimension_numbers<[1], [0], [0], [1], [0, 0, 1, 1], [], []>} : vector<64x3xbf16>, vector<3x8xbf16>, vector<64x8xf32> -> vector<64x8xf32>
      %49 = arith.addf %44, %48 : vector<64x8xf32>
      %50 = vector.broadcast %0 : vector<1x8xf32> to vector<64x8xf32>
      %51 = arith.addf %49, %50 : vector<64x8xf32>
      %52 = arith.negf %51 : vector<64x8xf32>
      %53 = math.exp %52 : vector<64x8xf32>
      %cst_28 = arith.constant 1.000000e+00 : f32
      %54 = vector.broadcast %cst_28 : f32 to vector<64x8xf32>
      %55 = arith.addf %54, %53 : vector<64x8xf32>
      %56 = arith.divf %54, %55 : vector<64x8xf32>
      %57 = arith.mulf %51, %56 : vector<64x8xf32>
      %58 = arith.truncf %57 : vector<64x8xf32> to vector<64x8xbf16>
      %c0_29 = arith.constant 0 : index
      %59 = arith.index_cast %arg6 : i32 to index
      %c0_30 = arith.constant 0 : index
      %c0_31 = arith.constant 0 : index
      %60 = vector.load %arg5[%c0_29, %59, %c0_30, %c0_31] : memref<1x32x64x8xbf16, #tpu.memory_space<vmem>>, vector<1x1x64x8xbf16>
      %61 = vector.shape_cast %60 : vector<1x1x64x8xbf16> to vector<64x8xbf16>
      %62 = vector.shape_cast %58 : vector<64x8xbf16> to vector<1x1x64x8xbf16>
      tpu.vector_store %arg5[%c0_29, %59, %c0_30, %c0_31], %62 {strides = array<i32>} : memref<1x32x64x8xbf16, #tpu.memory_space<vmem>>, vector<1x1x64x8xbf16>,
    }
    %c32_i32_7 = arith.constant 32 : i32
    return
  }
  func.func @transform_0(%arg0: i32) -> (i32, i32, i32, i32) {
    %c0_i32 = arith.constant 0 : i32
    %c0_i32_0 = arith.constant 0 : i32
    %c0_i32_1 = arith.constant 0 : i32
    %c0_i32_2 = arith.constant 0 : i32
    return %arg0, %c0_i32, %c0_i32_0, %c0_i32_1 : i32, i32, i32, i32
  }
  func.func @transform_1(%arg0: i32) -> (i32, i32, i32) {
    %c0_i32 = arith.constant 0 : i32
    %c0_i32_0 = arith.constant 0 : i32
    %c0_i32_1 = arith.constant 0 : i32
    %c0_i32_2 = arith.constant 0 : i32
    return %c0_i32, %c0_i32_0, %c0_i32_1 : i32, i32, i32
  }
  func.func @transform_2(%arg0: i32) -> (i32, i32, i32) {
    %c0_i32 = arith.constant 0 : i32
    %c0_i32_0 = arith.constant 0 : i32
    %c0_i32_1 = arith.constant 0 : i32
    %c0_i32_2 = arith.constant 0 : i32
    return %c0_i32, %c0_i32_0, %c0_i32_1 : i32, i32, i32
  }
  func.func @transform_3(%arg0: i32) -> (i32, i32) {
    %c0_i32 = arith.constant 0 : i32
    %c0_i32_0 = arith.constant 0 : i32
    %c0_i32_1 = arith.constant 0 : i32
    return %c0_i32, %c0_i32_0 : i32, i32
  }
  func.func @transform_4(%arg0: i32) -> (i32, i32, i32, i32) {
    %c0_i32 = arith.constant 0 : i32
    %c0_i32_0 = arith.constant 0 : i32
    %c0_i32_1 = arith.constant 0 : i32
    %c0_i32_2 = arith.constant 0 : i32
    return %arg0, %c0_i32, %c0_i32_0, %c0_i32_1 : i32, i32, i32, i32
  }
}

module attributes {stable_mosaic.version = 11 : i64} {
  func.func @_conv3x3_s2_silu_kernel(%arg0: i32, %arg1: memref<1x34x33x16xbf16, #tpu.memory_space<vmem>>, %arg2: memref<3x16x12xbf16, #tpu.memory_space<vmem>>, %arg3: memref<3x8x12xbf16, #tpu.memory_space<vmem>>, %arg4: memref<1x12xf32, #tpu.memory_space<vmem>>, %arg5: memref<1x16x32x12xbf16, #tpu.memory_space<vmem>>) attributes {dimension_semantics = [#tpu.dimension_semantics<parallel>], iteration_bounds = array<i64: 2>, scalar_prefetch = 0 : i64, scratch_operands = 0 : i64, tpu.core_type = #tpu.core_type<tc>, window_params = [{transform_indices = @transform_0, window_bounds = array<i64: 1, 34, 33, 16>}, {pipeline_mode = #tpu.pipeline_mode<synchronous>, transform_indices = @transform_1, window_bounds = array<i64: 3, 16, 12>}, {pipeline_mode = #tpu.pipeline_mode<synchronous>, transform_indices = @transform_2, window_bounds = array<i64: 3, 8, 12>}, {pipeline_mode = #tpu.pipeline_mode<synchronous>, transform_indices = @transform_3, window_bounds = array<i64: 1, 12>}, {transform_indices = @transform_4, window_bounds = array<i64: 1, 16, 32, 12>}]} {
    %c0 = arith.constant 0 : index
    %c0_0 = arith.constant 0 : index
    %0 = vector.load %arg4[%c0, %c0_0] : memref<1x12xf32, #tpu.memory_space<vmem>>, vector<1x12xf32>
    %c0_1 = arith.constant 0 : index
    %c0_2 = arith.constant 0 : index
    %c0_3 = arith.constant 0 : index
    %1 = vector.load %arg2[%c0_1, %c0_2, %c0_3] : memref<3x16x12xbf16, #tpu.memory_space<vmem>>, vector<3x16x12xbf16>
    %c0_4 = arith.constant 0 : index
    %c0_5 = arith.constant 0 : index
    %c0_6 = arith.constant 0 : index
    %2 = vector.load %arg3[%c0_4, %c0_5, %c0_6] : memref<3x8x12xbf16, #tpu.memory_space<vmem>>, vector<3x8x12xbf16>
    %c0_i32 = arith.constant 0 : i32
    %c16_i32 = arith.constant 16 : i32
    %3 = arith.addi %c0_i32, %c16_i32 : i32
    %c1_i32 = arith.constant 1 : i32
    scf.for %arg6 = %c0_i32 to %3 step %c1_i32  : i32 {
      %cst = arith.constant 0.000000e+00 : f32
      %4 = vector.broadcast %cst : f32 to vector<32x12xf32>
      %c2_i32 = arith.constant 2 : i32
      %5 = arith.muli %c2_i32, %arg6 : i32
      %c0_i32_8 = arith.constant 0 : i32
      %6 = arith.addi %5, %c0_i32_8 : i32
      %c0_9 = arith.constant 0 : index
      %7 = arith.index_cast %6 : i32 to index
      %c0_10 = arith.constant 0 : index
      %c0_11 = arith.constant 0 : index
      %8 = vector.load %arg1[%c0_9, %7, %c0_10, %c0_11] : memref<1x34x33x16xbf16, #tpu.memory_space<vmem>>, vector<1x1x33x16xbf16>
      %9 = vector.shape_cast %8 : vector<1x1x33x16xbf16> to vector<33x16xbf16>
      %10 = vector.extract_strided_slice %9 {offsets = [0, 0], sizes = [32, 16], strides = [1, 1]} : vector<33x16xbf16> to vector<32x16xbf16>
      %11 = vector.extract_strided_slice %1 {offsets = [0, 0, 0], sizes = [1, 16, 12], strides = [1, 1, 1]} : vector<3x16x12xbf16> to vector<1x16x12xbf16>
      %12 = vector.shape_cast %11 : vector<1x16x12xbf16> to vector<16x12xbf16>
      %cst_12 = arith.constant dense<0.000000e+00> : vector<32x12xf32>
      %13 = tpu.matmul %10, %12, %cst_12 {dimension_numbers = #tpu.dot_dimension_numbers<[1], [0], [0], [1], [0, 0, 1, 1], [], []>} : vector<32x16xbf16>, vector<16x12xbf16>, vector<32x12xf32> -> vector<32x12xf32>
      %14 = arith.addf %4, %13 : vector<32x12xf32>
      %15 = vector.extract_strided_slice %9 {offsets = [1, 0], sizes = [32, 8], strides = [1, 1]} : vector<33x16xbf16> to vector<32x8xbf16>
      %16 = vector.extract_strided_slice %2 {offsets = [0, 0, 0], sizes = [1, 8, 12], strides = [1, 1, 1]} : vector<3x8x12xbf16> to vector<1x8x12xbf16>
      %17 = vector.shape_cast %16 : vector<1x8x12xbf16> to vector<8x12xbf16>
      %cst_13 = arith.constant dense<0.000000e+00> : vector<32x12xf32>
      %18 = tpu.matmul %15, %17, %cst_13 {dimension_numbers = #tpu.dot_dimension_numbers<[1], [0], [0], [1], [0, 0, 1, 1], [], []>} : vector<32x8xbf16>, vector<8x12xbf16>, vector<32x12xf32> -> vector<32x12xf32>
      %19 = arith.addf %14, %18 : vector<32x12xf32>
      %c2_i32_14 = arith.constant 2 : i32
      %20 = arith.muli %c2_i32_14, %arg6 : i32
      %c1_i32_15 = arith.constant 1 : i32
      %21 = arith.addi %20, %c1_i32_15 : i32
      %c0_16 = arith.constant 0 : index
      %22 = arith.index_cast %21 : i32 to index
      %c0_17 = arith.constant 0 : index
      %c0_18 = arith.constant 0 : index
      %23 = vector.load %arg1[%c0_16, %22, %c0_17, %c0_18] : memref<1x34x33x16xbf16, #tpu.memory_space<vmem>>, vector<1x1x33x16xbf16>
      %24 = vector.shape_cast %23 : vector<1x1x33x16xbf16> to vector<33x16xbf16>
      %25 = vector.extract_strided_slice %24 {offsets = [0, 0], sizes = [32, 16], strides = [1, 1]} : vector<33x16xbf16> to vector<32x16xbf16>
      %26 = vector.extract_strided_slice %1 {offsets = [1, 0, 0], sizes = [1, 16, 12], strides = [1, 1, 1]} : vector<3x16x12xbf16> to vector<1x16x12xbf16>
      %27 = vector.shape_cast %26 : vector<1x16x12xbf16> to vector<16x12xbf16>
      %cst_19 = arith.constant dense<0.000000e+00> : vector<32x12xf32>
      %28 = tpu.matmul %25, %27, %cst_19 {dimension_numbers = #tpu.dot_dimension_numbers<[1], [0], [0], [1], [0, 0, 1, 1], [], []>} : vector<32x16xbf16>, vector<16x12xbf16>, vector<32x12xf32> -> vector<32x12xf32>
      %29 = arith.addf %19, %28 : vector<32x12xf32>
      %30 = vector.extract_strided_slice %24 {offsets = [1, 0], sizes = [32, 8], strides = [1, 1]} : vector<33x16xbf16> to vector<32x8xbf16>
      %31 = vector.extract_strided_slice %2 {offsets = [1, 0, 0], sizes = [1, 8, 12], strides = [1, 1, 1]} : vector<3x8x12xbf16> to vector<1x8x12xbf16>
      %32 = vector.shape_cast %31 : vector<1x8x12xbf16> to vector<8x12xbf16>
      %cst_20 = arith.constant dense<0.000000e+00> : vector<32x12xf32>
      %33 = tpu.matmul %30, %32, %cst_20 {dimension_numbers = #tpu.dot_dimension_numbers<[1], [0], [0], [1], [0, 0, 1, 1], [], []>} : vector<32x8xbf16>, vector<8x12xbf16>, vector<32x12xf32> -> vector<32x12xf32>
      %34 = arith.addf %29, %33 : vector<32x12xf32>
      %c2_i32_21 = arith.constant 2 : i32
      %35 = arith.muli %c2_i32_21, %arg6 : i32
      %c2_i32_22 = arith.constant 2 : i32
      %36 = arith.addi %35, %c2_i32_22 : i32
      %c0_23 = arith.constant 0 : index
      %37 = arith.index_cast %36 : i32 to index
      %c0_24 = arith.constant 0 : index
      %c0_25 = arith.constant 0 : index
      %38 = vector.load %arg1[%c0_23, %37, %c0_24, %c0_25] : memref<1x34x33x16xbf16, #tpu.memory_space<vmem>>, vector<1x1x33x16xbf16>
      %39 = vector.shape_cast %38 : vector<1x1x33x16xbf16> to vector<33x16xbf16>
      %40 = vector.extract_strided_slice %39 {offsets = [0, 0], sizes = [32, 16], strides = [1, 1]} : vector<33x16xbf16> to vector<32x16xbf16>
      %41 = vector.extract_strided_slice %1 {offsets = [2, 0, 0], sizes = [1, 16, 12], strides = [1, 1, 1]} : vector<3x16x12xbf16> to vector<1x16x12xbf16>
      %42 = vector.shape_cast %41 : vector<1x16x12xbf16> to vector<16x12xbf16>
      %cst_26 = arith.constant dense<0.000000e+00> : vector<32x12xf32>
      %43 = tpu.matmul %40, %42, %cst_26 {dimension_numbers = #tpu.dot_dimension_numbers<[1], [0], [0], [1], [0, 0, 1, 1], [], []>} : vector<32x16xbf16>, vector<16x12xbf16>, vector<32x12xf32> -> vector<32x12xf32>
      %44 = arith.addf %34, %43 : vector<32x12xf32>
      %45 = vector.extract_strided_slice %39 {offsets = [1, 0], sizes = [32, 8], strides = [1, 1]} : vector<33x16xbf16> to vector<32x8xbf16>
      %46 = vector.extract_strided_slice %2 {offsets = [2, 0, 0], sizes = [1, 8, 12], strides = [1, 1, 1]} : vector<3x8x12xbf16> to vector<1x8x12xbf16>
      %47 = vector.shape_cast %46 : vector<1x8x12xbf16> to vector<8x12xbf16>
      %cst_27 = arith.constant dense<0.000000e+00> : vector<32x12xf32>
      %48 = tpu.matmul %45, %47, %cst_27 {dimension_numbers = #tpu.dot_dimension_numbers<[1], [0], [0], [1], [0, 0, 1, 1], [], []>} : vector<32x8xbf16>, vector<8x12xbf16>, vector<32x12xf32> -> vector<32x12xf32>
      %49 = arith.addf %44, %48 : vector<32x12xf32>
      %50 = vector.broadcast %0 : vector<1x12xf32> to vector<32x12xf32>
      %51 = arith.addf %49, %50 : vector<32x12xf32>
      %52 = arith.negf %51 : vector<32x12xf32>
      %53 = math.exp %52 : vector<32x12xf32>
      %cst_28 = arith.constant 1.000000e+00 : f32
      %54 = vector.broadcast %cst_28 : f32 to vector<32x12xf32>
      %55 = arith.addf %54, %53 : vector<32x12xf32>
      %56 = arith.divf %54, %55 : vector<32x12xf32>
      %57 = arith.mulf %51, %56 : vector<32x12xf32>
      %58 = arith.truncf %57 : vector<32x12xf32> to vector<32x12xbf16>
      %c0_29 = arith.constant 0 : index
      %59 = arith.index_cast %arg6 : i32 to index
      %c0_30 = arith.constant 0 : index
      %c0_31 = arith.constant 0 : index
      %60 = vector.load %arg5[%c0_29, %59, %c0_30, %c0_31] : memref<1x16x32x12xbf16, #tpu.memory_space<vmem>>, vector<1x1x32x12xbf16>
      %61 = vector.shape_cast %60 : vector<1x1x32x12xbf16> to vector<32x12xbf16>
      %62 = vector.shape_cast %58 : vector<32x12xbf16> to vector<1x1x32x12xbf16>
      tpu.vector_store %arg5[%c0_29, %59, %c0_30, %c0_31], %62 {strides = array<i32>} : memref<1x16x32x12xbf16, #tpu.memory_space<vmem>>, vector<1x1x32x12xbf16>,
    }
    %c16_i32_7 = arith.constant 16 : i32
    return
  }
  func.func @transform_0(%arg0: i32) -> (i32, i32, i32, i32) {
    %c0_i32 = arith.constant 0 : i32
    %c0_i32_0 = arith.constant 0 : i32
    %c0_i32_1 = arith.constant 0 : i32
    %c0_i32_2 = arith.constant 0 : i32
    return %arg0, %c0_i32, %c0_i32_0, %c0_i32_1 : i32, i32, i32, i32
  }
  func.func @transform_1(%arg0: i32) -> (i32, i32, i32) {
    %c0_i32 = arith.constant 0 : i32
    %c0_i32_0 = arith.constant 0 : i32
    %c0_i32_1 = arith.constant 0 : i32
    %c0_i32_2 = arith.constant 0 : i32
    return %c0_i32, %c0_i32_0, %c0_i32_1 : i32, i32, i32
  }
  func.func @transform_2(%arg0: i32) -> (i32, i32, i32) {
    %c0_i32 = arith.constant 0 : i32
    %c0_i32_0 = arith.constant 0 : i32
    %c0_i32_1 = arith.constant 0 : i32
    %c0_i32_2 = arith.constant 0 : i32
    return %c0_i32, %c0_i32_0, %c0_i32_1 : i32, i32, i32
  }
  func.func @transform_3(%arg0: i32) -> (i32, i32) {
    %c0_i32 = arith.constant 0 : i32
    %c0_i32_0 = arith.constant 0 : i32
    %c0_i32_1 = arith.constant 0 : i32
    return %c0_i32, %c0_i32_0 : i32, i32
  }
  func.func @transform_4(%arg0: i32) -> (i32, i32, i32, i32) {
    %c0_i32 = arith.constant 0 : i32
    %c0_i32_0 = arith.constant 0 : i32
    %c0_i32_1 = arith.constant 0 : i32
    %c0_i32_2 = arith.constant 0 : i32
    return %arg0, %c0_i32, %c0_i32_0, %c0_i32_1 : i32, i32, i32, i32
  }
}

module attributes {stable_mosaic.version = 11 : i64} {
  func.func @_conv3x3_s2_silu_kernel(%arg0: i32, %arg1: memref<1x18x17x24xbf16, #tpu.memory_space<vmem>>, %arg2: memref<3x24x16xbf16, #tpu.memory_space<vmem>>, %arg3: memref<3x12x16xbf16, #tpu.memory_space<vmem>>, %arg4: memref<1x16xf32, #tpu.memory_space<vmem>>, %arg5: memref<1x8x16x16xbf16, #tpu.memory_space<vmem>>) attributes {dimension_semantics = [#tpu.dimension_semantics<parallel>], iteration_bounds = array<i64: 2>, scalar_prefetch = 0 : i64, scratch_operands = 0 : i64, tpu.core_type = #tpu.core_type<tc>, window_params = [{transform_indices = @transform_0, window_bounds = array<i64: 1, 18, 17, 24>}, {pipeline_mode = #tpu.pipeline_mode<synchronous>, transform_indices = @transform_1, window_bounds = array<i64: 3, 24, 16>}, {pipeline_mode = #tpu.pipeline_mode<synchronous>, transform_indices = @transform_2, window_bounds = array<i64: 3, 12, 16>}, {pipeline_mode = #tpu.pipeline_mode<synchronous>, transform_indices = @transform_3, window_bounds = array<i64: 1, 16>}, {transform_indices = @transform_4, window_bounds = array<i64: 1, 8, 16, 16>}]} {
    %c0 = arith.constant 0 : index
    %c0_0 = arith.constant 0 : index
    %0 = vector.load %arg4[%c0, %c0_0] : memref<1x16xf32, #tpu.memory_space<vmem>>, vector<1x16xf32>
    %c0_1 = arith.constant 0 : index
    %c0_2 = arith.constant 0 : index
    %c0_3 = arith.constant 0 : index
    %1 = vector.load %arg2[%c0_1, %c0_2, %c0_3] : memref<3x24x16xbf16, #tpu.memory_space<vmem>>, vector<3x24x16xbf16>
    %c0_4 = arith.constant 0 : index
    %c0_5 = arith.constant 0 : index
    %c0_6 = arith.constant 0 : index
    %2 = vector.load %arg3[%c0_4, %c0_5, %c0_6] : memref<3x12x16xbf16, #tpu.memory_space<vmem>>, vector<3x12x16xbf16>
    %c0_i32 = arith.constant 0 : i32
    %c8_i32 = arith.constant 8 : i32
    %3 = arith.addi %c0_i32, %c8_i32 : i32
    %c1_i32 = arith.constant 1 : i32
    scf.for %arg6 = %c0_i32 to %3 step %c1_i32  : i32 {
      %cst = arith.constant 0.000000e+00 : f32
      %4 = vector.broadcast %cst : f32 to vector<16x16xf32>
      %c2_i32 = arith.constant 2 : i32
      %5 = arith.muli %c2_i32, %arg6 : i32
      %c0_i32_8 = arith.constant 0 : i32
      %6 = arith.addi %5, %c0_i32_8 : i32
      %c0_9 = arith.constant 0 : index
      %7 = arith.index_cast %6 : i32 to index
      %c0_10 = arith.constant 0 : index
      %c0_11 = arith.constant 0 : index
      %8 = vector.load %arg1[%c0_9, %7, %c0_10, %c0_11] : memref<1x18x17x24xbf16, #tpu.memory_space<vmem>>, vector<1x1x17x24xbf16>
      %9 = vector.shape_cast %8 : vector<1x1x17x24xbf16> to vector<17x24xbf16>
      %10 = vector.extract_strided_slice %9 {offsets = [0, 0], sizes = [16, 24], strides = [1, 1]} : vector<17x24xbf16> to vector<16x24xbf16>
      %11 = vector.extract_strided_slice %1 {offsets = [0, 0, 0], sizes = [1, 24, 16], strides = [1, 1, 1]} : vector<3x24x16xbf16> to vector<1x24x16xbf16>
      %12 = vector.shape_cast %11 : vector<1x24x16xbf16> to vector<24x16xbf16>
      %cst_12 = arith.constant dense<0.000000e+00> : vector<16x16xf32>
      %13 = tpu.matmul %10, %12, %cst_12 {dimension_numbers = #tpu.dot_dimension_numbers<[1], [0], [0], [1], [0, 0, 1, 1], [], []>} : vector<16x24xbf16>, vector<24x16xbf16>, vector<16x16xf32> -> vector<16x16xf32>
      %14 = arith.addf %4, %13 : vector<16x16xf32>
      %15 = vector.extract_strided_slice %9 {offsets = [1, 0], sizes = [16, 12], strides = [1, 1]} : vector<17x24xbf16> to vector<16x12xbf16>
      %16 = vector.extract_strided_slice %2 {offsets = [0, 0, 0], sizes = [1, 12, 16], strides = [1, 1, 1]} : vector<3x12x16xbf16> to vector<1x12x16xbf16>
      %17 = vector.shape_cast %16 : vector<1x12x16xbf16> to vector<12x16xbf16>
      %cst_13 = arith.constant dense<0.000000e+00> : vector<16x16xf32>
      %18 = tpu.matmul %15, %17, %cst_13 {dimension_numbers = #tpu.dot_dimension_numbers<[1], [0], [0], [1], [0, 0, 1, 1], [], []>} : vector<16x12xbf16>, vector<12x16xbf16>, vector<16x16xf32> -> vector<16x16xf32>
      %19 = arith.addf %14, %18 : vector<16x16xf32>
      %c2_i32_14 = arith.constant 2 : i32
      %20 = arith.muli %c2_i32_14, %arg6 : i32
      %c1_i32_15 = arith.constant 1 : i32
      %21 = arith.addi %20, %c1_i32_15 : i32
      %c0_16 = arith.constant 0 : index
      %22 = arith.index_cast %21 : i32 to index
      %c0_17 = arith.constant 0 : index
      %c0_18 = arith.constant 0 : index
      %23 = vector.load %arg1[%c0_16, %22, %c0_17, %c0_18] : memref<1x18x17x24xbf16, #tpu.memory_space<vmem>>, vector<1x1x17x24xbf16>
      %24 = vector.shape_cast %23 : vector<1x1x17x24xbf16> to vector<17x24xbf16>
      %25 = vector.extract_strided_slice %24 {offsets = [0, 0], sizes = [16, 24], strides = [1, 1]} : vector<17x24xbf16> to vector<16x24xbf16>
      %26 = vector.extract_strided_slice %1 {offsets = [1, 0, 0], sizes = [1, 24, 16], strides = [1, 1, 1]} : vector<3x24x16xbf16> to vector<1x24x16xbf16>
      %27 = vector.shape_cast %26 : vector<1x24x16xbf16> to vector<24x16xbf16>
      %cst_19 = arith.constant dense<0.000000e+00> : vector<16x16xf32>
      %28 = tpu.matmul %25, %27, %cst_19 {dimension_numbers = #tpu.dot_dimension_numbers<[1], [0], [0], [1], [0, 0, 1, 1], [], []>} : vector<16x24xbf16>, vector<24x16xbf16>, vector<16x16xf32> -> vector<16x16xf32>
      %29 = arith.addf %19, %28 : vector<16x16xf32>
      %30 = vector.extract_strided_slice %24 {offsets = [1, 0], sizes = [16, 12], strides = [1, 1]} : vector<17x24xbf16> to vector<16x12xbf16>
      %31 = vector.extract_strided_slice %2 {offsets = [1, 0, 0], sizes = [1, 12, 16], strides = [1, 1, 1]} : vector<3x12x16xbf16> to vector<1x12x16xbf16>
      %32 = vector.shape_cast %31 : vector<1x12x16xbf16> to vector<12x16xbf16>
      %cst_20 = arith.constant dense<0.000000e+00> : vector<16x16xf32>
      %33 = tpu.matmul %30, %32, %cst_20 {dimension_numbers = #tpu.dot_dimension_numbers<[1], [0], [0], [1], [0, 0, 1, 1], [], []>} : vector<16x12xbf16>, vector<12x16xbf16>, vector<16x16xf32> -> vector<16x16xf32>
      %34 = arith.addf %29, %33 : vector<16x16xf32>
      %c2_i32_21 = arith.constant 2 : i32
      %35 = arith.muli %c2_i32_21, %arg6 : i32
      %c2_i32_22 = arith.constant 2 : i32
      %36 = arith.addi %35, %c2_i32_22 : i32
      %c0_23 = arith.constant 0 : index
      %37 = arith.index_cast %36 : i32 to index
      %c0_24 = arith.constant 0 : index
      %c0_25 = arith.constant 0 : index
      %38 = vector.load %arg1[%c0_23, %37, %c0_24, %c0_25] : memref<1x18x17x24xbf16, #tpu.memory_space<vmem>>, vector<1x1x17x24xbf16>
      %39 = vector.shape_cast %38 : vector<1x1x17x24xbf16> to vector<17x24xbf16>
      %40 = vector.extract_strided_slice %39 {offsets = [0, 0], sizes = [16, 24], strides = [1, 1]} : vector<17x24xbf16> to vector<16x24xbf16>
      %41 = vector.extract_strided_slice %1 {offsets = [2, 0, 0], sizes = [1, 24, 16], strides = [1, 1, 1]} : vector<3x24x16xbf16> to vector<1x24x16xbf16>
      %42 = vector.shape_cast %41 : vector<1x24x16xbf16> to vector<24x16xbf16>
      %cst_26 = arith.constant dense<0.000000e+00> : vector<16x16xf32>
      %43 = tpu.matmul %40, %42, %cst_26 {dimension_numbers = #tpu.dot_dimension_numbers<[1], [0], [0], [1], [0, 0, 1, 1], [], []>} : vector<16x24xbf16>, vector<24x16xbf16>, vector<16x16xf32> -> vector<16x16xf32>
      %44 = arith.addf %34, %43 : vector<16x16xf32>
      %45 = vector.extract_strided_slice %39 {offsets = [1, 0], sizes = [16, 12], strides = [1, 1]} : vector<17x24xbf16> to vector<16x12xbf16>
      %46 = vector.extract_strided_slice %2 {offsets = [2, 0, 0], sizes = [1, 12, 16], strides = [1, 1, 1]} : vector<3x12x16xbf16> to vector<1x12x16xbf16>
      %47 = vector.shape_cast %46 : vector<1x12x16xbf16> to vector<12x16xbf16>
      %cst_27 = arith.constant dense<0.000000e+00> : vector<16x16xf32>
      %48 = tpu.matmul %45, %47, %cst_27 {dimension_numbers = #tpu.dot_dimension_numbers<[1], [0], [0], [1], [0, 0, 1, 1], [], []>} : vector<16x12xbf16>, vector<12x16xbf16>, vector<16x16xf32> -> vector<16x16xf32>
      %49 = arith.addf %44, %48 : vector<16x16xf32>
      %50 = vector.broadcast %0 : vector<1x16xf32> to vector<16x16xf32>
      %51 = arith.addf %49, %50 : vector<16x16xf32>
      %52 = arith.negf %51 : vector<16x16xf32>
      %53 = math.exp %52 : vector<16x16xf32>
      %cst_28 = arith.constant 1.000000e+00 : f32
      %54 = vector.broadcast %cst_28 : f32 to vector<16x16xf32>
      %55 = arith.addf %54, %53 : vector<16x16xf32>
      %56 = arith.divf %54, %55 : vector<16x16xf32>
      %57 = arith.mulf %51, %56 : vector<16x16xf32>
      %58 = arith.truncf %57 : vector<16x16xf32> to vector<16x16xbf16>
      %c0_29 = arith.constant 0 : index
      %59 = arith.index_cast %arg6 : i32 to index
      %c0_30 = arith.constant 0 : index
      %c0_31 = arith.constant 0 : index
      %60 = vector.load %arg5[%c0_29, %59, %c0_30, %c0_31] : memref<1x8x16x16xbf16, #tpu.memory_space<vmem>>, vector<1x1x16x16xbf16>
      %61 = vector.shape_cast %60 : vector<1x1x16x16xbf16> to vector<16x16xbf16>
      %62 = vector.shape_cast %58 : vector<16x16xbf16> to vector<1x1x16x16xbf16>
      tpu.vector_store %arg5[%c0_29, %59, %c0_30, %c0_31], %62 {strides = array<i32>} : memref<1x8x16x16xbf16, #tpu.memory_space<vmem>>, vector<1x1x16x16xbf16>,
    }
    %c8_i32_7 = arith.constant 8 : i32
    return
  }
  func.func @transform_0(%arg0: i32) -> (i32, i32, i32, i32) {
    %c0_i32 = arith.constant 0 : i32
    %c0_i32_0 = arith.constant 0 : i32
    %c0_i32_1 = arith.constant 0 : i32
    %c0_i32_2 = arith.constant 0 : i32
    return %arg0, %c0_i32, %c0_i32_0, %c0_i32_1 : i32, i32, i32, i32
  }
  func.func @transform_1(%arg0: i32) -> (i32, i32, i32) {
    %c0_i32 = arith.constant 0 : i32
    %c0_i32_0 = arith.constant 0 : i32
    %c0_i32_1 = arith.constant 0 : i32
    %c0_i32_2 = arith.constant 0 : i32
    return %c0_i32, %c0_i32_0, %c0_i32_1 : i32, i32, i32
  }
  func.func @transform_2(%arg0: i32) -> (i32, i32, i32) {
    %c0_i32 = arith.constant 0 : i32
    %c0_i32_0 = arith.constant 0 : i32
    %c0_i32_1 = arith.constant 0 : i32
    %c0_i32_2 = arith.constant 0 : i32
    return %c0_i32, %c0_i32_0, %c0_i32_1 : i32, i32, i32
  }
  func.func @transform_3(%arg0: i32) -> (i32, i32) {
    %c0_i32 = arith.constant 0 : i32
    %c0_i32_0 = arith.constant 0 : i32
    %c0_i32_1 = arith.constant 0 : i32
    return %c0_i32, %c0_i32_0 : i32, i32
  }
  func.func @transform_4(%arg0: i32) -> (i32, i32, i32, i32) {
    %c0_i32 = arith.constant 0 : i32
    %c0_i32_0 = arith.constant 0 : i32
    %c0_i32_1 = arith.constant 0 : i32
    %c0_i32_2 = arith.constant 0 : i32
    return %arg0, %c0_i32, %c0_i32_0, %c0_i32_1 : i32, i32, i32, i32
  }
}

module attributes {stable_mosaic.version = 11 : i64} {
  func.func @_conv3x3_s2_silu_kernel(%arg0: i32, %arg1: memref<1x10x9x32xbf16, #tpu.memory_space<vmem>>, %arg2: memref<3x32x24xbf16, #tpu.memory_space<vmem>>, %arg3: memref<3x16x24xbf16, #tpu.memory_space<vmem>>, %arg4: memref<1x24xf32, #tpu.memory_space<vmem>>, %arg5: memref<1x4x8x24xbf16, #tpu.memory_space<vmem>>) attributes {dimension_semantics = [#tpu.dimension_semantics<parallel>], iteration_bounds = array<i64: 2>, scalar_prefetch = 0 : i64, scratch_operands = 0 : i64, tpu.core_type = #tpu.core_type<tc>, window_params = [{transform_indices = @transform_0, window_bounds = array<i64: 1, 10, 9, 32>}, {pipeline_mode = #tpu.pipeline_mode<synchronous>, transform_indices = @transform_1, window_bounds = array<i64: 3, 32, 24>}, {pipeline_mode = #tpu.pipeline_mode<synchronous>, transform_indices = @transform_2, window_bounds = array<i64: 3, 16, 24>}, {pipeline_mode = #tpu.pipeline_mode<synchronous>, transform_indices = @transform_3, window_bounds = array<i64: 1, 24>}, {transform_indices = @transform_4, window_bounds = array<i64: 1, 4, 8, 24>}]} {
    %c0 = arith.constant 0 : index
    %c0_0 = arith.constant 0 : index
    %0 = vector.load %arg4[%c0, %c0_0] : memref<1x24xf32, #tpu.memory_space<vmem>>, vector<1x24xf32>
    %c0_1 = arith.constant 0 : index
    %c0_2 = arith.constant 0 : index
    %c0_3 = arith.constant 0 : index
    %1 = vector.load %arg2[%c0_1, %c0_2, %c0_3] : memref<3x32x24xbf16, #tpu.memory_space<vmem>>, vector<3x32x24xbf16>
    %c0_4 = arith.constant 0 : index
    %c0_5 = arith.constant 0 : index
    %c0_6 = arith.constant 0 : index
    %2 = vector.load %arg3[%c0_4, %c0_5, %c0_6] : memref<3x16x24xbf16, #tpu.memory_space<vmem>>, vector<3x16x24xbf16>
    %c0_i32 = arith.constant 0 : i32
    %c4_i32 = arith.constant 4 : i32
    %3 = arith.addi %c0_i32, %c4_i32 : i32
    %c1_i32 = arith.constant 1 : i32
    scf.for %arg6 = %c0_i32 to %3 step %c1_i32  : i32 {
      %cst = arith.constant 0.000000e+00 : f32
      %4 = vector.broadcast %cst : f32 to vector<8x24xf32>
      %c2_i32 = arith.constant 2 : i32
      %5 = arith.muli %c2_i32, %arg6 : i32
      %c0_i32_8 = arith.constant 0 : i32
      %6 = arith.addi %5, %c0_i32_8 : i32
      %c0_9 = arith.constant 0 : index
      %7 = arith.index_cast %6 : i32 to index
      %c0_10 = arith.constant 0 : index
      %c0_11 = arith.constant 0 : index
      %8 = vector.load %arg1[%c0_9, %7, %c0_10, %c0_11] : memref<1x10x9x32xbf16, #tpu.memory_space<vmem>>, vector<1x1x9x32xbf16>
      %9 = vector.shape_cast %8 : vector<1x1x9x32xbf16> to vector<9x32xbf16>
      %10 = vector.extract_strided_slice %9 {offsets = [0, 0], sizes = [8, 32], strides = [1, 1]} : vector<9x32xbf16> to vector<8x32xbf16>
      %11 = vector.extract_strided_slice %1 {offsets = [0, 0, 0], sizes = [1, 32, 24], strides = [1, 1, 1]} : vector<3x32x24xbf16> to vector<1x32x24xbf16>
      %12 = vector.shape_cast %11 : vector<1x32x24xbf16> to vector<32x24xbf16>
      %cst_12 = arith.constant dense<0.000000e+00> : vector<8x24xf32>
      %13 = tpu.matmul %10, %12, %cst_12 {dimension_numbers = #tpu.dot_dimension_numbers<[1], [0], [0], [1], [0, 0, 1, 1], [], []>} : vector<8x32xbf16>, vector<32x24xbf16>, vector<8x24xf32> -> vector<8x24xf32>
      %14 = arith.addf %4, %13 : vector<8x24xf32>
      %15 = vector.extract_strided_slice %9 {offsets = [1, 0], sizes = [8, 16], strides = [1, 1]} : vector<9x32xbf16> to vector<8x16xbf16>
      %16 = vector.extract_strided_slice %2 {offsets = [0, 0, 0], sizes = [1, 16, 24], strides = [1, 1, 1]} : vector<3x16x24xbf16> to vector<1x16x24xbf16>
      %17 = vector.shape_cast %16 : vector<1x16x24xbf16> to vector<16x24xbf16>
      %cst_13 = arith.constant dense<0.000000e+00> : vector<8x24xf32>
      %18 = tpu.matmul %15, %17, %cst_13 {dimension_numbers = #tpu.dot_dimension_numbers<[1], [0], [0], [1], [0, 0, 1, 1], [], []>} : vector<8x16xbf16>, vector<16x24xbf16>, vector<8x24xf32> -> vector<8x24xf32>
      %19 = arith.addf %14, %18 : vector<8x24xf32>
      %c2_i32_14 = arith.constant 2 : i32
      %20 = arith.muli %c2_i32_14, %arg6 : i32
      %c1_i32_15 = arith.constant 1 : i32
      %21 = arith.addi %20, %c1_i32_15 : i32
      %c0_16 = arith.constant 0 : index
      %22 = arith.index_cast %21 : i32 to index
      %c0_17 = arith.constant 0 : index
      %c0_18 = arith.constant 0 : index
      %23 = vector.load %arg1[%c0_16, %22, %c0_17, %c0_18] : memref<1x10x9x32xbf16, #tpu.memory_space<vmem>>, vector<1x1x9x32xbf16>
      %24 = vector.shape_cast %23 : vector<1x1x9x32xbf16> to vector<9x32xbf16>
      %25 = vector.extract_strided_slice %24 {offsets = [0, 0], sizes = [8, 32], strides = [1, 1]} : vector<9x32xbf16> to vector<8x32xbf16>
      %26 = vector.extract_strided_slice %1 {offsets = [1, 0, 0], sizes = [1, 32, 24], strides = [1, 1, 1]} : vector<3x32x24xbf16> to vector<1x32x24xbf16>
      %27 = vector.shape_cast %26 : vector<1x32x24xbf16> to vector<32x24xbf16>
      %cst_19 = arith.constant dense<0.000000e+00> : vector<8x24xf32>
      %28 = tpu.matmul %25, %27, %cst_19 {dimension_numbers = #tpu.dot_dimension_numbers<[1], [0], [0], [1], [0, 0, 1, 1], [], []>} : vector<8x32xbf16>, vector<32x24xbf16>, vector<8x24xf32> -> vector<8x24xf32>
      %29 = arith.addf %19, %28 : vector<8x24xf32>
      %30 = vector.extract_strided_slice %24 {offsets = [1, 0], sizes = [8, 16], strides = [1, 1]} : vector<9x32xbf16> to vector<8x16xbf16>
      %31 = vector.extract_strided_slice %2 {offsets = [1, 0, 0], sizes = [1, 16, 24], strides = [1, 1, 1]} : vector<3x16x24xbf16> to vector<1x16x24xbf16>
      %32 = vector.shape_cast %31 : vector<1x16x24xbf16> to vector<16x24xbf16>
      %cst_20 = arith.constant dense<0.000000e+00> : vector<8x24xf32>
      %33 = tpu.matmul %30, %32, %cst_20 {dimension_numbers = #tpu.dot_dimension_numbers<[1], [0], [0], [1], [0, 0, 1, 1], [], []>} : vector<8x16xbf16>, vector<16x24xbf16>, vector<8x24xf32> -> vector<8x24xf32>
      %34 = arith.addf %29, %33 : vector<8x24xf32>
      %c2_i32_21 = arith.constant 2 : i32
      %35 = arith.muli %c2_i32_21, %arg6 : i32
      %c2_i32_22 = arith.constant 2 : i32
      %36 = arith.addi %35, %c2_i32_22 : i32
      %c0_23 = arith.constant 0 : index
      %37 = arith.index_cast %36 : i32 to index
      %c0_24 = arith.constant 0 : index
      %c0_25 = arith.constant 0 : index
      %38 = vector.load %arg1[%c0_23, %37, %c0_24, %c0_25] : memref<1x10x9x32xbf16, #tpu.memory_space<vmem>>, vector<1x1x9x32xbf16>
      %39 = vector.shape_cast %38 : vector<1x1x9x32xbf16> to vector<9x32xbf16>
      %40 = vector.extract_strided_slice %39 {offsets = [0, 0], sizes = [8, 32], strides = [1, 1]} : vector<9x32xbf16> to vector<8x32xbf16>
      %41 = vector.extract_strided_slice %1 {offsets = [2, 0, 0], sizes = [1, 32, 24], strides = [1, 1, 1]} : vector<3x32x24xbf16> to vector<1x32x24xbf16>
      %42 = vector.shape_cast %41 : vector<1x32x24xbf16> to vector<32x24xbf16>
      %cst_26 = arith.constant dense<0.000000e+00> : vector<8x24xf32>
      %43 = tpu.matmul %40, %42, %cst_26 {dimension_numbers = #tpu.dot_dimension_numbers<[1], [0], [0], [1], [0, 0, 1, 1], [], []>} : vector<8x32xbf16>, vector<32x24xbf16>, vector<8x24xf32> -> vector<8x24xf32>
      %44 = arith.addf %34, %43 : vector<8x24xf32>
      %45 = vector.extract_strided_slice %39 {offsets = [1, 0], sizes = [8, 16], strides = [1, 1]} : vector<9x32xbf16> to vector<8x16xbf16>
      %46 = vector.extract_strided_slice %2 {offsets = [2, 0, 0], sizes = [1, 16, 24], strides = [1, 1, 1]} : vector<3x16x24xbf16> to vector<1x16x24xbf16>
      %47 = vector.shape_cast %46 : vector<1x16x24xbf16> to vector<16x24xbf16>
      %cst_27 = arith.constant dense<0.000000e+00> : vector<8x24xf32>
      %48 = tpu.matmul %45, %47, %cst_27 {dimension_numbers = #tpu.dot_dimension_numbers<[1], [0], [0], [1], [0, 0, 1, 1], [], []>} : vector<8x16xbf16>, vector<16x24xbf16>, vector<8x24xf32> -> vector<8x24xf32>
      %49 = arith.addf %44, %48 : vector<8x24xf32>
      %50 = vector.broadcast %0 : vector<1x24xf32> to vector<8x24xf32>
      %51 = arith.addf %49, %50 : vector<8x24xf32>
      %52 = arith.negf %51 : vector<8x24xf32>
      %53 = math.exp %52 : vector<8x24xf32>
      %cst_28 = arith.constant 1.000000e+00 : f32
      %54 = vector.broadcast %cst_28 : f32 to vector<8x24xf32>
      %55 = arith.addf %54, %53 : vector<8x24xf32>
      %56 = arith.divf %54, %55 : vector<8x24xf32>
      %57 = arith.mulf %51, %56 : vector<8x24xf32>
      %58 = arith.truncf %57 : vector<8x24xf32> to vector<8x24xbf16>
      %c0_29 = arith.constant 0 : index
      %59 = arith.index_cast %arg6 : i32 to index
      %c0_30 = arith.constant 0 : index
      %c0_31 = arith.constant 0 : index
      %60 = vector.load %arg5[%c0_29, %59, %c0_30, %c0_31] : memref<1x4x8x24xbf16, #tpu.memory_space<vmem>>, vector<1x1x8x24xbf16>
      %61 = vector.shape_cast %60 : vector<1x1x8x24xbf16> to vector<8x24xbf16>
      %62 = vector.shape_cast %58 : vector<8x24xbf16> to vector<1x1x8x24xbf16>
      tpu.vector_store %arg5[%c0_29, %59, %c0_30, %c0_31], %62 {strides = array<i32>} : memref<1x4x8x24xbf16, #tpu.memory_space<vmem>>, vector<1x1x8x24xbf16>,
    }
    %c4_i32_7 = arith.constant 4 : i32
    return
  }
  func.func @transform_0(%arg0: i32) -> (i32, i32, i32, i32) {
    %c0_i32 = arith.constant 0 : i32
    %c0_i32_0 = arith.constant 0 : i32
    %c0_i32_1 = arith.constant 0 : i32
    %c0_i32_2 = arith.constant 0 : i32
    return %arg0, %c0_i32, %c0_i32_0, %c0_i32_1 : i32, i32, i32, i32
  }
  func.func @transform_1(%arg0: i32) -> (i32, i32, i32) {
    %c0_i32 = arith.constant 0 : i32
    %c0_i32_0 = arith.constant 0 : i32
    %c0_i32_1 = arith.constant 0 : i32
    %c0_i32_2 = arith.constant 0 : i32
    return %c0_i32, %c0_i32_0, %c0_i32_1 : i32, i32, i32
  }
  func.func @transform_2(%arg0: i32) -> (i32, i32, i32) {
    %c0_i32 = arith.constant 0 : i32
    %c0_i32_0 = arith.constant 0 : i32
    %c0_i32_1 = arith.constant 0 : i32
    %c0_i32_2 = arith.constant 0 : i32
    return %c0_i32, %c0_i32_0, %c0_i32_1 : i32, i32, i32
  }
  func.func @transform_3(%arg0: i32) -> (i32, i32) {
    %c0_i32 = arith.constant 0 : i32
    %c0_i32_0 = arith.constant 0 : i32
    %c0_i32_1 = arith.constant 0 : i32
    return %c0_i32, %c0_i32_0 : i32, i32
  }
  func.func @transform_4(%arg0: i32) -> (i32, i32, i32, i32) {
    %c0_i32 = arith.constant 0 : i32
    %c0_i32_0 = arith.constant 0 : i32
    %c0_i32_1 = arith.constant 0 : i32
    %c0_i32_2 = arith.constant 0 : i32
    return %arg0, %c0_i32, %c0_i32_0, %c0_i32_1 : i32, i32, i32, i32
  }
}

module attributes {stable_mosaic.version = 11 : i64} {
  func.func @_conv3x3_s2_silu_kernel(%arg0: i32, %arg1: memref<1x6x5x48xbf16, #tpu.memory_space<vmem>>, %arg2: memref<3x48x32xbf16, #tpu.memory_space<vmem>>, %arg3: memref<3x24x32xbf16, #tpu.memory_space<vmem>>, %arg4: memref<1x32xf32, #tpu.memory_space<vmem>>, %arg5: memref<1x2x4x32xbf16, #tpu.memory_space<vmem>>) attributes {dimension_semantics = [#tpu.dimension_semantics<parallel>], iteration_bounds = array<i64: 2>, scalar_prefetch = 0 : i64, scratch_operands = 0 : i64, tpu.core_type = #tpu.core_type<tc>, window_params = [{transform_indices = @transform_0, window_bounds = array<i64: 1, 6, 5, 48>}, {pipeline_mode = #tpu.pipeline_mode<synchronous>, transform_indices = @transform_1, window_bounds = array<i64: 3, 48, 32>}, {pipeline_mode = #tpu.pipeline_mode<synchronous>, transform_indices = @transform_2, window_bounds = array<i64: 3, 24, 32>}, {pipeline_mode = #tpu.pipeline_mode<synchronous>, transform_indices = @transform_3, window_bounds = array<i64: 1, 32>}, {transform_indices = @transform_4, window_bounds = array<i64: 1, 2, 4, 32>}]} {
    %c0 = arith.constant 0 : index
    %c0_0 = arith.constant 0 : index
    %0 = vector.load %arg4[%c0, %c0_0] : memref<1x32xf32, #tpu.memory_space<vmem>>, vector<1x32xf32>
    %c0_1 = arith.constant 0 : index
    %c0_2 = arith.constant 0 : index
    %c0_3 = arith.constant 0 : index
    %1 = vector.load %arg2[%c0_1, %c0_2, %c0_3] : memref<3x48x32xbf16, #tpu.memory_space<vmem>>, vector<3x48x32xbf16>
    %c0_4 = arith.constant 0 : index
    %c0_5 = arith.constant 0 : index
    %c0_6 = arith.constant 0 : index
    %2 = vector.load %arg3[%c0_4, %c0_5, %c0_6] : memref<3x24x32xbf16, #tpu.memory_space<vmem>>, vector<3x24x32xbf16>
    %c0_i32 = arith.constant 0 : i32
    %c2_i32 = arith.constant 2 : i32
    %3 = arith.addi %c0_i32, %c2_i32 : i32
    %c1_i32 = arith.constant 1 : i32
    scf.for %arg6 = %c0_i32 to %3 step %c1_i32  : i32 {
      %cst = arith.constant 0.000000e+00 : f32
      %4 = vector.broadcast %cst : f32 to vector<4x32xf32>
      %c2_i32_8 = arith.constant 2 : i32
      %5 = arith.muli %c2_i32_8, %arg6 : i32
      %c0_i32_9 = arith.constant 0 : i32
      %6 = arith.addi %5, %c0_i32_9 : i32
      %c0_10 = arith.constant 0 : index
      %7 = arith.index_cast %6 : i32 to index
      %c0_11 = arith.constant 0 : index
      %c0_12 = arith.constant 0 : index
      %8 = vector.load %arg1[%c0_10, %7, %c0_11, %c0_12] : memref<1x6x5x48xbf16, #tpu.memory_space<vmem>>, vector<1x1x5x48xbf16>
      %9 = vector.shape_cast %8 : vector<1x1x5x48xbf16> to vector<5x48xbf16>
      %10 = vector.extract_strided_slice %9 {offsets = [0, 0], sizes = [4, 48], strides = [1, 1]} : vector<5x48xbf16> to vector<4x48xbf16>
      %11 = vector.extract_strided_slice %1 {offsets = [0, 0, 0], sizes = [1, 48, 32], strides = [1, 1, 1]} : vector<3x48x32xbf16> to vector<1x48x32xbf16>
      %12 = vector.shape_cast %11 : vector<1x48x32xbf16> to vector<48x32xbf16>
      %cst_13 = arith.constant dense<0.000000e+00> : vector<4x32xf32>
      %13 = tpu.matmul %10, %12, %cst_13 {dimension_numbers = #tpu.dot_dimension_numbers<[1], [0], [0], [1], [0, 0, 1, 1], [], []>} : vector<4x48xbf16>, vector<48x32xbf16>, vector<4x32xf32> -> vector<4x32xf32>
      %14 = arith.addf %4, %13 : vector<4x32xf32>
      %15 = vector.extract_strided_slice %9 {offsets = [1, 0], sizes = [4, 24], strides = [1, 1]} : vector<5x48xbf16> to vector<4x24xbf16>
      %16 = vector.extract_strided_slice %2 {offsets = [0, 0, 0], sizes = [1, 24, 32], strides = [1, 1, 1]} : vector<3x24x32xbf16> to vector<1x24x32xbf16>
      %17 = vector.shape_cast %16 : vector<1x24x32xbf16> to vector<24x32xbf16>
      %cst_14 = arith.constant dense<0.000000e+00> : vector<4x32xf32>
      %18 = tpu.matmul %15, %17, %cst_14 {dimension_numbers = #tpu.dot_dimension_numbers<[1], [0], [0], [1], [0, 0, 1, 1], [], []>} : vector<4x24xbf16>, vector<24x32xbf16>, vector<4x32xf32> -> vector<4x32xf32>
      %19 = arith.addf %14, %18 : vector<4x32xf32>
      %c2_i32_15 = arith.constant 2 : i32
      %20 = arith.muli %c2_i32_15, %arg6 : i32
      %c1_i32_16 = arith.constant 1 : i32
      %21 = arith.addi %20, %c1_i32_16 : i32
      %c0_17 = arith.constant 0 : index
      %22 = arith.index_cast %21 : i32 to index
      %c0_18 = arith.constant 0 : index
      %c0_19 = arith.constant 0 : index
      %23 = vector.load %arg1[%c0_17, %22, %c0_18, %c0_19] : memref<1x6x5x48xbf16, #tpu.memory_space<vmem>>, vector<1x1x5x48xbf16>
      %24 = vector.shape_cast %23 : vector<1x1x5x48xbf16> to vector<5x48xbf16>
      %25 = vector.extract_strided_slice %24 {offsets = [0, 0], sizes = [4, 48], strides = [1, 1]} : vector<5x48xbf16> to vector<4x48xbf16>
      %26 = vector.extract_strided_slice %1 {offsets = [1, 0, 0], sizes = [1, 48, 32], strides = [1, 1, 1]} : vector<3x48x32xbf16> to vector<1x48x32xbf16>
      %27 = vector.shape_cast %26 : vector<1x48x32xbf16> to vector<48x32xbf16>
      %cst_20 = arith.constant dense<0.000000e+00> : vector<4x32xf32>
      %28 = tpu.matmul %25, %27, %cst_20 {dimension_numbers = #tpu.dot_dimension_numbers<[1], [0], [0], [1], [0, 0, 1, 1], [], []>} : vector<4x48xbf16>, vector<48x32xbf16>, vector<4x32xf32> -> vector<4x32xf32>
      %29 = arith.addf %19, %28 : vector<4x32xf32>
      %30 = vector.extract_strided_slice %24 {offsets = [1, 0], sizes = [4, 24], strides = [1, 1]} : vector<5x48xbf16> to vector<4x24xbf16>
      %31 = vector.extract_strided_slice %2 {offsets = [1, 0, 0], sizes = [1, 24, 32], strides = [1, 1, 1]} : vector<3x24x32xbf16> to vector<1x24x32xbf16>
      %32 = vector.shape_cast %31 : vector<1x24x32xbf16> to vector<24x32xbf16>
      %cst_21 = arith.constant dense<0.000000e+00> : vector<4x32xf32>
      %33 = tpu.matmul %30, %32, %cst_21 {dimension_numbers = #tpu.dot_dimension_numbers<[1], [0], [0], [1], [0, 0, 1, 1], [], []>} : vector<4x24xbf16>, vector<24x32xbf16>, vector<4x32xf32> -> vector<4x32xf32>
      %34 = arith.addf %29, %33 : vector<4x32xf32>
      %c2_i32_22 = arith.constant 2 : i32
      %35 = arith.muli %c2_i32_22, %arg6 : i32
      %c2_i32_23 = arith.constant 2 : i32
      %36 = arith.addi %35, %c2_i32_23 : i32
      %c0_24 = arith.constant 0 : index
      %37 = arith.index_cast %36 : i32 to index
      %c0_25 = arith.constant 0 : index
      %c0_26 = arith.constant 0 : index
      %38 = vector.load %arg1[%c0_24, %37, %c0_25, %c0_26] : memref<1x6x5x48xbf16, #tpu.memory_space<vmem>>, vector<1x1x5x48xbf16>
      %39 = vector.shape_cast %38 : vector<1x1x5x48xbf16> to vector<5x48xbf16>
      %40 = vector.extract_strided_slice %39 {offsets = [0, 0], sizes = [4, 48], strides = [1, 1]} : vector<5x48xbf16> to vector<4x48xbf16>
      %41 = vector.extract_strided_slice %1 {offsets = [2, 0, 0], sizes = [1, 48, 32], strides = [1, 1, 1]} : vector<3x48x32xbf16> to vector<1x48x32xbf16>
      %42 = vector.shape_cast %41 : vector<1x48x32xbf16> to vector<48x32xbf16>
      %cst_27 = arith.constant dense<0.000000e+00> : vector<4x32xf32>
      %43 = tpu.matmul %40, %42, %cst_27 {dimension_numbers = #tpu.dot_dimension_numbers<[1], [0], [0], [1], [0, 0, 1, 1], [], []>} : vector<4x48xbf16>, vector<48x32xbf16>, vector<4x32xf32> -> vector<4x32xf32>
      %44 = arith.addf %34, %43 : vector<4x32xf32>
      %45 = vector.extract_strided_slice %39 {offsets = [1, 0], sizes = [4, 24], strides = [1, 1]} : vector<5x48xbf16> to vector<4x24xbf16>
      %46 = vector.extract_strided_slice %2 {offsets = [2, 0, 0], sizes = [1, 24, 32], strides = [1, 1, 1]} : vector<3x24x32xbf16> to vector<1x24x32xbf16>
      %47 = vector.shape_cast %46 : vector<1x24x32xbf16> to vector<24x32xbf16>
      %cst_28 = arith.constant dense<0.000000e+00> : vector<4x32xf32>
      %48 = tpu.matmul %45, %47, %cst_28 {dimension_numbers = #tpu.dot_dimension_numbers<[1], [0], [0], [1], [0, 0, 1, 1], [], []>} : vector<4x24xbf16>, vector<24x32xbf16>, vector<4x32xf32> -> vector<4x32xf32>
      %49 = arith.addf %44, %48 : vector<4x32xf32>
      %50 = vector.broadcast %0 : vector<1x32xf32> to vector<4x32xf32>
      %51 = arith.addf %49, %50 : vector<4x32xf32>
      %52 = arith.negf %51 : vector<4x32xf32>
      %53 = math.exp %52 : vector<4x32xf32>
      %cst_29 = arith.constant 1.000000e+00 : f32
      %54 = vector.broadcast %cst_29 : f32 to vector<4x32xf32>
      %55 = arith.addf %54, %53 : vector<4x32xf32>
      %56 = arith.divf %54, %55 : vector<4x32xf32>
      %57 = arith.mulf %51, %56 : vector<4x32xf32>
      %58 = arith.truncf %57 : vector<4x32xf32> to vector<4x32xbf16>
      %c0_30 = arith.constant 0 : index
      %59 = arith.index_cast %arg6 : i32 to index
      %c0_31 = arith.constant 0 : index
      %c0_32 = arith.constant 0 : index
      %60 = vector.load %arg5[%c0_30, %59, %c0_31, %c0_32] : memref<1x2x4x32xbf16, #tpu.memory_space<vmem>>, vector<1x1x4x32xbf16>
      %61 = vector.shape_cast %60 : vector<1x1x4x32xbf16> to vector<4x32xbf16>
      %62 = vector.shape_cast %58 : vector<4x32xbf16> to vector<1x1x4x32xbf16>
      tpu.vector_store %arg5[%c0_30, %59, %c0_31, %c0_32], %62 {strides = array<i32>} : memref<1x2x4x32xbf16, #tpu.memory_space<vmem>>, vector<1x1x4x32xbf16>,
    }
    %c2_i32_7 = arith.constant 2 : i32
    return
  }
  func.func @transform_0(%arg0: i32) -> (i32, i32, i32, i32) {
    %c0_i32 = arith.constant 0 : i32
    %c0_i32_0 = arith.constant 0 : i32
    %c0_i32_1 = arith.constant 0 : i32
    %c0_i32_2 = arith.constant 0 : i32
    return %arg0, %c0_i32, %c0_i32_0, %c0_i32_1 : i32, i32, i32, i32
  }
  func.func @transform_1(%arg0: i32) -> (i32, i32, i32) {
    %c0_i32 = arith.constant 0 : i32
    %c0_i32_0 = arith.constant 0 : i32
    %c0_i32_1 = arith.constant 0 : i32
    %c0_i32_2 = arith.constant 0 : i32
    return %c0_i32, %c0_i32_0, %c0_i32_1 : i32, i32, i32
  }
  func.func @transform_2(%arg0: i32) -> (i32, i32, i32) {
    %c0_i32 = arith.constant 0 : i32
    %c0_i32_0 = arith.constant 0 : i32
    %c0_i32_1 = arith.constant 0 : i32
    %c0_i32_2 = arith.constant 0 : i32
    return %c0_i32, %c0_i32_0, %c0_i32_1 : i32, i32, i32
  }
  func.func @transform_3(%arg0: i32) -> (i32, i32) {
    %c0_i32 = arith.constant 0 : i32
    %c0_i32_0 = arith.constant 0 : i32
    %c0_i32_1 = arith.constant 0 : i32
    return %c0_i32, %c0_i32_0 : i32, i32
  }
  func.func @transform_4(%arg0: i32) -> (i32, i32, i32, i32) {
    %c0_i32 = arith.constant 0 : i32
    %c0_i32_0 = arith.constant 0 : i32
    %c0_i32_1 = arith.constant 0 : i32
    %c0_i32_2 = arith.constant 0 : i32
    return %arg0, %c0_i32, %c0_i32_0, %c0_i32_1 : i32, i32, i32, i32
  }
}

module attributes {stable_mosaic.version = 11 : i64} {
  func.func @_mm1_bias_kernel(%arg0: i32, %arg1: memref<8x64xbf16, #tpu.memory_space<vmem>>, %arg2: memref<64x128xbf16, #tpu.memory_space<vmem>>, %arg3: memref<1x128xf32, #tpu.memory_space<vmem>>, %arg4: memref<8x128xbf16, #tpu.memory_space<vmem>>) attributes {dimension_semantics = [#tpu.dimension_semantics<parallel>], iteration_bounds = array<i64: 1>, scalar_prefetch = 0 : i64, scratch_operands = 0 : i64, tpu.core_type = #tpu.core_type<tc>, window_params = [{transform_indices = @transform_0, window_bounds = array<i64: 8, 64>}, {pipeline_mode = #tpu.pipeline_mode<synchronous>, transform_indices = @transform_1, window_bounds = array<i64: 64, 128>}, {pipeline_mode = #tpu.pipeline_mode<synchronous>, transform_indices = @transform_2, window_bounds = array<i64: 1, 128>}, {transform_indices = @transform_3, window_bounds = array<i64: 8, 128>}]} {
    %c0 = arith.constant 0 : index
    %c0_0 = arith.constant 0 : index
    %0 = vector.load %arg1[%c0, %c0_0] : memref<8x64xbf16, #tpu.memory_space<vmem>>, vector<8x64xbf16>
    %c0_1 = arith.constant 0 : index
    %c0_2 = arith.constant 0 : index
    %1 = vector.load %arg2[%c0_1, %c0_2] : memref<64x128xbf16, #tpu.memory_space<vmem>>, vector<64x128xbf16>
    %cst = arith.constant dense<0.000000e+00> : vector<8x128xf32>
    %2 = tpu.matmul %0, %1, %cst {dimension_numbers = #tpu.dot_dimension_numbers<[1], [0], [0], [1], [0, 0, 1, 1], [], []>} : vector<8x64xbf16>, vector<64x128xbf16>, vector<8x128xf32> -> vector<8x128xf32>
    %c0_3 = arith.constant 0 : index
    %c0_4 = arith.constant 0 : index
    %3 = vector.load %arg3[%c0_3, %c0_4] : memref<1x128xf32, #tpu.memory_space<vmem>>, vector<1x128xf32>
    %4 = vector.broadcast %3 : vector<1x128xf32> to vector<8x128xf32>
    %5 = arith.addf %2, %4 : vector<8x128xf32>
    %6 = arith.truncf %5 : vector<8x128xf32> to vector<8x128xbf16>
    %c0_5 = arith.constant 0 : index
    %c0_6 = arith.constant 0 : index
    %7 = vector.load %arg4[%c0_5, %c0_6] : memref<8x128xbf16, #tpu.memory_space<vmem>>, vector<8x128xbf16>
    tpu.vector_store %arg4[%c0_5, %c0_6], %6 {strides = array<i32>} : memref<8x128xbf16, #tpu.memory_space<vmem>>, vector<8x128xbf16>,
    return
  }
  func.func @transform_0(%arg0: i32) -> (i32, i32) {
    %c0_i32 = arith.constant 0 : i32
    %c0_i32_0 = arith.constant 0 : i32
    return %arg0, %c0_i32 : i32, i32
  }
  func.func @transform_1(%arg0: i32) -> (i32, i32) {
    %c0_i32 = arith.constant 0 : i32
    %c0_i32_0 = arith.constant 0 : i32
    %c0_i32_1 = arith.constant 0 : i32
    return %c0_i32, %c0_i32_0 : i32, i32
  }
  func.func @transform_2(%arg0: i32) -> (i32, i32) {
    %c0_i32 = arith.constant 0 : i32
    %c0_i32_0 = arith.constant 0 : i32
    %c0_i32_1 = arith.constant 0 : i32
    return %c0_i32, %c0_i32_0 : i32, i32
  }
  func.func @transform_3(%arg0: i32) -> (i32, i32) {
    %c0_i32 = arith.constant 0 : i32
    %c0_i32_0 = arith.constant 0 : i32
    return %arg0, %c0_i32 : i32, i32
  }
}

module attributes {stable_mosaic.version = 11 : i64} {
  func.func @_bilstm_kernel(%arg0: i32, %arg1: memref<4x2x128xbf16, #tpu.memory_space<vmem>>, %arg2: memref<4x2x128xbf16, #tpu.memory_space<vmem>>, %arg3: memref<32x128xbf16, #tpu.memory_space<vmem>>, %arg4: memref<32x128xbf16, #tpu.memory_space<vmem>>, %arg5: memref<4x2x32xbf16, #tpu.memory_space<vmem>>, %arg6: memref<4x2x32xbf16, #tpu.memory_space<vmem>>, %arg7: memref<2x2x32xf32, #tpu.memory_space<vmem>>, %arg8: memref<2x32xf32, #tpu.memory_space<vmem>>, %arg9: memref<2x32xf32, #tpu.memory_space<vmem>>, %arg10: memref<2x32xf32, #tpu.memory_space<vmem>>, %arg11: memref<2x32xf32, #tpu.memory_space<vmem>>) attributes {dimension_semantics = [#tpu.dimension_semantics<arbitrary>], iteration_bounds = array<i64: 1>, scalar_prefetch = 0 : i64, scratch_operands = 4 : i64, tpu.core_type = #tpu.core_type<tc>, window_params = [{transform_indices = @transform_0, window_bounds = array<i64: 4, 2, 128>}, {transform_indices = @transform_1, window_bounds = array<i64: 4, 2, 128>}, {pipeline_mode = #tpu.pipeline_mode<synchronous>, transform_indices = @transform_2, window_bounds = array<i64: 32, 128>}, {pipeline_mode = #tpu.pipeline_mode<synchronous>, transform_indices = @transform_3, window_bounds = array<i64: 32, 128>}, {transform_indices = @transform_4, window_bounds = array<i64: 4, 2, 32>}, {transform_indices = @transform_5, window_bounds = array<i64: 4, 2, 32>}, {pipeline_mode = #tpu.pipeline_mode<synchronous>, transform_indices = @transform_6, window_bounds = array<i64: 2, 2, 32>}]} {
    %c0_i32 = arith.constant 0 : i32
    %0 = arith.cmpi eq, %arg0, %c0_i32 : i32
    %1 = arith.extui %0 : i1 to i32
    %c0_i32_0 = arith.constant 0 : i32
    %2 = arith.cmpi ne, %1, %c0_i32_0 : i32
    scf.if %2 {
      %cst_157 = arith.constant 0.000000e+00 : f32
      %351 = vector.broadcast %cst_157 : f32 to vector<2x32xf32>
      %c0_158 = arith.constant 0 : index
      %c0_159 = arith.constant 0 : index
      %352 = vector.load %arg8[%c0_158, %c0_159] : memref<2x32xf32, #tpu.memory_space<vmem>>, vector<2x32xf32>
      tpu.vector_store %arg8[%c0_158, %c0_159], %351 {strides = array<i32>} : memref<2x32xf32, #tpu.memory_space<vmem>>, vector<2x32xf32>,
      %cst_160 = arith.constant 0.000000e+00 : f32
      %353 = vector.broadcast %cst_160 : f32 to vector<2x32xf32>
      %c0_161 = arith.constant 0 : index
      %c0_162 = arith.constant 0 : index
      %354 = vector.load %arg9[%c0_161, %c0_162] : memref<2x32xf32, #tpu.memory_space<vmem>>, vector<2x32xf32>
      tpu.vector_store %arg9[%c0_161, %c0_162], %353 {strides = array<i32>} : memref<2x32xf32, #tpu.memory_space<vmem>>, vector<2x32xf32>,
      %cst_163 = arith.constant 0.000000e+00 : f32
      %355 = vector.broadcast %cst_163 : f32 to vector<2x32xf32>
      %c0_164 = arith.constant 0 : index
      %c0_165 = arith.constant 0 : index
      %356 = vector.load %arg10[%c0_164, %c0_165] : memref<2x32xf32, #tpu.memory_space<vmem>>, vector<2x32xf32>
      tpu.vector_store %arg10[%c0_164, %c0_165], %355 {strides = array<i32>} : memref<2x32xf32, #tpu.memory_space<vmem>>, vector<2x32xf32>,
      %cst_166 = arith.constant 0.000000e+00 : f32
      %357 = vector.broadcast %cst_166 : f32 to vector<2x32xf32>
      %c0_167 = arith.constant 0 : index
      %c0_168 = arith.constant 0 : index
      %358 = vector.load %arg11[%c0_167, %c0_168] : memref<2x32xf32, #tpu.memory_space<vmem>>, vector<2x32xf32>
      tpu.vector_store %arg11[%c0_167, %c0_168], %357 {strides = array<i32>} : memref<2x32xf32, #tpu.memory_space<vmem>>, vector<2x32xf32>,
    } else {
    }
    %c0_i32_1 = arith.constant 0 : i32
    %c3_i32 = arith.constant 3 : i32
    %3 = arith.subi %c3_i32, %c0_i32_1 : i32
    %4 = arith.index_cast %c0_i32_1 : i32 to index
    %c0 = arith.constant 0 : index
    %c0_2 = arith.constant 0 : index
    %5 = vector.load %arg1[%4, %c0, %c0_2] : memref<4x2x128xbf16, #tpu.memory_space<vmem>>, vector<1x2x128xbf16>
    %6 = vector.shape_cast %5 : vector<1x2x128xbf16> to vector<2x128xbf16>
    %7 = arith.extf %6 : vector<2x128xbf16> to vector<2x128xf32>
    %c0_3 = arith.constant 0 : index
    %c0_4 = arith.constant 0 : index
    %8 = vector.load %arg8[%c0_3, %c0_4] : memref<2x32xf32, #tpu.memory_space<vmem>>, vector<2x32xf32>
    %9 = arith.truncf %8 : vector<2x32xf32> to vector<2x32xbf16>
    %c0_5 = arith.constant 0 : index
    %c0_6 = arith.constant 0 : index
    %10 = vector.load %arg3[%c0_5, %c0_6] : memref<32x128xbf16, #tpu.memory_space<vmem>>, vector<32x128xbf16>
    %cst = arith.constant dense<0.000000e+00> : vector<2x128xf32>
    %11 = tpu.matmul %9, %10, %cst {dimension_numbers = #tpu.dot_dimension_numbers<[1], [0], [0], [1], [0, 0, 1, 1], [], []>} : vector<2x32xbf16>, vector<32x128xbf16>, vector<2x128xf32> -> vector<2x128xf32>
    %12 = arith.addf %7, %11 : vector<2x128xf32>
    %13 = arith.index_cast %3 : i32 to index
    %c0_7 = arith.constant 0 : index
    %c0_8 = arith.constant 0 : index
    %14 = vector.load %arg2[%13, %c0_7, %c0_8] : memref<4x2x128xbf16, #tpu.memory_space<vmem>>, vector<1x2x128xbf16>
    %15 = vector.shape_cast %14 : vector<1x2x128xbf16> to vector<2x128xbf16>
    %16 = arith.extf %15 : vector<2x128xbf16> to vector<2x128xf32>
    %c0_9 = arith.constant 0 : index
    %c0_10 = arith.constant 0 : index
    %17 = vector.load %arg10[%c0_9, %c0_10] : memref<2x32xf32, #tpu.memory_space<vmem>>, vector<2x32xf32>
    %18 = arith.truncf %17 : vector<2x32xf32> to vector<2x32xbf16>
    %c0_11 = arith.constant 0 : index
    %c0_12 = arith.constant 0 : index
    %19 = vector.load %arg4[%c0_11, %c0_12] : memref<32x128xbf16, #tpu.memory_space<vmem>>, vector<32x128xbf16>
    %cst_13 = arith.constant dense<0.000000e+00> : vector<2x128xf32>
    %20 = tpu.matmul %18, %19, %cst_13 {dimension_numbers = #tpu.dot_dimension_numbers<[1], [0], [0], [1], [0, 0, 1, 1], [], []>} : vector<2x32xbf16>, vector<32x128xbf16>, vector<2x128xf32> -> vector<2x128xf32>
    %21 = arith.addf %16, %20 : vector<2x128xf32>
    %c0_14 = arith.constant 0 : index
    %c0_15 = arith.constant 0 : index
    %22 = vector.load %arg9[%c0_14, %c0_15] : memref<2x32xf32, #tpu.memory_space<vmem>>, vector<2x32xf32>
    %23 = vector.extract_strided_slice %12 {offsets = [0, 0], sizes = [2, 32], strides = [1, 1]} : vector<2x128xf32> to vector<2x32xf32>
    %24 = arith.negf %23 : vector<2x32xf32>
    %25 = math.exp %24 : vector<2x32xf32>
    %cst_16 = arith.constant 1.000000e+00 : f32
    %26 = vector.broadcast %cst_16 : f32 to vector<2x32xf32>
    %27 = arith.addf %26, %25 : vector<2x32xf32>
    %28 = arith.divf %26, %27 : vector<2x32xf32>
    %29 = vector.extract_strided_slice %12 {offsets = [0, 32], sizes = [2, 32], strides = [1, 1]} : vector<2x128xf32> to vector<2x32xf32>
    %30 = arith.negf %29 : vector<2x32xf32>
    %31 = math.exp %30 : vector<2x32xf32>
    %cst_17 = arith.constant 1.000000e+00 : f32
    %32 = vector.broadcast %cst_17 : f32 to vector<2x32xf32>
    %33 = arith.addf %32, %31 : vector<2x32xf32>
    %34 = arith.divf %32, %33 : vector<2x32xf32>
    %35 = vector.extract_strided_slice %12 {offsets = [0, 64], sizes = [2, 32], strides = [1, 1]} : vector<2x128xf32> to vector<2x32xf32>
    %36 = math.tanh %35 : vector<2x32xf32>
    %37 = vector.extract_strided_slice %12 {offsets = [0, 96], sizes = [2, 32], strides = [1, 1]} : vector<2x128xf32> to vector<2x32xf32>
    %38 = arith.negf %37 : vector<2x32xf32>
    %39 = math.exp %38 : vector<2x32xf32>
    %cst_18 = arith.constant 1.000000e+00 : f32
    %40 = vector.broadcast %cst_18 : f32 to vector<2x32xf32>
    %41 = arith.addf %40, %39 : vector<2x32xf32>
    %42 = arith.divf %40, %41 : vector<2x32xf32>
    %43 = arith.mulf %34, %22 : vector<2x32xf32>
    %44 = arith.mulf %28, %36 : vector<2x32xf32>
    %45 = arith.addf %43, %44 : vector<2x32xf32>
    %46 = math.tanh %45 : vector<2x32xf32>
    %47 = arith.mulf %42, %46 : vector<2x32xf32>
    %c0_19 = arith.constant 0 : index
    %c0_20 = arith.constant 0 : index
    %48 = vector.load %arg11[%c0_19, %c0_20] : memref<2x32xf32, #tpu.memory_space<vmem>>, vector<2x32xf32>
    %49 = vector.extract_strided_slice %21 {offsets = [0, 0], sizes = [2, 32], strides = [1, 1]} : vector<2x128xf32> to vector<2x32xf32>
    %50 = arith.negf %49 : vector<2x32xf32>
    %51 = math.exp %50 : vector<2x32xf32>
    %cst_21 = arith.constant 1.000000e+00 : f32
    %52 = vector.broadcast %cst_21 : f32 to vector<2x32xf32>
    %53 = arith.addf %52, %51 : vector<2x32xf32>
    %54 = arith.divf %52, %53 : vector<2x32xf32>
    %55 = vector.extract_strided_slice %21 {offsets = [0, 32], sizes = [2, 32], strides = [1, 1]} : vector<2x128xf32> to vector<2x32xf32>
    %56 = arith.negf %55 : vector<2x32xf32>
    %57 = math.exp %56 : vector<2x32xf32>
    %cst_22 = arith.constant 1.000000e+00 : f32
    %58 = vector.broadcast %cst_22 : f32 to vector<2x32xf32>
    %59 = arith.addf %58, %57 : vector<2x32xf32>
    %60 = arith.divf %58, %59 : vector<2x32xf32>
    %61 = vector.extract_strided_slice %21 {offsets = [0, 64], sizes = [2, 32], strides = [1, 1]} : vector<2x128xf32> to vector<2x32xf32>
    %62 = math.tanh %61 : vector<2x32xf32>
    %63 = vector.extract_strided_slice %21 {offsets = [0, 96], sizes = [2, 32], strides = [1, 1]} : vector<2x128xf32> to vector<2x32xf32>
    %64 = arith.negf %63 : vector<2x32xf32>
    %65 = math.exp %64 : vector<2x32xf32>
    %cst_23 = arith.constant 1.000000e+00 : f32
    %66 = vector.broadcast %cst_23 : f32 to vector<2x32xf32>
    %67 = arith.addf %66, %65 : vector<2x32xf32>
    %68 = arith.divf %66, %67 : vector<2x32xf32>
    %69 = arith.mulf %60, %48 : vector<2x32xf32>
    %70 = arith.mulf %54, %62 : vector<2x32xf32>
    %71 = arith.addf %69, %70 : vector<2x32xf32>
    %72 = math.tanh %71 : vector<2x32xf32>
    %73 = arith.mulf %68, %72 : vector<2x32xf32>
    %c0_24 = arith.constant 0 : index
    %c0_25 = arith.constant 0 : index
    %74 = vector.load %arg8[%c0_24, %c0_25] : memref<2x32xf32, #tpu.memory_space<vmem>>, vector<2x32xf32>
    tpu.vector_store %arg8[%c0_24, %c0_25], %47 {strides = array<i32>} : memref<2x32xf32, #tpu.memory_space<vmem>>, vector<2x32xf32>,
    %c0_26 = arith.constant 0 : index
    %c0_27 = arith.constant 0 : index
    %75 = vector.load %arg9[%c0_26, %c0_27] : memref<2x32xf32, #tpu.memory_space<vmem>>, vector<2x32xf32>
    tpu.vector_store %arg9[%c0_26, %c0_27], %45 {strides = array<i32>} : memref<2x32xf32, #tpu.memory_space<vmem>>, vector<2x32xf32>,
    %c0_28 = arith.constant 0 : index
    %c0_29 = arith.constant 0 : index
    %76 = vector.load %arg10[%c0_28, %c0_29] : memref<2x32xf32, #tpu.memory_space<vmem>>, vector<2x32xf32>
    tpu.vector_store %arg10[%c0_28, %c0_29], %73 {strides = array<i32>} : memref<2x32xf32, #tpu.memory_space<vmem>>, vector<2x32xf32>,
    %c0_30 = arith.constant 0 : index
    %c0_31 = arith.constant 0 : index
    %77 = vector.load %arg11[%c0_30, %c0_31] : memref<2x32xf32, #tpu.memory_space<vmem>>, vector<2x32xf32>
    tpu.vector_store %arg11[%c0_30, %c0_31], %71 {strides = array<i32>} : memref<2x32xf32, #tpu.memory_space<vmem>>, vector<2x32xf32>,
    %78 = arith.truncf %47 : vector<2x32xf32> to vector<2x32xbf16>
    %79 = arith.index_cast %c0_i32_1 : i32 to index
    %c0_32 = arith.constant 0 : index
    %c0_33 = arith.constant 0 : index
    %80 = vector.load %arg5[%79, %c0_32, %c0_33] : memref<4x2x32xbf16, #tpu.memory_space<vmem>>, vector<1x2x32xbf16>
    %81 = vector.shape_cast %80 : vector<1x2x32xbf16> to vector<2x32xbf16>
    %82 = vector.shape_cast %78 : vector<2x32xbf16> to vector<1x2x32xbf16>
    tpu.vector_store %arg5[%79, %c0_32, %c0_33], %82 {strides = array<i32>} : memref<4x2x32xbf16, #tpu.memory_space<vmem>>, vector<1x2x32xbf16>,
    %83 = arith.truncf %73 : vector<2x32xf32> to vector<2x32xbf16>
    %84 = arith.index_cast %3 : i32 to index
    %c0_34 = arith.constant 0 : index
    %c0_35 = arith.constant 0 : index
    %85 = vector.load %arg6[%84, %c0_34, %c0_35] : memref<4x2x32xbf16, #tpu.memory_space<vmem>>, vector<1x2x32xbf16>
    %86 = vector.shape_cast %85 : vector<1x2x32xbf16> to vector<2x32xbf16>
    %87 = vector.shape_cast %83 : vector<2x32xbf16> to vector<1x2x32xbf16>
    tpu.vector_store %arg6[%84, %c0_34, %c0_35], %87 {strides = array<i32>} : memref<4x2x32xbf16, #tpu.memory_space<vmem>>, vector<1x2x32xbf16>,
    %c1_i32 = arith.constant 1 : i32
    %c3_i32_36 = arith.constant 3 : i32
    %88 = arith.subi %c3_i32_36, %c1_i32 : i32
    %89 = arith.index_cast %c1_i32 : i32 to index
    %c0_37 = arith.constant 0 : index
    %c0_38 = arith.constant 0 : index
    %90 = vector.load %arg1[%89, %c0_37, %c0_38] : memref<4x2x128xbf16, #tpu.memory_space<vmem>>, vector<1x2x128xbf16>
    %91 = vector.shape_cast %90 : vector<1x2x128xbf16> to vector<2x128xbf16>
    %92 = arith.extf %91 : vector<2x128xbf16> to vector<2x128xf32>
    %c0_39 = arith.constant 0 : index
    %c0_40 = arith.constant 0 : index
    %93 = vector.load %arg8[%c0_39, %c0_40] : memref<2x32xf32, #tpu.memory_space<vmem>>, vector<2x32xf32>
    %94 = arith.truncf %93 : vector<2x32xf32> to vector<2x32xbf16>
    %c0_41 = arith.constant 0 : index
    %c0_42 = arith.constant 0 : index
    %95 = vector.load %arg3[%c0_41, %c0_42] : memref<32x128xbf16, #tpu.memory_space<vmem>>, vector<32x128xbf16>
    %cst_43 = arith.constant dense<0.000000e+00> : vector<2x128xf32>
    %96 = tpu.matmul %94, %95, %cst_43 {dimension_numbers = #tpu.dot_dimension_numbers<[1], [0], [0], [1], [0, 0, 1, 1], [], []>} : vector<2x32xbf16>, vector<32x128xbf16>, vector<2x128xf32> -> vector<2x128xf32>
    %97 = arith.addf %92, %96 : vector<2x128xf32>
    %98 = arith.index_cast %88 : i32 to index
    %c0_44 = arith.constant 0 : index
    %c0_45 = arith.constant 0 : index
    %99 = vector.load %arg2[%98, %c0_44, %c0_45] : memref<4x2x128xbf16, #tpu.memory_space<vmem>>, vector<1x2x128xbf16>
    %100 = vector.shape_cast %99 : vector<1x2x128xbf16> to vector<2x128xbf16>
    %101 = arith.extf %100 : vector<2x128xbf16> to vector<2x128xf32>
    %c0_46 = arith.constant 0 : index
    %c0_47 = arith.constant 0 : index
    %102 = vector.load %arg10[%c0_46, %c0_47] : memref<2x32xf32, #tpu.memory_space<vmem>>, vector<2x32xf32>
    %103 = arith.truncf %102 : vector<2x32xf32> to vector<2x32xbf16>
    %c0_48 = arith.constant 0 : index
    %c0_49 = arith.constant 0 : index
    %104 = vector.load %arg4[%c0_48, %c0_49] : memref<32x128xbf16, #tpu.memory_space<vmem>>, vector<32x128xbf16>
    %cst_50 = arith.constant dense<0.000000e+00> : vector<2x128xf32>
    %105 = tpu.matmul %103, %104, %cst_50 {dimension_numbers = #tpu.dot_dimension_numbers<[1], [0], [0], [1], [0, 0, 1, 1], [], []>} : vector<2x32xbf16>, vector<32x128xbf16>, vector<2x128xf32> -> vector<2x128xf32>
    %106 = arith.addf %101, %105 : vector<2x128xf32>
    %c0_51 = arith.constant 0 : index
    %c0_52 = arith.constant 0 : index
    %107 = vector.load %arg9[%c0_51, %c0_52] : memref<2x32xf32, #tpu.memory_space<vmem>>, vector<2x32xf32>
    %108 = vector.extract_strided_slice %97 {offsets = [0, 0], sizes = [2, 32], strides = [1, 1]} : vector<2x128xf32> to vector<2x32xf32>
    %109 = arith.negf %108 : vector<2x32xf32>
    %110 = math.exp %109 : vector<2x32xf32>
    %cst_53 = arith.constant 1.000000e+00 : f32
    %111 = vector.broadcast %cst_53 : f32 to vector<2x32xf32>
    %112 = arith.addf %111, %110 : vector<2x32xf32>
    %113 = arith.divf %111, %112 : vector<2x32xf32>
    %114 = vector.extract_strided_slice %97 {offsets = [0, 32], sizes = [2, 32], strides = [1, 1]} : vector<2x128xf32> to vector<2x32xf32>
    %115 = arith.negf %114 : vector<2x32xf32>
    %116 = math.exp %115 : vector<2x32xf32>
    %cst_54 = arith.constant 1.000000e+00 : f32
    %117 = vector.broadcast %cst_54 : f32 to vector<2x32xf32>
    %118 = arith.addf %117, %116 : vector<2x32xf32>
    %119 = arith.divf %117, %118 : vector<2x32xf32>
    %120 = vector.extract_strided_slice %97 {offsets = [0, 64], sizes = [2, 32], strides = [1, 1]} : vector<2x128xf32> to vector<2x32xf32>
    %121 = math.tanh %120 : vector<2x32xf32>
    %122 = vector.extract_strided_slice %97 {offsets = [0, 96], sizes = [2, 32], strides = [1, 1]} : vector<2x128xf32> to vector<2x32xf32>
    %123 = arith.negf %122 : vector<2x32xf32>
    %124 = math.exp %123 : vector<2x32xf32>
    %cst_55 = arith.constant 1.000000e+00 : f32
    %125 = vector.broadcast %cst_55 : f32 to vector<2x32xf32>
    %126 = arith.addf %125, %124 : vector<2x32xf32>
    %127 = arith.divf %125, %126 : vector<2x32xf32>
    %128 = arith.mulf %119, %107 : vector<2x32xf32>
    %129 = arith.mulf %113, %121 : vector<2x32xf32>
    %130 = arith.addf %128, %129 : vector<2x32xf32>
    %131 = math.tanh %130 : vector<2x32xf32>
    %132 = arith.mulf %127, %131 : vector<2x32xf32>
    %c0_56 = arith.constant 0 : index
    %c0_57 = arith.constant 0 : index
    %133 = vector.load %arg11[%c0_56, %c0_57] : memref<2x32xf32, #tpu.memory_space<vmem>>, vector<2x32xf32>
    %134 = vector.extract_strided_slice %106 {offsets = [0, 0], sizes = [2, 32], strides = [1, 1]} : vector<2x128xf32> to vector<2x32xf32>
    %135 = arith.negf %134 : vector<2x32xf32>
    %136 = math.exp %135 : vector<2x32xf32>
    %cst_58 = arith.constant 1.000000e+00 : f32
    %137 = vector.broadcast %cst_58 : f32 to vector<2x32xf32>
    %138 = arith.addf %137, %136 : vector<2x32xf32>
    %139 = arith.divf %137, %138 : vector<2x32xf32>
    %140 = vector.extract_strided_slice %106 {offsets = [0, 32], sizes = [2, 32], strides = [1, 1]} : vector<2x128xf32> to vector<2x32xf32>
    %141 = arith.negf %140 : vector<2x32xf32>
    %142 = math.exp %141 : vector<2x32xf32>
    %cst_59 = arith.constant 1.000000e+00 : f32
    %143 = vector.broadcast %cst_59 : f32 to vector<2x32xf32>
    %144 = arith.addf %143, %142 : vector<2x32xf32>
    %145 = arith.divf %143, %144 : vector<2x32xf32>
    %146 = vector.extract_strided_slice %106 {offsets = [0, 64], sizes = [2, 32], strides = [1, 1]} : vector<2x128xf32> to vector<2x32xf32>
    %147 = math.tanh %146 : vector<2x32xf32>
    %148 = vector.extract_strided_slice %106 {offsets = [0, 96], sizes = [2, 32], strides = [1, 1]} : vector<2x128xf32> to vector<2x32xf32>
    %149 = arith.negf %148 : vector<2x32xf32>
    %150 = math.exp %149 : vector<2x32xf32>
    %cst_60 = arith.constant 1.000000e+00 : f32
    %151 = vector.broadcast %cst_60 : f32 to vector<2x32xf32>
    %152 = arith.addf %151, %150 : vector<2x32xf32>
    %153 = arith.divf %151, %152 : vector<2x32xf32>
    %154 = arith.mulf %145, %133 : vector<2x32xf32>
    %155 = arith.mulf %139, %147 : vector<2x32xf32>
    %156 = arith.addf %154, %155 : vector<2x32xf32>
    %157 = math.tanh %156 : vector<2x32xf32>
    %158 = arith.mulf %153, %157 : vector<2x32xf32>
    %c0_61 = arith.constant 0 : index
    %c0_62 = arith.constant 0 : index
    %159 = vector.load %arg8[%c0_61, %c0_62] : memref<2x32xf32, #tpu.memory_space<vmem>>, vector<2x32xf32>
    tpu.vector_store %arg8[%c0_61, %c0_62], %132 {strides = array<i32>} : memref<2x32xf32, #tpu.memory_space<vmem>>, vector<2x32xf32>,
    %c0_63 = arith.constant 0 : index
    %c0_64 = arith.constant 0 : index
    %160 = vector.load %arg9[%c0_63, %c0_64] : memref<2x32xf32, #tpu.memory_space<vmem>>, vector<2x32xf32>
    tpu.vector_store %arg9[%c0_63, %c0_64], %130 {strides = array<i32>} : memref<2x32xf32, #tpu.memory_space<vmem>>, vector<2x32xf32>,
    %c0_65 = arith.constant 0 : index
    %c0_66 = arith.constant 0 : index
    %161 = vector.load %arg10[%c0_65, %c0_66] : memref<2x32xf32, #tpu.memory_space<vmem>>, vector<2x32xf32>
    tpu.vector_store %arg10[%c0_65, %c0_66], %158 {strides = array<i32>} : memref<2x32xf32, #tpu.memory_space<vmem>>, vector<2x32xf32>,
    %c0_67 = arith.constant 0 : index
    %c0_68 = arith.constant 0 : index
    %162 = vector.load %arg11[%c0_67, %c0_68] : memref<2x32xf32, #tpu.memory_space<vmem>>, vector<2x32xf32>
    tpu.vector_store %arg11[%c0_67, %c0_68], %156 {strides = array<i32>} : memref<2x32xf32, #tpu.memory_space<vmem>>, vector<2x32xf32>,
    %163 = arith.truncf %132 : vector<2x32xf32> to vector<2x32xbf16>
    %164 = arith.index_cast %c1_i32 : i32 to index
    %c0_69 = arith.constant 0 : index
    %c0_70 = arith.constant 0 : index
    %165 = vector.load %arg5[%164, %c0_69, %c0_70] : memref<4x2x32xbf16, #tpu.memory_space<vmem>>, vector<1x2x32xbf16>
    %166 = vector.shape_cast %165 : vector<1x2x32xbf16> to vector<2x32xbf16>
    %167 = vector.shape_cast %163 : vector<2x32xbf16> to vector<1x2x32xbf16>
    tpu.vector_store %arg5[%164, %c0_69, %c0_70], %167 {strides = array<i32>} : memref<4x2x32xbf16, #tpu.memory_space<vmem>>, vector<1x2x32xbf16>,
    %168 = arith.truncf %158 : vector<2x32xf32> to vector<2x32xbf16>
    %169 = arith.index_cast %88 : i32 to index
    %c0_71 = arith.constant 0 : index
    %c0_72 = arith.constant 0 : index
    %170 = vector.load %arg6[%169, %c0_71, %c0_72] : memref<4x2x32xbf16, #tpu.memory_space<vmem>>, vector<1x2x32xbf16>
    %171 = vector.shape_cast %170 : vector<1x2x32xbf16> to vector<2x32xbf16>
    %172 = vector.shape_cast %168 : vector<2x32xbf16> to vector<1x2x32xbf16>
    tpu.vector_store %arg6[%169, %c0_71, %c0_72], %172 {strides = array<i32>} : memref<4x2x32xbf16, #tpu.memory_space<vmem>>, vector<1x2x32xbf16>,
    %c2_i32 = arith.constant 2 : i32
    %c3_i32_73 = arith.constant 3 : i32
    %173 = arith.subi %c3_i32_73, %c2_i32 : i32
    %174 = arith.index_cast %c2_i32 : i32 to index
    %c0_74 = arith.constant 0 : index
    %c0_75 = arith.constant 0 : index
    %175 = vector.load %arg1[%174, %c0_74, %c0_75] : memref<4x2x128xbf16, #tpu.memory_space<vmem>>, vector<1x2x128xbf16>
    %176 = vector.shape_cast %175 : vector<1x2x128xbf16> to vector<2x128xbf16>
    %177 = arith.extf %176 : vector<2x128xbf16> to vector<2x128xf32>
    %c0_76 = arith.constant 0 : index
    %c0_77 = arith.constant 0 : index
    %178 = vector.load %arg8[%c0_76, %c0_77] : memref<2x32xf32, #tpu.memory_space<vmem>>, vector<2x32xf32>
    %179 = arith.truncf %178 : vector<2x32xf32> to vector<2x32xbf16>
    %c0_78 = arith.constant 0 : index
    %c0_79 = arith.constant 0 : index
    %180 = vector.load %arg3[%c0_78, %c0_79] : memref<32x128xbf16, #tpu.memory_space<vmem>>, vector<32x128xbf16>
    %cst_80 = arith.constant dense<0.000000e+00> : vector<2x128xf32>
    %181 = tpu.matmul %179, %180, %cst_80 {dimension_numbers = #tpu.dot_dimension_numbers<[1], [0], [0], [1], [0, 0, 1, 1], [], []>} : vector<2x32xbf16>, vector<32x128xbf16>, vector<2x128xf32> -> vector<2x128xf32>
    %182 = arith.addf %177, %181 : vector<2x128xf32>
    %183 = arith.index_cast %173 : i32 to index
    %c0_81 = arith.constant 0 : index
    %c0_82 = arith.constant 0 : index
    %184 = vector.load %arg2[%183, %c0_81, %c0_82] : memref<4x2x128xbf16, #tpu.memory_space<vmem>>, vector<1x2x128xbf16>
    %185 = vector.shape_cast %184 : vector<1x2x128xbf16> to vector<2x128xbf16>
    %186 = arith.extf %185 : vector<2x128xbf16> to vector<2x128xf32>
    %c0_83 = arith.constant 0 : index
    %c0_84 = arith.constant 0 : index
    %187 = vector.load %arg10[%c0_83, %c0_84] : memref<2x32xf32, #tpu.memory_space<vmem>>, vector<2x32xf32>
    %188 = arith.truncf %187 : vector<2x32xf32> to vector<2x32xbf16>
    %c0_85 = arith.constant 0 : index
    %c0_86 = arith.constant 0 : index
    %189 = vector.load %arg4[%c0_85, %c0_86] : memref<32x128xbf16, #tpu.memory_space<vmem>>, vector<32x128xbf16>
    %cst_87 = arith.constant dense<0.000000e+00> : vector<2x128xf32>
    %190 = tpu.matmul %188, %189, %cst_87 {dimension_numbers = #tpu.dot_dimension_numbers<[1], [0], [0], [1], [0, 0, 1, 1], [], []>} : vector<2x32xbf16>, vector<32x128xbf16>, vector<2x128xf32> -> vector<2x128xf32>
    %191 = arith.addf %186, %190 : vector<2x128xf32>
    %c0_88 = arith.constant 0 : index
    %c0_89 = arith.constant 0 : index
    %192 = vector.load %arg9[%c0_88, %c0_89] : memref<2x32xf32, #tpu.memory_space<vmem>>, vector<2x32xf32>
    %193 = vector.extract_strided_slice %182 {offsets = [0, 0], sizes = [2, 32], strides = [1, 1]} : vector<2x128xf32> to vector<2x32xf32>
    %194 = arith.negf %193 : vector<2x32xf32>
    %195 = math.exp %194 : vector<2x32xf32>
    %cst_90 = arith.constant 1.000000e+00 : f32
    %196 = vector.broadcast %cst_90 : f32 to vector<2x32xf32>
    %197 = arith.addf %196, %195 : vector<2x32xf32>
    %198 = arith.divf %196, %197 : vector<2x32xf32>
    %199 = vector.extract_strided_slice %182 {offsets = [0, 32], sizes = [2, 32], strides = [1, 1]} : vector<2x128xf32> to vector<2x32xf32>
    %200 = arith.negf %199 : vector<2x32xf32>
    %201 = math.exp %200 : vector<2x32xf32>
    %cst_91 = arith.constant 1.000000e+00 : f32
    %202 = vector.broadcast %cst_91 : f32 to vector<2x32xf32>
    %203 = arith.addf %202, %201 : vector<2x32xf32>
    %204 = arith.divf %202, %203 : vector<2x32xf32>
    %205 = vector.extract_strided_slice %182 {offsets = [0, 64], sizes = [2, 32], strides = [1, 1]} : vector<2x128xf32> to vector<2x32xf32>
    %206 = math.tanh %205 : vector<2x32xf32>
    %207 = vector.extract_strided_slice %182 {offsets = [0, 96], sizes = [2, 32], strides = [1, 1]} : vector<2x128xf32> to vector<2x32xf32>
    %208 = arith.negf %207 : vector<2x32xf32>
    %209 = math.exp %208 : vector<2x32xf32>
    %cst_92 = arith.constant 1.000000e+00 : f32
    %210 = vector.broadcast %cst_92 : f32 to vector<2x32xf32>
    %211 = arith.addf %210, %209 : vector<2x32xf32>
    %212 = arith.divf %210, %211 : vector<2x32xf32>
    %213 = arith.mulf %204, %192 : vector<2x32xf32>
    %214 = arith.mulf %198, %206 : vector<2x32xf32>
    %215 = arith.addf %213, %214 : vector<2x32xf32>
    %216 = math.tanh %215 : vector<2x32xf32>
    %217 = arith.mulf %212, %216 : vector<2x32xf32>
    %c0_93 = arith.constant 0 : index
    %c0_94 = arith.constant 0 : index
    %218 = vector.load %arg11[%c0_93, %c0_94] : memref<2x32xf32, #tpu.memory_space<vmem>>, vector<2x32xf32>
    %219 = vector.extract_strided_slice %191 {offsets = [0, 0], sizes = [2, 32], strides = [1, 1]} : vector<2x128xf32> to vector<2x32xf32>
    %220 = arith.negf %219 : vector<2x32xf32>
    %221 = math.exp %220 : vector<2x32xf32>
    %cst_95 = arith.constant 1.000000e+00 : f32
    %222 = vector.broadcast %cst_95 : f32 to vector<2x32xf32>
    %223 = arith.addf %222, %221 : vector<2x32xf32>
    %224 = arith.divf %222, %223 : vector<2x32xf32>
    %225 = vector.extract_strided_slice %191 {offsets = [0, 32], sizes = [2, 32], strides = [1, 1]} : vector<2x128xf32> to vector<2x32xf32>
    %226 = arith.negf %225 : vector<2x32xf32>
    %227 = math.exp %226 : vector<2x32xf32>
    %cst_96 = arith.constant 1.000000e+00 : f32
    %228 = vector.broadcast %cst_96 : f32 to vector<2x32xf32>
    %229 = arith.addf %228, %227 : vector<2x32xf32>
    %230 = arith.divf %228, %229 : vector<2x32xf32>
    %231 = vector.extract_strided_slice %191 {offsets = [0, 64], sizes = [2, 32], strides = [1, 1]} : vector<2x128xf32> to vector<2x32xf32>
    %232 = math.tanh %231 : vector<2x32xf32>
    %233 = vector.extract_strided_slice %191 {offsets = [0, 96], sizes = [2, 32], strides = [1, 1]} : vector<2x128xf32> to vector<2x32xf32>
    %234 = arith.negf %233 : vector<2x32xf32>
    %235 = math.exp %234 : vector<2x32xf32>
    %cst_97 = arith.constant 1.000000e+00 : f32
    %236 = vector.broadcast %cst_97 : f32 to vector<2x32xf32>
    %237 = arith.addf %236, %235 : vector<2x32xf32>
    %238 = arith.divf %236, %237 : vector<2x32xf32>
    %239 = arith.mulf %230, %218 : vector<2x32xf32>
    %240 = arith.mulf %224, %232 : vector<2x32xf32>
    %241 = arith.addf %239, %240 : vector<2x32xf32>
    %242 = math.tanh %241 : vector<2x32xf32>
    %243 = arith.mulf %238, %242 : vector<2x32xf32>
    %c0_98 = arith.constant 0 : index
    %c0_99 = arith.constant 0 : index
    %244 = vector.load %arg8[%c0_98, %c0_99] : memref<2x32xf32, #tpu.memory_space<vmem>>, vector<2x32xf32>
    tpu.vector_store %arg8[%c0_98, %c0_99], %217 {strides = array<i32>} : memref<2x32xf32, #tpu.memory_space<vmem>>, vector<2x32xf32>,
    %c0_100 = arith.constant 0 : index
    %c0_101 = arith.constant 0 : index
    %245 = vector.load %arg9[%c0_100, %c0_101] : memref<2x32xf32, #tpu.memory_space<vmem>>, vector<2x32xf32>
    tpu.vector_store %arg9[%c0_100, %c0_101], %215 {strides = array<i32>} : memref<2x32xf32, #tpu.memory_space<vmem>>, vector<2x32xf32>,
    %c0_102 = arith.constant 0 : index
    %c0_103 = arith.constant 0 : index
    %246 = vector.load %arg10[%c0_102, %c0_103] : memref<2x32xf32, #tpu.memory_space<vmem>>, vector<2x32xf32>
    tpu.vector_store %arg10[%c0_102, %c0_103], %243 {strides = array<i32>} : memref<2x32xf32, #tpu.memory_space<vmem>>, vector<2x32xf32>,
    %c0_104 = arith.constant 0 : index
    %c0_105 = arith.constant 0 : index
    %247 = vector.load %arg11[%c0_104, %c0_105] : memref<2x32xf32, #tpu.memory_space<vmem>>, vector<2x32xf32>
    tpu.vector_store %arg11[%c0_104, %c0_105], %241 {strides = array<i32>} : memref<2x32xf32, #tpu.memory_space<vmem>>, vector<2x32xf32>,
    %248 = arith.truncf %217 : vector<2x32xf32> to vector<2x32xbf16>
    %249 = arith.index_cast %c2_i32 : i32 to index
    %c0_106 = arith.constant 0 : index
    %c0_107 = arith.constant 0 : index
    %250 = vector.load %arg5[%249, %c0_106, %c0_107] : memref<4x2x32xbf16, #tpu.memory_space<vmem>>, vector<1x2x32xbf16>
    %251 = vector.shape_cast %250 : vector<1x2x32xbf16> to vector<2x32xbf16>
    %252 = vector.shape_cast %248 : vector<2x32xbf16> to vector<1x2x32xbf16>
    tpu.vector_store %arg5[%249, %c0_106, %c0_107], %252 {strides = array<i32>} : memref<4x2x32xbf16, #tpu.memory_space<vmem>>, vector<1x2x32xbf16>,
    %253 = arith.truncf %243 : vector<2x32xf32> to vector<2x32xbf16>
    %254 = arith.index_cast %173 : i32 to index
    %c0_108 = arith.constant 0 : index
    %c0_109 = arith.constant 0 : index
    %255 = vector.load %arg6[%254, %c0_108, %c0_109] : memref<4x2x32xbf16, #tpu.memory_space<vmem>>, vector<1x2x32xbf16>
    %256 = vector.shape_cast %255 : vector<1x2x32xbf16> to vector<2x32xbf16>
    %257 = vector.shape_cast %253 : vector<2x32xbf16> to vector<1x2x32xbf16>
    tpu.vector_store %arg6[%254, %c0_108, %c0_109], %257 {strides = array<i32>} : memref<4x2x32xbf16, #tpu.memory_space<vmem>>, vector<1x2x32xbf16>,
    %c3_i32_110 = arith.constant 3 : i32
    %c3_i32_111 = arith.constant 3 : i32
    %258 = arith.subi %c3_i32_111, %c3_i32_110 : i32
    %259 = arith.index_cast %c3_i32_110 : i32 to index
    %c0_112 = arith.constant 0 : index
    %c0_113 = arith.constant 0 : index
    %260 = vector.load %arg1[%259, %c0_112, %c0_113] : memref<4x2x128xbf16, #tpu.memory_space<vmem>>, vector<1x2x128xbf16>
    %261 = vector.shape_cast %260 : vector<1x2x128xbf16> to vector<2x128xbf16>
    %262 = arith.extf %261 : vector<2x128xbf16> to vector<2x128xf32>
    %c0_114 = arith.constant 0 : index
    %c0_115 = arith.constant 0 : index
    %263 = vector.load %arg8[%c0_114, %c0_115] : memref<2x32xf32, #tpu.memory_space<vmem>>, vector<2x32xf32>
    %264 = arith.truncf %263 : vector<2x32xf32> to vector<2x32xbf16>
    %c0_116 = arith.constant 0 : index
    %c0_117 = arith.constant 0 : index
    %265 = vector.load %arg3[%c0_116, %c0_117] : memref<32x128xbf16, #tpu.memory_space<vmem>>, vector<32x128xbf16>
    %cst_118 = arith.constant dense<0.000000e+00> : vector<2x128xf32>
    %266 = tpu.matmul %264, %265, %cst_118 {dimension_numbers = #tpu.dot_dimension_numbers<[1], [0], [0], [1], [0, 0, 1, 1], [], []>} : vector<2x32xbf16>, vector<32x128xbf16>, vector<2x128xf32> -> vector<2x128xf32>
    %267 = arith.addf %262, %266 : vector<2x128xf32>
    %268 = arith.index_cast %258 : i32 to index
    %c0_119 = arith.constant 0 : index
    %c0_120 = arith.constant 0 : index
    %269 = vector.load %arg2[%268, %c0_119, %c0_120] : memref<4x2x128xbf16, #tpu.memory_space<vmem>>, vector<1x2x128xbf16>
    %270 = vector.shape_cast %269 : vector<1x2x128xbf16> to vector<2x128xbf16>
    %271 = arith.extf %270 : vector<2x128xbf16> to vector<2x128xf32>
    %c0_121 = arith.constant 0 : index
    %c0_122 = arith.constant 0 : index
    %272 = vector.load %arg10[%c0_121, %c0_122] : memref<2x32xf32, #tpu.memory_space<vmem>>, vector<2x32xf32>
    %273 = arith.truncf %272 : vector<2x32xf32> to vector<2x32xbf16>
    %c0_123 = arith.constant 0 : index
    %c0_124 = arith.constant 0 : index
    %274 = vector.load %arg4[%c0_123, %c0_124] : memref<32x128xbf16, #tpu.memory_space<vmem>>, vector<32x128xbf16>
    %cst_125 = arith.constant dense<0.000000e+00> : vector<2x128xf32>
    %275 = tpu.matmul %273, %274, %cst_125 {dimension_numbers = #tpu.dot_dimension_numbers<[1], [0], [0], [1], [0, 0, 1, 1], [], []>} : vector<2x32xbf16>, vector<32x128xbf16>, vector<2x128xf32> -> vector<2x128xf32>
    %276 = arith.addf %271, %275 : vector<2x128xf32>
    %c0_126 = arith.constant 0 : index
    %c0_127 = arith.constant 0 : index
    %277 = vector.load %arg9[%c0_126, %c0_127] : memref<2x32xf32, #tpu.memory_space<vmem>>, vector<2x32xf32>
    %278 = vector.extract_strided_slice %267 {offsets = [0, 0], sizes = [2, 32], strides = [1, 1]} : vector<2x128xf32> to vector<2x32xf32>
    %279 = arith.negf %278 : vector<2x32xf32>
    %280 = math.exp %279 : vector<2x32xf32>
    %cst_128 = arith.constant 1.000000e+00 : f32
    %281 = vector.broadcast %cst_128 : f32 to vector<2x32xf32>
    %282 = arith.addf %281, %280 : vector<2x32xf32>
    %283 = arith.divf %281, %282 : vector<2x32xf32>
    %284 = vector.extract_strided_slice %267 {offsets = [0, 32], sizes = [2, 32], strides = [1, 1]} : vector<2x128xf32> to vector<2x32xf32>
    %285 = arith.negf %284 : vector<2x32xf32>
    %286 = math.exp %285 : vector<2x32xf32>
    %cst_129 = arith.constant 1.000000e+00 : f32
    %287 = vector.broadcast %cst_129 : f32 to vector<2x32xf32>
    %288 = arith.addf %287, %286 : vector<2x32xf32>
    %289 = arith.divf %287, %288 : vector<2x32xf32>
    %290 = vector.extract_strided_slice %267 {offsets = [0, 64], sizes = [2, 32], strides = [1, 1]} : vector<2x128xf32> to vector<2x32xf32>
    %291 = math.tanh %290 : vector<2x32xf32>
    %292 = vector.extract_strided_slice %267 {offsets = [0, 96], sizes = [2, 32], strides = [1, 1]} : vector<2x128xf32> to vector<2x32xf32>
    %293 = arith.negf %292 : vector<2x32xf32>
    %294 = math.exp %293 : vector<2x32xf32>
    %cst_130 = arith.constant 1.000000e+00 : f32
    %295 = vector.broadcast %cst_130 : f32 to vector<2x32xf32>
    %296 = arith.addf %295, %294 : vector<2x32xf32>
    %297 = arith.divf %295, %296 : vector<2x32xf32>
    %298 = arith.mulf %289, %277 : vector<2x32xf32>
    %299 = arith.mulf %283, %291 : vector<2x32xf32>
    %300 = arith.addf %298, %299 : vector<2x32xf32>
    %301 = math.tanh %300 : vector<2x32xf32>
    %302 = arith.mulf %297, %301 : vector<2x32xf32>
    %c0_131 = arith.constant 0 : index
    %c0_132 = arith.constant 0 : index
    %303 = vector.load %arg11[%c0_131, %c0_132] : memref<2x32xf32, #tpu.memory_space<vmem>>, vector<2x32xf32>
    %304 = vector.extract_strided_slice %276 {offsets = [0, 0], sizes = [2, 32], strides = [1, 1]} : vector<2x128xf32> to vector<2x32xf32>
    %305 = arith.negf %304 : vector<2x32xf32>
    %306 = math.exp %305 : vector<2x32xf32>
    %cst_133 = arith.constant 1.000000e+00 : f32
    %307 = vector.broadcast %cst_133 : f32 to vector<2x32xf32>
    %308 = arith.addf %307, %306 : vector<2x32xf32>
    %309 = arith.divf %307, %308 : vector<2x32xf32>
    %310 = vector.extract_strided_slice %276 {offsets = [0, 32], sizes = [2, 32], strides = [1, 1]} : vector<2x128xf32> to vector<2x32xf32>
    %311 = arith.negf %310 : vector<2x32xf32>
    %312 = math.exp %311 : vector<2x32xf32>
    %cst_134 = arith.constant 1.000000e+00 : f32
    %313 = vector.broadcast %cst_134 : f32 to vector<2x32xf32>
    %314 = arith.addf %313, %312 : vector<2x32xf32>
    %315 = arith.divf %313, %314 : vector<2x32xf32>
    %316 = vector.extract_strided_slice %276 {offsets = [0, 64], sizes = [2, 32], strides = [1, 1]} : vector<2x128xf32> to vector<2x32xf32>
    %317 = math.tanh %316 : vector<2x32xf32>
    %318 = vector.extract_strided_slice %276 {offsets = [0, 96], sizes = [2, 32], strides = [1, 1]} : vector<2x128xf32> to vector<2x32xf32>
    %319 = arith.negf %318 : vector<2x32xf32>
    %320 = math.exp %319 : vector<2x32xf32>
    %cst_135 = arith.constant 1.000000e+00 : f32
    %321 = vector.broadcast %cst_135 : f32 to vector<2x32xf32>
    %322 = arith.addf %321, %320 : vector<2x32xf32>
    %323 = arith.divf %321, %322 : vector<2x32xf32>
    %324 = arith.mulf %315, %303 : vector<2x32xf32>
    %325 = arith.mulf %309, %317 : vector<2x32xf32>
    %326 = arith.addf %324, %325 : vector<2x32xf32>
    %327 = math.tanh %326 : vector<2x32xf32>
    %328 = arith.mulf %323, %327 : vector<2x32xf32>
    %c0_136 = arith.constant 0 : index
    %c0_137 = arith.constant 0 : index
    %329 = vector.load %arg8[%c0_136, %c0_137] : memref<2x32xf32, #tpu.memory_space<vmem>>, vector<2x32xf32>
    tpu.vector_store %arg8[%c0_136, %c0_137], %302 {strides = array<i32>} : memref<2x32xf32, #tpu.memory_space<vmem>>, vector<2x32xf32>,
    %c0_138 = arith.constant 0 : index
    %c0_139 = arith.constant 0 : index
    %330 = vector.load %arg9[%c0_138, %c0_139] : memref<2x32xf32, #tpu.memory_space<vmem>>, vector<2x32xf32>
    tpu.vector_store %arg9[%c0_138, %c0_139], %300 {strides = array<i32>} : memref<2x32xf32, #tpu.memory_space<vmem>>, vector<2x32xf32>,
    %c0_140 = arith.constant 0 : index
    %c0_141 = arith.constant 0 : index
    %331 = vector.load %arg10[%c0_140, %c0_141] : memref<2x32xf32, #tpu.memory_space<vmem>>, vector<2x32xf32>
    tpu.vector_store %arg10[%c0_140, %c0_141], %328 {strides = array<i32>} : memref<2x32xf32, #tpu.memory_space<vmem>>, vector<2x32xf32>,
    %c0_142 = arith.constant 0 : index
    %c0_143 = arith.constant 0 : index
    %332 = vector.load %arg11[%c0_142, %c0_143] : memref<2x32xf32, #tpu.memory_space<vmem>>, vector<2x32xf32>
    tpu.vector_store %arg11[%c0_142, %c0_143], %326 {strides = array<i32>} : memref<2x32xf32, #tpu.memory_space<vmem>>, vector<2x32xf32>,
    %333 = arith.truncf %302 : vector<2x32xf32> to vector<2x32xbf16>
    %334 = arith.index_cast %c3_i32_110 : i32 to index
    %c0_144 = arith.constant 0 : index
    %c0_145 = arith.constant 0 : index
    %335 = vector.load %arg5[%334, %c0_144, %c0_145] : memref<4x2x32xbf16, #tpu.memory_space<vmem>>, vector<1x2x32xbf16>
    %336 = vector.shape_cast %335 : vector<1x2x32xbf16> to vector<2x32xbf16>
    %337 = vector.shape_cast %333 : vector<2x32xbf16> to vector<1x2x32xbf16>
    tpu.vector_store %arg5[%334, %c0_144, %c0_145], %337 {strides = array<i32>} : memref<4x2x32xbf16, #tpu.memory_space<vmem>>, vector<1x2x32xbf16>,
    %338 = arith.truncf %328 : vector<2x32xf32> to vector<2x32xbf16>
    %339 = arith.index_cast %258 : i32 to index
    %c0_146 = arith.constant 0 : index
    %c0_147 = arith.constant 0 : index
    %340 = vector.load %arg6[%339, %c0_146, %c0_147] : memref<4x2x32xbf16, #tpu.memory_space<vmem>>, vector<1x2x32xbf16>
    %341 = vector.shape_cast %340 : vector<1x2x32xbf16> to vector<2x32xbf16>
    %342 = vector.shape_cast %338 : vector<2x32xbf16> to vector<1x2x32xbf16>
    tpu.vector_store %arg6[%339, %c0_146, %c0_147], %342 {strides = array<i32>} : memref<4x2x32xbf16, #tpu.memory_space<vmem>>, vector<1x2x32xbf16>,
    %c4_i32 = arith.constant 4 : i32
    %c0_148 = arith.constant 0 : index
    %c0_149 = arith.constant 0 : index
    %343 = vector.load %arg8[%c0_148, %c0_149] : memref<2x32xf32, #tpu.memory_space<vmem>>, vector<2x32xf32>
    %c0_150 = arith.constant 0 : index
    %c0_151 = arith.constant 0 : index
    %c0_152 = arith.constant 0 : index
    %344 = vector.load %arg7[%c0_150, %c0_151, %c0_152] : memref<2x2x32xf32, #tpu.memory_space<vmem>>, vector<1x2x32xf32>
    %345 = vector.shape_cast %344 : vector<1x2x32xf32> to vector<2x32xf32>
    %346 = vector.shape_cast %343 : vector<2x32xf32> to vector<1x2x32xf32>
    tpu.vector_store %arg7[%c0_150, %c0_151, %c0_152], %346 {strides = array<i32>} : memref<2x2x32xf32, #tpu.memory_space<vmem>>, vector<1x2x32xf32>,
    %c0_153 = arith.constant 0 : index
    %c0_154 = arith.constant 0 : index
    %347 = vector.load %arg10[%c0_153, %c0_154] : memref<2x32xf32, #tpu.memory_space<vmem>>, vector<2x32xf32>
    %c1 = arith.constant 1 : index
    %c0_155 = arith.constant 0 : index
    %c0_156 = arith.constant 0 : index
    %348 = vector.load %arg7[%c1, %c0_155, %c0_156] : memref<2x2x32xf32, #tpu.memory_space<vmem>>, vector<1x2x32xf32>
    %349 = vector.shape_cast %348 : vector<1x2x32xf32> to vector<2x32xf32>
    %350 = vector.shape_cast %347 : vector<2x32xf32> to vector<1x2x32xf32>
    tpu.vector_store %arg7[%c1, %c0_155, %c0_156], %350 {strides = array<i32>} : memref<2x2x32xf32, #tpu.memory_space<vmem>>, vector<1x2x32xf32>,
    return
  }
  func.func @transform_0(%arg0: i32) -> (i32, i32, i32) {
    %c0_i32 = arith.constant 0 : i32
    %c0_i32_0 = arith.constant 0 : i32
    %c0_i32_1 = arith.constant 0 : i32
    return %arg0, %c0_i32, %c0_i32_0 : i32, i32, i32
  }
  func.func @transform_1(%arg0: i32) -> (i32, i32, i32) {
    %c0_i32 = arith.constant 0 : i32
    %0 = arith.subi %c0_i32, %arg0 : i32
    %c0_i32_0 = arith.constant 0 : i32
    %c0_i32_1 = arith.constant 0 : i32
    %c0_i32_2 = arith.constant 0 : i32
    return %0, %c0_i32_0, %c0_i32_1 : i32, i32, i32
  }
  func.func @transform_2(%arg0: i32) -> (i32, i32) {
    %c0_i32 = arith.constant 0 : i32
    %c0_i32_0 = arith.constant 0 : i32
    %c0_i32_1 = arith.constant 0 : i32
    return %c0_i32, %c0_i32_0 : i32, i32
  }
  func.func @transform_3(%arg0: i32) -> (i32, i32) {
    %c0_i32 = arith.constant 0 : i32
    %c0_i32_0 = arith.constant 0 : i32
    %c0_i32_1 = arith.constant 0 : i32
    return %c0_i32, %c0_i32_0 : i32, i32
  }
  func.func @transform_4(%arg0: i32) -> (i32, i32, i32) {
    %c0_i32 = arith.constant 0 : i32
    %c0_i32_0 = arith.constant 0 : i32
    %c0_i32_1 = arith.constant 0 : i32
    return %arg0, %c0_i32, %c0_i32_0 : i32, i32, i32
  }
  func.func @transform_5(%arg0: i32) -> (i32, i32, i32) {
    %c0_i32 = arith.constant 0 : i32
    %0 = arith.subi %c0_i32, %arg0 : i32
    %c0_i32_0 = arith.constant 0 : i32
    %c0_i32_1 = arith.constant 0 : i32
    %c0_i32_2 = arith.constant 0 : i32
    return %0, %c0_i32_0, %c0_i32_1 : i32, i32, i32
  }
  func.func @transform_6(%arg0: i32) -> (i32, i32, i32) {
    %c0_i32 = arith.constant 0 : i32
    %c0_i32_0 = arith.constant 0 : i32
    %c0_i32_1 = arith.constant 0 : i32
    %c0_i32_2 = arith.constant 0 : i32
    return %c0_i32, %c0_i32_0, %c0_i32_1 : i32, i32, i32
  }
}

module attributes {stable_mosaic.version = 11 : i64} {
  func.func @_mm2_bias_kernel(%arg0: i32, %arg1: memref<8x32xbf16, #tpu.memory_space<vmem>>, %arg2: memref<32x128xbf16, #tpu.memory_space<vmem>>, %arg3: memref<8x32xbf16, #tpu.memory_space<vmem>>, %arg4: memref<32x128xbf16, #tpu.memory_space<vmem>>, %arg5: memref<1x128xf32, #tpu.memory_space<vmem>>, %arg6: memref<8x128xbf16, #tpu.memory_space<vmem>>) attributes {dimension_semantics = [#tpu.dimension_semantics<parallel>], iteration_bounds = array<i64: 1>, scalar_prefetch = 0 : i64, scratch_operands = 0 : i64, tpu.core_type = #tpu.core_type<tc>, window_params = [{transform_indices = @transform_0, window_bounds = array<i64: 8, 32>}, {pipeline_mode = #tpu.pipeline_mode<synchronous>, transform_indices = @transform_1, window_bounds = array<i64: 32, 128>}, {transform_indices = @transform_2, window_bounds = array<i64: 8, 32>}, {pipeline_mode = #tpu.pipeline_mode<synchronous>, transform_indices = @transform_3, window_bounds = array<i64: 32, 128>}, {pipeline_mode = #tpu.pipeline_mode<synchronous>, transform_indices = @transform_4, window_bounds = array<i64: 1, 128>}, {transform_indices = @transform_5, window_bounds = array<i64: 8, 128>}]} {
    %c0 = arith.constant 0 : index
    %c0_0 = arith.constant 0 : index
    %0 = vector.load %arg1[%c0, %c0_0] : memref<8x32xbf16, #tpu.memory_space<vmem>>, vector<8x32xbf16>
    %c0_1 = arith.constant 0 : index
    %c0_2 = arith.constant 0 : index
    %1 = vector.load %arg2[%c0_1, %c0_2] : memref<32x128xbf16, #tpu.memory_space<vmem>>, vector<32x128xbf16>
    %cst = arith.constant dense<0.000000e+00> : vector<8x128xf32>
    %2 = tpu.matmul %0, %1, %cst {dimension_numbers = #tpu.dot_dimension_numbers<[1], [0], [0], [1], [0, 0, 1, 1], [], []>} : vector<8x32xbf16>, vector<32x128xbf16>, vector<8x128xf32> -> vector<8x128xf32>
    %c0_3 = arith.constant 0 : index
    %c0_4 = arith.constant 0 : index
    %3 = vector.load %arg3[%c0_3, %c0_4] : memref<8x32xbf16, #tpu.memory_space<vmem>>, vector<8x32xbf16>
    %c0_5 = arith.constant 0 : index
    %c0_6 = arith.constant 0 : index
    %4 = vector.load %arg4[%c0_5, %c0_6] : memref<32x128xbf16, #tpu.memory_space<vmem>>, vector<32x128xbf16>
    %cst_7 = arith.constant dense<0.000000e+00> : vector<8x128xf32>
    %5 = tpu.matmul %3, %4, %cst_7 {dimension_numbers = #tpu.dot_dimension_numbers<[1], [0], [0], [1], [0, 0, 1, 1], [], []>} : vector<8x32xbf16>, vector<32x128xbf16>, vector<8x128xf32> -> vector<8x128xf32>
    %6 = arith.addf %2, %5 : vector<8x128xf32>
    %c0_8 = arith.constant 0 : index
    %c0_9 = arith.constant 0 : index
    %7 = vector.load %arg5[%c0_8, %c0_9] : memref<1x128xf32, #tpu.memory_space<vmem>>, vector<1x128xf32>
    %8 = vector.broadcast %7 : vector<1x128xf32> to vector<8x128xf32>
    %9 = arith.addf %6, %8 : vector<8x128xf32>
    %10 = arith.truncf %9 : vector<8x128xf32> to vector<8x128xbf16>
    %c0_10 = arith.constant 0 : index
    %c0_11 = arith.constant 0 : index
    %11 = vector.load %arg6[%c0_10, %c0_11] : memref<8x128xbf16, #tpu.memory_space<vmem>>, vector<8x128xbf16>
    tpu.vector_store %arg6[%c0_10, %c0_11], %10 {strides = array<i32>} : memref<8x128xbf16, #tpu.memory_space<vmem>>, vector<8x128xbf16>,
    return
  }
  func.func @transform_0(%arg0: i32) -> (i32, i32) {
    %c0_i32 = arith.constant 0 : i32
    %c0_i32_0 = arith.constant 0 : i32
    return %arg0, %c0_i32 : i32, i32
  }
  func.func @transform_1(%arg0: i32) -> (i32, i32) {
    %c0_i32 = arith.constant 0 : i32
    %c0_i32_0 = arith.constant 0 : i32
    %c0_i32_1 = arith.constant 0 : i32
    return %c0_i32, %c0_i32_0 : i32, i32
  }
  func.func @transform_2(%arg0: i32) -> (i32, i32) {
    %c0_i32 = arith.constant 0 : i32
    %c0_i32_0 = arith.constant 0 : i32
    return %arg0, %c0_i32 : i32, i32
  }
  func.func @transform_3(%arg0: i32) -> (i32, i32) {
    %c0_i32 = arith.constant 0 : i32
    %c0_i32_0 = arith.constant 0 : i32
    %c0_i32_1 = arith.constant 0 : i32
    return %c0_i32, %c0_i32_0 : i32, i32
  }
  func.func @transform_4(%arg0: i32) -> (i32, i32) {
    %c0_i32 = arith.constant 0 : i32
    %c0_i32_0 = arith.constant 0 : i32
    %c0_i32_1 = arith.constant 0 : i32
    return %c0_i32, %c0_i32_0 : i32, i32
  }
  func.func @transform_5(%arg0: i32) -> (i32, i32) {
    %c0_i32 = arith.constant 0 : i32
    %c0_i32_0 = arith.constant 0 : i32
    return %arg0, %c0_i32 : i32, i32
  }
}

module attributes {stable_mosaic.version = 11 : i64} {
  func.func @_bilstm_kernel(%arg0: i32, %arg1: memref<4x2x128xbf16, #tpu.memory_space<vmem>>, %arg2: memref<4x2x128xbf16, #tpu.memory_space<vmem>>, %arg3: memref<32x128xbf16, #tpu.memory_space<vmem>>, %arg4: memref<32x128xbf16, #tpu.memory_space<vmem>>, %arg5: memref<4x2x32xbf16, #tpu.memory_space<vmem>>, %arg6: memref<4x2x32xbf16, #tpu.memory_space<vmem>>, %arg7: memref<2x2x32xf32, #tpu.memory_space<vmem>>, %arg8: memref<2x32xf32, #tpu.memory_space<vmem>>, %arg9: memref<2x32xf32, #tpu.memory_space<vmem>>, %arg10: memref<2x32xf32, #tpu.memory_space<vmem>>, %arg11: memref<2x32xf32, #tpu.memory_space<vmem>>) attributes {dimension_semantics = [#tpu.dimension_semantics<arbitrary>], iteration_bounds = array<i64: 1>, scalar_prefetch = 0 : i64, scratch_operands = 4 : i64, tpu.core_type = #tpu.core_type<tc>, window_params = [{transform_indices = @transform_0, window_bounds = array<i64: 4, 2, 128>}, {transform_indices = @transform_1, window_bounds = array<i64: 4, 2, 128>}, {pipeline_mode = #tpu.pipeline_mode<synchronous>, transform_indices = @transform_2, window_bounds = array<i64: 32, 128>}, {pipeline_mode = #tpu.pipeline_mode<synchronous>, transform_indices = @transform_3, window_bounds = array<i64: 32, 128>}, {transform_indices = @transform_4, window_bounds = array<i64: 4, 2, 32>}, {transform_indices = @transform_5, window_bounds = array<i64: 4, 2, 32>}, {pipeline_mode = #tpu.pipeline_mode<synchronous>, transform_indices = @transform_6, window_bounds = array<i64: 2, 2, 32>}]} {
    %c0_i32 = arith.constant 0 : i32
    %0 = arith.cmpi eq, %arg0, %c0_i32 : i32
    %1 = arith.extui %0 : i1 to i32
    %c0_i32_0 = arith.constant 0 : i32
    %2 = arith.cmpi ne, %1, %c0_i32_0 : i32
    scf.if %2 {
      %cst_157 = arith.constant 0.000000e+00 : f32
      %351 = vector.broadcast %cst_157 : f32 to vector<2x32xf32>
      %c0_158 = arith.constant 0 : index
      %c0_159 = arith.constant 0 : index
      %352 = vector.load %arg8[%c0_158, %c0_159] : memref<2x32xf32, #tpu.memory_space<vmem>>, vector<2x32xf32>
      tpu.vector_store %arg8[%c0_158, %c0_159], %351 {strides = array<i32>} : memref<2x32xf32, #tpu.memory_space<vmem>>, vector<2x32xf32>,
      %cst_160 = arith.constant 0.000000e+00 : f32
      %353 = vector.broadcast %cst_160 : f32 to vector<2x32xf32>
      %c0_161 = arith.constant 0 : index
      %c0_162 = arith.constant 0 : index
      %354 = vector.load %arg9[%c0_161, %c0_162] : memref<2x32xf32, #tpu.memory_space<vmem>>, vector<2x32xf32>
      tpu.vector_store %arg9[%c0_161, %c0_162], %353 {strides = array<i32>} : memref<2x32xf32, #tpu.memory_space<vmem>>, vector<2x32xf32>,
      %cst_163 = arith.constant 0.000000e+00 : f32
      %355 = vector.broadcast %cst_163 : f32 to vector<2x32xf32>
      %c0_164 = arith.constant 0 : index
      %c0_165 = arith.constant 0 : index
      %356 = vector.load %arg10[%c0_164, %c0_165] : memref<2x32xf32, #tpu.memory_space<vmem>>, vector<2x32xf32>
      tpu.vector_store %arg10[%c0_164, %c0_165], %355 {strides = array<i32>} : memref<2x32xf32, #tpu.memory_space<vmem>>, vector<2x32xf32>,
      %cst_166 = arith.constant 0.000000e+00 : f32
      %357 = vector.broadcast %cst_166 : f32 to vector<2x32xf32>
      %c0_167 = arith.constant 0 : index
      %c0_168 = arith.constant 0 : index
      %358 = vector.load %arg11[%c0_167, %c0_168] : memref<2x32xf32, #tpu.memory_space<vmem>>, vector<2x32xf32>
      tpu.vector_store %arg11[%c0_167, %c0_168], %357 {strides = array<i32>} : memref<2x32xf32, #tpu.memory_space<vmem>>, vector<2x32xf32>,
    } else {
    }
    %c0_i32_1 = arith.constant 0 : i32
    %c3_i32 = arith.constant 3 : i32
    %3 = arith.subi %c3_i32, %c0_i32_1 : i32
    %4 = arith.index_cast %c0_i32_1 : i32 to index
    %c0 = arith.constant 0 : index
    %c0_2 = arith.constant 0 : index
    %5 = vector.load %arg1[%4, %c0, %c0_2] : memref<4x2x128xbf16, #tpu.memory_space<vmem>>, vector<1x2x128xbf16>
    %6 = vector.shape_cast %5 : vector<1x2x128xbf16> to vector<2x128xbf16>
    %7 = arith.extf %6 : vector<2x128xbf16> to vector<2x128xf32>
    %c0_3 = arith.constant 0 : index
    %c0_4 = arith.constant 0 : index
    %8 = vector.load %arg8[%c0_3, %c0_4] : memref<2x32xf32, #tpu.memory_space<vmem>>, vector<2x32xf32>
    %9 = arith.truncf %8 : vector<2x32xf32> to vector<2x32xbf16>
    %c0_5 = arith.constant 0 : index
    %c0_6 = arith.constant 0 : index
    %10 = vector.load %arg3[%c0_5, %c0_6] : memref<32x128xbf16, #tpu.memory_space<vmem>>, vector<32x128xbf16>
    %cst = arith.constant dense<0.000000e+00> : vector<2x128xf32>
    %11 = tpu.matmul %9, %10, %cst {dimension_numbers = #tpu.dot_dimension_numbers<[1], [0], [0], [1], [0, 0, 1, 1], [], []>} : vector<2x32xbf16>, vector<32x128xbf16>, vector<2x128xf32> -> vector<2x128xf32>
    %12 = arith.addf %7, %11 : vector<2x128xf32>
    %13 = arith.index_cast %3 : i32 to index
    %c0_7 = arith.constant 0 : index
    %c0_8 = arith.constant 0 : index
    %14 = vector.load %arg2[%13, %c0_7, %c0_8] : memref<4x2x128xbf16, #tpu.memory_space<vmem>>, vector<1x2x128xbf16>
    %15 = vector.shape_cast %14 : vector<1x2x128xbf16> to vector<2x128xbf16>
    %16 = arith.extf %15 : vector<2x128xbf16> to vector<2x128xf32>
    %c0_9 = arith.constant 0 : index
    %c0_10 = arith.constant 0 : index
    %17 = vector.load %arg10[%c0_9, %c0_10] : memref<2x32xf32, #tpu.memory_space<vmem>>, vector<2x32xf32>
    %18 = arith.truncf %17 : vector<2x32xf32> to vector<2x32xbf16>
    %c0_11 = arith.constant 0 : index
    %c0_12 = arith.constant 0 : index
    %19 = vector.load %arg4[%c0_11, %c0_12] : memref<32x128xbf16, #tpu.memory_space<vmem>>, vector<32x128xbf16>
    %cst_13 = arith.constant dense<0.000000e+00> : vector<2x128xf32>
    %20 = tpu.matmul %18, %19, %cst_13 {dimension_numbers = #tpu.dot_dimension_numbers<[1], [0], [0], [1], [0, 0, 1, 1], [], []>} : vector<2x32xbf16>, vector<32x128xbf16>, vector<2x128xf32> -> vector<2x128xf32>
    %21 = arith.addf %16, %20 : vector<2x128xf32>
    %c0_14 = arith.constant 0 : index
    %c0_15 = arith.constant 0 : index
    %22 = vector.load %arg9[%c0_14, %c0_15] : memref<2x32xf32, #tpu.memory_space<vmem>>, vector<2x32xf32>
    %23 = vector.extract_strided_slice %12 {offsets = [0, 0], sizes = [2, 32], strides = [1, 1]} : vector<2x128xf32> to vector<2x32xf32>
    %24 = arith.negf %23 : vector<2x32xf32>
    %25 = math.exp %24 : vector<2x32xf32>
    %cst_16 = arith.constant 1.000000e+00 : f32
    %26 = vector.broadcast %cst_16 : f32 to vector<2x32xf32>
    %27 = arith.addf %26, %25 : vector<2x32xf32>
    %28 = arith.divf %26, %27 : vector<2x32xf32>
    %29 = vector.extract_strided_slice %12 {offsets = [0, 32], sizes = [2, 32], strides = [1, 1]} : vector<2x128xf32> to vector<2x32xf32>
    %30 = arith.negf %29 : vector<2x32xf32>
    %31 = math.exp %30 : vector<2x32xf32>
    %cst_17 = arith.constant 1.000000e+00 : f32
    %32 = vector.broadcast %cst_17 : f32 to vector<2x32xf32>
    %33 = arith.addf %32, %31 : vector<2x32xf32>
    %34 = arith.divf %32, %33 : vector<2x32xf32>
    %35 = vector.extract_strided_slice %12 {offsets = [0, 64], sizes = [2, 32], strides = [1, 1]} : vector<2x128xf32> to vector<2x32xf32>
    %36 = math.tanh %35 : vector<2x32xf32>
    %37 = vector.extract_strided_slice %12 {offsets = [0, 96], sizes = [2, 32], strides = [1, 1]} : vector<2x128xf32> to vector<2x32xf32>
    %38 = arith.negf %37 : vector<2x32xf32>
    %39 = math.exp %38 : vector<2x32xf32>
    %cst_18 = arith.constant 1.000000e+00 : f32
    %40 = vector.broadcast %cst_18 : f32 to vector<2x32xf32>
    %41 = arith.addf %40, %39 : vector<2x32xf32>
    %42 = arith.divf %40, %41 : vector<2x32xf32>
    %43 = arith.mulf %34, %22 : vector<2x32xf32>
    %44 = arith.mulf %28, %36 : vector<2x32xf32>
    %45 = arith.addf %43, %44 : vector<2x32xf32>
    %46 = math.tanh %45 : vector<2x32xf32>
    %47 = arith.mulf %42, %46 : vector<2x32xf32>
    %c0_19 = arith.constant 0 : index
    %c0_20 = arith.constant 0 : index
    %48 = vector.load %arg11[%c0_19, %c0_20] : memref<2x32xf32, #tpu.memory_space<vmem>>, vector<2x32xf32>
    %49 = vector.extract_strided_slice %21 {offsets = [0, 0], sizes = [2, 32], strides = [1, 1]} : vector<2x128xf32> to vector<2x32xf32>
    %50 = arith.negf %49 : vector<2x32xf32>
    %51 = math.exp %50 : vector<2x32xf32>
    %cst_21 = arith.constant 1.000000e+00 : f32
    %52 = vector.broadcast %cst_21 : f32 to vector<2x32xf32>
    %53 = arith.addf %52, %51 : vector<2x32xf32>
    %54 = arith.divf %52, %53 : vector<2x32xf32>
    %55 = vector.extract_strided_slice %21 {offsets = [0, 32], sizes = [2, 32], strides = [1, 1]} : vector<2x128xf32> to vector<2x32xf32>
    %56 = arith.negf %55 : vector<2x32xf32>
    %57 = math.exp %56 : vector<2x32xf32>
    %cst_22 = arith.constant 1.000000e+00 : f32
    %58 = vector.broadcast %cst_22 : f32 to vector<2x32xf32>
    %59 = arith.addf %58, %57 : vector<2x32xf32>
    %60 = arith.divf %58, %59 : vector<2x32xf32>
    %61 = vector.extract_strided_slice %21 {offsets = [0, 64], sizes = [2, 32], strides = [1, 1]} : vector<2x128xf32> to vector<2x32xf32>
    %62 = math.tanh %61 : vector<2x32xf32>
    %63 = vector.extract_strided_slice %21 {offsets = [0, 96], sizes = [2, 32], strides = [1, 1]} : vector<2x128xf32> to vector<2x32xf32>
    %64 = arith.negf %63 : vector<2x32xf32>
    %65 = math.exp %64 : vector<2x32xf32>
    %cst_23 = arith.constant 1.000000e+00 : f32
    %66 = vector.broadcast %cst_23 : f32 to vector<2x32xf32>
    %67 = arith.addf %66, %65 : vector<2x32xf32>
    %68 = arith.divf %66, %67 : vector<2x32xf32>
    %69 = arith.mulf %60, %48 : vector<2x32xf32>
    %70 = arith.mulf %54, %62 : vector<2x32xf32>
    %71 = arith.addf %69, %70 : vector<2x32xf32>
    %72 = math.tanh %71 : vector<2x32xf32>
    %73 = arith.mulf %68, %72 : vector<2x32xf32>
    %c0_24 = arith.constant 0 : index
    %c0_25 = arith.constant 0 : index
    %74 = vector.load %arg8[%c0_24, %c0_25] : memref<2x32xf32, #tpu.memory_space<vmem>>, vector<2x32xf32>
    tpu.vector_store %arg8[%c0_24, %c0_25], %47 {strides = array<i32>} : memref<2x32xf32, #tpu.memory_space<vmem>>, vector<2x32xf32>,
    %c0_26 = arith.constant 0 : index
    %c0_27 = arith.constant 0 : index
    %75 = vector.load %arg9[%c0_26, %c0_27] : memref<2x32xf32, #tpu.memory_space<vmem>>, vector<2x32xf32>
    tpu.vector_store %arg9[%c0_26, %c0_27], %45 {strides = array<i32>} : memref<2x32xf32, #tpu.memory_space<vmem>>, vector<2x32xf32>,
    %c0_28 = arith.constant 0 : index
    %c0_29 = arith.constant 0 : index
    %76 = vector.load %arg10[%c0_28, %c0_29] : memref<2x32xf32, #tpu.memory_space<vmem>>, vector<2x32xf32>
    tpu.vector_store %arg10[%c0_28, %c0_29], %73 {strides = array<i32>} : memref<2x32xf32, #tpu.memory_space<vmem>>, vector<2x32xf32>,
    %c0_30 = arith.constant 0 : index
    %c0_31 = arith.constant 0 : index
    %77 = vector.load %arg11[%c0_30, %c0_31] : memref<2x32xf32, #tpu.memory_space<vmem>>, vector<2x32xf32>
    tpu.vector_store %arg11[%c0_30, %c0_31], %71 {strides = array<i32>} : memref<2x32xf32, #tpu.memory_space<vmem>>, vector<2x32xf32>,
    %78 = arith.truncf %47 : vector<2x32xf32> to vector<2x32xbf16>
    %79 = arith.index_cast %c0_i32_1 : i32 to index
    %c0_32 = arith.constant 0 : index
    %c0_33 = arith.constant 0 : index
    %80 = vector.load %arg5[%79, %c0_32, %c0_33] : memref<4x2x32xbf16, #tpu.memory_space<vmem>>, vector<1x2x32xbf16>
    %81 = vector.shape_cast %80 : vector<1x2x32xbf16> to vector<2x32xbf16>
    %82 = vector.shape_cast %78 : vector<2x32xbf16> to vector<1x2x32xbf16>
    tpu.vector_store %arg5[%79, %c0_32, %c0_33], %82 {strides = array<i32>} : memref<4x2x32xbf16, #tpu.memory_space<vmem>>, vector<1x2x32xbf16>,
    %83 = arith.truncf %73 : vector<2x32xf32> to vector<2x32xbf16>
    %84 = arith.index_cast %3 : i32 to index
    %c0_34 = arith.constant 0 : index
    %c0_35 = arith.constant 0 : index
    %85 = vector.load %arg6[%84, %c0_34, %c0_35] : memref<4x2x32xbf16, #tpu.memory_space<vmem>>, vector<1x2x32xbf16>
    %86 = vector.shape_cast %85 : vector<1x2x32xbf16> to vector<2x32xbf16>
    %87 = vector.shape_cast %83 : vector<2x32xbf16> to vector<1x2x32xbf16>
    tpu.vector_store %arg6[%84, %c0_34, %c0_35], %87 {strides = array<i32>} : memref<4x2x32xbf16, #tpu.memory_space<vmem>>, vector<1x2x32xbf16>,
    %c1_i32 = arith.constant 1 : i32
    %c3_i32_36 = arith.constant 3 : i32
    %88 = arith.subi %c3_i32_36, %c1_i32 : i32
    %89 = arith.index_cast %c1_i32 : i32 to index
    %c0_37 = arith.constant 0 : index
    %c0_38 = arith.constant 0 : index
    %90 = vector.load %arg1[%89, %c0_37, %c0_38] : memref<4x2x128xbf16, #tpu.memory_space<vmem>>, vector<1x2x128xbf16>
    %91 = vector.shape_cast %90 : vector<1x2x128xbf16> to vector<2x128xbf16>
    %92 = arith.extf %91 : vector<2x128xbf16> to vector<2x128xf32>
    %c0_39 = arith.constant 0 : index
    %c0_40 = arith.constant 0 : index
    %93 = vector.load %arg8[%c0_39, %c0_40] : memref<2x32xf32, #tpu.memory_space<vmem>>, vector<2x32xf32>
    %94 = arith.truncf %93 : vector<2x32xf32> to vector<2x32xbf16>
    %c0_41 = arith.constant 0 : index
    %c0_42 = arith.constant 0 : index
    %95 = vector.load %arg3[%c0_41, %c0_42] : memref<32x128xbf16, #tpu.memory_space<vmem>>, vector<32x128xbf16>
    %cst_43 = arith.constant dense<0.000000e+00> : vector<2x128xf32>
    %96 = tpu.matmul %94, %95, %cst_43 {dimension_numbers = #tpu.dot_dimension_numbers<[1], [0], [0], [1], [0, 0, 1, 1], [], []>} : vector<2x32xbf16>, vector<32x128xbf16>, vector<2x128xf32> -> vector<2x128xf32>
    %97 = arith.addf %92, %96 : vector<2x128xf32>
    %98 = arith.index_cast %88 : i32 to index
    %c0_44 = arith.constant 0 : index
    %c0_45 = arith.constant 0 : index
    %99 = vector.load %arg2[%98, %c0_44, %c0_45] : memref<4x2x128xbf16, #tpu.memory_space<vmem>>, vector<1x2x128xbf16>
    %100 = vector.shape_cast %99 : vector<1x2x128xbf16> to vector<2x128xbf16>
    %101 = arith.extf %100 : vector<2x128xbf16> to vector<2x128xf32>
    %c0_46 = arith.constant 0 : index
    %c0_47 = arith.constant 0 : index
    %102 = vector.load %arg10[%c0_46, %c0_47] : memref<2x32xf32, #tpu.memory_space<vmem>>, vector<2x32xf32>
    %103 = arith.truncf %102 : vector<2x32xf32> to vector<2x32xbf16>
    %c0_48 = arith.constant 0 : index
    %c0_49 = arith.constant 0 : index
    %104 = vector.load %arg4[%c0_48, %c0_49] : memref<32x128xbf16, #tpu.memory_space<vmem>>, vector<32x128xbf16>
    %cst_50 = arith.constant dense<0.000000e+00> : vector<2x128xf32>
    %105 = tpu.matmul %103, %104, %cst_50 {dimension_numbers = #tpu.dot_dimension_numbers<[1], [0], [0], [1], [0, 0, 1, 1], [], []>} : vector<2x32xbf16>, vector<32x128xbf16>, vector<2x128xf32> -> vector<2x128xf32>
    %106 = arith.addf %101, %105 : vector<2x128xf32>
    %c0_51 = arith.constant 0 : index
    %c0_52 = arith.constant 0 : index
    %107 = vector.load %arg9[%c0_51, %c0_52] : memref<2x32xf32, #tpu.memory_space<vmem>>, vector<2x32xf32>
    %108 = vector.extract_strided_slice %97 {offsets = [0, 0], sizes = [2, 32], strides = [1, 1]} : vector<2x128xf32> to vector<2x32xf32>
    %109 = arith.negf %108 : vector<2x32xf32>
    %110 = math.exp %109 : vector<2x32xf32>
    %cst_53 = arith.constant 1.000000e+00 : f32
    %111 = vector.broadcast %cst_53 : f32 to vector<2x32xf32>
    %112 = arith.addf %111, %110 : vector<2x32xf32>
    %113 = arith.divf %111, %112 : vector<2x32xf32>
    %114 = vector.extract_strided_slice %97 {offsets = [0, 32], sizes = [2, 32], strides = [1, 1]} : vector<2x128xf32> to vector<2x32xf32>
    %115 = arith.negf %114 : vector<2x32xf32>
    %116 = math.exp %115 : vector<2x32xf32>
    %cst_54 = arith.constant 1.000000e+00 : f32
    %117 = vector.broadcast %cst_54 : f32 to vector<2x32xf32>
    %118 = arith.addf %117, %116 : vector<2x32xf32>
    %119 = arith.divf %117, %118 : vector<2x32xf32>
    %120 = vector.extract_strided_slice %97 {offsets = [0, 64], sizes = [2, 32], strides = [1, 1]} : vector<2x128xf32> to vector<2x32xf32>
    %121 = math.tanh %120 : vector<2x32xf32>
    %122 = vector.extract_strided_slice %97 {offsets = [0, 96], sizes = [2, 32], strides = [1, 1]} : vector<2x128xf32> to vector<2x32xf32>
    %123 = arith.negf %122 : vector<2x32xf32>
    %124 = math.exp %123 : vector<2x32xf32>
    %cst_55 = arith.constant 1.000000e+00 : f32
    %125 = vector.broadcast %cst_55 : f32 to vector<2x32xf32>
    %126 = arith.addf %125, %124 : vector<2x32xf32>
    %127 = arith.divf %125, %126 : vector<2x32xf32>
    %128 = arith.mulf %119, %107 : vector<2x32xf32>
    %129 = arith.mulf %113, %121 : vector<2x32xf32>
    %130 = arith.addf %128, %129 : vector<2x32xf32>
    %131 = math.tanh %130 : vector<2x32xf32>
    %132 = arith.mulf %127, %131 : vector<2x32xf32>
    %c0_56 = arith.constant 0 : index
    %c0_57 = arith.constant 0 : index
    %133 = vector.load %arg11[%c0_56, %c0_57] : memref<2x32xf32, #tpu.memory_space<vmem>>, vector<2x32xf32>
    %134 = vector.extract_strided_slice %106 {offsets = [0, 0], sizes = [2, 32], strides = [1, 1]} : vector<2x128xf32> to vector<2x32xf32>
    %135 = arith.negf %134 : vector<2x32xf32>
    %136 = math.exp %135 : vector<2x32xf32>
    %cst_58 = arith.constant 1.000000e+00 : f32
    %137 = vector.broadcast %cst_58 : f32 to vector<2x32xf32>
    %138 = arith.addf %137, %136 : vector<2x32xf32>
    %139 = arith.divf %137, %138 : vector<2x32xf32>
    %140 = vector.extract_strided_slice %106 {offsets = [0, 32], sizes = [2, 32], strides = [1, 1]} : vector<2x128xf32> to vector<2x32xf32>
    %141 = arith.negf %140 : vector<2x32xf32>
    %142 = math.exp %141 : vector<2x32xf32>
    %cst_59 = arith.constant 1.000000e+00 : f32
    %143 = vector.broadcast %cst_59 : f32 to vector<2x32xf32>
    %144 = arith.addf %143, %142 : vector<2x32xf32>
    %145 = arith.divf %143, %144 : vector<2x32xf32>
    %146 = vector.extract_strided_slice %106 {offsets = [0, 64], sizes = [2, 32], strides = [1, 1]} : vector<2x128xf32> to vector<2x32xf32>
    %147 = math.tanh %146 : vector<2x32xf32>
    %148 = vector.extract_strided_slice %106 {offsets = [0, 96], sizes = [2, 32], strides = [1, 1]} : vector<2x128xf32> to vector<2x32xf32>
    %149 = arith.negf %148 : vector<2x32xf32>
    %150 = math.exp %149 : vector<2x32xf32>
    %cst_60 = arith.constant 1.000000e+00 : f32
    %151 = vector.broadcast %cst_60 : f32 to vector<2x32xf32>
    %152 = arith.addf %151, %150 : vector<2x32xf32>
    %153 = arith.divf %151, %152 : vector<2x32xf32>
    %154 = arith.mulf %145, %133 : vector<2x32xf32>
    %155 = arith.mulf %139, %147 : vector<2x32xf32>
    %156 = arith.addf %154, %155 : vector<2x32xf32>
    %157 = math.tanh %156 : vector<2x32xf32>
    %158 = arith.mulf %153, %157 : vector<2x32xf32>
    %c0_61 = arith.constant 0 : index
    %c0_62 = arith.constant 0 : index
    %159 = vector.load %arg8[%c0_61, %c0_62] : memref<2x32xf32, #tpu.memory_space<vmem>>, vector<2x32xf32>
    tpu.vector_store %arg8[%c0_61, %c0_62], %132 {strides = array<i32>} : memref<2x32xf32, #tpu.memory_space<vmem>>, vector<2x32xf32>,
    %c0_63 = arith.constant 0 : index
    %c0_64 = arith.constant 0 : index
    %160 = vector.load %arg9[%c0_63, %c0_64] : memref<2x32xf32, #tpu.memory_space<vmem>>, vector<2x32xf32>
    tpu.vector_store %arg9[%c0_63, %c0_64], %130 {strides = array<i32>} : memref<2x32xf32, #tpu.memory_space<vmem>>, vector<2x32xf32>,
    %c0_65 = arith.constant 0 : index
    %c0_66 = arith.constant 0 : index
    %161 = vector.load %arg10[%c0_65, %c0_66] : memref<2x32xf32, #tpu.memory_space<vmem>>, vector<2x32xf32>
    tpu.vector_store %arg10[%c0_65, %c0_66], %158 {strides = array<i32>} : memref<2x32xf32, #tpu.memory_space<vmem>>, vector<2x32xf32>,
    %c0_67 = arith.constant 0 : index
    %c0_68 = arith.constant 0 : index
    %162 = vector.load %arg11[%c0_67, %c0_68] : memref<2x32xf32, #tpu.memory_space<vmem>>, vector<2x32xf32>
    tpu.vector_store %arg11[%c0_67, %c0_68], %156 {strides = array<i32>} : memref<2x32xf32, #tpu.memory_space<vmem>>, vector<2x32xf32>,
    %163 = arith.truncf %132 : vector<2x32xf32> to vector<2x32xbf16>
    %164 = arith.index_cast %c1_i32 : i32 to index
    %c0_69 = arith.constant 0 : index
    %c0_70 = arith.constant 0 : index
    %165 = vector.load %arg5[%164, %c0_69, %c0_70] : memref<4x2x32xbf16, #tpu.memory_space<vmem>>, vector<1x2x32xbf16>
    %166 = vector.shape_cast %165 : vector<1x2x32xbf16> to vector<2x32xbf16>
    %167 = vector.shape_cast %163 : vector<2x32xbf16> to vector<1x2x32xbf16>
    tpu.vector_store %arg5[%164, %c0_69, %c0_70], %167 {strides = array<i32>} : memref<4x2x32xbf16, #tpu.memory_space<vmem>>, vector<1x2x32xbf16>,
    %168 = arith.truncf %158 : vector<2x32xf32> to vector<2x32xbf16>
    %169 = arith.index_cast %88 : i32 to index
    %c0_71 = arith.constant 0 : index
    %c0_72 = arith.constant 0 : index
    %170 = vector.load %arg6[%169, %c0_71, %c0_72] : memref<4x2x32xbf16, #tpu.memory_space<vmem>>, vector<1x2x32xbf16>
    %171 = vector.shape_cast %170 : vector<1x2x32xbf16> to vector<2x32xbf16>
    %172 = vector.shape_cast %168 : vector<2x32xbf16> to vector<1x2x32xbf16>
    tpu.vector_store %arg6[%169, %c0_71, %c0_72], %172 {strides = array<i32>} : memref<4x2x32xbf16, #tpu.memory_space<vmem>>, vector<1x2x32xbf16>,
    %c2_i32 = arith.constant 2 : i32
    %c3_i32_73 = arith.constant 3 : i32
    %173 = arith.subi %c3_i32_73, %c2_i32 : i32
    %174 = arith.index_cast %c2_i32 : i32 to index
    %c0_74 = arith.constant 0 : index
    %c0_75 = arith.constant 0 : index
    %175 = vector.load %arg1[%174, %c0_74, %c0_75] : memref<4x2x128xbf16, #tpu.memory_space<vmem>>, vector<1x2x128xbf16>
    %176 = vector.shape_cast %175 : vector<1x2x128xbf16> to vector<2x128xbf16>
    %177 = arith.extf %176 : vector<2x128xbf16> to vector<2x128xf32>
    %c0_76 = arith.constant 0 : index
    %c0_77 = arith.constant 0 : index
    %178 = vector.load %arg8[%c0_76, %c0_77] : memref<2x32xf32, #tpu.memory_space<vmem>>, vector<2x32xf32>
    %179 = arith.truncf %178 : vector<2x32xf32> to vector<2x32xbf16>
    %c0_78 = arith.constant 0 : index
    %c0_79 = arith.constant 0 : index
    %180 = vector.load %arg3[%c0_78, %c0_79] : memref<32x128xbf16, #tpu.memory_space<vmem>>, vector<32x128xbf16>
    %cst_80 = arith.constant dense<0.000000e+00> : vector<2x128xf32>
    %181 = tpu.matmul %179, %180, %cst_80 {dimension_numbers = #tpu.dot_dimension_numbers<[1], [0], [0], [1], [0, 0, 1, 1], [], []>} : vector<2x32xbf16>, vector<32x128xbf16>, vector<2x128xf32> -> vector<2x128xf32>
    %182 = arith.addf %177, %181 : vector<2x128xf32>
    %183 = arith.index_cast %173 : i32 to index
    %c0_81 = arith.constant 0 : index
    %c0_82 = arith.constant 0 : index
    %184 = vector.load %arg2[%183, %c0_81, %c0_82] : memref<4x2x128xbf16, #tpu.memory_space<vmem>>, vector<1x2x128xbf16>
    %185 = vector.shape_cast %184 : vector<1x2x128xbf16> to vector<2x128xbf16>
    %186 = arith.extf %185 : vector<2x128xbf16> to vector<2x128xf32>
    %c0_83 = arith.constant 0 : index
    %c0_84 = arith.constant 0 : index
    %187 = vector.load %arg10[%c0_83, %c0_84] : memref<2x32xf32, #tpu.memory_space<vmem>>, vector<2x32xf32>
    %188 = arith.truncf %187 : vector<2x32xf32> to vector<2x32xbf16>
    %c0_85 = arith.constant 0 : index
    %c0_86 = arith.constant 0 : index
    %189 = vector.load %arg4[%c0_85, %c0_86] : memref<32x128xbf16, #tpu.memory_space<vmem>>, vector<32x128xbf16>
    %cst_87 = arith.constant dense<0.000000e+00> : vector<2x128xf32>
    %190 = tpu.matmul %188, %189, %cst_87 {dimension_numbers = #tpu.dot_dimension_numbers<[1], [0], [0], [1], [0, 0, 1, 1], [], []>} : vector<2x32xbf16>, vector<32x128xbf16>, vector<2x128xf32> -> vector<2x128xf32>
    %191 = arith.addf %186, %190 : vector<2x128xf32>
    %c0_88 = arith.constant 0 : index
    %c0_89 = arith.constant 0 : index
    %192 = vector.load %arg9[%c0_88, %c0_89] : memref<2x32xf32, #tpu.memory_space<vmem>>, vector<2x32xf32>
    %193 = vector.extract_strided_slice %182 {offsets = [0, 0], sizes = [2, 32], strides = [1, 1]} : vector<2x128xf32> to vector<2x32xf32>
    %194 = arith.negf %193 : vector<2x32xf32>
    %195 = math.exp %194 : vector<2x32xf32>
    %cst_90 = arith.constant 1.000000e+00 : f32
    %196 = vector.broadcast %cst_90 : f32 to vector<2x32xf32>
    %197 = arith.addf %196, %195 : vector<2x32xf32>
    %198 = arith.divf %196, %197 : vector<2x32xf32>
    %199 = vector.extract_strided_slice %182 {offsets = [0, 32], sizes = [2, 32], strides = [1, 1]} : vector<2x128xf32> to vector<2x32xf32>
    %200 = arith.negf %199 : vector<2x32xf32>
    %201 = math.exp %200 : vector<2x32xf32>
    %cst_91 = arith.constant 1.000000e+00 : f32
    %202 = vector.broadcast %cst_91 : f32 to vector<2x32xf32>
    %203 = arith.addf %202, %201 : vector<2x32xf32>
    %204 = arith.divf %202, %203 : vector<2x32xf32>
    %205 = vector.extract_strided_slice %182 {offsets = [0, 64], sizes = [2, 32], strides = [1, 1]} : vector<2x128xf32> to vector<2x32xf32>
    %206 = math.tanh %205 : vector<2x32xf32>
    %207 = vector.extract_strided_slice %182 {offsets = [0, 96], sizes = [2, 32], strides = [1, 1]} : vector<2x128xf32> to vector<2x32xf32>
    %208 = arith.negf %207 : vector<2x32xf32>
    %209 = math.exp %208 : vector<2x32xf32>
    %cst_92 = arith.constant 1.000000e+00 : f32
    %210 = vector.broadcast %cst_92 : f32 to vector<2x32xf32>
    %211 = arith.addf %210, %209 : vector<2x32xf32>
    %212 = arith.divf %210, %211 : vector<2x32xf32>
    %213 = arith.mulf %204, %192 : vector<2x32xf32>
    %214 = arith.mulf %198, %206 : vector<2x32xf32>
    %215 = arith.addf %213, %214 : vector<2x32xf32>
    %216 = math.tanh %215 : vector<2x32xf32>
    %217 = arith.mulf %212, %216 : vector<2x32xf32>
    %c0_93 = arith.constant 0 : index
    %c0_94 = arith.constant 0 : index
    %218 = vector.load %arg11[%c0_93, %c0_94] : memref<2x32xf32, #tpu.memory_space<vmem>>, vector<2x32xf32>
    %219 = vector.extract_strided_slice %191 {offsets = [0, 0], sizes = [2, 32], strides = [1, 1]} : vector<2x128xf32> to vector<2x32xf32>
    %220 = arith.negf %219 : vector<2x32xf32>
    %221 = math.exp %220 : vector<2x32xf32>
    %cst_95 = arith.constant 1.000000e+00 : f32
    %222 = vector.broadcast %cst_95 : f32 to vector<2x32xf32>
    %223 = arith.addf %222, %221 : vector<2x32xf32>
    %224 = arith.divf %222, %223 : vector<2x32xf32>
    %225 = vector.extract_strided_slice %191 {offsets = [0, 32], sizes = [2, 32], strides = [1, 1]} : vector<2x128xf32> to vector<2x32xf32>
    %226 = arith.negf %225 : vector<2x32xf32>
    %227 = math.exp %226 : vector<2x32xf32>
    %cst_96 = arith.constant 1.000000e+00 : f32
    %228 = vector.broadcast %cst_96 : f32 to vector<2x32xf32>
    %229 = arith.addf %228, %227 : vector<2x32xf32>
    %230 = arith.divf %228, %229 : vector<2x32xf32>
    %231 = vector.extract_strided_slice %191 {offsets = [0, 64], sizes = [2, 32], strides = [1, 1]} : vector<2x128xf32> to vector<2x32xf32>
    %232 = math.tanh %231 : vector<2x32xf32>
    %233 = vector.extract_strided_slice %191 {offsets = [0, 96], sizes = [2, 32], strides = [1, 1]} : vector<2x128xf32> to vector<2x32xf32>
    %234 = arith.negf %233 : vector<2x32xf32>
    %235 = math.exp %234 : vector<2x32xf32>
    %cst_97 = arith.constant 1.000000e+00 : f32
    %236 = vector.broadcast %cst_97 : f32 to vector<2x32xf32>
    %237 = arith.addf %236, %235 : vector<2x32xf32>
    %238 = arith.divf %236, %237 : vector<2x32xf32>
    %239 = arith.mulf %230, %218 : vector<2x32xf32>
    %240 = arith.mulf %224, %232 : vector<2x32xf32>
    %241 = arith.addf %239, %240 : vector<2x32xf32>
    %242 = math.tanh %241 : vector<2x32xf32>
    %243 = arith.mulf %238, %242 : vector<2x32xf32>
    %c0_98 = arith.constant 0 : index
    %c0_99 = arith.constant 0 : index
    %244 = vector.load %arg8[%c0_98, %c0_99] : memref<2x32xf32, #tpu.memory_space<vmem>>, vector<2x32xf32>
    tpu.vector_store %arg8[%c0_98, %c0_99], %217 {strides = array<i32>} : memref<2x32xf32, #tpu.memory_space<vmem>>, vector<2x32xf32>,
    %c0_100 = arith.constant 0 : index
    %c0_101 = arith.constant 0 : index
    %245 = vector.load %arg9[%c0_100, %c0_101] : memref<2x32xf32, #tpu.memory_space<vmem>>, vector<2x32xf32>
    tpu.vector_store %arg9[%c0_100, %c0_101], %215 {strides = array<i32>} : memref<2x32xf32, #tpu.memory_space<vmem>>, vector<2x32xf32>,
    %c0_102 = arith.constant 0 : index
    %c0_103 = arith.constant 0 : index
    %246 = vector.load %arg10[%c0_102, %c0_103] : memref<2x32xf32, #tpu.memory_space<vmem>>, vector<2x32xf32>
    tpu.vector_store %arg10[%c0_102, %c0_103], %243 {strides = array<i32>} : memref<2x32xf32, #tpu.memory_space<vmem>>, vector<2x32xf32>,
    %c0_104 = arith.constant 0 : index
    %c0_105 = arith.constant 0 : index
    %247 = vector.load %arg11[%c0_104, %c0_105] : memref<2x32xf32, #tpu.memory_space<vmem>>, vector<2x32xf32>
    tpu.vector_store %arg11[%c0_104, %c0_105], %241 {strides = array<i32>} : memref<2x32xf32, #tpu.memory_space<vmem>>, vector<2x32xf32>,
    %248 = arith.truncf %217 : vector<2x32xf32> to vector<2x32xbf16>
    %249 = arith.index_cast %c2_i32 : i32 to index
    %c0_106 = arith.constant 0 : index
    %c0_107 = arith.constant 0 : index
    %250 = vector.load %arg5[%249, %c0_106, %c0_107] : memref<4x2x32xbf16, #tpu.memory_space<vmem>>, vector<1x2x32xbf16>
    %251 = vector.shape_cast %250 : vector<1x2x32xbf16> to vector<2x32xbf16>
    %252 = vector.shape_cast %248 : vector<2x32xbf16> to vector<1x2x32xbf16>
    tpu.vector_store %arg5[%249, %c0_106, %c0_107], %252 {strides = array<i32>} : memref<4x2x32xbf16, #tpu.memory_space<vmem>>, vector<1x2x32xbf16>,
    %253 = arith.truncf %243 : vector<2x32xf32> to vector<2x32xbf16>
    %254 = arith.index_cast %173 : i32 to index
    %c0_108 = arith.constant 0 : index
    %c0_109 = arith.constant 0 : index
    %255 = vector.load %arg6[%254, %c0_108, %c0_109] : memref<4x2x32xbf16, #tpu.memory_space<vmem>>, vector<1x2x32xbf16>
    %256 = vector.shape_cast %255 : vector<1x2x32xbf16> to vector<2x32xbf16>
    %257 = vector.shape_cast %253 : vector<2x32xbf16> to vector<1x2x32xbf16>
    tpu.vector_store %arg6[%254, %c0_108, %c0_109], %257 {strides = array<i32>} : memref<4x2x32xbf16, #tpu.memory_space<vmem>>, vector<1x2x32xbf16>,
    %c3_i32_110 = arith.constant 3 : i32
    %c3_i32_111 = arith.constant 3 : i32
    %258 = arith.subi %c3_i32_111, %c3_i32_110 : i32
    %259 = arith.index_cast %c3_i32_110 : i32 to index
    %c0_112 = arith.constant 0 : index
    %c0_113 = arith.constant 0 : index
    %260 = vector.load %arg1[%259, %c0_112, %c0_113] : memref<4x2x128xbf16, #tpu.memory_space<vmem>>, vector<1x2x128xbf16>
    %261 = vector.shape_cast %260 : vector<1x2x128xbf16> to vector<2x128xbf16>
    %262 = arith.extf %261 : vector<2x128xbf16> to vector<2x128xf32>
    %c0_114 = arith.constant 0 : index
    %c0_115 = arith.constant 0 : index
    %263 = vector.load %arg8[%c0_114, %c0_115] : memref<2x32xf32, #tpu.memory_space<vmem>>, vector<2x32xf32>
    %264 = arith.truncf %263 : vector<2x32xf32> to vector<2x32xbf16>
    %c0_116 = arith.constant 0 : index
    %c0_117 = arith.constant 0 : index
    %265 = vector.load %arg3[%c0_116, %c0_117] : memref<32x128xbf16, #tpu.memory_space<vmem>>, vector<32x128xbf16>
    %cst_118 = arith.constant dense<0.000000e+00> : vector<2x128xf32>
    %266 = tpu.matmul %264, %265, %cst_118 {dimension_numbers = #tpu.dot_dimension_numbers<[1], [0], [0], [1], [0, 0, 1, 1], [], []>} : vector<2x32xbf16>, vector<32x128xbf16>, vector<2x128xf32> -> vector<2x128xf32>
    %267 = arith.addf %262, %266 : vector<2x128xf32>
    %268 = arith.index_cast %258 : i32 to index
    %c0_119 = arith.constant 0 : index
    %c0_120 = arith.constant 0 : index
    %269 = vector.load %arg2[%268, %c0_119, %c0_120] : memref<4x2x128xbf16, #tpu.memory_space<vmem>>, vector<1x2x128xbf16>
    %270 = vector.shape_cast %269 : vector<1x2x128xbf16> to vector<2x128xbf16>
    %271 = arith.extf %270 : vector<2x128xbf16> to vector<2x128xf32>
    %c0_121 = arith.constant 0 : index
    %c0_122 = arith.constant 0 : index
    %272 = vector.load %arg10[%c0_121, %c0_122] : memref<2x32xf32, #tpu.memory_space<vmem>>, vector<2x32xf32>
    %273 = arith.truncf %272 : vector<2x32xf32> to vector<2x32xbf16>
    %c0_123 = arith.constant 0 : index
    %c0_124 = arith.constant 0 : index
    %274 = vector.load %arg4[%c0_123, %c0_124] : memref<32x128xbf16, #tpu.memory_space<vmem>>, vector<32x128xbf16>
    %cst_125 = arith.constant dense<0.000000e+00> : vector<2x128xf32>
    %275 = tpu.matmul %273, %274, %cst_125 {dimension_numbers = #tpu.dot_dimension_numbers<[1], [0], [0], [1], [0, 0, 1, 1], [], []>} : vector<2x32xbf16>, vector<32x128xbf16>, vector<2x128xf32> -> vector<2x128xf32>
    %276 = arith.addf %271, %275 : vector<2x128xf32>
    %c0_126 = arith.constant 0 : index
    %c0_127 = arith.constant 0 : index
    %277 = vector.load %arg9[%c0_126, %c0_127] : memref<2x32xf32, #tpu.memory_space<vmem>>, vector<2x32xf32>
    %278 = vector.extract_strided_slice %267 {offsets = [0, 0], sizes = [2, 32], strides = [1, 1]} : vector<2x128xf32> to vector<2x32xf32>
    %279 = arith.negf %278 : vector<2x32xf32>
    %280 = math.exp %279 : vector<2x32xf32>
    %cst_128 = arith.constant 1.000000e+00 : f32
    %281 = vector.broadcast %cst_128 : f32 to vector<2x32xf32>
    %282 = arith.addf %281, %280 : vector<2x32xf32>
    %283 = arith.divf %281, %282 : vector<2x32xf32>
    %284 = vector.extract_strided_slice %267 {offsets = [0, 32], sizes = [2, 32], strides = [1, 1]} : vector<2x128xf32> to vector<2x32xf32>
    %285 = arith.negf %284 : vector<2x32xf32>
    %286 = math.exp %285 : vector<2x32xf32>
    %cst_129 = arith.constant 1.000000e+00 : f32
    %287 = vector.broadcast %cst_129 : f32 to vector<2x32xf32>
    %288 = arith.addf %287, %286 : vector<2x32xf32>
    %289 = arith.divf %287, %288 : vector<2x32xf32>
    %290 = vector.extract_strided_slice %267 {offsets = [0, 64], sizes = [2, 32], strides = [1, 1]} : vector<2x128xf32> to vector<2x32xf32>
    %291 = math.tanh %290 : vector<2x32xf32>
    %292 = vector.extract_strided_slice %267 {offsets = [0, 96], sizes = [2, 32], strides = [1, 1]} : vector<2x128xf32> to vector<2x32xf32>
    %293 = arith.negf %292 : vector<2x32xf32>
    %294 = math.exp %293 : vector<2x32xf32>
    %cst_130 = arith.constant 1.000000e+00 : f32
    %295 = vector.broadcast %cst_130 : f32 to vector<2x32xf32>
    %296 = arith.addf %295, %294 : vector<2x32xf32>
    %297 = arith.divf %295, %296 : vector<2x32xf32>
    %298 = arith.mulf %289, %277 : vector<2x32xf32>
    %299 = arith.mulf %283, %291 : vector<2x32xf32>
    %300 = arith.addf %298, %299 : vector<2x32xf32>
    %301 = math.tanh %300 : vector<2x32xf32>
    %302 = arith.mulf %297, %301 : vector<2x32xf32>
    %c0_131 = arith.constant 0 : index
    %c0_132 = arith.constant 0 : index
    %303 = vector.load %arg11[%c0_131, %c0_132] : memref<2x32xf32, #tpu.memory_space<vmem>>, vector<2x32xf32>
    %304 = vector.extract_strided_slice %276 {offsets = [0, 0], sizes = [2, 32], strides = [1, 1]} : vector<2x128xf32> to vector<2x32xf32>
    %305 = arith.negf %304 : vector<2x32xf32>
    %306 = math.exp %305 : vector<2x32xf32>
    %cst_133 = arith.constant 1.000000e+00 : f32
    %307 = vector.broadcast %cst_133 : f32 to vector<2x32xf32>
    %308 = arith.addf %307, %306 : vector<2x32xf32>
    %309 = arith.divf %307, %308 : vector<2x32xf32>
    %310 = vector.extract_strided_slice %276 {offsets = [0, 32], sizes = [2, 32], strides = [1, 1]} : vector<2x128xf32> to vector<2x32xf32>
    %311 = arith.negf %310 : vector<2x32xf32>
    %312 = math.exp %311 : vector<2x32xf32>
    %cst_134 = arith.constant 1.000000e+00 : f32
    %313 = vector.broadcast %cst_134 : f32 to vector<2x32xf32>
    %314 = arith.addf %313, %312 : vector<2x32xf32>
    %315 = arith.divf %313, %314 : vector<2x32xf32>
    %316 = vector.extract_strided_slice %276 {offsets = [0, 64], sizes = [2, 32], strides = [1, 1]} : vector<2x128xf32> to vector<2x32xf32>
    %317 = math.tanh %316 : vector<2x32xf32>
    %318 = vector.extract_strided_slice %276 {offsets = [0, 96], sizes = [2, 32], strides = [1, 1]} : vector<2x128xf32> to vector<2x32xf32>
    %319 = arith.negf %318 : vector<2x32xf32>
    %320 = math.exp %319 : vector<2x32xf32>
    %cst_135 = arith.constant 1.000000e+00 : f32
    %321 = vector.broadcast %cst_135 : f32 to vector<2x32xf32>
    %322 = arith.addf %321, %320 : vector<2x32xf32>
    %323 = arith.divf %321, %322 : vector<2x32xf32>
    %324 = arith.mulf %315, %303 : vector<2x32xf32>
    %325 = arith.mulf %309, %317 : vector<2x32xf32>
    %326 = arith.addf %324, %325 : vector<2x32xf32>
    %327 = math.tanh %326 : vector<2x32xf32>
    %328 = arith.mulf %323, %327 : vector<2x32xf32>
    %c0_136 = arith.constant 0 : index
    %c0_137 = arith.constant 0 : index
    %329 = vector.load %arg8[%c0_136, %c0_137] : memref<2x32xf32, #tpu.memory_space<vmem>>, vector<2x32xf32>
    tpu.vector_store %arg8[%c0_136, %c0_137], %302 {strides = array<i32>} : memref<2x32xf32, #tpu.memory_space<vmem>>, vector<2x32xf32>,
    %c0_138 = arith.constant 0 : index
    %c0_139 = arith.constant 0 : index
    %330 = vector.load %arg9[%c0_138, %c0_139] : memref<2x32xf32, #tpu.memory_space<vmem>>, vector<2x32xf32>
    tpu.vector_store %arg9[%c0_138, %c0_139], %300 {strides = array<i32>} : memref<2x32xf32, #tpu.memory_space<vmem>>, vector<2x32xf32>,
    %c0_140 = arith.constant 0 : index
    %c0_141 = arith.constant 0 : index
    %331 = vector.load %arg10[%c0_140, %c0_141] : memref<2x32xf32, #tpu.memory_space<vmem>>, vector<2x32xf32>
    tpu.vector_store %arg10[%c0_140, %c0_141], %328 {strides = array<i32>} : memref<2x32xf32, #tpu.memory_space<vmem>>, vector<2x32xf32>,
    %c0_142 = arith.constant 0 : index
    %c0_143 = arith.constant 0 : index
    %332 = vector.load %arg11[%c0_142, %c0_143] : memref<2x32xf32, #tpu.memory_space<vmem>>, vector<2x32xf32>
    tpu.vector_store %arg11[%c0_142, %c0_143], %326 {strides = array<i32>} : memref<2x32xf32, #tpu.memory_space<vmem>>, vector<2x32xf32>,
    %333 = arith.truncf %302 : vector<2x32xf32> to vector<2x32xbf16>
    %334 = arith.index_cast %c3_i32_110 : i32 to index
    %c0_144 = arith.constant 0 : index
    %c0_145 = arith.constant 0 : index
    %335 = vector.load %arg5[%334, %c0_144, %c0_145] : memref<4x2x32xbf16, #tpu.memory_space<vmem>>, vector<1x2x32xbf16>
    %336 = vector.shape_cast %335 : vector<1x2x32xbf16> to vector<2x32xbf16>
    %337 = vector.shape_cast %333 : vector<2x32xbf16> to vector<1x2x32xbf16>
    tpu.vector_store %arg5[%334, %c0_144, %c0_145], %337 {strides = array<i32>} : memref<4x2x32xbf16, #tpu.memory_space<vmem>>, vector<1x2x32xbf16>,
    %338 = arith.truncf %328 : vector<2x32xf32> to vector<2x32xbf16>
    %339 = arith.index_cast %258 : i32 to index
    %c0_146 = arith.constant 0 : index
    %c0_147 = arith.constant 0 : index
    %340 = vector.load %arg6[%339, %c0_146, %c0_147] : memref<4x2x32xbf16, #tpu.memory_space<vmem>>, vector<1x2x32xbf16>
    %341 = vector.shape_cast %340 : vector<1x2x32xbf16> to vector<2x32xbf16>
    %342 = vector.shape_cast %338 : vector<2x32xbf16> to vector<1x2x32xbf16>
    tpu.vector_store %arg6[%339, %c0_146, %c0_147], %342 {strides = array<i32>} : memref<4x2x32xbf16, #tpu.memory_space<vmem>>, vector<1x2x32xbf16>,
    %c4_i32 = arith.constant 4 : i32
    %c0_148 = arith.constant 0 : index
    %c0_149 = arith.constant 0 : index
    %343 = vector.load %arg8[%c0_148, %c0_149] : memref<2x32xf32, #tpu.memory_space<vmem>>, vector<2x32xf32>
    %c0_150 = arith.constant 0 : index
    %c0_151 = arith.constant 0 : index
    %c0_152 = arith.constant 0 : index
    %344 = vector.load %arg7[%c0_150, %c0_151, %c0_152] : memref<2x2x32xf32, #tpu.memory_space<vmem>>, vector<1x2x32xf32>
    %345 = vector.shape_cast %344 : vector<1x2x32xf32> to vector<2x32xf32>
    %346 = vector.shape_cast %343 : vector<2x32xf32> to vector<1x2x32xf32>
    tpu.vector_store %arg7[%c0_150, %c0_151, %c0_152], %346 {strides = array<i32>} : memref<2x2x32xf32, #tpu.memory_space<vmem>>, vector<1x2x32xf32>,
    %c0_153 = arith.constant 0 : index
    %c0_154 = arith.constant 0 : index
    %347 = vector.load %arg10[%c0_153, %c0_154] : memref<2x32xf32, #tpu.memory_space<vmem>>, vector<2x32xf32>
    %c1 = arith.constant 1 : index
    %c0_155 = arith.constant 0 : index
    %c0_156 = arith.constant 0 : index
    %348 = vector.load %arg7[%c1, %c0_155, %c0_156] : memref<2x2x32xf32, #tpu.memory_space<vmem>>, vector<1x2x32xf32>
    %349 = vector.shape_cast %348 : vector<1x2x32xf32> to vector<2x32xf32>
    %350 = vector.shape_cast %347 : vector<2x32xf32> to vector<1x2x32xf32>
    tpu.vector_store %arg7[%c1, %c0_155, %c0_156], %350 {strides = array<i32>} : memref<2x2x32xf32, #tpu.memory_space<vmem>>, vector<1x2x32xf32>,
    return
  }
  func.func @transform_0(%arg0: i32) -> (i32, i32, i32) {
    %c0_i32 = arith.constant 0 : i32
    %c0_i32_0 = arith.constant 0 : i32
    %c0_i32_1 = arith.constant 0 : i32
    return %arg0, %c0_i32, %c0_i32_0 : i32, i32, i32
  }
  func.func @transform_1(%arg0: i32) -> (i32, i32, i32) {
    %c0_i32 = arith.constant 0 : i32
    %0 = arith.subi %c0_i32, %arg0 : i32
    %c0_i32_0 = arith.constant 0 : i32
    %c0_i32_1 = arith.constant 0 : i32
    %c0_i32_2 = arith.constant 0 : i32
    return %0, %c0_i32_0, %c0_i32_1 : i32, i32, i32
  }
  func.func @transform_2(%arg0: i32) -> (i32, i32) {
    %c0_i32 = arith.constant 0 : i32
    %c0_i32_0 = arith.constant 0 : i32
    %c0_i32_1 = arith.constant 0 : i32
    return %c0_i32, %c0_i32_0 : i32, i32
  }
  func.func @transform_3(%arg0: i32) -> (i32, i32) {
    %c0_i32 = arith.constant 0 : i32
    %c0_i32_0 = arith.constant 0 : i32
    %c0_i32_1 = arith.constant 0 : i32
    return %c0_i32, %c0_i32_0 : i32, i32
  }
  func.func @transform_4(%arg0: i32) -> (i32, i32, i32) {
    %c0_i32 = arith.constant 0 : i32
    %c0_i32_0 = arith.constant 0 : i32
    %c0_i32_1 = arith.constant 0 : i32
    return %arg0, %c0_i32, %c0_i32_0 : i32, i32, i32
  }
  func.func @transform_5(%arg0: i32) -> (i32, i32, i32) {
    %c0_i32 = arith.constant 0 : i32
    %0 = arith.subi %c0_i32, %arg0 : i32
    %c0_i32_0 = arith.constant 0 : i32
    %c0_i32_1 = arith.constant 0 : i32
    %c0_i32_2 = arith.constant 0 : i32
    return %0, %c0_i32_0, %c0_i32_1 : i32, i32, i32
  }
  func.func @transform_6(%arg0: i32) -> (i32, i32, i32) {
    %c0_i32 = arith.constant 0 : i32
    %c0_i32_0 = arith.constant 0 : i32
    %c0_i32_1 = arith.constant 0 : i32
    %c0_i32_2 = arith.constant 0 : i32
    return %c0_i32, %c0_i32_0, %c0_i32_1 : i32, i32, i32
  }
}

</mosaic_0001>

<llo_original>
// kernel: encoder_forward.11
$region0: #{encoder_forward.11}
  #allocation0 [shape = 'u32[]', space=smem, size = 0x4, offset = 0x4, fixed_abs, tag = 'smem constant byte address 0x4 - core index']
  #allocation1 [shape = 'u32[144,128]{1,0:T(1,128)}', space=vmem, size = 0x12000, scoped, tag = 'internal scratch']
  %s0 = inlined_call_operand.vmem [shape: bf16[2,66,65,6], index: 0, kind: input, shape index: {}]
  %s1 = inlined_call_operand.vmem [shape: bf16[3,6,8], index: 1, kind: input, shape index: {}]
  %s2 = inlined_call_operand.vmem [shape: bf16[3,3,8], index: 2, kind: input, shape index: {}]
  %s3 = inlined_call_operand.vmem [shape: f32[1,8], index: 3, kind: input, shape index: {}]
  %s4 = inlined_call_operand.vmem [shape: bf16[2,32,64,8], index: 4, kind: output, shape index: {}]
  %s5 = sld [smem:[#allocation0]]
  $region56: #{encoder_forward.11} parent=0
    _
  %s7 = ssub.s32 1, %s5
  %s8 = scalar_select 0, %s7, %s5
  loop: start=0, step=1, limit=4
  $region2: #{encoder_forward.11} parent=0 // loop_pre_header
    _
  $region3: #{encoder_forward.11} parent=0 // loop_header
    %s10 = sphi 0, %s14
    %p11 = scmp.ge.s32.totalorder %s10, 4
    %s20 = sphi 0, %s22
    %s23 = sphi 0, %s20
    %s24 = sphi 0, %s23
    %s40 = sphi 0, %s24
    %s44 = sphi 0, %s44
    %s46 = sphi 0, %s44
    %s47 = sphi 0, %s46
    %s61 = sphi 0, %s47
    %s65 = sphi 0, %s65
    %s67 = sphi 0, %s65
    %s68 = sphi 0, %s67
    %s82 = sphi 0, %s68
    %s86 = sphi 0, %s86
    %s88 = sphi 0, %s86
    %s89 = sphi 0, %s88
    %s103 = sphi 0, %s89
    %s109 = sphi 0, %s111
    %s112 = sphi 0, %s109
    %s113 = sphi 0, %s112
    %s129 = sphi 0, %s113
  $region4: #{encoder_forward.11} parent=0 // loop_header_branch
    %13 = sbr.rel (%p11) target = $region8
  $region5: #{encoder_forward.11} parent=0 // loop_body
    %s15 = ssub.s32 %s10, 1
    %s16 = ssub.s32 %s10, 2
    %s17 = sadd.s32 %s10, 1
    %s18 = ssub.s32 %s10, %s17
    %p19 = scmp.eq.s32.totalorder %s18, 0
    %s21 = sadd.s32 %s20, 1
    %s22 = scalar_select %p19, %s20, %s21
    %p25 = pneg %p19
    %p26 = scmp.eq.s32.totalorder %s10, 1
    %p27 = por %p25, %p26
    %p28 = scmp.ne.s32.totalorder %s20, %s23
    %p29 = scmp.eq.s32.totalorder %s10, 0
    %p30 = por %p28, %p29
    %p31 = scmp.ne.s32.totalorder %s20, %s23
    %p32 = scmp.eq.s32.totalorder %s15, 1
    %p33 = por %p31, %p32
    %p34 = scmp.ne.s32.totalorder %s23, %s24
    %p35 = scmp.eq.s32.totalorder %s15, 0
    %p36 = por %p34, %p35
    %p37 = scmp.ne.s32.totalorder %s23, %s24
    %p38 = scmp.eq.s32.totalorder %s16, 1
    %p39 = por %p37, %p38
    %p41 = scmp.ne.s32.totalorder %s24, %s40
    %p42 = scmp.eq.s32.totalorder %s16, 0
    %p43 = por %p41, %p42
    %s45 = sadd.s32 %s44, 1
    %p48 = scmp.eq.s32.totalorder %s10, 1
    %p49 = scmp.ne.s32.totalorder %s44, %s46
    %p50 = scmp.eq.s32.totalorder %s10, 0
    %p51 = por %p49, %p50
    %p52 = scmp.ne.s32.totalorder %s44, %s46
    %p53 = scmp.eq.s32.totalorder %s15, 1
    %p54 = por %p52, %p53
    %p55 = scmp.ne.s32.totalorder %s46, %s47
    %p56 = scmp.eq.s32.totalorder %s15, 0
    %p57 = por %p55, %p56
    %p58 = scmp.ne.s32.totalorder %s46, %s47
    %p59 = scmp.eq.s32.totalorder %s16, 1
    %p60 = por %p58, %p59
    %p62 = scmp.ne.s32.totalorder %s47, %s61
    %p63 = scmp.eq.s32.totalorder %s16, 0
    %p64 = por %p62, %p63
    %s66 = sadd.s32 %s65, 1
    %p69 = scmp.eq.s32.totalorder %s10, 1
    %p70 = scmp.ne.s32.totalorder %s65, %s67
    %p71 = scmp.eq.s32.totalorder %s10, 0
    %p72 = por %p70, %p71
    %p73 = scmp.ne.s32.totalorder %s65, %s67
    %p74 = scmp.eq.s32.totalorder %s15, 1
    %p75 = por %p73, %p74
    %p76 = scmp.ne.s32.totalorder %s67, %s68
    %p77 = scmp.eq.s32.totalorder %s15, 0
    %p78 = por %p76, %p77
    %p79 = scmp.ne.s32.totalorder %s67, %s68
    %p80 = scmp.eq.s32.totalorder %s16, 1
    %p81 = por %p79, %p80
    %p83 = scmp.ne.s32.totalorder %s68, %s82
    %p84 = scmp.eq.s32.totalorder %s16, 0
    %p85 = por %p83, %p84
    %s87 = sadd.s32 %s86, 1
    %p90 = scmp.eq.s32.totalorder %s10, 1
    %p91 = scmp.ne.s32.totalorder %s86, %s88
    %p92 = scmp.eq.s32.totalorder %s10, 0
    %p93 = por %p91, %p92
    %p94 = scmp.ne.s32.totalorder %s86, %s88
    %p95 = scmp.eq.s32.totalorder %s15, 1
    %p96 = por %p94, %p95
    %p97 = scmp.ne.s32.totalorder %s88, %s89
    %p98 = scmp.eq.s32.totalorder %s15, 0
    %p99 = por %p97, %p98
    %p100 = scmp.ne.s32.totalorder %s88, %s89
    %p101 = scmp.eq.s32.totalorder %s16, 1
    %p102 = por %p100, %p101
    %p104 = scmp.ne.s32.totalorder %s89, %s103
    %p105 = scmp.eq.s32.totalorder %s16, 0
    %p106 = por %p104, %p105
    %s107 = ssub.s32 %s10, %s17
    %p108 = scmp.eq.s32.totalorder %s107, 0
    %s110 = sadd.s32 %s109, 1
    %s111 = scalar_select %p108, %s109, %s110
    %p114 = pneg %p108
    %p115 = scmp.eq.s32.totalorder %s10, 1
    %p116 = por %p114, %p115
    %p117 = scmp.ne.s32.totalorder %s109, %s112
    %p118 = scmp.eq.s32.totalorder %s10, 0
    %p119 = por %p117, %p118
    %p120 = scmp.ne.s32.totalorder %s109, %s112
    %p121 = scmp.eq.s32.totalorder %s15, 1
    %p122 = por %p120, %p121
    %p123 = scmp.ne.s32.totalorder %s112, %s113
    %p124 = scmp.eq.s32.totalorder %s15, 0
    %p125 = por %p123, %p124
    %p126 = scmp.ne.s32.totalorder %s112, %s113
    %p127 = scmp.eq.s32.totalorder %s16, 1
    %p128 = por %p126, %p127
    %p130 = scmp.ne.s32.totalorder %s113, %s129
    %p131 = scmp.eq.s32.totalorder %s16, 0
    %p132 = por %p130, %p131
    %p133 = scmp.le.s32.totalorder 1, %s10
    %p134 = scmp.lt.s32.totalorder %s10, 3
    %p135 = pnand %p133, %p134
    %p136 = pneg %p135
    // Predicated region
    $region9: #{encoder_forward.11} parent=5 // pred_check
      _
    $region10: #{encoder_forward.11} parent=5 // pred_check_branch
      %138 = sbr.rel (%p135) target = $region12
    $region11: #{encoder_forward.11} parent=5 // pred_region
      %s139 = ssub.s32 %s10, 1
      // Predicated region
      $region13: #{encoder_forward.11} parent=11 // pred_check
        %p140 = pneg %p57
      $region14: #{encoder_forward.11} parent=11 // pred_check_branch
        %142 = sbr.rel (%p140) target = $region16
      $region15: #{encoder_forward.11} parent=11 // pred_region
        _
      $region16: #{encoder_forward.11} parent=11 // pred_fallthru
        _
      // Predicated region
      $region17: #{encoder_forward.11} parent=11 // pred_check
        %p143 = pneg %p78
      $region18: #{encoder_forward.11} parent=11 // pred_check_branch
        %145 = sbr.rel (%p143) target = $region20
      $region19: #{encoder_forward.11} parent=11 // pred_region
        _
      $region20: #{encoder_forward.11} parent=11 // pred_fallthru
        _
      // Predicated region
      $region21: #{encoder_forward.11} parent=11 // pred_check
        %p146 = pneg %p99
      $region22: #{encoder_forward.11} parent=11 // pred_check_branch
        %148 = sbr.rel (%p146) target = $region24
      $region23: #{encoder_forward.11} parent=11 // pred_region
        _
      $region24: #{encoder_forward.11} parent=11 // pred_fallthru
        _
    $region12: #{encoder_forward.11} parent=5 // pred_fallthru
      _
    %p149 = scmp.lt.s32.totalorder %s10, 2
    // Predicated region
    $region25: #{encoder_forward.11} parent=5 // pred_check
      %p150 = pneg %p149
    $region26: #{encoder_forward.11} parent=5 // pred_check_branch
      %152 = sbr.rel (%p150) target = $region28
    $region27: #{encoder_forward.11} parent=5 // pred_region
      // Predicated region
      $region29: #{encoder_forward.11} parent=27 // pred_check
        %p153 = pneg %p30
      $region30: #{encoder_forward.11} parent=27 // pred_check_branch
        %155 = sbr.rel (%p153) target = $region32
      $region31: #{encoder_forward.11} parent=27 // pred_region
        %p156 = scmp.lt.s32.totalorder %s10, 1
        %s157 = scalar_select %p156, %s10, 1
        %s158 = smul.addr %s157, 594
        %s159 = smul.addr %s158, 4
        %s160 = scalar_lea.vmem %s0, %s159
      $region32: #{encoder_forward.11} parent=27 // pred_fallthru
        _
    $region28: #{encoder_forward.11} parent=5 // pred_fallthru
      _
    %p161 = scmp.le.s32.totalorder 1, %s10
    %p162 = scmp.lt.s32.totalorder %s10, 3
    %p163 = pnand %p161, %p162
    %p164 = pneg %p163
    // Predicated region
    $region33: #{encoder_forward.11} parent=5 // pred_check
      _
    $region34: #{encoder_forward.11} parent=5 // pred_check_branch
      %166 = sbr.rel (%p163) target = $region36
    $region35: #{encoder_forward.11} parent=5 // pred_region
      %s167 = ssub.s32 %s10, 1
      %p168 = scmp.lt.s32.totalorder %s15, 1
      %s169 = scalar_select %p168, %s15, 1
      %s170 = smul.addr %s169, 594
      %s171 = smul.addr %s170, 4
      %s172 = scalar_lea.vmem %s0, %s171
      %p173 = pneg %p36
      %p174 = pneg %p33
      %p175 = pneg %p57
      %p176 = pneg %p54
      %p177 = pneg %p78
      %p178 = pneg %p75
      %p179 = pneg %p99
      %p180 = pneg %p96
      %p181 = pneg %p125
      %p182 = pneg %p122
      %p183 = scmp.lt.s32.totalorder %s15, 1
      %s184 = scalar_select %p183, %s15, 1
      %s185 = smul.addr %s184, 256
      %s186 = smul.addr %s185, 4
      %s187 = scalar_lea.vmem %s4, %s186
      %p188 = scmp.lt.s32.totalorder %s15, 1
      %s189 = scalar_select %p188, %s15, 1
      %s190 = smul.addr %s189, 594
      %s191 = smul.addr %s190, 4
      %s192 = scalar_lea.vmem %s0, %s191
      %p193 = scmp.lt.s32.totalorder %s15, 1
      %s194 = scalar_select %p193, %s15, 1
      %s195 = smul.addr %s194, 256
      %s196 = smul.addr %s195, 4
      %s197 = scalar_lea.vmem %s4, %s196
      %v199 = vld [vmem:[%s3] sm:$0x1]
      %v200 = vld [vmem:[%s1] sm:$0x7]
      %v201 = vld [vmem:[%s1 + $0x4] sm:$0x7]
      %v202 = vld [vmem:[%s1 + $0x8] sm:$0x7]
      %v203 = vld [vmem:[%s2] sm:$0x3]
      %v204 = vld [vmem:[%s2 + $0x2] sm:$0x3]
      %v205 = vld [vmem:[%s2 + $0x4] sm:$0x3]
      loop: start=0, step=1, limit=32
      $region37: #{encoder_forward.11} parent=35 // loop_pre_header
        _
      $region38: #{encoder_forward.11} parent=35 // loop_header
        %s207 = sphi 0, %s211
        %p208 = scmp.ge.s32.totalorder %s207, 32
      $region39: #{encoder_forward.11} parent=35 // loop_header_branch
        %210 = sbr.rel (%p208) target = $region43
      $region40: #{encoder_forward.11} parent=35 // loop_body
        %s212 = smul.u32 %s207, 2
        %s213 = smul.u32 %s212, 9
        %s214 = smul.addr %s213, 4
        %s215 = scalar_lea.vmem %s192, %s214
        %v216 = vld [vmem:[%s215] sm:$0xf]
        %v217 = vld [vmem:[%s215 + $0x4] sm:$0xf]
        %v218 = vld [vmem:[%s215 + $0x8] sm:$0xf]
        %v219 = vld [vmem:[%s215 + $0xc] sm:$0xf]
        %v220 = vld [vmem:[%s215 + $0x10] sm:$0xf]
        %v221 = vld [vmem:[%s215 + $0x14] sm:$0xf]
        %v222 = vld [vmem:[%s215 + $0x18] sm:$0xf]
        %v223 = vld [vmem:[%s215 + $0x1c] sm:$0xf]
        %v224 = vld [vmem:[%s215 + $0x20] sm:$0x1]
        %v234 = vunpack.c.l.b16 %v216
        %v235 = vunpack.c.l.b16 %v217
        %v236 = vunpack.c.l.b16 %v218
        %v237 = vunpack.c.l.b16 %v219
        %v238 = vunpack.c.l.b16 %v220
        %v239 = vunpack.c.l.b16 %v221
        %v240 = vunpack.c.l.b16 %v222
        %v241 = vunpack.c.l.b16 %v223
        %v242 = vunpack.c.l.b16 %v224
        %v243 = vpack.c.b16 %v235, %v234
        %v244 = vpack.c.b16 %v237, %v236
        %v245 = vpack.c.b16 %v239, %v238
        %v246 = vpack.c.b16 %v241, %v240
        %v247 = vpack.c.b16 %v242, %v242
        %vm248 = vsmask.f32 7424
        %v250 = vshrl.u32 %v243, 16
        %v252 = vshll.u32 %v243, 16
        %v254 = vrot.slane %v252, 1
        %v255 = vor.u32 %v250, %v254
        %v257 = vshll.u32 %v244, 16
        %v259 = vrot.slane %v257, 1
        %v260 = vsel %vm248, %v255, %v259
        %v261 = vshrl.u32 %v244, 16
        %v263 = vor.u32 %v261, %v259
        %v265 = vshll.u32 %v245, 16
        %v267 = vrot.slane %v265, 1
        %v268 = vsel %vm248, %v263, %v267
        %v269 = vshrl.u32 %v245, 16
        %v271 = vor.u32 %v269, %v267
        %v273 = vshll.u32 %v246, 16
        %v275 = vrot.slane %v273, 1
        %v276 = vsel %vm248, %v271, %v275
        %v277 = vshrl.u32 %v246, 16
        %v279 = vor.u32 %v277, %v275
        %v281 = vshll.u32 %v247, 16
        %v283 = vrot.slane %v281, 1
        %v284 = vsel %vm248, %v279, %v283
        %vm285 = vcmask 23552
        %v287 = vsel %vm285, %v260, 0
        %v290 = vsel %vm285, %v268, 0
        %v293 = vsel %vm285, %v276, 0
        %v296 = vsel %vm285, %v284, 0
        %vm298 = vcmask 1040384
        %vm299 = vcmask 1041408
        %v300 = vsel %vm298, 4294967295, 65535
        %v301 = vsel %vm299, %v300, 0
        %v303 = vand.u32 %v203, %v301
        %305 = vmatprep.subr.bf16.mxu0 0
        %306 = vmatpush1.bf16.msra.mxu0 %v303
        %307 = vmatprep.subr.bf16.mxu0 0
        %308 = vmatpush1.bf16.msra.mxu0 0
        %309 = vmatprep.subr.bf16.mxu0 0
        %310 = vmatpush1.bf16.msra.mxu0 0
        %311 = vmatprep.subr.bf16.mxu0 0
        %312 = vmatpush1.bf16.msra.mxu0 0
        %313 = vmatprep.subr.bf16.mxu0 0
        %314 = vmatpush1.bf16.msra.mxu0 0
        %315 = vmatprep.subr.bf16.mxu0 0
        %316 = vmatpush1.bf16.msra.mxu0 0
        %317 = vmatprep.subr.bf16.mxu0 0
        %318 = vmatpush1.bf16.msra.mxu0 0
        %319 = vmatprep.subr.bf16.mxu0 0
        %320 = vmatpush1.bf16.msra.mxu0 0
        %321 = vmatprep.subr.bf16.mxu0 0
        %322 = vmatpush1.bf16.msra.mxu0 0
        %323 = vmatprep.subr.bf16.mxu0 0
        %324 = vmatpush1.bf16.msra.mxu0 0
        %325 = vmatprep.subr.bf16.mxu0 0
        %326 = vmatpush1.bf16.msra.mxu0 0
        %327 = vmatprep.subr.bf16.mxu0 0
        %328 = vmatpush1.bf16.msra.mxu0 0
        %329 = vmatprep.subr.bf16.mxu0 0
        %330 = vmatpush1.bf16.msra.mxu0 0
        %331 = vmatprep.subr.bf16.mxu0 0
        %332 = vmatpush1.bf16.msra.mxu0 0
        %333 = vmatprep.subr.bf16.mxu0 0
        %334 = vmatpush1.bf16.msra.mxu0 0
        %335 = vmatprep.subr.bf16.mxu0 0
        %336 = vmatpush1.bf16.msra.mxu0 0
        %337 = vmatprep.mubr.bf16.mxu0 0
        %338 = vmatmul.mubr.bf16.gmra.mrb[0].mxu0 %v287
        %v339 = vpop.f32.mrb[0].mxu0
        %v340 = vadd.f32 0.0, %v339
        %v341 = vpop.f32.mrb[0].mxu0
        %v342 = vpop.f32.mrb[0].mxu0
        %v343 = vadd.f32 0.0, %v342
        %v344 = vpop.f32.mrb[0].mxu0
        %345 = vmatprep.mubr.bf16.mxu0 0
        %346 = vmatmul.mubr.bf16.gmra.mrb[0].mxu0 %v290
        %v347 = vpop.f32.mrb[0].mxu0
        %v348 = vadd.f32 0.0, %v347
        %v349 = vpop.f32.mrb[0].mxu0
        %v350 = vpop.f32.mrb[0].mxu0
        %v351 = vadd.f32 0.0, %v350
        %v352 = vpop.f32.mrb[0].mxu0
        %353 = vmatprep.mubr.bf16.mxu0 0
        %354 = vmatmul.mubr.bf16.gmra.mrb[0].mxu0 %v293
        %v355 = vpop.f32.mrb[0].mxu0
        %v356 = vadd.f32 0.0, %v355
        %v357 = vpop.f32.mrb[0].mxu0
        %v358 = vpop.f32.mrb[0].mxu0
        %v359 = vadd.f32 0.0, %v358
        %v360 = vpop.f32.mrb[0].mxu0
        %361 = vmatprep.mubr.bf16.mxu0 0
        %362 = vmatmul.mubr.bf16.gmra.mrb[0].mxu0 %v296
        %v363 = vpop.f32.mrb[0].mxu0
        %v364 = vadd.f32 0.0, %v363
        %v365 = vpop.f32.mrb[0].mxu0
        %v366 = vpop.f32.mrb[0].mxu0
        %v367 = vadd.f32 0.0, %v366
        %v368 = vpop.f32.mrb[0].mxu0
        %369 = vdwg.mxu0
        %vm370 = vcmask 48128
        %v371 = vsel %vm370, %v243, 0
        %v373 = vsel %vm370, %v244, 0
        %v375 = vsel %vm370, %v245, 0
        %v377 = vsel %vm370, %v246, 0
        %vm379 = vcmask 1042432
        %v381 = vsel %vm379, %v200, 0
        %383 = vmatprep.subr.bf16.mxu0 0
        %384 = vmatpush1.bf16.msra.mxu0 %v381
        %385 = vmatprep.subr.bf16.mxu0 0
        %386 = vmatpush1.bf16.msra.mxu0 0
        %387 = vmatprep.subr.bf16.mxu0 0
        %388 = vmatpush1.bf16.msra.mxu0 0
        %389 = vmatprep.subr.bf16.mxu0 0
        %390 = vmatpush1.bf16.msra.mxu0 0
        %391 = vmatprep.subr.bf16.mxu0 0
        %392 = vmatpush1.bf16.msra.mxu0 0
        %393 = vmatprep.subr.bf16.mxu0 0
        %394 = vmatpush1.bf16.msra.mxu0 0
        %395 = vmatprep.subr.bf16.mxu0 0
        %396 = vmatpush1.bf16.msra.mxu0 0
        %397 = vmatprep.subr.bf16.mxu0 0
        %398 = vmatpush1.bf16.msra.mxu0 0
        %399 = vmatprep.subr.bf16.mxu0 0
        %400 = vmatpush1.bf16.msra.mxu0 0
        %401 = vmatprep.subr.bf16.mxu0 0
        %402 = vmatpush1.bf16.msra.mxu0 0
        %403 = vmatprep.subr.bf16.mxu0 0
        %404 = vmatpush1.bf16.msra.mxu0 0
        %405 = vmatprep.subr.bf16.mxu0 0
        %406 = vmatpush1.bf16.msra.mxu0 0
        %407 = vmatprep.subr.bf16.mxu0 0
        %408 = vmatpush1.bf16.msra.mxu0 0
        %409 = vmatprep.subr.bf16.mxu0 0
        %410 = vmatpush1.bf16.msra.mxu0 0
        %411 = vmatprep.subr.bf16.mxu0 0
        %412 = vmatpush1.bf16.msra.mxu0 0
        %413 = vmatprep.subr.bf16.mxu0 0
        %414 = vmatpush1.bf16.msra.mxu0 0
        %415 = vmatprep.mubr.bf16.mxu0 0
        %416 = vmatmul.mubr.bf16.gmra.mrb[0].mxu0 %v371
        %v417 = vpop.f32.mrb[0].mxu0
        %v418 = vadd.f32 %v340, %v417
        %v419 = vpop.f32.mrb[0].mxu0
        %v420 = vpop.f32.mrb[0].mxu0
        %v421 = vadd.f32 %v343, %v420
        %v422 = vpop.f32.mrb[0].mxu0
        %423 = vmatprep.mubr.bf16.mxu0 0
        %424 = vmatmul.mubr.bf16.gmra.mrb[0].mxu0 %v373
        %v425 = vpop.f32.mrb[0].mxu0
        %v426 = vadd.f32 %v348, %v425
        %v427 = vpop.f32.mrb[0].mxu0
        %v428 = vpop.f32.mrb[0].mxu0
        %v429 = vadd.f32 %v351, %v428
        %v430 = vpop.f32.mrb[0].mxu0
        %431 = vmatprep.mubr.bf16.mxu0 0
        %432 = vmatmul.mubr.bf16.gmra.mrb[0].mxu0 %v375
        %v433 = vpop.f32.mrb[0].mxu0
        %v434 = vadd.f32 %v356, %v433
        %v435 = vpop.f32.mrb[0].mxu0
        %v436 = vpop.f32.mrb[0].mxu0
        %v437 = vadd.f32 %v359, %v436
        %v438 = vpop.f32.mrb[0].mxu0
        %439 = vmatprep.mubr.bf16.mxu0 0
        %440 = vmatmul.mubr.bf16.gmra.mrb[0].mxu0 %v377
        %v441 = vpop.f32.mrb[0].mxu0
        %v442 = vadd.f32 %v364, %v441
        %v443 = vpop.f32.mrb[0].mxu0
        %v444 = vpop.f32.mrb[0].mxu0
        %v445 = vadd.f32 %v367, %v444
        %v446 = vpop.f32.mrb[0].mxu0
        %447 = vdwg.mxu0
        %s448 = sadd.s32 %s212, 1
        %s449 = smul.u32 %s448, 9
        %s450 = smul.addr %s449, 4
        %s451 = scalar_lea.vmem %s192, %s450
        %v452 = vld [vmem:[%s451] sm:$0xf]
        %v453 = vld [vmem:[%s451 + $0x4] sm:$0xf]
        %v454 = vld [vmem:[%s451 + $0x8] sm:$0xf]
        %v455 = vld [vmem:[%s451 + $0xc] sm:$0xf]
        %v456 = vld [vmem:[%s451 + $0x10] sm:$0xf]
        %v457 = vld [vmem:[%s451 + $0x14] sm:$0xf]
        %v458 = vld [vmem:[%s451 + $0x18] sm:$0xf]
        %v459 = vld [vmem:[%s451 + $0x1c] sm:$0xf]
        %v460 = vld [vmem:[%s451 + $0x20] sm:$0x1]
        %v469 = vunpack.c.l.b16 %v452
        %v470 = vunpack.c.l.b16 %v453
        %v471 = vunpack.c.l.b16 %v454
        %v472 = vunpack.c.l.b16 %v455
        %v473 = vunpack.c.l.b16 %v456
        %v474 = vunpack.c.l.b16 %v457
        %v475 = vunpack.c.l.b16 %v458
        %v476 = vunpack.c.l.b16 %v459
        %v477 = vpack.c.b16 %v470, %v469
        %v478 = vpack.c.b16 %v472, %v471
        %v479 = vpack.c.b16 %v474, %v473
        %v480 = vpack.c.b16 %v476, %v475
        %v482 = vsel %vm370, %v477, 0
        %v485 = vsel %vm370, %v478, 0
        %v488 = vsel %vm370, %v479, 0
        %v491 = vsel %vm370, %v480, 0
        %v494 = vsel %vm379, %v201, 0
        %496 = vmatprep.subr.bf16.mxu0 0
        %497 = vmatpush1.bf16.msra.mxu0 %v494
        %498 = vmatprep.subr.bf16.mxu0 0
        %499 = vmatpush1.bf16.msra.mxu0 0
        %500 = vmatprep.subr.bf16.mxu0 0
        %501 = vmatpush1.bf16.msra.mxu0 0
        %502 = vmatprep.subr.bf16.mxu0 0
        %503 = vmatpush1.bf16.msra.mxu0 0
        %504 = vmatprep.subr.bf16.mxu0 0
        %505 = vmatpush1.bf16.msra.mxu0 0
        %506 = vmatprep.subr.bf16.mxu0 0
        %507 = vmatpush1.bf16.msra.mxu0 0
        %508 = vmatprep.subr.bf16.mxu0 0
        %509 = vmatpush1.bf16.msra.mxu0 0
        %510 = vmatprep.subr.bf16.mxu0 0
        %511 = vmatpush1.bf16.msra.mxu0 0
        %512 = vmatprep.subr.bf16.mxu0 0
        %513 = vmatpush1.bf16.msra.mxu0 0
        %514 = vmatprep.subr.bf16.mxu0 0
        %515 = vmatpush1.bf16.msra.mxu0 0
        %516 = vmatprep.subr.bf16.mxu0 0
        %517 = vmatpush1.bf16.msra.mxu0 0
        %518 = vmatprep.subr.bf16.mxu0 0
        %519 = vmatpush1.bf16.msra.mxu0 0
        %520 = vmatprep.subr.bf16.mxu0 0
        %521 = vmatpush1.bf16.msra.mxu0 0
        %522 = vmatprep.subr.bf16.mxu0 0
        %523 = vmatpush1.bf16.msra.mxu0 0
        %524 = vmatprep.subr.bf16.mxu0 0
        %525 = vmatpush1.bf16.msra.mxu0 0
        %526 = vmatprep.subr.bf16.mxu0 0
        %527 = vmatpush1.bf16.msra.mxu0 0
        %528 = vmatprep.mubr.bf16.mxu0 0
        %529 = vmatmul.mubr.bf16.gmra.mrb[0].mxu0 %v482
        %v530 = vpop.f32.mrb[0].mxu0
        %v531 = vadd.f32 0.0, %v530
        %v532 = vpop.f32.mrb[0].mxu0
        %v533 = vpop.f32.mrb[0].mxu0
        %v534 = vadd.f32 0.0, %v533
        %v535 = vpop.f32.mrb[0].mxu0
        %536 = vmatprep.mubr.bf16.mxu0 0
        %537 = vmatmul.mubr.bf16.gmra.mrb[0].mxu0 %v485
        %v538 = vpop.f32.mrb[0].mxu0
        %v539 = vadd.f32 0.0, %v538
        %v540 = vpop.f32.mrb[0].mxu0
        %v541 = vpop.f32.mrb[0].mxu0
        %v542 = vadd.f32 0.0, %v541
        %v543 = vpop.f32.mrb[0].mxu0
        %544 = vmatprep.mubr.bf16.mxu0 0
        %545 = vmatmul.mubr.bf16.gmra.mrb[0].mxu0 %v488
        %v546 = vpop.f32.mrb[0].mxu0
        %v547 = vadd.f32 0.0, %v546
        %v548 = vpop.f32.mrb[0].mxu0
        %v549 = vpop.f32.mrb[0].mxu0
        %v550 = vadd.f32 0.0, %v549
        %v551 = vpop.f32.mrb[0].mxu0
        %552 = vmatprep.mubr.bf16.mxu0 0
        %553 = vmatmul.mubr.bf16.gmra.mrb[0].mxu0 %v491
        %v554 = vpop.f32.mrb[0].mxu0
        %v555 = vadd.f32 0.0, %v554
        %v556 = vpop.f32.mrb[0].mxu0
        %v557 = vpop.f32.mrb[0].mxu0
        %v558 = vadd.f32 0.0, %v557
        %v559 = vpop.f32.mrb[0].mxu0
        %560 = vdwg.mxu0
        %v561 = vadd.f32 %v418, %v531
        %v562 = vadd.f32 %v421, %v534
        %v563 = vadd.f32 %v426, %v539
        %v564 = vadd.f32 %v429, %v542
        %v565 = vadd.f32 %v434, %v547
        %v566 = vadd.f32 %v437, %v550
        %v567 = vadd.f32 %v442, %v555
        %v568 = vadd.f32 %v445, %v558
        %v570 = vunpack.c.l.b16 %v460
        %v571 = vpack.c.b16 %v570, %v570
        %v572 = vshrl.u32 %v477, 16
        %v574 = vshll.u32 %v477, 16
        %v576 = vrot.slane %v574, 1
        %v577 = vor.u32 %v572, %v576
        %v578 = vshll.u32 %v478, 16
        %v580 = vrot.slane %v578, 1
        %v581 = vsel %vm248, %v577, %v580
        %v582 = vshrl.u32 %v478, 16
        %v584 = vor.u32 %v582, %v580
        %v585 = vshll.u32 %v479, 16
        %v587 = vrot.slane %v585, 1
        %v588 = vsel %vm248, %v584, %v587
        %v589 = vshrl.u32 %v479, 16
        %v591 = vor.u32 %v589, %v587
        %v592 = vshll.u32 %v480, 16
        %v594 = vrot.slane %v592, 1
        %v595 = vsel %vm248, %v591, %v594
        %v596 = vshrl.u32 %v480, 16
        %v598 = vor.u32 %v596, %v594
        %v600 = vshll.u32 %v571, 16
        %v602 = vrot.slane %v600, 1
        %v603 = vsel %vm248, %v598, %v602
        %v605 = vsel %vm285, %v581, 0
        %v608 = vsel %vm285, %v588, 0
        %v611 = vsel %vm285, %v595, 0
        %v614 = vsel %vm285, %v603, 0
        %v617 = vand.u32 %v204, %v301
        %619 = vmatprep.subr.bf16.mxu0 0
        %620 = vmatpush1.bf16.msra.mxu0 %v617
        %621 = vmatprep.subr.bf16.mxu0 0
        %622 = vmatpush1.bf16.msra.mxu0 0
        %623 = vmatprep.subr.bf16.mxu0 0
        %624 = vmatpush1.bf16.msra.mxu0 0
        %625 = vmatprep.subr.bf16.mxu0 0
        %626 = vmatpush1.bf16.msra.mxu0 0
        %627 = vmatprep.subr.bf16.mxu0 0
        %628 = vmatpush1.bf16.msra.mxu0 0
        %629 = vmatprep.subr.bf16.mxu0 0
        %630 = vmatpush1.bf16.msra.mxu0 0
        %631 = vmatprep.subr.bf16.mxu0 0
        %632 = vmatpush1.bf16.msra.mxu0 0
        %633 = vmatprep.subr.bf16.mxu0 0
        %634 = vmatpush1.bf16.msra.mxu0 0
        %635 = vmatprep.subr.bf16.mxu0 0
        %636 = vmatpush1.bf16.msra.mxu0 0
        %637 = vmatprep.subr.bf16.mxu0 0
        %638 = vmatpush1.bf16.msra.mxu0 0
        %639 = vmatprep.subr.bf16.mxu0 0
        %640 = vmatpush1.bf16.msra.mxu0 0
        %641 = vmatprep.subr.bf16.mxu0 0
        %642 = vmatpush1.bf16.msra.mxu0 0
        %643 = vmatprep.subr.bf16.mxu0 0
        %644 = vmatpush1.bf16.msra.mxu0 0
        %645 = vmatprep.subr.bf16.mxu0 0
        %646 = vmatpush1.bf16.msra.mxu0 0
        %647 = vmatprep.subr.bf16.mxu0 0
        %648 = vmatpush1.bf16.msra.mxu0 0
        %649 = vmatprep.subr.bf16.mxu0 0
        %650 = vmatpush1.bf16.msra.mxu0 0
        %651 = vmatprep.mubr.bf16.mxu0 0
        %652 = vmatmul.mubr.bf16.gmra.mrb[0].mxu0 %v605
        %v653 = vpop.f32.mrb[0].mxu0
        %v654 = vadd.f32 0.0, %v653
        %v655 = vpop.f32.mrb[0].mxu0
        %v656 = vpop.f32.mrb[0].mxu0
        %v657 = vadd.f32 0.0, %v656
        %v658 = vpop.f32.mrb[0].mxu0
        %659 = vmatprep.mubr.bf16.mxu0 0
        %660 = vmatmul.mubr.bf16.gmra.mrb[0].mxu0 %v608
        %v661 = vpop.f32.mrb[0].mxu0
        %v662 = vadd.f32 0.0, %v661
        %v663 = vpop.f32.mrb[0].mxu0
        %v664 = vpop.f32.mrb[0].mxu0
        %v665 = vadd.f32 0.0, %v664
        %v666 = vpop.f32.mrb[0].mxu0
        %667 = vmatprep.mubr.bf16.mxu0 0
        %668 = vmatmul.mubr.bf16.gmra.mrb[0].mxu0 %v611
        %v669 = vpop.f32.mrb[0].mxu0
        %v670 = vadd.f32 0.0, %v669
        %v671 = vpop.f32.mrb[0].mxu0
        %v672 = vpop.f32.mrb[0].mxu0
        %v673 = vadd.f32 0.0, %v672
        %v674 = vpop.f32.mrb[0].mxu0
        %675 = vmatprep.mubr.bf16.mxu0 0
        %676 = vmatmul.mubr.bf16.gmra.mrb[0].mxu0 %v614
        %v677 = vpop.f32.mrb[0].mxu0
        %v678 = vadd.f32 0.0, %v677
        %v679 = vpop.f32.mrb[0].mxu0
        %v680 = vpop.f32.mrb[0].mxu0
        %v681 = vadd.f32 0.0, %v680
        %v682 = vpop.f32.mrb[0].mxu0
        %683 = vdwg.mxu0
        %v684 = vadd.f32 %v561, %v654
        %v685 = vadd.f32 %v562, %v657
        %v686 = vadd.f32 %v563, %v662
        %v687 = vadd.f32 %v564, %v665
        %v688 = vadd.f32 %v565, %v670
        %v689 = vadd.f32 %v566, %v673
        %v690 = vadd.f32 %v567, %v678
        %v691 = vadd.f32 %v568, %v681
        %s692 = sadd.s32 %s212, 2
        %s693 = smul.u32 %s692, 9
        %s694 = smul.addr %s693, 4
        %s695 = scalar_lea.vmem %s192, %s694
        %v696 = vld [vmem:[%s695] sm:$0xf]
        %v697 = vld [vmem:[%s695 + $0x4] sm:$0xf]
        %v698 = vld [vmem:[%s695 + $0x8] sm:$0xf]
        %v699 = vld [vmem:[%s695 + $0xc] sm:$0xf]
        %v700 = vld [vmem:[%s695 + $0x10] sm:$0xf]
        %v701 = vld [vmem:[%s695 + $0x14] sm:$0xf]
        %v702 = vld [vmem:[%s695 + $0x18] sm:$0xf]
        %v703 = vld [vmem:[%s695 + $0x1c] sm:$0xf]
        %v704 = vld [vmem:[%s695 + $0x20] sm:$0x1]
        %v713 = vunpack.c.l.b16 %v696
        %v714 = vunpack.c.l.b16 %v697
        %v715 = vunpack.c.l.b16 %v698
        %v716 = vunpack.c.l.b16 %v699
        %v717 = vunpack.c.l.b16 %v700
        %v718 = vunpack.c.l.b16 %v701
        %v719 = vunpack.c.l.b16 %v702
        %v720 = vunpack.c.l.b16 %v703
        %v721 = vpack.c.b16 %v714, %v713
        %v722 = vpack.c.b16 %v716, %v715
        %v723 = vpack.c.b16 %v718, %v717
        %v724 = vpack.c.b16 %v720, %v719
        %v726 = vsel %vm370, %v721, 0
        %v729 = vsel %vm370, %v722, 0
        %v732 = vsel %vm370, %v723, 0
        %v735 = vsel %vm370, %v724, 0
        %v738 = vsel %vm379, %v202, 0
        %740 = vmatprep.subr.bf16.mxu0 0
        %741 = vmatpush1.bf16.msra.mxu0 %v738
        %742 = vmatprep.subr.bf16.mxu0 0
        %743 = vmatpush1.bf16.msra.mxu0 0
        %744 = vmatprep.subr.bf16.mxu0 0
        %745 = vmatpush1.bf16.msra.mxu0 0
        %746 = vmatprep.subr.bf16.mxu0 0
        %747 = vmatpush1.bf16.msra.mxu0 0
        %748 = vmatprep.subr.bf16.mxu0 0
        %749 = vmatpush1.bf16.msra.mxu0 0
        %750 = vmatprep.subr.bf16.mxu0 0
        %751 = vmatpush1.bf16.msra.mxu0 0
        %752 = vmatprep.subr.bf16.mxu0 0
        %753 = vmatpush1.bf16.msra.mxu0 0
        %754 = vmatprep.subr.bf16.mxu0 0
        %755 = vmatpush1.bf16.msra.mxu0 0
        %756 = vmatprep.subr.bf16.mxu0 0
        %757 = vmatpush1.bf16.msra.mxu0 0
        %758 = vmatprep.subr.bf16.mxu0 0
        %759 = vmatpush1.bf16.msra.mxu0 0
        %760 = vmatprep.subr.bf16.mxu0 0
        %761 = vmatpush1.bf16.msra.mxu0 0
        %762 = vmatprep.subr.bf16.mxu0 0
        %763 = vmatpush1.bf16.msra.mxu0 0
        %764 = vmatprep.subr.bf16.mxu0 0
        %765 = vmatpush1.bf16.msra.mxu0 0
        %766 = vmatprep.subr.bf16.mxu0 0
        %767 = vmatpush1.bf16.msra.mxu0 0
        %768 = vmatprep.subr.bf16.mxu0 0
        %769 = vmatpush1.bf16.msra.mxu0 0
        %770 = vmatprep.subr.bf16.mxu0 0
        %771 = vmatpush1.bf16.msra.mxu0 0
        %772 = vmatprep.mubr.bf16.mxu0 0
        %773 = vmatmul.mubr.bf16.gmra.mrb[0].mxu0 %v726
        %v774 = vpop.f32.mrb[0].mxu0
        %v775 = vadd.f32 0.0, %v774
        %v776 = vpop.f32.mrb[0].mxu0
        %v777 = vpop.f32.mrb[0].mxu0
        %v778 = vadd.f32 0.0, %v777
        %v779 = vpop.f32.mrb[0].mxu0
        %780 = vmatprep.mubr.bf16.mxu0 0
        %781 = vmatmul.mubr.bf16.gmra.mrb[0].mxu0 %v729
        %v782 = vpop.f32.mrb[0].mxu0
        %v783 = vadd.f32 0.0, %v782
        %v784 = vpop.f32.mrb[0].mxu0
        %v785 = vpop.f32.mrb[0].mxu0
        %v786 = vadd.f32 0.0, %v785
        %v787 = vpop.f32.mrb[0].mxu0
        %788 = vmatprep.mubr.bf16.mxu0 0
        %789 = vmatmul.mubr.bf16.gmra.mrb[0].mxu0 %v732
        %v790 = vpop.f32.mrb[0].mxu0
        %v791 = vadd.f32 0.0, %v790
        %v792 = vpop.f32.mrb[0].mxu0
        %v793 = vpop.f32.mrb[0].mxu0
        %v794 = vadd.f32 0.0, %v793
        %v795 = vpop.f32.mrb[0].mxu0
        %796 = vmatprep.mubr.bf16.mxu0 0
        %797 = vmatmul.mubr.bf16.gmra.mrb[0].mxu0 %v735
        %v798 = vpop.f32.mrb[0].mxu0
        %v799 = vadd.f32 0.0, %v798
        %v800 = vpop.f32.mrb[0].mxu0
        %v801 = vpop.f32.mrb[0].mxu0
        %v802 = vadd.f32 0.0, %v801
        %v803 = vpop.f32.mrb[0].mxu0
        %804 = vdwg.mxu0
        %v805 = vadd.f32 %v684, %v775
        %v806 = vadd.f32 %v685, %v778
        %v807 = vadd.f32 %v686, %v783
        %v808 = vadd.f32 %v687, %v786
        %v809 = vadd.f32 %v688, %v791
        %v810 = vadd.f32 %v689, %v794
        %v811 = vadd.f32 %v690, %v799
        %v812 = vadd.f32 %v691, %v802
        %v814 = vunpack.c.l.b16 %v704
        %v815 = vpack.c.b16 %v814, %v814
        %v816 = vshrl.u32 %v721, 16
        %v818 = vshll.u32 %v721, 16
        %v820 = vrot.slane %v818, 1
        %v821 = vor.u32 %v816, %v820
        %v822 = vshll.u32 %v722, 16
        %v824 = vrot.slane %v822, 1
        %v825 = vsel %vm248, %v821, %v824
        %v826 = vshrl.u32 %v722, 16
        %v828 = vor.u32 %v826, %v824
        %v829 = vshll.u32 %v723, 16
        %v831 = vrot.slane %v829, 1
        %v832 = vsel %vm248, %v828, %v831
        %v833 = vshrl.u32 %v723, 16
        %v835 = vor.u32 %v833, %v831
        %v836 = vshll.u32 %v724, 16
        %v838 = vrot.slane %v836, 1
        %v839 = vsel %vm248, %v835, %v838
        %v840 = vshrl.u32 %v724, 16
        %v842 = vor.u32 %v840, %v838
        %v844 = vshll.u32 %v815, 16
        %v846 = vrot.slane %v844, 1
        %v847 = vsel %vm248, %v842, %v846
        %v849 = vsel %vm285, %v825, 0
        %v852 = vsel %vm285, %v832, 0
        %v855 = vsel %vm285, %v839, 0
        %v858 = vsel %vm285, %v847, 0
        %v861 = vand.u32 %v205, %v301
        %863 = vmatprep.subr.bf16.mxu0 0
        %864 = vmatpush1.bf16.msra.mxu0 %v861
        %865 = vmatprep.subr.bf16.mxu0 0
        %866 = vmatpush1.bf16.msra.mxu0 0
        %867 = vmatprep.subr.bf16.mxu0 0
        %868 = vmatpush1.bf16.msra.mxu0 0
        %869 = vmatprep.subr.bf16.mxu0 0
        %870 = vmatpush1.bf16.msra.mxu0 0
        %871 = vmatprep.subr.bf16.mxu0 0
        %872 = vmatpush1.bf16.msra.mxu0 0
        %873 = vmatprep.subr.bf16.mxu0 0
        %874 = vmatpush1.bf16.msra.mxu0 0
        %875 = vmatprep.subr.bf16.mxu0 0
        %876 = vmatpush1.bf16.msra.mxu0 0
        %877 = vmatprep.subr.bf16.mxu0 0
        %878 = vmatpush1.bf16.msra.mxu0 0
        %879 = vmatprep.subr.bf16.mxu0 0
        %880 = vmatpush1.bf16.msra.mxu0 0
        %881 = vmatprep.subr.bf16.mxu0 0
        %882 = vmatpush1.bf16.msra.mxu0 0
        %883 = vmatprep.subr.bf16.mxu0 0
        %884 = vmatpush1.bf16.msra.mxu0 0
        %885 = vmatprep.subr.bf16.mxu0 0
        %886 = vmatpush1.bf16.msra.mxu0 0
        %887 = vmatprep.subr.bf16.mxu0 0
        %888 = vmatpush1.bf16.msra.mxu0 0
        %889 = vmatprep.subr.bf16.mxu0 0
        %890 = vmatpush1.bf16.msra.mxu0 0
        %891 = vmatprep.subr.bf16.mxu0 0
        %892 = vmatpush1.bf16.msra.mxu0 0
        %893 = vmatprep.subr.bf16.mxu0 0
        %894 = vmatpush1.bf16.msra.mxu0 0
        %895 = vmatprep.mubr.bf16.mxu0 0
        %896 = vmatmul.mubr.bf16.gmra.mrb[0].mxu0 %v849
        %v897 = vpop.f32.mrb[0].mxu0
        %v898 = vadd.f32 0.0, %v897
        %v899 = vpop.f32.mrb[0].mxu0
        %v900 = vpop.f32.mrb[0].mxu0
        %v901 = vadd.f32 0.0, %v900
        %v902 = vpop.f32.mrb[0].mxu0
        %903 = vmatprep.mubr.bf16.mxu0 0
        %904 = vmatmul.mubr.bf16.gmra.mrb[0].mxu0 %v852
        %v905 = vpop.f32.mrb[0].mxu0
        %v906 = vadd.f32 0.0, %v905
        %v907 = vpop.f32.mrb[0].mxu0
        %v908 = vpop.f32.mrb[0].mxu0
        %v909 = vadd.f32 0.0, %v908
        %v910 = vpop.f32.mrb[0].mxu0
        %911 = vmatprep.mubr.bf16.mxu0 0
        %912 = vmatmul.mubr.bf16.gmra.mrb[0].mxu0 %v855
        %v913 = vpop.f32.mrb[0].mxu0
        %v914 = vadd.f32 0.0, %v913
        %v915 = vpop.f32.mrb[0].mxu0
        %v916 = vpop.f32.mrb[0].mxu0
        %v917 = vadd.f32 0.0, %v916
        %v918 = vpop.f32.mrb[0].mxu0
        %919 = vmatprep.mubr.bf16.mxu0 0
        %920 = vmatmul.mubr.bf16.gmra.mrb[0].mxu0 %v858
        %v921 = vpop.f32.mrb[0].mxu0
        %v922 = vadd.f32 0.0, %v921
        %v923 = vpop.f32.mrb[0].mxu0
        %v924 = vpop.f32.mrb[0].mxu0
        %v925 = vadd.f32 0.0, %v924
        %v926 = vpop.f32.mrb[0].mxu0
        %927 = vdwg.mxu0
        %v928 = vadd.f32 %v805, %v898
        %v929 = vadd.f32 %v806, %v901
        %v930 = vadd.f32 %v807, %v906
        %v931 = vadd.f32 %v808, %v909
        %v932 = vadd.f32 %v809, %v914
        %v933 = vadd.f32 %v810, %v917
        %v934 = vadd.f32 %v811, %v922
        %v935 = vadd.f32 %v812, %v925
        %v937 = vlaneseq
        %v938 = vshrl.u32 %v937, 7
        %v939 = vsub.s32 0, %v938
        %v940 = vrot.slane %v199, %v939
        %v942 = vadd.f32 %v928, %v940
        %v943 = vadd.f32 %v929, %v940
        %v944 = vadd.f32 %v930, %v940
        %v945 = vadd.f32 %v931, %v940
        %v946 = vadd.f32 %v932, %v940
        %v947 = vadd.f32 %v933, %v940
        %v948 = vadd.f32 %v934, %v940
        %v949 = vadd.f32 %v935, %v940
        %v950 = vxor.u32 %v942, 2147483648
        %v951 = vxor.u32 %v943, 2147483648
        %v952 = vxor.u32 %v944, 2147483648
        %v953 = vxor.u32 %v945, 2147483648
        %v954 = vxor.u32 %v946, 2147483648
        %v955 = vxor.u32 %v947, 2147483648
        %v956 = vxor.u32 %v948, 2147483648
        %v957 = vxor.u32 %v949, 2147483648
        %v958 = vmul.f32 %v950, 1.442695
        %v959 = vpow.pop %v958
        %v960 = vmul.f32 %v951, 1.442695
        %v961 = vpow.pop %v960
        %v962 = vmul.f32 %v952, 1.442695
        %v963 = vpow.pop %v962
        %v964 = vmul.f32 %v953, 1.442695
        %v965 = vpow.pop %v964
        %v966 = vmul.f32 %v954, 1.442695
        %v967 = vpow.pop %v966
        %v968 = vmul.f32 %v955, 1.442695
        %v969 = vpow.pop %v968
        %v970 = vmul.f32 %v956, 1.442695
        %v971 = vpow.pop %v970
        %v972 = vmul.f32 %v957, 1.442695
        %v973 = vpow.pop %v972
        %v974 = vadd.f32 %v959, 1.0
        %v975 = vadd.f32 %v961, 1.0
        %v976 = vadd.f32 %v963, 1.0
        %v977 = vadd.f32 %v965, 1.0
        %v978 = vadd.f32 %v967, 1.0
        %v979 = vadd.f32 %v969, 1.0
        %v980 = vadd.f32 %v971, 1.0
        %v981 = vadd.f32 %v973, 1.0
        %v982 = vrcp.pop %v974
        %v983 = vmul.f32 1.0, %v982
        %v984 = vrcp.pop %v975
        %v985 = vmul.f32 1.0, %v984
        %v986 = vrcp.pop %v976
        %v987 = vmul.f32 1.0, %v986
        %v988 = vrcp.pop %v977
        %v989 = vmul.f32 1.0, %v988
        %v990 = vrcp.pop %v978
        %v991 = vmul.f32 1.0, %v990
        %v992 = vrcp.pop %v979
        %v993 = vmul.f32 1.0, %v992
        %v994 = vrcp.pop %v980
        %v995 = vmul.f32 1.0, %v994
        %v996 = vrcp.pop %v981
        %v997 = vmul.f32 1.0, %v996
        %v998 = vmul.f32 %v942, %v983
        %v999 = vmul.f32 %v943, %v985
        %v1000 = vmul.f32 %v944, %v987
        %v1001 = vmul.f32 %v945, %v989
        %v1002 = vmul.f32 %v946, %v991
        %v1003 = vmul.f32 %v947, %v993
        %v1004 = vmul.f32 %v948, %v995
        %v1005 = vmul.f32 %v949, %v997
        %v1006 = vpack.c.bf16 %v999, %v998
        %v1007 = vpack.c.bf16 %v1001, %v1000
        %v1008 = vpack.c.bf16 %v1003, %v1002
        %v1009 = vpack.c.bf16 %v1005, %v1004
        %v1014 = vunpack.c.l.b16 %v1006
        %v1015 = vunpack.c.h.b16 %v1006
        %v1016 = vunpack.c.l.b16 %v1007
        %v1017 = vunpack.c.h.b16 %v1007
        %v1018 = vunpack.c.l.b16 %v1008
        %v1019 = vunpack.c.h.b16 %v1008
        %v1020 = vunpack.c.l.b16 %v1009
        %v1021 = vunpack.c.h.b16 %v1009
        %v1022 = vpack.c.b16 %v1014, %v1014
        %v1023 = vpack.c.b16 %v1015, %v1015
        %v1024 = vpack.c.b16 %v1016, %v1016
        %v1025 = vpack.c.b16 %v1017, %v1017
        %v1026 = vpack.c.b16 %v1018, %v1018
        %v1027 = vpack.c.b16 %v1019, %v1019
        %v1028 = vpack.c.b16 %v1020, %v1020
        %v1029 = vpack.c.b16 %v1021, %v1021
        %s1038 = smul.u32 %s207, 8
        %s1039 = smul.addr %s1038, 4
        %s1040 = scalar_lea.vmem %s197, %s1039
        %vm1041 = vcmask 60416
        %1042 = vst.msk [vmem:[%s1040] sm:$0xf] %vm1041, %v1022
        %1043 = vst.msk [vmem:[%s1040 + $0x4] sm:$0xf] %vm1041, %v1023
        %1044 = vst.msk [vmem:[%s1040 + $0x8] sm:$0xf] %vm1041, %v1024
        %1045 = vst.msk [vmem:[%s1040 + $0xc] sm:$0xf] %vm1041, %v1025
        %1046 = vst.msk [vmem:[%s1040 + $0x10] sm:$0xf] %vm1041, %v1026
        %1047 = vst.msk [vmem:[%s1040 + $0x14] sm:$0xf] %vm1041, %v1027
        %1048 = vst.msk [vmem:[%s1040 + $0x18] sm:$0xf] %vm1041, %v1028
        %1049 = vst.msk [vmem:[%s1040 + $0x1c] sm:$0xf] %vm1041, %v1029
      $region41: #{encoder_forward.11} parent=35 // loop_footer
        %s211 = sadd.s32 1, %s207
      $region42: #{encoder_forward.11} parent=35 // loop_footer_branch
        %206 = sbr.rel target = $region38
      $region43: #{encoder_forward.11} parent=35 // loop_exit
        _
      %p1050 = scmp.lt.s32.totalorder %s15, 1
      %s1051 = scalar_select %p1050, %s15, 1
      %s1052 = smul.addr %s1051, 256
      %s1053 = smul.addr %s1052, 4
      %s1054 = scalar_lea.vmem %s4, %s1053
      // Predicated region
      $region44: #{encoder_forward.11} parent=35 // pred_check
        %p1055 = pneg %p122
      $region45: #{encoder_forward.11} parent=35 // pred_check_branch
        %1057 = sbr.rel (%p1055) target = $region47
      $region46: #{encoder_forward.11} parent=35 // pred_region
        _
      $region47: #{encoder_forward.11} parent=35 // pred_fallthru
        _
    $region36: #{encoder_forward.11} parent=5 // pred_fallthru
      _
    %p1058 = scmp.le.s32.totalorder 2, %s10
    // Predicated region
    $region48: #{encoder_forward.11} parent=5 // pred_check
      %p1059 = pneg %p1058
    $region49: #{encoder_forward.11} parent=5 // pred_check_branch
      %1061 = sbr.rel (%p1059) target = $region51
    $region50: #{encoder_forward.11} parent=5 // pred_region
      %s1062 = ssub.s32 %s10, 2
      // Predicated region
      $region52: #{encoder_forward.11} parent=50 // pred_check
        %p1063 = pneg %p128
      $region53: #{encoder_forward.11} parent=50 // pred_check_branch
        %1065 = sbr.rel (%p1063) target = $region55
      $region54: #{encoder_forward.11} parent=50 // pred_region
        %p1066 = scmp.lt.s32.totalorder %s16, 1
        %s1067 = scalar_select %p1066, %s16, 1
        %s1068 = smul.addr %s1067, 256
        %s1069 = smul.addr %s1068, 4
        %s1070 = scalar_lea.vmem %s4, %s1069
      $region55: #{encoder_forward.11} parent=50 // pred_fallthru
        _
    $region51: #{encoder_forward.11} parent=5 // pred_fallthru
      _
  $region6: #{encoder_forward.11} parent=0 // loop_footer
    %s14 = sadd.s32 1, %s10
  $region7: #{encoder_forward.11} parent=0 // loop_footer_branch
    %9 = sbr.rel target = $region3
  $region8: #{encoder_forward.11} parent=0 // loop_exit
    _

// kernel: encoder_forward.12
$region0: #{encoder_forward.12}
  #allocation0 [shape = 'u32[]', space=smem, size = 0x4, offset = 0x4, fixed_abs, tag = 'smem constant byte address 0x4 - core index']
  #allocation1 [shape = 'u32[144,128]{1,0:T(1,128)}', space=vmem, size = 0x12000, scoped, tag = 'internal scratch']
  %s0 = inlined_call_operand.vmem [shape: bf16[2,34,33,16], index: 0, kind: input, shape index: {}]
  %s1 = inlined_call_operand.vmem [shape: bf16[3,16,12], index: 1, kind: input, shape index: {}]
  %s2 = inlined_call_operand.vmem [shape: bf16[3,8,12], index: 2, kind: input, shape index: {}]
  %s3 = inlined_call_operand.vmem [shape: f32[1,12], index: 3, kind: input, shape index: {}]
  %s4 = inlined_call_operand.vmem [shape: bf16[2,16,32,12], index: 4, kind: output, shape index: {}]
  %s5 = sld [smem:[#allocation0]]
  $region56: #{encoder_forward.12} parent=0
    _
  %s7 = ssub.s32 1, %s5
  %s8 = scalar_select 0, %s7, %s5
  loop: start=0, step=1, limit=4
  $region2: #{encoder_forward.12} parent=0 // loop_pre_header
    _
  $region3: #{encoder_forward.12} parent=0 // loop_header
    %s10 = sphi 0, %s14
    %p11 = scmp.ge.s32.totalorder %s10, 4
    %s20 = sphi 0, %s22
    %s23 = sphi 0, %s20
    %s24 = sphi 0, %s23
    %s40 = sphi 0, %s24
    %s44 = sphi 0, %s44
    %s46 = sphi 0, %s44
    %s47 = sphi 0, %s46
    %s61 = sphi 0, %s47
    %s65 = sphi 0, %s65
    %s67 = sphi 0, %s65
    %s68 = sphi 0, %s67
    %s82 = sphi 0, %s68
    %s86 = sphi 0, %s86
    %s88 = sphi 0, %s86
    %s89 = sphi 0, %s88
    %s103 = sphi 0, %s89
    %s109 = sphi 0, %s111
    %s112 = sphi 0, %s109
    %s113 = sphi 0, %s112
    %s129 = sphi 0, %s113
  $region4: #{encoder_forward.12} parent=0 // loop_header_branch
    %13 = sbr.rel (%p11) target = $region8
  $region5: #{encoder_forward.12} parent=0 // loop_body
    %s15 = ssub.s32 %s10, 1
    %s16 = ssub.s32 %s10, 2
    %s17 = sadd.s32 %s10, 1
    %s18 = ssub.s32 %s10, %s17
    %p19 = scmp.eq.s32.totalorder %s18, 0
    %s21 = sadd.s32 %s20, 1
    %s22 = scalar_select %p19, %s20, %s21
    %p25 = pneg %p19
    %p26 = scmp.eq.s32.totalorder %s10, 1
    %p27 = por %p25, %p26
    %p28 = scmp.ne.s32.totalorder %s20, %s23
    %p29 = scmp.eq.s32.totalorder %s10, 0
    %p30 = por %p28, %p29
    %p31 = scmp.ne.s32.totalorder %s20, %s23
    %p32 = scmp.eq.s32.totalorder %s15, 1
    %p33 = por %p31, %p32
    %p34 = scmp.ne.s32.totalorder %s23, %s24
    %p35 = scmp.eq.s32.totalorder %s15, 0
    %p36 = por %p34, %p35
    %p37 = scmp.ne.s32.totalorder %s23, %s24
    %p38 = scmp.eq.s32.totalorder %s16, 1
    %p39 = por %p37, %p38
    %p41 = scmp.ne.s32.totalorder %s24, %s40
    %p42 = scmp.eq.s32.totalorder %s16, 0
    %p43 = por %p41, %p42
    %s45 = sadd.s32 %s44, 1
    %p48 = scmp.eq.s32.totalorder %s10, 1
    %p49 = scmp.ne.s32.totalorder %s44, %s46
    %p50 = scmp.eq.s32.totalorder %s10, 0
    %p51 = por %p49, %p50
    %p52 = scmp.ne.s32.totalorder %s44, %s46
    %p53 = scmp.eq.s32.totalorder %s15, 1
    %p54 = por %p52, %p53
    %p55 = scmp.ne.s32.totalorder %s46, %s47
    %p56 = scmp.eq.s32.totalorder %s15, 0
    %p57 = por %p55, %p56
    %p58 = scmp.ne.s32.totalorder %s46, %s47
    %p59 = scmp.eq.s32.totalorder %s16, 1
    %p60 = por %p58, %p59
    %p62 = scmp.ne.s32.totalorder %s47, %s61
    %p63 = scmp.eq.s32.totalorder %s16, 0
    %p64 = por %p62, %p63
    %s66 = sadd.s32 %s65, 1
    %p69 = scmp.eq.s32.totalorder %s10, 1
    %p70 = scmp.ne.s32.totalorder %s65, %s67
    %p71 = scmp.eq.s32.totalorder %s10, 0
    %p72 = por %p70, %p71
    %p73 = scmp.ne.s32.totalorder %s65, %s67
    %p74 = scmp.eq.s32.totalorder %s15, 1
    %p75 = por %p73, %p74
    %p76 = scmp.ne.s32.totalorder %s67, %s68
    %p77 = scmp.eq.s32.totalorder %s15, 0
    %p78 = por %p76, %p77
    %p79 = scmp.ne.s32.totalorder %s67, %s68
    %p80 = scmp.eq.s32.totalorder %s16, 1
    %p81 = por %p79, %p80
    %p83 = scmp.ne.s32.totalorder %s68, %s82
    %p84 = scmp.eq.s32.totalorder %s16, 0
    %p85 = por %p83, %p84
    %s87 = sadd.s32 %s86, 1
    %p90 = scmp.eq.s32.totalorder %s10, 1
    %p91 = scmp.ne.s32.totalorder %s86, %s88
    %p92 = scmp.eq.s32.totalorder %s10, 0
    %p93 = por %p91, %p92
    %p94 = scmp.ne.s32.totalorder %s86, %s88
    %p95 = scmp.eq.s32.totalorder %s15, 1
    %p96 = por %p94, %p95
    %p97 = scmp.ne.s32.totalorder %s88, %s89
    %p98 = scmp.eq.s32.totalorder %s15, 0
    %p99 = por %p97, %p98
    %p100 = scmp.ne.s32.totalorder %s88, %s89
    %p101 = scmp.eq.s32.totalorder %s16, 1
    %p102 = por %p100, %p101
    %p104 = scmp.ne.s32.totalorder %s89, %s103
    %p105 = scmp.eq.s32.totalorder %s16, 0
    %p106 = por %p104, %p105
    %s107 = ssub.s32 %s10, %s17
    %p108 = scmp.eq.s32.totalorder %s107, 0
    %s110 = sadd.s32 %s109, 1
    %s111 = scalar_select %p108, %s109, %s110
    %p114 = pneg %p108
    %p115 = scmp.eq.s32.totalorder %s10, 1
    %p116 = por %p114, %p115
    %p117 = scmp.ne.s32.totalorder %s109, %s112
    %p118 = scmp.eq.s32.totalorder %s10, 0
    %p119 = por %p117, %p118
    %p120 = scmp.ne.s32.totalorder %s109, %s112
    %p121 = scmp.eq.s32.totalorder %s15, 1
    %p122 = por %p120, %p121
    %p123 = scmp.ne.s32.totalorder %s112, %s113
    %p124 = scmp.eq.s32.totalorder %s15, 0
    %p125 = por %p123, %p124
    %p126 = scmp.ne.s32.totalorder %s112, %s113
    %p127 = scmp.eq.s32.totalorder %s16, 1
    %p128 = por %p126, %p127
    %p130 = scmp.ne.s32.totalorder %s113, %s129
    %p131 = scmp.eq.s32.totalorder %s16, 0
    %p132 = por %p130, %p131
    %p133 = scmp.le.s32.totalorder 1, %s10
    %p134 = scmp.lt.s32.totalorder %s10, 3
    %p135 = pnand %p133, %p134
    %p136 = pneg %p135
    // Predicated region
    $region9: #{encoder_forward.12} parent=5 // pred_check
      _
    $region10: #{encoder_forward.12} parent=5 // pred_check_branch
      %138 = sbr.rel (%p135) target = $region12
    $region11: #{encoder_forward.12} parent=5 // pred_region
      %s139 = ssub.s32 %s10, 1
      // Predicated region
      $region13: #{encoder_forward.12} parent=11 // pred_check
        %p140 = pneg %p57
      $region14: #{encoder_forward.12} parent=11 // pred_check_branch
        %142 = sbr.rel (%p140) target = $region16
      $region15: #{encoder_forward.12} parent=11 // pred_region
        _
      $region16: #{encoder_forward.12} parent=11 // pred_fallthru
        _
      // Predicated region
      $region17: #{encoder_forward.12} parent=11 // pred_check
        %p143 = pneg %p78
      $region18: #{encoder_forward.12} parent=11 // pred_check_branch
        %145 = sbr.rel (%p143) target = $region20
      $region19: #{encoder_forward.12} parent=11 // pred_region
        _
      $region20: #{encoder_forward.12} parent=11 // pred_fallthru
        _
      // Predicated region
      $region21: #{encoder_forward.12} parent=11 // pred_check
        %p146 = pneg %p99
      $region22: #{encoder_forward.12} parent=11 // pred_check_branch
        %148 = sbr.rel (%p146) target = $region24
      $region23: #{encoder_forward.12} parent=11 // pred_region
        _
      $region24: #{encoder_forward.12} parent=11 // pred_fallthru
        _
    $region12: #{encoder_forward.12} parent=5 // pred_fallthru
      _
    %p149 = scmp.lt.s32.totalorder %s10, 2
    // Predicated region
    $region25: #{encoder_forward.12} parent=5 // pred_check
      %p150 = pneg %p149
    $region26: #{encoder_forward.12} parent=5 // pred_check_branch
      %152 = sbr.rel (%p150) target = $region28
    $region27: #{encoder_forward.12} parent=5 // pred_region
      // Predicated region
      $region29: #{encoder_forward.12} parent=27 // pred_check
        %p153 = pneg %p30
      $region30: #{encoder_forward.12} parent=27 // pred_check_branch
        %155 = sbr.rel (%p153) target = $region32
      $region31: #{encoder_forward.12} parent=27 // pred_region
        %p156 = scmp.lt.s32.totalorder %s10, 1
        %s157 = scalar_select %p156, %s10, 1
        %s158 = smul.addr %s157, 170
        %s159 = smul.addr %s158, 4
        %s160 = scalar_lea.vmem %s0, %s159
      $region32: #{encoder_forward.12} parent=27 // pred_fallthru
        _
    $region28: #{encoder_forward.12} parent=5 // pred_fallthru
      _
    %p161 = scmp.le.s32.totalorder 1, %s10
    %p162 = scmp.lt.s32.totalorder %s10, 3
    %p163 = pnand %p161, %p162
    %p164 = pneg %p163
    // Predicated region
    $region33: #{encoder_forward.12} parent=5 // pred_check
      _
    $region34: #{encoder_forward.12} parent=5 // pred_check_branch
      %166 = sbr.rel (%p163) target = $region36
    $region35: #{encoder_forward.12} parent=5 // pred_region
      %s167 = ssub.s32 %s10, 1
      %p168 = scmp.lt.s32.totalorder %s15, 1
      %s169 = scalar_select %p168, %s15, 1
      %s170 = smul.addr %s169, 170
      %s171 = smul.addr %s170, 4
      %s172 = scalar_lea.vmem %s0, %s171
      %p173 = pneg %p36
      %p174 = pneg %p33
      %p175 = pneg %p57
      %p176 = pneg %p54
      %p177 = pneg %p78
      %p178 = pneg %p75
      %p179 = pneg %p99
      %p180 = pneg %p96
      %p181 = pneg %p125
      %p182 = pneg %p122
      %p183 = scmp.lt.s32.totalorder %s15, 1
      %s184 = scalar_select %p183, %s15, 1
      %s185 = smul.addr %s184, 64
      %s186 = smul.addr %s185, 4
      %s187 = scalar_lea.vmem %s4, %s186
      %p188 = scmp.lt.s32.totalorder %s15, 1
      %s189 = scalar_select %p188, %s15, 1
      %s190 = smul.addr %s189, 170
      %s191 = smul.addr %s190, 4
      %s192 = scalar_lea.vmem %s0, %s191
      %p193 = scmp.lt.s32.totalorder %s15, 1
      %s194 = scalar_select %p193, %s15, 1
      %s195 = smul.addr %s194, 64
      %s196 = smul.addr %s195, 4
      %s197 = scalar_lea.vmem %s4, %s196
      %v199 = vld [vmem:[%s3] sm:$0x1]
      %v200 = vld [vmem:[%s1] sm:$0xf]
      %v201 = vld [vmem:[%s1 + $0x4] sm:$0xf]
      %v202 = vld [vmem:[%s1 + $0x8] sm:$0xf]
      %v203 = vld [vmem:[%s1 + $0xc] sm:$0xf]
      %v204 = vld [vmem:[%s1 + $0x10] sm:$0xf]
      %v205 = vld [vmem:[%s1 + $0x14] sm:$0xf]
      %v206 = vld [vmem:[%s2] sm:$0xf]
      %v207 = vld [vmem:[%s2 + $0x4] sm:$0xf]
      %v208 = vld [vmem:[%s2 + $0x8] sm:$0xf]
      loop: start=0, step=1, limit=16
      $region37: #{encoder_forward.12} parent=35 // loop_pre_header
        _
      $region38: #{encoder_forward.12} parent=35 // loop_header
        %s210 = sphi 0, %s214
        %p211 = scmp.ge.s32.totalorder %s210, 16
      $region39: #{encoder_forward.12} parent=35 // loop_header_branch
        %213 = sbr.rel (%p211) target = $region43
      $region40: #{encoder_forward.12} parent=35 // loop_body
        %s215 = smul.u32 %s210, 2
        %s216 = smul.u32 %s215, 5
        %s217 = smul.addr %s216, 4
        %s218 = scalar_lea.vmem %s192, %s217
        %v219 = vld [vmem:[%s218] sm:$0xf]
        %v220 = vld [vmem:[%s218 + $0x4] sm:$0xf]
        %v221 = vld [vmem:[%s218 + $0x8] sm:$0xf]
        %v222 = vld [vmem:[%s218 + $0xc] sm:$0xf]
        %v223 = vld [vmem:[%s218 + $0x10] sm:$0x1]
        %v229 = vunpack.c.l.b16 %v219
        %v230 = vunpack.c.l.b16 %v220
        %v231 = vunpack.c.l.b16 %v221
        %v232 = vunpack.c.l.b16 %v222
        %v233 = vunpack.c.l.b16 %v223
        %v234 = vpack.c.b16 %v230, %v229
        %v235 = vpack.c.b16 %v232, %v231
        %v236 = vpack.c.b16 %v233, %v233
        %vm237 = vsmask.f32 7424
        %v239 = vshrl.u32 %v234, 16
        %v241 = vshll.u32 %v234, 16
        %v243 = vrot.slane %v241, 1
        %v244 = vor.u32 %v239, %v243
        %v246 = vshll.u32 %v235, 16
        %v248 = vrot.slane %v246, 1
        %v249 = vsel %vm237, %v244, %v248
        %v250 = vshrl.u32 %v235, 16
        %v252 = vor.u32 %v250, %v248
        %v254 = vshll.u32 %v236, 16
        %v256 = vrot.slane %v254, 1
        %v257 = vsel %vm237, %v252, %v256
        %vm258 = vcmask 64512
        %v260 = vsel %vm258, %v249, 0
        %v263 = vsel %vm258, %v257, 0
        %vm265 = vcmask 1043456
        %v267 = vsel %vm265, %v206, 0
        %269 = vmatprep.subr.bf16.mxu0 0
        %270 = vmatpush1.bf16.msra.mxu0 %v267
        %271 = vmatprep.subr.bf16.mxu0 0
        %272 = vmatpush1.bf16.msra.mxu0 0
        %273 = vmatprep.subr.bf16.mxu0 0
        %274 = vmatpush1.bf16.msra.mxu0 0
        %275 = vmatprep.subr.bf16.mxu0 0
        %276 = vmatpush1.bf16.msra.mxu0 0
        %277 = vmatprep.subr.bf16.mxu0 0
        %278 = vmatpush1.bf16.msra.mxu0 0
        %279 = vmatprep.subr.bf16.mxu0 0
        %280 = vmatpush1.bf16.msra.mxu0 0
        %281 = vmatprep.subr.bf16.mxu0 0
        %282 = vmatpush1.bf16.msra.mxu0 0
        %283 = vmatprep.subr.bf16.mxu0 0
        %284 = vmatpush1.bf16.msra.mxu0 0
        %285 = vmatprep.subr.bf16.mxu0 0
        %286 = vmatpush1.bf16.msra.mxu0 0
        %287 = vmatprep.subr.bf16.mxu0 0
        %288 = vmatpush1.bf16.msra.mxu0 0
        %289 = vmatprep.subr.bf16.mxu0 0
        %290 = vmatpush1.bf16.msra.mxu0 0
        %291 = vmatprep.subr.bf16.mxu0 0
        %292 = vmatpush1.bf16.msra.mxu0 0
        %293 = vmatprep.subr.bf16.mxu0 0
        %294 = vmatpush1.bf16.msra.mxu0 0
        %295 = vmatprep.subr.bf16.mxu0 0
        %296 = vmatpush1.bf16.msra.mxu0 0
        %297 = vmatprep.subr.bf16.mxu0 0
        %298 = vmatpush1.bf16.msra.mxu0 0
        %299 = vmatprep.subr.bf16.mxu0 0
        %300 = vmatpush1.bf16.msra.mxu0 0
        %301 = vmatprep.mubr.bf16.mxu0 0
        %302 = vmatmul.mubr.bf16.gmra.mrb[0].mxu0 %v260
        %v303 = vpop.f32.mrb[0].mxu0
        %v304 = vadd.f32 0.0, %v303
        %v305 = vpop.f32.mrb[0].mxu0
        %v306 = vpop.f32.mrb[0].mxu0
        %v307 = vadd.f32 0.0, %v306
        %v308 = vpop.f32.mrb[0].mxu0
        %309 = vmatprep.mubr.bf16.mxu0 0
        %310 = vmatmul.mubr.bf16.gmra.mrb[0].mxu0 %v263
        %v311 = vpop.f32.mrb[0].mxu0
        %v312 = vadd.f32 0.0, %v311
        %v313 = vpop.f32.mrb[0].mxu0
        %v314 = vpop.f32.mrb[0].mxu0
        %v315 = vadd.f32 0.0, %v314
        %v316 = vpop.f32.mrb[0].mxu0
        %317 = vdwg.mxu0
        %v320 = vunpack.c.l.b16 %v200
        %v321 = vunpack.c.l.b16 %v201
        %v322 = vpack.c.b16 %v321, %v320
        %vm324 = vcmask 130048
        %v325 = vsel %vm324, %v234, 0
        %v327 = vsel %vm324, %v235, 0
        %329 = vmatprep.subr.bf16.mxu0 0
        %330 = vmatpush1.bf16.msra.mxu0 %v322
        %331 = vmatprep.subr.bf16.mxu0 0
        %332 = vmatpush1.bf16.msra.mxu0 0
        %333 = vmatprep.subr.bf16.mxu0 0
        %334 = vmatpush1.bf16.msra.mxu0 0
        %335 = vmatprep.subr.bf16.mxu0 0
        %336 = vmatpush1.bf16.msra.mxu0 0
        %337 = vmatprep.subr.bf16.mxu0 0
        %338 = vmatpush1.bf16.msra.mxu0 0
        %339 = vmatprep.subr.bf16.mxu0 0
        %340 = vmatpush1.bf16.msra.mxu0 0
        %341 = vmatprep.subr.bf16.mxu0 0
        %342 = vmatpush1.bf16.msra.mxu0 0
        %343 = vmatprep.subr.bf16.mxu0 0
        %344 = vmatpush1.bf16.msra.mxu0 0
        %345 = vmatprep.subr.bf16.mxu0 0
        %346 = vmatpush1.bf16.msra.mxu0 0
        %347 = vmatprep.subr.bf16.mxu0 0
        %348 = vmatpush1.bf16.msra.mxu0 0
        %349 = vmatprep.subr.bf16.mxu0 0
        %350 = vmatpush1.bf16.msra.mxu0 0
        %351 = vmatprep.subr.bf16.mxu0 0
        %352 = vmatpush1.bf16.msra.mxu0 0
        %353 = vmatprep.subr.bf16.mxu0 0
        %354 = vmatpush1.bf16.msra.mxu0 0
        %355 = vmatprep.subr.bf16.mxu0 0
        %356 = vmatpush1.bf16.msra.mxu0 0
        %357 = vmatprep.subr.bf16.mxu0 0
        %358 = vmatpush1.bf16.msra.mxu0 0
        %359 = vmatprep.subr.bf16.mxu0 0
        %360 = vmatpush1.bf16.msra.mxu0 0
        %361 = vmatprep.mubr.bf16.mxu0 0
        %362 = vmatmul.mubr.bf16.gmra.mrb[0].mxu0 %v325
        %v363 = vpop.f32.mrb[0].mxu0
        %v364 = vadd.f32 %v304, %v363
        %v365 = vpop.f32.mrb[0].mxu0
        %v366 = vpop.f32.mrb[0].mxu0
        %v367 = vadd.f32 %v307, %v366
        %v368 = vpop.f32.mrb[0].mxu0
        %369 = vmatprep.mubr.bf16.mxu0 0
        %370 = vmatmul.mubr.bf16.gmra.mrb[0].mxu0 %v327
        %v371 = vpop.f32.mrb[0].mxu0
        %v372 = vadd.f32 %v312, %v371
        %v373 = vpop.f32.mrb[0].mxu0
        %v374 = vpop.f32.mrb[0].mxu0
        %v375 = vadd.f32 %v315, %v374
        %v376 = vpop.f32.mrb[0].mxu0
        %377 = vdwg.mxu0
        %s378 = sadd.s32 %s215, 1
        %s379 = smul.u32 %s378, 5
        %s380 = smul.addr %s379, 4
        %s381 = scalar_lea.vmem %s192, %s380
        %v382 = vld [vmem:[%s381] sm:$0xf]
        %v383 = vld [vmem:[%s381 + $0x4] sm:$0xf]
        %v384 = vld [vmem:[%s381 + $0x8] sm:$0xf]
        %v385 = vld [vmem:[%s381 + $0xc] sm:$0xf]
        %v386 = vld [vmem:[%s381 + $0x10] sm:$0x1]
        %v391 = vunpack.c.l.b16 %v382
        %v392 = vunpack.c.l.b16 %v383
        %v393 = vunpack.c.l.b16 %v384
        %v394 = vunpack.c.l.b16 %v385
        %v395 = vpack.c.b16 %v392, %v391
        %v396 = vpack.c.b16 %v394, %v393
        %v399 = vunpack.c.l.b16 %v202
        %v400 = vunpack.c.l.b16 %v203
        %v401 = vpack.c.b16 %v400, %v399
        %v404 = vsel %vm324, %v395, 0
        %v407 = vsel %vm324, %v396, 0
        %409 = vmatprep.subr.bf16.mxu0 0
        %410 = vmatpush1.bf16.msra.mxu0 %v401
        %411 = vmatprep.subr.bf16.mxu0 0
        %412 = vmatpush1.bf16.msra.mxu0 0
        %413 = vmatprep.subr.bf16.mxu0 0
        %414 = vmatpush1.bf16.msra.mxu0 0
        %415 = vmatprep.subr.bf16.mxu0 0
        %416 = vmatpush1.bf16.msra.mxu0 0
        %417 = vmatprep.subr.bf16.mxu0 0
        %418 = vmatpush1.bf16.msra.mxu0 0
        %419 = vmatprep.subr.bf16.mxu0 0
        %420 = vmatpush1.bf16.msra.mxu0 0
        %421 = vmatprep.subr.bf16.mxu0 0
        %422 = vmatpush1.bf16.msra.mxu0 0
        %423 = vmatprep.subr.bf16.mxu0 0
        %424 = vmatpush1.bf16.msra.mxu0 0
        %425 = vmatprep.subr.bf16.mxu0 0
        %426 = vmatpush1.bf16.msra.mxu0 0
        %427 = vmatprep.subr.bf16.mxu0 0
        %428 = vmatpush1.bf16.msra.mxu0 0
        %429 = vmatprep.subr.bf16.mxu0 0
        %430 = vmatpush1.bf16.msra.mxu0 0
        %431 = vmatprep.subr.bf16.mxu0 0
        %432 = vmatpush1.bf16.msra.mxu0 0
        %433 = vmatprep.subr.bf16.mxu0 0
        %434 = vmatpush1.bf16.msra.mxu0 0
        %435 = vmatprep.subr.bf16.mxu0 0
        %436 = vmatpush1.bf16.msra.mxu0 0
        %437 = vmatprep.subr.bf16.mxu0 0
        %438 = vmatpush1.bf16.msra.mxu0 0
        %439 = vmatprep.subr.bf16.mxu0 0
        %440 = vmatpush1.bf16.msra.mxu0 0
        %441 = vmatprep.mubr.bf16.mxu0 0
        %442 = vmatmul.mubr.bf16.gmra.mrb[0].mxu0 %v404
        %v443 = vpop.f32.mrb[0].mxu0
        %v444 = vadd.f32 0.0, %v443
        %v445 = vpop.f32.mrb[0].mxu0
        %v446 = vpop.f32.mrb[0].mxu0
        %v447 = vadd.f32 0.0, %v446
        %v448 = vpop.f32.mrb[0].mxu0
        %449 = vmatprep.mubr.bf16.mxu0 0
        %450 = vmatmul.mubr.bf16.gmra.mrb[0].mxu0 %v407
        %v451 = vpop.f32.mrb[0].mxu0
        %v452 = vadd.f32 0.0, %v451
        %v453 = vpop.f32.mrb[0].mxu0
        %v454 = vpop.f32.mrb[0].mxu0
        %v455 = vadd.f32 0.0, %v454
        %v456 = vpop.f32.mrb[0].mxu0
        %457 = vdwg.mxu0
        %v458 = vadd.f32 %v364, %v444
        %v459 = vadd.f32 %v367, %v447
        %v460 = vadd.f32 %v372, %v452
        %v461 = vadd.f32 %v375, %v455
        %v463 = vunpack.c.l.b16 %v386
        %v464 = vpack.c.b16 %v463, %v463
        %v465 = vshrl.u32 %v395, 16
        %v467 = vshll.u32 %v395, 16
        %v469 = vrot.slane %v467, 1
        %v470 = vor.u32 %v465, %v469
        %v471 = vshll.u32 %v396, 16
        %v473 = vrot.slane %v471, 1
        %v474 = vsel %vm237, %v470, %v473
        %v475 = vshrl.u32 %v396, 16
        %v477 = vor.u32 %v475, %v473
        %v479 = vshll.u32 %v464, 16
        %v481 = vrot.slane %v479, 1
        %v482 = vsel %vm237, %v477, %v481
        %v484 = vsel %vm258, %v474, 0
        %v487 = vsel %vm258, %v482, 0
        %v490 = vsel %vm265, %v207, 0
        %492 = vmatprep.subr.bf16.mxu0 0
        %493 = vmatpush1.bf16.msra.mxu0 %v490
        %494 = vmatprep.subr.bf16.mxu0 0
        %495 = vmatpush1.bf16.msra.mxu0 0
        %496 = vmatprep.subr.bf16.mxu0 0
        %497 = vmatpush1.bf16.msra.mxu0 0
        %498 = vmatprep.subr.bf16.mxu0 0
        %499 = vmatpush1.bf16.msra.mxu0 0
        %500 = vmatprep.subr.bf16.mxu0 0
        %501 = vmatpush1.bf16.msra.mxu0 0
        %502 = vmatprep.subr.bf16.mxu0 0
        %503 = vmatpush1.bf16.msra.mxu0 0
        %504 = vmatprep.subr.bf16.mxu0 0
        %505 = vmatpush1.bf16.msra.mxu0 0
        %506 = vmatprep.subr.bf16.mxu0 0
        %507 = vmatpush1.bf16.msra.mxu0 0
        %508 = vmatprep.subr.bf16.mxu0 0
        %509 = vmatpush1.bf16.msra.mxu0 0
        %510 = vmatprep.subr.bf16.mxu0 0
        %511 = vmatpush1.bf16.msra.mxu0 0
        %512 = vmatprep.subr.bf16.mxu0 0
        %513 = vmatpush1.bf16.msra.mxu0 0
        %514 = vmatprep.subr.bf16.mxu0 0
        %515 = vmatpush1.bf16.msra.mxu0 0
        %516 = vmatprep.subr.bf16.mxu0 0
        %517 = vmatpush1.bf16.msra.mxu0 0
        %518 = vmatprep.subr.bf16.mxu0 0
        %519 = vmatpush1.bf16.msra.mxu0 0
        %520 = vmatprep.subr.bf16.mxu0 0
        %521 = vmatpush1.bf16.msra.mxu0 0
        %522 = vmatprep.subr.bf16.mxu0 0
        %523 = vmatpush1.bf16.msra.mxu0 0
        %524 = vmatprep.mubr.bf16.mxu0 0
        %525 = vmatmul.mubr.bf16.gmra.mrb[0].mxu0 %v484
        %v526 = vpop.f32.mrb[0].mxu0
        %v527 = vadd.f32 0.0, %v526
        %v528 = vpop.f32.mrb[0].mxu0
        %v529 = vpop.f32.mrb[0].mxu0
        %v530 = vadd.f32 0.0, %v529
        %v531 = vpop.f32.mrb[0].mxu0
        %532 = vmatprep.mubr.bf16.mxu0 0
        %533 = vmatmul.mubr.bf16.gmra.mrb[0].mxu0 %v487
        %v534 = vpop.f32.mrb[0].mxu0
        %v535 = vadd.f32 0.0, %v534
        %v536 = vpop.f32.mrb[0].mxu0
        %v537 = vpop.f32.mrb[0].mxu0
        %v538 = vadd.f32 0.0, %v537
        %v539 = vpop.f32.mrb[0].mxu0
        %540 = vdwg.mxu0
        %v541 = vadd.f32 %v458, %v527
        %v542 = vadd.f32 %v459, %v530
        %v543 = vadd.f32 %v460, %v535
        %v544 = vadd.f32 %v461, %v538
        %s545 = sadd.s32 %s215, 2
        %s546 = smul.u32 %s545, 5
        %s547 = smul.addr %s546, 4
        %s548 = scalar_lea.vmem %s192, %s547
        %v549 = vld [vmem:[%s548] sm:$0xf]
        %v550 = vld [vmem:[%s548 + $0x4] sm:$0xf]
        %v551 = vld [vmem:[%s548 + $0x8] sm:$0xf]
        %v552 = vld [vmem:[%s548 + $0xc] sm:$0xf]
        %v553 = vld [vmem:[%s548 + $0x10] sm:$0x1]
        %v558 = vunpack.c.l.b16 %v549
        %v559 = vunpack.c.l.b16 %v550
        %v560 = vunpack.c.l.b16 %v551
        %v561 = vunpack.c.l.b16 %v552
        %v562 = vpack.c.b16 %v559, %v558
        %v563 = vpack.c.b16 %v561, %v560
        %v566 = vunpack.c.l.b16 %v204
        %v567 = vunpack.c.l.b16 %v205
        %v568 = vpack.c.b16 %v567, %v566
        %v571 = vsel %vm324, %v562, 0
        %v574 = vsel %vm324, %v563, 0
        %576 = vmatprep.subr.bf16.mxu0 0
        %577 = vmatpush1.bf16.msra.mxu0 %v568
        %578 = vmatprep.subr.bf16.mxu0 0
        %579 = vmatpush1.bf16.msra.mxu0 0
        %580 = vmatprep.subr.bf16.mxu0 0
        %581 = vmatpush1.bf16.msra.mxu0 0
        %582 = vmatprep.subr.bf16.mxu0 0
        %583 = vmatpush1.bf16.msra.mxu0 0
        %584 = vmatprep.subr.bf16.mxu0 0
        %585 = vmatpush1.bf16.msra.mxu0 0
        %586 = vmatprep.subr.bf16.mxu0 0
        %587 = vmatpush1.bf16.msra.mxu0 0
        %588 = vmatprep.subr.bf16.mxu0 0
        %589 = vmatpush1.bf16.msra.mxu0 0
        %590 = vmatprep.subr.bf16.mxu0 0
        %591 = vmatpush1.bf16.msra.mxu0 0
        %592 = vmatprep.subr.bf16.mxu0 0
        %593 = vmatpush1.bf16.msra.mxu0 0
        %594 = vmatprep.subr.bf16.mxu0 0
        %595 = vmatpush1.bf16.msra.mxu0 0
        %596 = vmatprep.subr.bf16.mxu0 0
        %597 = vmatpush1.bf16.msra.mxu0 0
        %598 = vmatprep.subr.bf16.mxu0 0
        %599 = vmatpush1.bf16.msra.mxu0 0
        %600 = vmatprep.subr.bf16.mxu0 0
        %601 = vmatpush1.bf16.msra.mxu0 0
        %602 = vmatprep.subr.bf16.mxu0 0
        %603 = vmatpush1.bf16.msra.mxu0 0
        %604 = vmatprep.subr.bf16.mxu0 0
        %605 = vmatpush1.bf16.msra.mxu0 0
        %606 = vmatprep.subr.bf16.mxu0 0
        %607 = vmatpush1.bf16.msra.mxu0 0
        %608 = vmatprep.mubr.bf16.mxu0 0
        %609 = vmatmul.mubr.bf16.gmra.mrb[0].mxu0 %v571
        %v610 = vpop.f32.mrb[0].mxu0
        %v611 = vadd.f32 0.0, %v610
        %v612 = vpop.f32.mrb[0].mxu0
        %v613 = vpop.f32.mrb[0].mxu0
        %v614 = vadd.f32 0.0, %v613
        %v615 = vpop.f32.mrb[0].mxu0
        %616 = vmatprep.mubr.bf16.mxu0 0
        %617 = vmatmul.mubr.bf16.gmra.mrb[0].mxu0 %v574
        %v618 = vpop.f32.mrb[0].mxu0
        %v619 = vadd.f32 0.0, %v618
        %v620 = vpop.f32.mrb[0].mxu0
        %v621 = vpop.f32.mrb[0].mxu0
        %v622 = vadd.f32 0.0, %v621
        %v623 = vpop.f32.mrb[0].mxu0
        %624 = vdwg.mxu0
        %v625 = vadd.f32 %v541, %v611
        %v626 = vadd.f32 %v542, %v614
        %v627 = vadd.f32 %v543, %v619
        %v628 = vadd.f32 %v544, %v622
        %v630 = vunpack.c.l.b16 %v553
        %v631 = vpack.c.b16 %v630, %v630
        %v632 = vshrl.u32 %v562, 16
        %v634 = vshll.u32 %v562, 16
        %v636 = vrot.slane %v634, 1
        %v637 = vor.u32 %v632, %v636
        %v638 = vshll.u32 %v563, 16
        %v640 = vrot.slane %v638, 1
        %v641 = vsel %vm237, %v637, %v640
        %v642 = vshrl.u32 %v563, 16
        %v644 = vor.u32 %v642, %v640
        %v646 = vshll.u32 %v631, 16
        %v648 = vrot.slane %v646, 1
        %v649 = vsel %vm237, %v644, %v648
        %v651 = vsel %vm258, %v641, 0
        %v654 = vsel %vm258, %v649, 0
        %v657 = vsel %vm265, %v208, 0
        %659 = vmatprep.subr.bf16.mxu0 0
        %660 = vmatpush1.bf16.msra.mxu0 %v657
        %661 = vmatprep.subr.bf16.mxu0 0
        %662 = vmatpush1.bf16.msra.mxu0 0
        %663 = vmatprep.subr.bf16.mxu0 0
        %664 = vmatpush1.bf16.msra.mxu0 0
        %665 = vmatprep.subr.bf16.mxu0 0
        %666 = vmatpush1.bf16.msra.mxu0 0
        %667 = vmatprep.subr.bf16.mxu0 0
        %668 = vmatpush1.bf16.msra.mxu0 0
        %669 = vmatprep.subr.bf16.mxu0 0
        %670 = vmatpush1.bf16.msra.mxu0 0
        %671 = vmatprep.subr.bf16.mxu0 0
        %672 = vmatpush1.bf16.msra.mxu0 0
        %673 = vmatprep.subr.bf16.mxu0 0
        %674 = vmatpush1.bf16.msra.mxu0 0
        %675 = vmatprep.subr.bf16.mxu0 0
        %676 = vmatpush1.bf16.msra.mxu0 0
        %677 = vmatprep.subr.bf16.mxu0 0
        %678 = vmatpush1.bf16.msra.mxu0 0
        %679 = vmatprep.subr.bf16.mxu0 0
        %680 = vmatpush1.bf16.msra.mxu0 0
        %681 = vmatprep.subr.bf16.mxu0 0
        %682 = vmatpush1.bf16.msra.mxu0 0
        %683 = vmatprep.subr.bf16.mxu0 0
        %684 = vmatpush1.bf16.msra.mxu0 0
        %685 = vmatprep.subr.bf16.mxu0 0
        %686 = vmatpush1.bf16.msra.mxu0 0
        %687 = vmatprep.subr.bf16.mxu0 0
        %688 = vmatpush1.bf16.msra.mxu0 0
        %689 = vmatprep.subr.bf16.mxu0 0
        %690 = vmatpush1.bf16.msra.mxu0 0
        %691 = vmatprep.mubr.bf16.mxu0 0
        %692 = vmatmul.mubr.bf16.gmra.mrb[0].mxu0 %v651
        %v693 = vpop.f32.mrb[0].mxu0
        %v694 = vadd.f32 0.0, %v693
        %v695 = vpop.f32.mrb[0].mxu0
        %v696 = vpop.f32.mrb[0].mxu0
        %v697 = vadd.f32 0.0, %v696
        %v698 = vpop.f32.mrb[0].mxu0
        %699 = vmatprep.mubr.bf16.mxu0 0
        %700 = vmatmul.mubr.bf16.gmra.mrb[0].mxu0 %v654
        %v701 = vpop.f32.mrb[0].mxu0
        %v702 = vadd.f32 0.0, %v701
        %v703 = vpop.f32.mrb[0].mxu0
        %v704 = vpop.f32.mrb[0].mxu0
        %v705 = vadd.f32 0.0, %v704
        %v706 = vpop.f32.mrb[0].mxu0
        %707 = vdwg.mxu0
        %v708 = vadd.f32 %v625, %v694
        %v709 = vadd.f32 %v626, %v697
        %v710 = vadd.f32 %v627, %v702
        %v711 = vadd.f32 %v628, %v705
        %v713 = vlaneseq
        %v714 = vshrl.u32 %v713, 7
        %v715 = vsub.s32 0, %v714
        %v716 = vrot.slane %v199, %v715
        %v718 = vadd.f32 %v708, %v716
        %v719 = vadd.f32 %v709, %v716
        %v720 = vadd.f32 %v710, %v716
        %v721 = vadd.f32 %v711, %v716
        %v722 = vxor.u32 %v718, 2147483648
        %v723 = vxor.u32 %v719, 2147483648
        %v724 = vxor.u32 %v720, 2147483648
        %v725 = vxor.u32 %v721, 2147483648
        %v726 = vmul.f32 %v722, 1.442695
        %v727 = vpow.pop %v726
        %v728 = vmul.f32 %v723, 1.442695
        %v729 = vpow.pop %v728
        %v730 = vmul.f32 %v724, 1.442695
        %v731 = vpow.pop %v730
        %v732 = vmul.f32 %v725, 1.442695
        %v733 = vpow.pop %v732
        %v734 = vadd.f32 %v727, 1.0
        %v735 = vadd.f32 %v729, 1.0
        %v736 = vadd.f32 %v731, 1.0
        %v737 = vadd.f32 %v733, 1.0
        %v738 = vrcp.pop %v734
        %v739 = vmul.f32 1.0, %v738
        %v740 = vrcp.pop %v735
        %v741 = vmul.f32 1.0, %v740
        %v742 = vrcp.pop %v736
        %v743 = vmul.f32 1.0, %v742
        %v744 = vrcp.pop %v737
        %v745 = vmul.f32 1.0, %v744
        %v746 = vmul.f32 %v718, %v739
        %v747 = vmul.f32 %v719, %v741
        %v748 = vmul.f32 %v720, %v743
        %v749 = vmul.f32 %v721, %v745
        %v750 = vpack.c.bf16 %v747, %v746
        %v751 = vpack.c.bf16 %v749, %v748
        %v754 = vunpack.c.l.b16 %v750
        %v755 = vunpack.c.h.b16 %v750
        %v756 = vunpack.c.l.b16 %v751
        %v757 = vunpack.c.h.b16 %v751
        %v758 = vpack.c.b16 %v754, %v754
        %v759 = vpack.c.b16 %v755, %v755
        %v760 = vpack.c.b16 %v756, %v756
        %v761 = vpack.c.b16 %v757, %v757
        %s766 = smul.u32 %s210, 4
        %s767 = smul.addr %s766, 4
        %s768 = scalar_lea.vmem %s197, %s767
        %vm769 = vcmask 93184
        %770 = vst.msk [vmem:[%s768] sm:$0xf] %vm769, %v758
        %771 = vst.msk [vmem:[%s768 + $0x4] sm:$0xf] %vm769, %v759
        %772 = vst.msk [vmem:[%s768 + $0x8] sm:$0xf] %vm769, %v760
        %773 = vst.msk [vmem:[%s768 + $0xc] sm:$0xf] %vm769, %v761
      $region41: #{encoder_forward.12} parent=35 // loop_footer
        %s214 = sadd.s32 1, %s210
      $region42: #{encoder_forward.12} parent=35 // loop_footer_branch
        %209 = sbr.rel target = $region38
      $region43: #{encoder_forward.12} parent=35 // loop_exit
        _
      %p774 = scmp.lt.s32.totalorder %s15, 1
      %s775 = scalar_select %p774, %s15, 1
      %s776 = smul.addr %s775, 64
      %s777 = smul.addr %s776, 4
      %s778 = scalar_lea.vmem %s4, %s777
      // Predicated region
      $region44: #{encoder_forward.12} parent=35 // pred_check
        %p779 = pneg %p122
      $region45: #{encoder_forward.12} parent=35 // pred_check_branch
        %781 = sbr.rel (%p779) target = $region47
      $region46: #{encoder_forward.12} parent=35 // pred_region
        _
      $region47: #{encoder_forward.12} parent=35 // pred_fallthru
        _
    $region36: #{encoder_forward.12} parent=5 // pred_fallthru
      _
    %p782 = scmp.le.s32.totalorder 2, %s10
    // Predicated region
    $region48: #{encoder_forward.12} parent=5 // pred_check
      %p783 = pneg %p782
    $region49: #{encoder_forward.12} parent=5 // pred_check_branch
      %785 = sbr.rel (%p783) target = $region51
    $region50: #{encoder_forward.12} parent=5 // pred_region
      %s786 = ssub.s32 %s10, 2
      // Predicated region
      $region52: #{encoder_forward.12} parent=50 // pred_check
        %p787 = pneg %p128
      $region53: #{encoder_forward.12} parent=50 // pred_check_branch
        %789 = sbr.rel (%p787) target = $region55
      $region54: #{encoder_forward.12} parent=50 // pred_region
        %p790 = scmp.lt.s32.totalorder %s16, 1
        %s791 = scalar_select %p790, %s16, 1
        %s792 = smul.addr %s791, 64
        %s793 = smul.addr %s792, 4
        %s794 = scalar_lea.vmem %s4, %s793
      $region55: #{encoder_forward.12} parent=50 // pred_fallthru
        _
    $region51: #{encoder_forward.12} parent=5 // pred_fallthru
      _
  $region6: #{encoder_forward.12} parent=0 // loop_footer
    %s14 = sadd.s32 1, %s10
  $region7: #{encoder_forward.12} parent=0 // loop_footer_branch
    %9 = sbr.rel target = $region3
  $region8: #{encoder_forward.12} parent=0 // loop_exit
    _

// kernel: encoder_forward.13
$region0: #{encoder_forward.13}
  #allocation0 [shape = 'u32[]', space=smem, size = 0x4, offset = 0x4, fixed_abs, tag = 'smem constant byte address 0x4 - core index']
  #allocation1 [shape = 'u32[144,128]{1,0:T(1,128)}', space=vmem, size = 0x12000, scoped, tag = 'internal scratch']
  %s0 = inlined_call_operand.vmem [shape: bf16[2,18,17,24], index: 0, kind: input, shape index: {}]
  %s1 = inlined_call_operand.vmem [shape: bf16[3,24,16], index: 1, kind: input, shape index: {}]
  %s2 = inlined_call_operand.vmem [shape: bf16[3,12,16], index: 2, kind: input, shape index: {}]
  %s3 = inlined_call_operand.vmem [shape: f32[1,16], index: 3, kind: input, shape index: {}]
  %s4 = inlined_call_operand.vmem [shape: bf16[2,8,16,16], index: 4, kind: output, shape index: {}]
  %s5 = sld [smem:[#allocation0]]
  $region56: #{encoder_forward.13} parent=0
    _
  %s7 = ssub.s32 1, %s5
  %s8 = scalar_select 0, %s7, %s5
  loop: start=0, step=1, limit=4
  $region2: #{encoder_forward.13} parent=0 // loop_pre_header
    _
  $region3: #{encoder_forward.13} parent=0 // loop_header
    %s10 = sphi 0, %s14
    %p11 = scmp.ge.s32.totalorder %s10, 4
    %s20 = sphi 0, %s22
    %s23 = sphi 0, %s20
    %s24 = sphi 0, %s23
    %s40 = sphi 0, %s24
    %s44 = sphi 0, %s44
    %s46 = sphi 0, %s44
    %s47 = sphi 0, %s46
    %s61 = sphi 0, %s47
    %s65 = sphi 0, %s65
    %s67 = sphi 0, %s65
    %s68 = sphi 0, %s67
    %s82 = sphi 0, %s68
    %s86 = sphi 0, %s86
    %s88 = sphi 0, %s86
    %s89 = sphi 0, %s88
    %s103 = sphi 0, %s89
    %s109 = sphi 0, %s111
    %s112 = sphi 0, %s109
    %s113 = sphi 0, %s112
    %s129 = sphi 0, %s113
  $region4: #{encoder_forward.13} parent=0 // loop_header_branch
    %13 = sbr.rel (%p11) target = $region8
  $region5: #{encoder_forward.13} parent=0 // loop_body
    %s15 = ssub.s32 %s10, 1
    %s16 = ssub.s32 %s10, 2
    %s17 = sadd.s32 %s10, 1
    %s18 = ssub.s32 %s10, %s17
    %p19 = scmp.eq.s32.totalorder %s18, 0
    %s21 = sadd.s32 %s20, 1
    %s22 = scalar_select %p19, %s20, %s21
    %p25 = pneg %p19
    %p26 = scmp.eq.s32.totalorder %s10, 1
    %p27 = por %p25, %p26
    %p28 = scmp.ne.s32.totalorder %s20, %s23
    %p29 = scmp.eq.s32.totalorder %s10, 0
    %p30 = por %p28, %p29
    %p31 = scmp.ne.s32.totalorder %s20, %s23
    %p32 = scmp.eq.s32.totalorder %s15, 1
    %p33 = por %p31, %p32
    %p34 = scmp.ne.s32.totalorder %s23, %s24
    %p35 = scmp.eq.s32.totalorder %s15, 0
    %p36 = por %p34, %p35
    %p37 = scmp.ne.s32.totalorder %s23, %s24
    %p38 = scmp.eq.s32.totalorder %s16, 1
    %p39 = por %p37, %p38
    %p41 = scmp.ne.s32.totalorder %s24, %s40
    %p42 = scmp.eq.s32.totalorder %s16, 0
    %p43 = por %p41, %p42
    %s45 = sadd.s32 %s44, 1
    %p48 = scmp.eq.s32.totalorder %s10, 1
    %p49 = scmp.ne.s32.totalorder %s44, %s46
    %p50 = scmp.eq.s32.totalorder %s10, 0
    %p51 = por %p49, %p50
    %p52 = scmp.ne.s32.totalorder %s44, %s46
    %p53 = scmp.eq.s32.totalorder %s15, 1
    %p54 = por %p52, %p53
    %p55 = scmp.ne.s32.totalorder %s46, %s47
    %p56 = scmp.eq.s32.totalorder %s15, 0
    %p57 = por %p55, %p56
    %p58 = scmp.ne.s32.totalorder %s46, %s47
    %p59 = scmp.eq.s32.totalorder %s16, 1
    %p60 = por %p58, %p59
    %p62 = scmp.ne.s32.totalorder %s47, %s61
    %p63 = scmp.eq.s32.totalorder %s16, 0
    %p64 = por %p62, %p63
    %s66 = sadd.s32 %s65, 1
    %p69 = scmp.eq.s32.totalorder %s10, 1
    %p70 = scmp.ne.s32.totalorder %s65, %s67
    %p71 = scmp.eq.s32.totalorder %s10, 0
    %p72 = por %p70, %p71
    %p73 = scmp.ne.s32.totalorder %s65, %s67
    %p74 = scmp.eq.s32.totalorder %s15, 1
    %p75 = por %p73, %p74
    %p76 = scmp.ne.s32.totalorder %s67, %s68
    %p77 = scmp.eq.s32.totalorder %s15, 0
    %p78 = por %p76, %p77
    %p79 = scmp.ne.s32.totalorder %s67, %s68
    %p80 = scmp.eq.s32.totalorder %s16, 1
    %p81 = por %p79, %p80
    %p83 = scmp.ne.s32.totalorder %s68, %s82
    %p84 = scmp.eq.s32.totalorder %s16, 0
    %p85 = por %p83, %p84
    %s87 = sadd.s32 %s86, 1
    %p90 = scmp.eq.s32.totalorder %s10, 1
    %p91 = scmp.ne.s32.totalorder %s86, %s88
    %p92 = scmp.eq.s32.totalorder %s10, 0
    %p93 = por %p91, %p92
    %p94 = scmp.ne.s32.totalorder %s86, %s88
    %p95 = scmp.eq.s32.totalorder %s15, 1
    %p96 = por %p94, %p95
    %p97 = scmp.ne.s32.totalorder %s88, %s89
    %p98 = scmp.eq.s32.totalorder %s15, 0
    %p99 = por %p97, %p98
    %p100 = scmp.ne.s32.totalorder %s88, %s89
    %p101 = scmp.eq.s32.totalorder %s16, 1
    %p102 = por %p100, %p101
    %p104 = scmp.ne.s32.totalorder %s89, %s103
    %p105 = scmp.eq.s32.totalorder %s16, 0
    %p106 = por %p104, %p105
    %s107 = ssub.s32 %s10, %s17
    %p108 = scmp.eq.s32.totalorder %s107, 0
    %s110 = sadd.s32 %s109, 1
    %s111 = scalar_select %p108, %s109, %s110
    %p114 = pneg %p108
    %p115 = scmp.eq.s32.totalorder %s10, 1
    %p116 = por %p114, %p115
    %p117 = scmp.ne.s32.totalorder %s109, %s112
    %p118 = scmp.eq.s32.totalorder %s10, 0
    %p119 = por %p117, %p118
    %p120 = scmp.ne.s32.totalorder %s109, %s112
    %p121 = scmp.eq.s32.totalorder %s15, 1
    %p122 = por %p120, %p121
    %p123 = scmp.ne.s32.totalorder %s112, %s113
    %p124 = scmp.eq.s32.totalorder %s15, 0
    %p125 = por %p123, %p124
    %p126 = scmp.ne.s32.totalorder %s112, %s113
    %p127 = scmp.eq.s32.totalorder %s16, 1
    %p128 = por %p126, %p127
    %p130 = scmp.ne.s32.totalorder %s113, %s129
    %p131 = scmp.eq.s32.totalorder %s16, 0
    %p132 = por %p130, %p131
    %p133 = scmp.le.s32.totalorder 1, %s10
    %p134 = scmp.lt.s32.totalorder %s10, 3
    %p135 = pnand %p133, %p134
    %p136 = pneg %p135
    // Predicated region
    $region9: #{encoder_forward.13} parent=5 // pred_check
      _
    $region10: #{encoder_forward.13} parent=5 // pred_check_branch
      %138 = sbr.rel (%p135) target = $region12
    $region11: #{encoder_forward.13} parent=5 // pred_region
      %s139 = ssub.s32 %s10, 1
      // Predicated region
      $region13: #{encoder_forward.13} parent=11 // pred_check
        %p140 = pneg %p57
      $region14: #{encoder_forward.13} parent=11 // pred_check_branch
        %142 = sbr.rel (%p140) target = $region16
      $region15: #{encoder_forward.13} parent=11 // pred_region
        _
      $region16: #{encoder_forward.13} parent=11 // pred_fallthru
        _
      // Predicated region
      $region17: #{encoder_forward.13} parent=11 // pred_check
        %p143 = pneg %p78
      $region18: #{encoder_forward.13} parent=11 // pred_check_branch
        %145 = sbr.rel (%p143) target = $region20
      $region19: #{encoder_forward.13} parent=11 // pred_region
        _
      $region20: #{encoder_forward.13} parent=11 // pred_fallthru
        _
      // Predicated region
      $region21: #{encoder_forward.13} parent=11 // pred_check
        %p146 = pneg %p99
      $region22: #{encoder_forward.13} parent=11 // pred_check_branch
        %148 = sbr.rel (%p146) target = $region24
      $region23: #{encoder_forward.13} parent=11 // pred_region
        _
      $region24: #{encoder_forward.13} parent=11 // pred_fallthru
        _
    $region12: #{encoder_forward.13} parent=5 // pred_fallthru
      _
    %p149 = scmp.lt.s32.totalorder %s10, 2
    // Predicated region
    $region25: #{encoder_forward.13} parent=5 // pred_check
      %p150 = pneg %p149
    $region26: #{encoder_forward.13} parent=5 // pred_check_branch
      %152 = sbr.rel (%p150) target = $region28
    $region27: #{encoder_forward.13} parent=5 // pred_region
      // Predicated region
      $region29: #{encoder_forward.13} parent=27 // pred_check
        %p153 = pneg %p30
      $region30: #{encoder_forward.13} parent=27 // pred_check_branch
        %155 = sbr.rel (%p153) target = $region32
      $region31: #{encoder_forward.13} parent=27 // pred_region
        %p156 = scmp.lt.s32.totalorder %s10, 1
        %s157 = scalar_select %p156, %s10, 1
        %s158 = smul.addr %s157, 54
        %s159 = smul.addr %s158, 4
        %s160 = scalar_lea.vmem %s0, %s159
      $region32: #{encoder_forward.13} parent=27 // pred_fallthru
        _
    $region28: #{encoder_forward.13} parent=5 // pred_fallthru
      _
    %p161 = scmp.le.s32.totalorder 1, %s10
    %p162 = scmp.lt.s32.totalorder %s10, 3
    %p163 = pnand %p161, %p162
    %p164 = pneg %p163
    // Predicated region
    $region33: #{encoder_forward.13} parent=5 // pred_check
      _
    $region34: #{encoder_forward.13} parent=5 // pred_check_branch
      %166 = sbr.rel (%p163) target = $region36
    $region35: #{encoder_forward.13} parent=5 // pred_region
      %s167 = ssub.s32 %s10, 1
      %p168 = scmp.lt.s32.totalorder %s15, 1
      %s169 = scalar_select %p168, %s15, 1
      %s170 = smul.addr %s169, 54
      %s171 = smul.addr %s170, 4
      %s172 = scalar_lea.vmem %s0, %s171
      %p173 = pneg %p36
      %p174 = pneg %p33
      %p175 = pneg %p57
      %p176 = pneg %p54
      %p177 = pneg %p78
      %p178 = pneg %p75
      %p179 = pneg %p99
      %p180 = pneg %p96
      %p181 = pneg %p125
      %p182 = pneg %p122
      %p183 = scmp.lt.s32.totalorder %s15, 1
      %s184 = scalar_select %p183, %s15, 1
      %s185 = smul.addr %s184, 16
      %s186 = smul.addr %s185, 4
      %s187 = scalar_lea.vmem %s4, %s186
      %p188 = scmp.lt.s32.totalorder %s15, 1
      %s189 = scalar_select %p188, %s15, 1
      %s190 = smul.addr %s189, 54
      %s191 = smul.addr %s190, 4
      %s192 = scalar_lea.vmem %s0, %s191
      %p193 = scmp.lt.s32.totalorder %s15, 1
      %s194 = scalar_select %p193, %s15, 1
      %s195 = smul.addr %s194, 16
      %s196 = smul.addr %s195, 4
      %s197 = scalar_lea.vmem %s4, %s196
      %v199 = vld [vmem:[%s3] sm:$0x1]
      %v200 = vld [vmem:[%s1] sm:$0xf]
      %v201 = vld [vmem:[%s1 + $0x4] sm:$0xf]
      %v202 = vld [vmem:[%s1 + $0x8] sm:$0xf]
      %v203 = vld [vmem:[%s1 + $0xc] sm:$0xf]
      %v204 = vld [vmem:[%s1 + $0x10] sm:$0xf]
      %v205 = vld [vmem:[%s1 + $0x14] sm:$0xf]
      %v206 = vld [vmem:[%s1 + $0x18] sm:$0xf]
      %v207 = vld [vmem:[%s1 + $0x1c] sm:$0xf]
      %v208 = vld [vmem:[%s1 + $0x20] sm:$0xf]
      %v209 = vld [vmem:[%s2] sm:$0xf]
      %v210 = vld [vmem:[%s2 + $0x4] sm:$0x3]
      %v211 = vld [vmem:[%s2 + $0x8] sm:$0xf]
      %v212 = vld [vmem:[%s2 + $0xc] sm:$0x3]
      %v213 = vld [vmem:[%s2 + $0x10] sm:$0xf]
      %v214 = vld [vmem:[%s2 + $0x14] sm:$0x3]
      loop: start=0, step=1, limit=8
      $region37: #{encoder_forward.13} parent=35 // loop_pre_header
        _
      $region38: #{encoder_forward.13} parent=35 // loop_header
        %s216 = sphi 0, %s220
        %p217 = scmp.ge.s32.totalorder %s216, 8
      $region39: #{encoder_forward.13} parent=35 // loop_header_branch
        %219 = sbr.rel (%p217) target = $region43
      $region40: #{encoder_forward.13} parent=35 // loop_body
        %s221 = smul.u32 %s216, 2
        %s222 = smul.u32 %s221, 3
        %s223 = smul.addr %s222, 4
        %s224 = scalar_lea.vmem %s192, %s223
        %v225 = vld [vmem:[%s224] sm:$0xf]
        %v226 = vld [vmem:[%s224 + $0x4] sm:$0xf]
        %v227 = vld [vmem:[%s224 + $0x8] sm:$0x1]
        %v231 = vunpack.c.l.b16 %v225
        %v232 = vunpack.c.l.b16 %v226
        %v233 = vunpack.c.l.b16 %v227
        %v234 = vpack.c.b16 %v232, %v231
        %v235 = vpack.c.b16 %v233, %v233
        %vm236 = vsmask.f32 7424
        %v238 = vshrl.u32 %v234, 16
        %v240 = vshll.u32 %v234, 16
        %v242 = vrot.slane %v240, 1
        %v243 = vor.u32 %v238, %v242
        %v245 = vshll.u32 %v235, 16
        %v247 = vrot.slane %v245, 1
        %v248 = vsel %vm236, %v243, %v247
        %v251 = vunpack.c.l.b16 %v209
        %v252 = vunpack.c.l.b16 %v210
        %v253 = vpack.c.b16 %v252, %v251
        %vm254 = vcmask 97280
        %v256 = vsel %vm254, %v248, 0
        %vm258 = vcmask 1045504
        %v260 = vsel %vm258, %v253, 0
        %262 = vmatprep.subr.bf16.mxu0 0
        %263 = vmatpush1.bf16.msra.mxu0 %v260
        %264 = vmatprep.subr.bf16.mxu0 0
        %265 = vmatpush1.bf16.msra.mxu0 0
        %266 = vmatprep.subr.bf16.mxu0 0
        %267 = vmatpush1.bf16.msra.mxu0 0
        %268 = vmatprep.subr.bf16.mxu0 0
        %269 = vmatpush1.bf16.msra.mxu0 0
        %270 = vmatprep.subr.bf16.mxu0 0
        %271 = vmatpush1.bf16.msra.mxu0 0
        %272 = vmatprep.subr.bf16.mxu0 0
        %273 = vmatpush1.bf16.msra.mxu0 0
        %274 = vmatprep.subr.bf16.mxu0 0
        %275 = vmatpush1.bf16.msra.mxu0 0
        %276 = vmatprep.subr.bf16.mxu0 0
        %277 = vmatpush1.bf16.msra.mxu0 0
        %278 = vmatprep.subr.bf16.mxu0 0
        %279 = vmatpush1.bf16.msra.mxu0 0
        %280 = vmatprep.subr.bf16.mxu0 0
        %281 = vmatpush1.bf16.msra.mxu0 0
        %282 = vmatprep.subr.bf16.mxu0 0
        %283 = vmatpush1.bf16.msra.mxu0 0
        %284 = vmatprep.subr.bf16.mxu0 0
        %285 = vmatpush1.bf16.msra.mxu0 0
        %286 = vmatprep.subr.bf16.mxu0 0
        %287 = vmatpush1.bf16.msra.mxu0 0
        %288 = vmatprep.subr.bf16.mxu0 0
        %289 = vmatpush1.bf16.msra.mxu0 0
        %290 = vmatprep.subr.bf16.mxu0 0
        %291 = vmatpush1.bf16.msra.mxu0 0
        %292 = vmatprep.subr.bf16.mxu0 0
        %293 = vmatpush1.bf16.msra.mxu0 0
        %294 = vmatprep.mubr.bf16.mxu0 0
        %295 = vmatmul.mubr.bf16.gmra.mrb[0].mxu0 %v256
        %v296 = vpop.f32.mrb[0].mxu0
        %v297 = vadd.f32 0.0, %v296
        %v298 = vpop.f32.mrb[0].mxu0
        %v299 = vpop.f32.mrb[0].mxu0
        %v300 = vadd.f32 0.0, %v299
        %v301 = vpop.f32.mrb[0].mxu0
        %302 = vdwg.mxu0
        %v306 = vunpack.c.l.b16 %v200
        %v307 = vunpack.c.l.b16 %v201
        %v308 = vunpack.c.l.b16 %v202
        %v309 = vpack.c.b16 %v307, %v306
        %v310 = vpack.c.b16 %v308, %v308
        %vm312 = vcmask 195584
        %v313 = vsel %vm312, %v234, 0
        %vm315 = vcmask 1043456
        %v317 = vsel %vm315, %v310, 0
        %319 = vmatprep.subr.bf16.mxu0 0
        %320 = vmatpush1.bf16.msra.mxu0 %v309
        %321 = vmatprep.subr.bf16.mxu0 0
        %322 = vmatpush1.bf16.msra.mxu0 %v317
        %323 = vmatprep.subr.bf16.mxu0 0
        %324 = vmatpush1.bf16.msra.mxu0 0
        %325 = vmatprep.subr.bf16.mxu0 0
        %326 = vmatpush1.bf16.msra.mxu0 0
        %327 = vmatprep.subr.bf16.mxu0 0
        %328 = vmatpush1.bf16.msra.mxu0 0
        %329 = vmatprep.subr.bf16.mxu0 0
        %330 = vmatpush1.bf16.msra.mxu0 0
        %331 = vmatprep.subr.bf16.mxu0 0
        %332 = vmatpush1.bf16.msra.mxu0 0
        %333 = vmatprep.subr.bf16.mxu0 0
        %334 = vmatpush1.bf16.msra.mxu0 0
        %335 = vmatprep.subr.bf16.mxu0 0
        %336 = vmatpush1.bf16.msra.mxu0 0
        %337 = vmatprep.subr.bf16.mxu0 0
        %338 = vmatpush1.bf16.msra.mxu0 0
        %339 = vmatprep.subr.bf16.mxu0 0
        %340 = vmatpush1.bf16.msra.mxu0 0
        %341 = vmatprep.subr.bf16.mxu0 0
        %342 = vmatpush1.bf16.msra.mxu0 0
        %343 = vmatprep.subr.bf16.mxu0 0
        %344 = vmatpush1.bf16.msra.mxu0 0
        %345 = vmatprep.subr.bf16.mxu0 0
        %346 = vmatpush1.bf16.msra.mxu0 0
        %347 = vmatprep.subr.bf16.mxu0 0
        %348 = vmatpush1.bf16.msra.mxu0 0
        %349 = vmatprep.subr.bf16.mxu0 0
        %350 = vmatpush1.bf16.msra.mxu0 0
        %351 = vmatprep.mubr.bf16.mxu0 0
        %352 = vmatmul.mubr.bf16.gmra.mrb[0].mxu0 %v313
        %v353 = vpop.f32.mrb[0].mxu0
        %v354 = vadd.f32 %v297, %v353
        %v355 = vpop.f32.mrb[0].mxu0
        %v356 = vpop.f32.mrb[0].mxu0
        %v357 = vadd.f32 %v300, %v356
        %v358 = vpop.f32.mrb[0].mxu0
        %359 = vdwg.mxu0
        %s360 = sadd.s32 %s221, 1
        %s361 = smul.u32 %s360, 3
        %s362 = smul.addr %s361, 4
        %s363 = scalar_lea.vmem %s192, %s362
        %v364 = vld [vmem:[%s363] sm:$0xf]
        %v365 = vld [vmem:[%s363 + $0x4] sm:$0xf]
        %v366 = vld [vmem:[%s363 + $0x8] sm:$0x1]
        %v369 = vunpack.c.l.b16 %v364
        %v370 = vunpack.c.l.b16 %v365
        %v371 = vpack.c.b16 %v370, %v369
        %v375 = vunpack.c.l.b16 %v203
        %v376 = vunpack.c.l.b16 %v204
        %v377 = vunpack.c.l.b16 %v205
        %v378 = vpack.c.b16 %v376, %v375
        %v379 = vpack.c.b16 %v377, %v377
        %v382 = vsel %vm312, %v371, 0
        %v385 = vsel %vm315, %v379, 0
        %387 = vmatprep.subr.bf16.mxu0 0
        %388 = vmatpush1.bf16.msra.mxu0 %v378
        %389 = vmatprep.subr.bf16.mxu0 0
        %390 = vmatpush1.bf16.msra.mxu0 %v385
        %391 = vmatprep.subr.bf16.mxu0 0
        %392 = vmatpush1.bf16.msra.mxu0 0
        %393 = vmatprep.subr.bf16.mxu0 0
        %394 = vmatpush1.bf16.msra.mxu0 0
        %395 = vmatprep.subr.bf16.mxu0 0
        %396 = vmatpush1.bf16.msra.mxu0 0
        %397 = vmatprep.subr.bf16.mxu0 0
        %398 = vmatpush1.bf16.msra.mxu0 0
        %399 = vmatprep.subr.bf16.mxu0 0
        %400 = vmatpush1.bf16.msra.mxu0 0
        %401 = vmatprep.subr.bf16.mxu0 0
        %402 = vmatpush1.bf16.msra.mxu0 0
        %403 = vmatprep.subr.bf16.mxu0 0
        %404 = vmatpush1.bf16.msra.mxu0 0
        %405 = vmatprep.subr.bf16.mxu0 0
        %406 = vmatpush1.bf16.msra.mxu0 0
        %407 = vmatprep.subr.bf16.mxu0 0
        %408 = vmatpush1.bf16.msra.mxu0 0
        %409 = vmatprep.subr.bf16.mxu0 0
        %410 = vmatpush1.bf16.msra.mxu0 0
        %411 = vmatprep.subr.bf16.mxu0 0
        %412 = vmatpush1.bf16.msra.mxu0 0
        %413 = vmatprep.subr.bf16.mxu0 0
        %414 = vmatpush1.bf16.msra.mxu0 0
        %415 = vmatprep.subr.bf16.mxu0 0
        %416 = vmatpush1.bf16.msra.mxu0 0
        %417 = vmatprep.subr.bf16.mxu0 0
        %418 = vmatpush1.bf16.msra.mxu0 0
        %419 = vmatprep.mubr.bf16.mxu0 0
        %420 = vmatmul.mubr.bf16.gmra.mrb[0].mxu0 %v382
        %v421 = vpop.f32.mrb[0].mxu0
        %v422 = vadd.f32 0.0, %v421
        %v423 = vpop.f32.mrb[0].mxu0
        %v424 = vpop.f32.mrb[0].mxu0
        %v425 = vadd.f32 0.0, %v424
        %v426 = vpop.f32.mrb[0].mxu0
        %427 = vdwg.mxu0
        %v428 = vadd.f32 %v354, %v422
        %v429 = vadd.f32 %v357, %v425
        %v431 = vunpack.c.l.b16 %v366
        %v432 = vpack.c.b16 %v431, %v431
        %v433 = vshrl.u32 %v371, 16
        %v435 = vshll.u32 %v371, 16
        %v437 = vrot.slane %v435, 1
        %v438 = vor.u32 %v433, %v437
        %v440 = vshll.u32 %v432, 16
        %v442 = vrot.slane %v440, 1
        %v443 = vsel %vm236, %v438, %v442
        %v446 = vunpack.c.l.b16 %v211
        %v447 = vunpack.c.l.b16 %v212
        %v448 = vpack.c.b16 %v447, %v446
        %v450 = vsel %vm254, %v443, 0
        %v453 = vsel %vm258, %v448, 0
        %455 = vmatprep.subr.bf16.mxu0 0
        %456 = vmatpush1.bf16.msra.mxu0 %v453
        %457 = vmatprep.subr.bf16.mxu0 0
        %458 = vmatpush1.bf16.msra.mxu0 0
        %459 = vmatprep.subr.bf16.mxu0 0
        %460 = vmatpush1.bf16.msra.mxu0 0
        %461 = vmatprep.subr.bf16.mxu0 0
        %462 = vmatpush1.bf16.msra.mxu0 0
        %463 = vmatprep.subr.bf16.mxu0 0
        %464 = vmatpush1.bf16.msra.mxu0 0
        %465 = vmatprep.subr.bf16.mxu0 0
        %466 = vmatpush1.bf16.msra.mxu0 0
        %467 = vmatprep.subr.bf16.mxu0 0
        %468 = vmatpush1.bf16.msra.mxu0 0
        %469 = vmatprep.subr.bf16.mxu0 0
        %470 = vmatpush1.bf16.msra.mxu0 0
        %471 = vmatprep.subr.bf16.mxu0 0
        %472 = vmatpush1.bf16.msra.mxu0 0
        %473 = vmatprep.subr.bf16.mxu0 0
        %474 = vmatpush1.bf16.msra.mxu0 0
        %475 = vmatprep.subr.bf16.mxu0 0
        %476 = vmatpush1.bf16.msra.mxu0 0
        %477 = vmatprep.subr.bf16.mxu0 0
        %478 = vmatpush1.bf16.msra.mxu0 0
        %479 = vmatprep.subr.bf16.mxu0 0
        %480 = vmatpush1.bf16.msra.mxu0 0
        %481 = vmatprep.subr.bf16.mxu0 0
        %482 = vmatpush1.bf16.msra.mxu0 0
        %483 = vmatprep.subr.bf16.mxu0 0
        %484 = vmatpush1.bf16.msra.mxu0 0
        %485 = vmatprep.subr.bf16.mxu0 0
        %486 = vmatpush1.bf16.msra.mxu0 0
        %487 = vmatprep.mubr.bf16.mxu0 0
        %488 = vmatmul.mubr.bf16.gmra.mrb[0].mxu0 %v450
        %v489 = vpop.f32.mrb[0].mxu0
        %v490 = vadd.f32 0.0, %v489
        %v491 = vpop.f32.mrb[0].mxu0
        %v492 = vpop.f32.mrb[0].mxu0
        %v493 = vadd.f32 0.0, %v492
        %v494 = vpop.f32.mrb[0].mxu0
        %495 = vdwg.mxu0
        %v496 = vadd.f32 %v428, %v490
        %v497 = vadd.f32 %v429, %v493
        %s498 = sadd.s32 %s221, 2
        %s499 = smul.u32 %s498, 3
        %s500 = smul.addr %s499, 4
        %s501 = scalar_lea.vmem %s192, %s500
        %v502 = vld [vmem:[%s501] sm:$0xf]
        %v503 = vld [vmem:[%s501 + $0x4] sm:$0xf]
        %v504 = vld [vmem:[%s501 + $0x8] sm:$0x1]
        %v507 = vunpack.c.l.b16 %v502
        %v508 = vunpack.c.l.b16 %v503
        %v509 = vpack.c.b16 %v508, %v507
        %v513 = vunpack.c.l.b16 %v206
        %v514 = vunpack.c.l.b16 %v207
        %v515 = vunpack.c.l.b16 %v208
        %v516 = vpack.c.b16 %v514, %v513
        %v517 = vpack.c.b16 %v515, %v515
        %v520 = vsel %vm312, %v509, 0
        %v523 = vsel %vm315, %v517, 0
        %525 = vmatprep.subr.bf16.mxu0 0
        %526 = vmatpush1.bf16.msra.mxu0 %v516
        %527 = vmatprep.subr.bf16.mxu0 0
        %528 = vmatpush1.bf16.msra.mxu0 %v523
        %529 = vmatprep.subr.bf16.mxu0 0
        %530 = vmatpush1.bf16.msra.mxu0 0
        %531 = vmatprep.subr.bf16.mxu0 0
        %532 = vmatpush1.bf16.msra.mxu0 0
        %533 = vmatprep.subr.bf16.mxu0 0
        %534 = vmatpush1.bf16.msra.mxu0 0
        %535 = vmatprep.subr.bf16.mxu0 0
        %536 = vmatpush1.bf16.msra.mxu0 0
        %537 = vmatprep.subr.bf16.mxu0 0
        %538 = vmatpush1.bf16.msra.mxu0 0
        %539 = vmatprep.subr.bf16.mxu0 0
        %540 = vmatpush1.bf16.msra.mxu0 0
        %541 = vmatprep.subr.bf16.mxu0 0
        %542 = vmatpush1.bf16.msra.mxu0 0
        %543 = vmatprep.subr.bf16.mxu0 0
        %544 = vmatpush1.bf16.msra.mxu0 0
        %545 = vmatprep.subr.bf16.mxu0 0
        %546 = vmatpush1.bf16.msra.mxu0 0
        %547 = vmatprep.subr.bf16.mxu0 0
        %548 = vmatpush1.bf16.msra.mxu0 0
        %549 = vmatprep.subr.bf16.mxu0 0
        %550 = vmatpush1.bf16.msra.mxu0 0
        %551 = vmatprep.subr.bf16.mxu0 0
        %552 = vmatpush1.bf16.msra.mxu0 0
        %553 = vmatprep.subr.bf16.mxu0 0
        %554 = vmatpush1.bf16.msra.mxu0 0
        %555 = vmatprep.subr.bf16.mxu0 0
        %556 = vmatpush1.bf16.msra.mxu0 0
        %557 = vmatprep.mubr.bf16.mxu0 0
        %558 = vmatmul.mubr.bf16.gmra.mrb[0].mxu0 %v520
        %v559 = vpop.f32.mrb[0].mxu0
        %v560 = vadd.f32 0.0, %v559
        %v561 = vpop.f32.mrb[0].mxu0
        %v562 = vpop.f32.mrb[0].mxu0
        %v563 = vadd.f32 0.0, %v562
        %v564 = vpop.f32.mrb[0].mxu0
        %565 = vdwg.mxu0
        %v566 = vadd.f32 %v496, %v560
        %v567 = vadd.f32 %v497, %v563
        %v569 = vunpack.c.l.b16 %v504
        %v570 = vpack.c.b16 %v569, %v569
        %v571 = vshrl.u32 %v509, 16
        %v573 = vshll.u32 %v509, 16
        %v575 = vrot.slane %v573, 1
        %v576 = vor.u32 %v571, %v575
        %v578 = vshll.u32 %v570, 16
        %v580 = vrot.slane %v578, 1
        %v581 = vsel %vm236, %v576, %v580
        %v584 = vunpack.c.l.b16 %v213
        %v585 = vunpack.c.l.b16 %v214
        %v586 = vpack.c.b16 %v585, %v584
        %v588 = vsel %vm254, %v581, 0
        %v591 = vsel %vm258, %v586, 0
        %593 = vmatprep.subr.bf16.mxu0 0
        %594 = vmatpush1.bf16.msra.mxu0 %v591
        %595 = vmatprep.subr.bf16.mxu0 0
        %596 = vmatpush1.bf16.msra.mxu0 0
        %597 = vmatprep.subr.bf16.mxu0 0
        %598 = vmatpush1.bf16.msra.mxu0 0
        %599 = vmatprep.subr.bf16.mxu0 0
        %600 = vmatpush1.bf16.msra.mxu0 0
        %601 = vmatprep.subr.bf16.mxu0 0
        %602 = vmatpush1.bf16.msra.mxu0 0
        %603 = vmatprep.subr.bf16.mxu0 0
        %604 = vmatpush1.bf16.msra.mxu0 0
        %605 = vmatprep.subr.bf16.mxu0 0
        %606 = vmatpush1.bf16.msra.mxu0 0
        %607 = vmatprep.subr.bf16.mxu0 0
        %608 = vmatpush1.bf16.msra.mxu0 0
        %609 = vmatprep.subr.bf16.mxu0 0
        %610 = vmatpush1.bf16.msra.mxu0 0
        %611 = vmatprep.subr.bf16.mxu0 0
        %612 = vmatpush1.bf16.msra.mxu0 0
        %613 = vmatprep.subr.bf16.mxu0 0
        %614 = vmatpush1.bf16.msra.mxu0 0
        %615 = vmatprep.subr.bf16.mxu0 0
        %616 = vmatpush1.bf16.msra.mxu0 0
        %617 = vmatprep.subr.bf16.mxu0 0
        %618 = vmatpush1.bf16.msra.mxu0 0
        %619 = vmatprep.subr.bf16.mxu0 0
        %620 = vmatpush1.bf16.msra.mxu0 0
        %621 = vmatprep.subr.bf16.mxu0 0
        %622 = vmatpush1.bf16.msra.mxu0 0
        %623 = vmatprep.subr.bf16.mxu0 0
        %624 = vmatpush1.bf16.msra.mxu0 0
        %625 = vmatprep.mubr.bf16.mxu0 0
        %626 = vmatmul.mubr.bf16.gmra.mrb[0].mxu0 %v588
        %v627 = vpop.f32.mrb[0].mxu0
        %v628 = vadd.f32 0.0, %v627
        %v629 = vpop.f32.mrb[0].mxu0
        %v630 = vpop.f32.mrb[0].mxu0
        %v631 = vadd.f32 0.0, %v630
        %v632 = vpop.f32.mrb[0].mxu0
        %633 = vdwg.mxu0
        %v634 = vadd.f32 %v566, %v628
        %v635 = vadd.f32 %v567, %v631
        %v637 = vlaneseq
        %v638 = vshrl.u32 %v637, 7
        %v639 = vsub.s32 0, %v638
        %v640 = vrot.slane %v199, %v639
        %v642 = vadd.f32 %v634, %v640
        %v643 = vadd.f32 %v635, %v640
        %v644 = vxor.u32 %v642, 2147483648
        %v645 = vxor.u32 %v643, 2147483648
        %v646 = vmul.f32 %v644, 1.442695
        %v647 = vpow.pop %v646
        %v648 = vmul.f32 %v645, 1.442695
        %v649 = vpow.pop %v648
        %v650 = vadd.f32 %v647, 1.0
        %v651 = vadd.f32 %v649, 1.0
        %v652 = vrcp.pop %v650
        %v653 = vmul.f32 1.0, %v652
        %v654 = vrcp.pop %v651
        %v655 = vmul.f32 1.0, %v654
        %v656 = vmul.f32 %v642, %v653
        %v657 = vmul.f32 %v643, %v655
        %v658 = vpack.c.bf16 %v657, %v656
        %v660 = vunpack.c.l.b16 %v658
        %v661 = vunpack.c.h.b16 %v658
        %v662 = vpack.c.b16 %v660, %v660
        %v663 = vpack.c.b16 %v661, %v661
        %s666 = smul.addr %s221, 4
        %s667 = scalar_lea.vmem %s197, %s666
        %vm668 = vcmask 125952
        %669 = vst.msk [vmem:[%s667] sm:$0xf] %vm668, %v662
        %670 = vst.msk [vmem:[%s667 + $0x4] sm:$0xf] %vm668, %v663
      $region41: #{encoder_forward.13} parent=35 // loop_footer
        %s220 = sadd.s32 1, %s216
      $region42: #{encoder_forward.13} parent=35 // loop_footer_branch
        %215 = sbr.rel target = $region38
      $region43: #{encoder_forward.13} parent=35 // loop_exit
        _
      %p671 = scmp.lt.s32.totalorder %s15, 1
      %s672 = scalar_select %p671, %s15, 1
      %s673 = smul.addr %s672, 16
      %s674 = smul.addr %s673, 4
      %s675 = scalar_lea.vmem %s4, %s674
      // Predicated region
      $region44: #{encoder_forward.13} parent=35 // pred_check
        %p676 = pneg %p122
      $region45: #{encoder_forward.13} parent=35 // pred_check_branch
        %678 = sbr.rel (%p676) target = $region47
      $region46: #{encoder_forward.13} parent=35 // pred_region
        _
      $region47: #{encoder_forward.13} parent=35 // pred_fallthru
        _
    $region36: #{encoder_forward.13} parent=5 // pred_fallthru
      _
    %p679 = scmp.le.s32.totalorder 2, %s10
    // Predicated region
    $region48: #{encoder_forward.13} parent=5 // pred_check
      %p680 = pneg %p679
    $region49: #{encoder_forward.13} parent=5 // pred_check_branch
      %682 = sbr.rel (%p680) target = $region51
    $region50: #{encoder_forward.13} parent=5 // pred_region
      %s683 = ssub.s32 %s10, 2
      // Predicated region
      $region52: #{encoder_forward.13} parent=50 // pred_check
        %p684 = pneg %p128
      $region53: #{encoder_forward.13} parent=50 // pred_check_branch
        %686 = sbr.rel (%p684) target = $region55
      $region54: #{encoder_forward.13} parent=50 // pred_region
        %p687 = scmp.lt.s32.totalorder %s16, 1
        %s688 = scalar_select %p687, %s16, 1
        %s689 = smul.addr %s688, 16
        %s690 = smul.addr %s689, 4
        %s691 = scalar_lea.vmem %s4, %s690
      $region55: #{encoder_forward.13} parent=50 // pred_fallthru
        _
    $region51: #{encoder_forward.13} parent=5 // pred_fallthru
      _
  $region6: #{encoder_forward.13} parent=0 // loop_footer
    %s14 = sadd.s32 1, %s10
  $region7: #{encoder_forward.13} parent=0 // loop_footer_branch
    %9 = sbr.rel target = $region3
  $region8: #{encoder_forward.13} parent=0 // loop_exit
    _

// kernel: encoder_forward.14
$region0: #{encoder_forward.14}
  #allocation0 [shape = 'u32[]', space=smem, size = 0x4, offset = 0x4, fixed_abs, tag = 'smem constant byte address 0x4 - core index']
  #allocation1 [shape = 'u32[144,128]{1,0:T(1,128)}', space=vmem, size = 0x12000, scoped, tag = 'internal scratch']
  %s0 = inlined_call_operand.vmem [shape: bf16[2,10,9,32], index: 0, kind: input, shape index: {}]
  %s1 = inlined_call_operand.vmem [shape: bf16[3,32,24], index: 1, kind: input, shape index: {}]
  %s2 = inlined_call_operand.vmem [shape: bf16[3,16,24], index: 2, kind: input, shape index: {}]
  %s3 = inlined_call_operand.vmem [shape: f32[1,24], index: 3, kind: input, shape index: {}]
  %s4 = inlined_call_operand.vmem [shape: bf16[2,4,8,24], index: 4, kind: output, shape index: {}]
  %s5 = sld [smem:[#allocation0]]
  $region56: #{encoder_forward.14} parent=0
    _
  %s7 = ssub.s32 1, %s5
  %s8 = scalar_select 0, %s7, %s5
  loop: start=0, step=1, limit=4
  $region2: #{encoder_forward.14} parent=0 // loop_pre_header
    _
  $region3: #{encoder_forward.14} parent=0 // loop_header
    %s10 = sphi 0, %s14
    %p11 = scmp.ge.s32.totalorder %s10, 4
    %s20 = sphi 0, %s22
    %s23 = sphi 0, %s20
    %s24 = sphi 0, %s23
    %s40 = sphi 0, %s24
    %s44 = sphi 0, %s44
    %s46 = sphi 0, %s44
    %s47 = sphi 0, %s46
    %s61 = sphi 0, %s47
    %s65 = sphi 0, %s65
    %s67 = sphi 0, %s65
    %s68 = sphi 0, %s67
    %s82 = sphi 0, %s68
    %s86 = sphi 0, %s86
    %s88 = sphi 0, %s86
    %s89 = sphi 0, %s88
    %s103 = sphi 0, %s89
    %s109 = sphi 0, %s111
    %s112 = sphi 0, %s109
    %s113 = sphi 0, %s112
    %s129 = sphi 0, %s113
  $region4: #{encoder_forward.14} parent=0 // loop_header_branch
    %13 = sbr.rel (%p11) target = $region8
  $region5: #{encoder_forward.14} parent=0 // loop_body
    %s15 = ssub.s32 %s10, 1
    %s16 = ssub.s32 %s10, 2
    %s17 = sadd.s32 %s10, 1
    %s18 = ssub.s32 %s10, %s17
    %p19 = scmp.eq.s32.totalorder %s18, 0
    %s21 = sadd.s32 %s20, 1
    %s22 = scalar_select %p19, %s20, %s21
    %p25 = pneg %p19
    %p26 = scmp.eq.s32.totalorder %s10, 1
    %p27 = por %p25, %p26
    %p28 = scmp.ne.s32.totalorder %s20, %s23
    %p29 = scmp.eq.s32.totalorder %s10, 0
    %p30 = por %p28, %p29
    %p31 = scmp.ne.s32.totalorder %s20, %s23
    %p32 = scmp.eq.s32.totalorder %s15, 1
    %p33 = por %p31, %p32
    %p34 = scmp.ne.s32.totalorder %s23, %s24
    %p35 = scmp.eq.s32.totalorder %s15, 0
    %p36 = por %p34, %p35
    %p37 = scmp.ne.s32.totalorder %s23, %s24
    %p38 = scmp.eq.s32.totalorder %s16, 1
    %p39 = por %p37, %p38
    %p41 = scmp.ne.s32.totalorder %s24, %s40
    %p42 = scmp.eq.s32.totalorder %s16, 0
    %p43 = por %p41, %p42
    %s45 = sadd.s32 %s44, 1
    %p48 = scmp.eq.s32.totalorder %s10, 1
    %p49 = scmp.ne.s32.totalorder %s44, %s46
    %p50 = scmp.eq.s32.totalorder %s10, 0
    %p51 = por %p49, %p50
    %p52 = scmp.ne.s32.totalorder %s44, %s46
    %p53 = scmp.eq.s32.totalorder %s15, 1
    %p54 = por %p52, %p53
    %p55 = scmp.ne.s32.totalorder %s46, %s47
    %p56 = scmp.eq.s32.totalorder %s15, 0
    %p57 = por %p55, %p56
    %p58 = scmp.ne.s32.totalorder %s46, %s47
    %p59 = scmp.eq.s32.totalorder %s16, 1
    %p60 = por %p58, %p59
    %p62 = scmp.ne.s32.totalorder %s47, %s61
    %p63 = scmp.eq.s32.totalorder %s16, 0
    %p64 = por %p62, %p63
    %s66 = sadd.s32 %s65, 1
    %p69 = scmp.eq.s32.totalorder %s10, 1
    %p70 = scmp.ne.s32.totalorder %s65, %s67
    %p71 = scmp.eq.s32.totalorder %s10, 0
    %p72 = por %p70, %p71
    %p73 = scmp.ne.s32.totalorder %s65, %s67
    %p74 = scmp.eq.s32.totalorder %s15, 1
    %p75 = por %p73, %p74
    %p76 = scmp.ne.s32.totalorder %s67, %s68
    %p77 = scmp.eq.s32.totalorder %s15, 0
    %p78 = por %p76, %p77
    %p79 = scmp.ne.s32.totalorder %s67, %s68
    %p80 = scmp.eq.s32.totalorder %s16, 1
    %p81 = por %p79, %p80
    %p83 = scmp.ne.s32.totalorder %s68, %s82
    %p84 = scmp.eq.s32.totalorder %s16, 0
    %p85 = por %p83, %p84
    %s87 = sadd.s32 %s86, 1
    %p90 = scmp.eq.s32.totalorder %s10, 1
    %p91 = scmp.ne.s32.totalorder %s86, %s88
    %p92 = scmp.eq.s32.totalorder %s10, 0
    %p93 = por %p91, %p92
    %p94 = scmp.ne.s32.totalorder %s86, %s88
    %p95 = scmp.eq.s32.totalorder %s15, 1
    %p96 = por %p94, %p95
    %p97 = scmp.ne.s32.totalorder %s88, %s89
    %p98 = scmp.eq.s32.totalorder %s15, 0
    %p99 = por %p97, %p98
    %p100 = scmp.ne.s32.totalorder %s88, %s89
    %p101 = scmp.eq.s32.totalorder %s16, 1
    %p102 = por %p100, %p101
    %p104 = scmp.ne.s32.totalorder %s89, %s103
    %p105 = scmp.eq.s32.totalorder %s16, 0
    %p106 = por %p104, %p105
    %s107 = ssub.s32 %s10, %s17
    %p108 = scmp.eq.s32.totalorder %s107, 0
    %s110 = sadd.s32 %s109, 1
    %s111 = scalar_select %p108, %s109, %s110
    %p114 = pneg %p108
    %p115 = scmp.eq.s32.totalorder %s10, 1
    %p116 = por %p114, %p115
    %p117 = scmp.ne.s32.totalorder %s109, %s112
    %p118 = scmp.eq.s32.totalorder %s10, 0
    %p119 = por %p117, %p118
    %p120 = scmp.ne.s32.totalorder %s109, %s112
    %p121 = scmp.eq.s32.totalorder %s15, 1
    %p122 = por %p120, %p121
    %p123 = scmp.ne.s32.totalorder %s112, %s113
    %p124 = scmp.eq.s32.totalorder %s15, 0
    %p125 = por %p123, %p124
    %p126 = scmp.ne.s32.totalorder %s112, %s113
    %p127 = scmp.eq.s32.totalorder %s16, 1
    %p128 = por %p126, %p127
    %p130 = scmp.ne.s32.totalorder %s113, %s129
    %p131 = scmp.eq.s32.totalorder %s16, 0
    %p132 = por %p130, %p131
    %p133 = scmp.le.s32.totalorder 1, %s10
    %p134 = scmp.lt.s32.totalorder %s10, 3
    %p135 = pnand %p133, %p134
    %p136 = pneg %p135
    // Predicated region
    $region9: #{encoder_forward.14} parent=5 // pred_check
      _
    $region10: #{encoder_forward.14} parent=5 // pred_check_branch
      %138 = sbr.rel (%p135) target = $region12
    $region11: #{encoder_forward.14} parent=5 // pred_region
      %s139 = ssub.s32 %s10, 1
      // Predicated region
      $region13: #{encoder_forward.14} parent=11 // pred_check
        %p140 = pneg %p57
      $region14: #{encoder_forward.14} parent=11 // pred_check_branch
        %142 = sbr.rel (%p140) target = $region16
      $region15: #{encoder_forward.14} parent=11 // pred_region
        _
      $region16: #{encoder_forward.14} parent=11 // pred_fallthru
        _
      // Predicated region
      $region17: #{encoder_forward.14} parent=11 // pred_check
        %p143 = pneg %p78
      $region18: #{encoder_forward.14} parent=11 // pred_check_branch
        %145 = sbr.rel (%p143) target = $region20
      $region19: #{encoder_forward.14} parent=11 // pred_region
        _
      $region20: #{encoder_forward.14} parent=11 // pred_fallthru
        _
      // Predicated region
      $region21: #{encoder_forward.14} parent=11 // pred_check
        %p146 = pneg %p99
      $region22: #{encoder_forward.14} parent=11 // pred_check_branch
        %148 = sbr.rel (%p146) target = $region24
      $region23: #{encoder_forward.14} parent=11 // pred_region
        _
      $region24: #{encoder_forward.14} parent=11 // pred_fallthru
        _
    $region12: #{encoder_forward.14} parent=5 // pred_fallthru
      _
    %p149 = scmp.lt.s32.totalorder %s10, 2
    // Predicated region
    $region25: #{encoder_forward.14} parent=5 // pred_check
      %p150 = pneg %p149
    $region26: #{encoder_forward.14} parent=5 // pred_check_branch
      %152 = sbr.rel (%p150) target = $region28
    $region27: #{encoder_forward.14} parent=5 // pred_region
      // Predicated region
      $region29: #{encoder_forward.14} parent=27 // pred_check
        %p153 = pneg %p30
      $region30: #{encoder_forward.14} parent=27 // pred_check_branch
        %155 = sbr.rel (%p153) target = $region32
      $region31: #{encoder_forward.14} parent=27 // pred_region
        %p156 = scmp.lt.s32.totalorder %s10, 1
        %s157 = scalar_select %p156, %s10, 1
        %s158 = smul.addr %s157, 20
        %s159 = smul.addr %s158, 4
        %s160 = scalar_lea.vmem %s0, %s159
      $region32: #{encoder_forward.14} parent=27 // pred_fallthru
        _
    $region28: #{encoder_forward.14} parent=5 // pred_fallthru
      _
    %p161 = scmp.le.s32.totalorder 1, %s10
    %p162 = scmp.lt.s32.totalorder %s10, 3
    %p163 = pnand %p161, %p162
    %p164 = pneg %p163
    // Predicated region
    $region33: #{encoder_forward.14} parent=5 // pred_check
      _
    $region34: #{encoder_forward.14} parent=5 // pred_check_branch
      %166 = sbr.rel (%p163) target = $region36
    $region35: #{encoder_forward.14} parent=5 // pred_region
      %s167 = ssub.s32 %s10, 1
      %p168 = scmp.lt.s32.totalorder %s15, 1
      %s169 = scalar_select %p168, %s15, 1
      %s170 = smul.addr %s169, 20
      %s171 = smul.addr %s170, 4
      %s172 = scalar_lea.vmem %s0, %s171
      %p173 = pneg %p36
      %p174 = pneg %p33
      %p175 = pneg %p57
      %p176 = pneg %p54
      %p177 = pneg %p78
      %p178 = pneg %p75
      %p179 = pneg %p99
      %p180 = pneg %p96
      %p181 = pneg %p125
      %p182 = pneg %p122
      %p183 = scmp.lt.s32.totalorder %s15, 1
      %s184 = scalar_select %p183, %s15, 1
      %s185 = smul.addr %s184, 4
      %s186 = smul.addr %s185, 4
      %s187 = scalar_lea.vmem %s4, %s186
      %p188 = scmp.lt.s32.totalorder %s15, 1
      %s189 = scalar_select %p188, %s15, 1
      %s190 = smul.addr %s189, 20
      %s191 = smul.addr %s190, 4
      %s192 = scalar_lea.vmem %s0, %s191
      %p193 = scmp.lt.s32.totalorder %s15, 1
      %s194 = scalar_select %p193, %s15, 1
      %s195 = smul.addr %s194, 4
      %s196 = smul.addr %s195, 4
      %s197 = scalar_lea.vmem %s4, %s196
      %v199 = vld [vmem:[%s3] sm:$0x1]
      %v200 = vld [vmem:[%s1] sm:$0xf]
      %v201 = vld [vmem:[%s1 + $0x4] sm:$0xf]
      %v202 = vld [vmem:[%s1 + $0x8] sm:$0xf]
      %v203 = vld [vmem:[%s1 + $0xc] sm:$0xf]
      %v204 = vld [vmem:[%s1 + $0x10] sm:$0xf]
      %v205 = vld [vmem:[%s1 + $0x14] sm:$0xf]
      %v206 = vld [vmem:[%s1 + $0x18] sm:$0xf]
      %v207 = vld [vmem:[%s1 + $0x1c] sm:$0xf]
      %v208 = vld [vmem:[%s1 + $0x20] sm:$0xf]
      %v209 = vld [vmem:[%s1 + $0x24] sm:$0xf]
      %v210 = vld [vmem:[%s1 + $0x28] sm:$0xf]
      %v211 = vld [vmem:[%s1 + $0x2c] sm:$0xf]
      %v212 = vld [vmem:[%s2] sm:$0xf]
      %v213 = vld [vmem:[%s2 + $0x4] sm:$0xf]
      %v214 = vld [vmem:[%s2 + $0x8] sm:$0xf]
      %v215 = vld [vmem:[%s2 + $0xc] sm:$0xf]
      %v216 = vld [vmem:[%s2 + $0x10] sm:$0xf]
      %v217 = vld [vmem:[%s2 + $0x14] sm:$0xf]
      loop: start=0, step=1, limit=4
      $region37: #{encoder_forward.14} parent=35 // loop_pre_header
        _
      $region38: #{encoder_forward.14} parent=35 // loop_header
        %s219 = sphi 0, %s223
        %p220 = scmp.ge.s32.totalorder %s219, 4
      $region39: #{encoder_forward.14} parent=35 // loop_header_branch
        %222 = sbr.rel (%p220) target = $region43
      $region40: #{encoder_forward.14} parent=35 // loop_body
        %s224 = smul.u32 %s219, 2
        %s225 = smul.u32 %s224, 2
        %s226 = smul.addr %s225, 4
        %s227 = scalar_lea.vmem %s192, %s226
        %v228 = vld [vmem:[%s227] sm:$0xf]
        %v229 = vld [vmem:[%s227 + $0x4] sm:$0x1]
        %v232 = vunpack.c.l.b16 %v228
        %v233 = vunpack.c.l.b16 %v229
        %v234 = vpack.c.b16 %v233, %v232
        %v236 = vshrl.u32 %v234, 16
        %v238 = vshll.u32 %v234, 16
        %v240 = vrot.slane %v238, 1
        %v241 = vor.u32 %v236, %v240
        %v244 = vunpack.c.l.b16 %v212
        %v245 = vunpack.c.l.b16 %v213
        %v246 = vpack.c.b16 %v245, %v244
        %vm248 = vcmask 130048
        %v250 = vsel %vm248, %v241, 0
        %252 = vmatprep.subr.bf16.mxu0 0
        %253 = vmatpush1.bf16.msra.mxu0 %v246
        %254 = vmatprep.subr.bf16.mxu0 0
        %255 = vmatpush1.bf16.msra.mxu0 0
        %256 = vmatprep.subr.bf16.mxu0 0
        %257 = vmatpush1.bf16.msra.mxu0 0
        %258 = vmatprep.subr.bf16.mxu0 0
        %259 = vmatpush1.bf16.msra.mxu0 0
        %260 = vmatprep.subr.bf16.mxu0 0
        %261 = vmatpush1.bf16.msra.mxu0 0
        %262 = vmatprep.subr.bf16.mxu0 0
        %263 = vmatpush1.bf16.msra.mxu0 0
        %264 = vmatprep.subr.bf16.mxu0 0
        %265 = vmatpush1.bf16.msra.mxu0 0
        %266 = vmatprep.subr.bf16.mxu0 0
        %267 = vmatpush1.bf16.msra.mxu0 0
        %268 = vmatprep.subr.bf16.mxu0 0
        %269 = vmatpush1.bf16.msra.mxu0 0
        %270 = vmatprep.subr.bf16.mxu0 0
        %271 = vmatpush1.bf16.msra.mxu0 0
        %272 = vmatprep.subr.bf16.mxu0 0
        %273 = vmatpush1.bf16.msra.mxu0 0
        %274 = vmatprep.subr.bf16.mxu0 0
        %275 = vmatpush1.bf16.msra.mxu0 0
        %276 = vmatprep.subr.bf16.mxu0 0
        %277 = vmatpush1.bf16.msra.mxu0 0
        %278 = vmatprep.subr.bf16.mxu0 0
        %279 = vmatpush1.bf16.msra.mxu0 0
        %280 = vmatprep.subr.bf16.mxu0 0
        %281 = vmatpush1.bf16.msra.mxu0 0
        %282 = vmatprep.subr.bf16.mxu0 0
        %283 = vmatpush1.bf16.msra.mxu0 0
        %284 = vmatprep.mubr.bf16.mxu0 0
        %285 = vmatmul.mubr.bf16.gmra.mrb[0].mxu0 %v250
        %v286 = vpop.f32.mrb[0].mxu0
        %v287 = vadd.f32 0.0, %v286
        %v288 = vpop.f32.mrb[0].mxu0
        %v289 = vpop.f32.mrb[0].mxu0
        %v290 = vpop.f32.mrb[0].mxu0
        %291 = vdwg.mxu0
        %v296 = vunpack.c.l.b16 %v200
        %v297 = vunpack.c.l.b16 %v201
        %v298 = vunpack.c.l.b16 %v202
        %v299 = vunpack.c.l.b16 %v203
        %v300 = vpack.c.b16 %v297, %v296
        %v301 = vpack.c.b16 %v299, %v298
        %vm304 = vcmask 261120
        %v306 = vsel %vm304, %v228, 0
        %308 = vmatprep.subr.bf16.mxu0 0
        %309 = vmatpush1.bf16.msra.mxu0 %v300
        %310 = vmatprep.subr.bf16.mxu0 0
        %311 = vmatpush1.bf16.msra.mxu0 %v301
        %312 = vmatprep.subr.bf16.mxu0 0
        %313 = vmatpush1.bf16.msra.mxu0 0
        %314 = vmatprep.subr.bf16.mxu0 0
        %315 = vmatpush1.bf16.msra.mxu0 0
        %316 = vmatprep.subr.bf16.mxu0 0
        %317 = vmatpush1.bf16.msra.mxu0 0
        %318 = vmatprep.subr.bf16.mxu0 0
        %319 = vmatpush1.bf16.msra.mxu0 0
        %320 = vmatprep.subr.bf16.mxu0 0
        %321 = vmatpush1.bf16.msra.mxu0 0
        %322 = vmatprep.subr.bf16.mxu0 0
        %323 = vmatpush1.bf16.msra.mxu0 0
        %324 = vmatprep.subr.bf16.mxu0 0
        %325 = vmatpush1.bf16.msra.mxu0 0
        %326 = vmatprep.subr.bf16.mxu0 0
        %327 = vmatpush1.bf16.msra.mxu0 0
        %328 = vmatprep.subr.bf16.mxu0 0
        %329 = vmatpush1.bf16.msra.mxu0 0
        %330 = vmatprep.subr.bf16.mxu0 0
        %331 = vmatpush1.bf16.msra.mxu0 0
        %332 = vmatprep.subr.bf16.mxu0 0
        %333 = vmatpush1.bf16.msra.mxu0 0
        %334 = vmatprep.subr.bf16.mxu0 0
        %335 = vmatpush1.bf16.msra.mxu0 0
        %336 = vmatprep.subr.bf16.mxu0 0
        %337 = vmatpush1.bf16.msra.mxu0 0
        %338 = vmatprep.subr.bf16.mxu0 0
        %339 = vmatpush1.bf16.msra.mxu0 0
        %340 = vmatprep.mubr.bf16.mxu0 0
        %341 = vmatmul.mubr.bf16.gmra.mrb[0].mxu0 %v306
        %v342 = vpop.f32.mrb[0].mxu0
        %v343 = vadd.f32 %v287, %v342
        %v344 = vpop.f32.mrb[0].mxu0
        %v345 = vpop.f32.mrb[0].mxu0
        %v346 = vpop.f32.mrb[0].mxu0
        %347 = vdwg.mxu0
        %s348 = sadd.s32 %s224, 1
        %s349 = smul.u32 %s348, 2
        %s350 = smul.addr %s349, 4
        %s351 = scalar_lea.vmem %s192, %s350
        %v352 = vld [vmem:[%s351] sm:$0xf]
        %v353 = vld [vmem:[%s351 + $0x4] sm:$0x1]
        %v358 = vunpack.c.l.b16 %v204
        %v359 = vunpack.c.l.b16 %v205
        %v360 = vunpack.c.l.b16 %v206
        %v361 = vunpack.c.l.b16 %v207
        %v362 = vpack.c.b16 %v359, %v358
        %v363 = vpack.c.b16 %v361, %v360
        %v367 = vsel %vm304, %v352, 0
        %369 = vmatprep.subr.bf16.mxu0 0
        %370 = vmatpush1.bf16.msra.mxu0 %v362
        %371 = vmatprep.subr.bf16.mxu0 0
        %372 = vmatpush1.bf16.msra.mxu0 %v363
        %373 = vmatprep.subr.bf16.mxu0 0
        %374 = vmatpush1.bf16.msra.mxu0 0
        %375 = vmatprep.subr.bf16.mxu0 0
        %376 = vmatpush1.bf16.msra.mxu0 0
        %377 = vmatprep.subr.bf16.mxu0 0
        %378 = vmatpush1.bf16.msra.mxu0 0
        %379 = vmatprep.subr.bf16.mxu0 0
        %380 = vmatpush1.bf16.msra.mxu0 0
        %381 = vmatprep.subr.bf16.mxu0 0
        %382 = vmatpush1.bf16.msra.mxu0 0
        %383 = vmatprep.subr.bf16.mxu0 0
        %384 = vmatpush1.bf16.msra.mxu0 0
        %385 = vmatprep.subr.bf16.mxu0 0
        %386 = vmatpush1.bf16.msra.mxu0 0
        %387 = vmatprep.subr.bf16.mxu0 0
        %388 = vmatpush1.bf16.msra.mxu0 0
        %389 = vmatprep.subr.bf16.mxu0 0
        %390 = vmatpush1.bf16.msra.mxu0 0
        %391 = vmatprep.subr.bf16.mxu0 0
        %392 = vmatpush1.bf16.msra.mxu0 0
        %393 = vmatprep.subr.bf16.mxu0 0
        %394 = vmatpush1.bf16.msra.mxu0 0
        %395 = vmatprep.subr.bf16.mxu0 0
        %396 = vmatpush1.bf16.msra.mxu0 0
        %397 = vmatprep.subr.bf16.mxu0 0
        %398 = vmatpush1.bf16.msra.mxu0 0
        %399 = vmatprep.subr.bf16.mxu0 0
        %400 = vmatpush1.bf16.msra.mxu0 0
        %401 = vmatprep.mubr.bf16.mxu0 0
        %402 = vmatmul.mubr.bf16.gmra.mrb[0].mxu0 %v367
        %v403 = vpop.f32.mrb[0].mxu0
        %v404 = vadd.f32 0.0, %v403
        %v405 = vpop.f32.mrb[0].mxu0
        %v406 = vpop.f32.mrb[0].mxu0
        %v407 = vpop.f32.mrb[0].mxu0
        %408 = vdwg.mxu0
        %v409 = vadd.f32 %v343, %v404
        %v412 = vunpack.c.l.b16 %v352
        %v413 = vunpack.c.l.b16 %v353
        %v414 = vpack.c.b16 %v413, %v412
        %v416 = vshrl.u32 %v414, 16
        %v418 = vshll.u32 %v414, 16
        %v420 = vrot.slane %v418, 1
        %v421 = vor.u32 %v416, %v420
        %v424 = vunpack.c.l.b16 %v214
        %v425 = vunpack.c.l.b16 %v215
        %v426 = vpack.c.b16 %v425, %v424
        %v429 = vsel %vm248, %v421, 0
        %431 = vmatprep.subr.bf16.mxu0 0
        %432 = vmatpush1.bf16.msra.mxu0 %v426
        %433 = vmatprep.subr.bf16.mxu0 0
        %434 = vmatpush1.bf16.msra.mxu0 0
        %435 = vmatprep.subr.bf16.mxu0 0
        %436 = vmatpush1.bf16.msra.mxu0 0
        %437 = vmatprep.subr.bf16.mxu0 0
        %438 = vmatpush1.bf16.msra.mxu0 0
        %439 = vmatprep.subr.bf16.mxu0 0
        %440 = vmatpush1.bf16.msra.mxu0 0
        %441 = vmatprep.subr.bf16.mxu0 0
        %442 = vmatpush1.bf16.msra.mxu0 0
        %443 = vmatprep.subr.bf16.mxu0 0
        %444 = vmatpush1.bf16.msra.mxu0 0
        %445 = vmatprep.subr.bf16.mxu0 0
        %446 = vmatpush1.bf16.msra.mxu0 0
        %447 = vmatprep.subr.bf16.mxu0 0
        %448 = vmatpush1.bf16.msra.mxu0 0
        %449 = vmatprep.subr.bf16.mxu0 0
        %450 = vmatpush1.bf16.msra.mxu0 0
        %451 = vmatprep.subr.bf16.mxu0 0
        %452 = vmatpush1.bf16.msra.mxu0 0
        %453 = vmatprep.subr.bf16.mxu0 0
        %454 = vmatpush1.bf16.msra.mxu0 0
        %455 = vmatprep.subr.bf16.mxu0 0
        %456 = vmatpush1.bf16.msra.mxu0 0
        %457 = vmatprep.subr.bf16.mxu0 0
        %458 = vmatpush1.bf16.msra.mxu0 0
        %459 = vmatprep.subr.bf16.mxu0 0
        %460 = vmatpush1.bf16.msra.mxu0 0
        %461 = vmatprep.subr.bf16.mxu0 0
        %462 = vmatpush1.bf16.msra.mxu0 0
        %463 = vmatprep.mubr.bf16.mxu0 0
        %464 = vmatmul.mubr.bf16.gmra.mrb[0].mxu0 %v429
        %v465 = vpop.f32.mrb[0].mxu0
        %v466 = vadd.f32 0.0, %v465
        %v467 = vpop.f32.mrb[0].mxu0
        %v468 = vpop.f32.mrb[0].mxu0
        %v469 = vpop.f32.mrb[0].mxu0
        %470 = vdwg.mxu0
        %v471 = vadd.f32 %v409, %v466
        %s472 = sadd.s32 %s224, 2
        %s473 = smul.u32 %s472, 2
        %s474 = smul.addr %s473, 4
        %s475 = scalar_lea.vmem %s192, %s474
        %v476 = vld [vmem:[%s475] sm:$0xf]
        %v477 = vld [vmem:[%s475 + $0x4] sm:$0x1]
        %v482 = vunpack.c.l.b16 %v208
        %v483 = vunpack.c.l.b16 %v209
        %v484 = vunpack.c.l.b16 %v210
        %v485 = vunpack.c.l.b16 %v211
        %v486 = vpack.c.b16 %v483, %v482
        %v487 = vpack.c.b16 %v485, %v484
        %v491 = vsel %vm304, %v476, 0
        %493 = vmatprep.subr.bf16.mxu0 0
        %494 = vmatpush1.bf16.msra.mxu0 %v486
        %495 = vmatprep.subr.bf16.mxu0 0
        %496 = vmatpush1.bf16.msra.mxu0 %v487
        %497 = vmatprep.subr.bf16.mxu0 0
        %498 = vmatpush1.bf16.msra.mxu0 0
        %499 = vmatprep.subr.bf16.mxu0 0
        %500 = vmatpush1.bf16.msra.mxu0 0
        %501 = vmatprep.subr.bf16.mxu0 0
        %502 = vmatpush1.bf16.msra.mxu0 0
        %503 = vmatprep.subr.bf16.mxu0 0
        %504 = vmatpush1.bf16.msra.mxu0 0
        %505 = vmatprep.subr.bf16.mxu0 0
        %506 = vmatpush1.bf16.msra.mxu0 0
        %507 = vmatprep.subr.bf16.mxu0 0
        %508 = vmatpush1.bf16.msra.mxu0 0
        %509 = vmatprep.subr.bf16.mxu0 0
        %510 = vmatpush1.bf16.msra.mxu0 0
        %511 = vmatprep.subr.bf16.mxu0 0
        %512 = vmatpush1.bf16.msra.mxu0 0
        %513 = vmatprep.subr.bf16.mxu0 0
        %514 = vmatpush1.bf16.msra.mxu0 0
        %515 = vmatprep.subr.bf16.mxu0 0
        %516 = vmatpush1.bf16.msra.mxu0 0
        %517 = vmatprep.subr.bf16.mxu0 0
        %518 = vmatpush1.bf16.msra.mxu0 0
        %519 = vmatprep.subr.bf16.mxu0 0
        %520 = vmatpush1.bf16.msra.mxu0 0
        %521 = vmatprep.subr.bf16.mxu0 0
        %522 = vmatpush1.bf16.msra.mxu0 0
        %523 = vmatprep.subr.bf16.mxu0 0
        %524 = vmatpush1.bf16.msra.mxu0 0
        %525 = vmatprep.mubr.bf16.mxu0 0
        %526 = vmatmul.mubr.bf16.gmra.mrb[0].mxu0 %v491
        %v527 = vpop.f32.mrb[0].mxu0
        %v528 = vadd.f32 0.0, %v527
        %v529 = vpop.f32.mrb[0].mxu0
        %v530 = vpop.f32.mrb[0].mxu0
        %v531 = vpop.f32.mrb[0].mxu0
        %532 = vdwg.mxu0
        %v533 = vadd.f32 %v471, %v528
        %v536 = vunpack.c.l.b16 %v476
        %v537 = vunpack.c.l.b16 %v477
        %v538 = vpack.c.b16 %v537, %v536
        %v540 = vshrl.u32 %v538, 16
        %v542 = vshll.u32 %v538, 16
        %v544 = vrot.slane %v542, 1
        %v545 = vor.u32 %v540, %v544
        %v548 = vunpack.c.l.b16 %v216
        %v549 = vunpack.c.l.b16 %v217
        %v550 = vpack.c.b16 %v549, %v548
        %v553 = vsel %vm248, %v545, 0
        %555 = vmatprep.subr.bf16.mxu0 0
        %556 = vmatpush1.bf16.msra.mxu0 %v550
        %557 = vmatprep.subr.bf16.mxu0 0
        %558 = vmatpush1.bf16.msra.mxu0 0
        %559 = vmatprep.subr.bf16.mxu0 0
        %560 = vmatpush1.bf16.msra.mxu0 0
        %561 = vmatprep.subr.bf16.mxu0 0
        %562 = vmatpush1.bf16.msra.mxu0 0
        %563 = vmatprep.subr.bf16.mxu0 0
        %564 = vmatpush1.bf16.msra.mxu0 0
        %565 = vmatprep.subr.bf16.mxu0 0
        %566 = vmatpush1.bf16.msra.mxu0 0
        %567 = vmatprep.subr.bf16.mxu0 0
        %568 = vmatpush1.bf16.msra.mxu0 0
        %569 = vmatprep.subr.bf16.mxu0 0
        %570 = vmatpush1.bf16.msra.mxu0 0
        %571 = vmatprep.subr.bf16.mxu0 0
        %572 = vmatpush1.bf16.msra.mxu0 0
        %573 = vmatprep.subr.bf16.mxu0 0
        %574 = vmatpush1.bf16.msra.mxu0 0
        %575 = vmatprep.subr.bf16.mxu0 0
        %576 = vmatpush1.bf16.msra.mxu0 0
        %577 = vmatprep.subr.bf16.mxu0 0
        %578 = vmatpush1.bf16.msra.mxu0 0
        %579 = vmatprep.subr.bf16.mxu0 0
        %580 = vmatpush1.bf16.msra.mxu0 0
        %581 = vmatprep.subr.bf16.mxu0 0
        %582 = vmatpush1.bf16.msra.mxu0 0
        %583 = vmatprep.subr.bf16.mxu0 0
        %584 = vmatpush1.bf16.msra.mxu0 0
        %585 = vmatprep.subr.bf16.mxu0 0
        %586 = vmatpush1.bf16.msra.mxu0 0
        %587 = vmatprep.mubr.bf16.mxu0 0
        %588 = vmatmul.mubr.bf16.gmra.mrb[0].mxu0 %v553
        %v589 = vpop.f32.mrb[0].mxu0
        %v590 = vadd.f32 0.0, %v589
        %v591 = vpop.f32.mrb[0].mxu0
        %v592 = vpop.f32.mrb[0].mxu0
        %v593 = vpop.f32.mrb[0].mxu0
        %594 = vdwg.mxu0
        %v595 = vadd.f32 %v533, %v590
        %v597 = vlaneseq
        %v598 = vshrl.u32 %v597, 7
        %v599 = vsub.s32 0, %v598
        %v600 = vrot.slane %v199, %v599
        %v602 = vadd.f32 %v595, %v600
        %v603 = vxor.u32 %v602, 2147483648
        %v604 = vmul.f32 %v603, 1.442695
        %v605 = vpow.pop %v604
        %v606 = vadd.f32 %v605, 1.0
        %v607 = vrcp.pop %v606
        %v608 = vmul.f32 1.0, %v607
        %v609 = vmul.f32 %v602, %v608
        %v610 = vpack.c.bf16 %v609, %v609
        %s611 = smul.addr %s219, 4
        %s612 = scalar_lea.vmem %s197, %s611
        %vm613 = vcmask 191488
        %614 = vst.msk [vmem:[%s612] sm:$0xf] %vm613, %v610
      $region41: #{encoder_forward.14} parent=35 // loop_footer
        %s223 = sadd.s32 1, %s219
      $region42: #{encoder_forward.14} parent=35 // loop_footer_branch
        %218 = sbr.rel target = $region38
      $region43: #{encoder_forward.14} parent=35 // loop_exit
        _
      %p615 = scmp.lt.s32.totalorder %s15, 1
      %s616 = scalar_select %p615, %s15, 1
      %s617 = smul.addr %s616, 4
      %s618 = smul.addr %s617, 4
      %s619 = scalar_lea.vmem %s4, %s618
      // Predicated region
      $region44: #{encoder_forward.14} parent=35 // pred_check
        %p620 = pneg %p122
      $region45: #{encoder_forward.14} parent=35 // pred_check_branch
        %622 = sbr.rel (%p620) target = $region47
      $region46: #{encoder_forward.14} parent=35 // pred_region
        _
      $region47: #{encoder_forward.14} parent=35 // pred_fallthru
        _
    $region36: #{encoder_forward.14} parent=5 // pred_fallthru
      _
    %p623 = scmp.le.s32.totalorder 2, %s10
    // Predicated region
    $region48: #{encoder_forward.14} parent=5 // pred_check
      %p624 = pneg %p623
    $region49: #{encoder_forward.14} parent=5 // pred_check_branch
      %626 = sbr.rel (%p624) target = $region51
    $region50: #{encoder_forward.14} parent=5 // pred_region
      %s627 = ssub.s32 %s10, 2
      // Predicated region
      $region52: #{encoder_forward.14} parent=50 // pred_check
        %p628 = pneg %p128
      $region53: #{encoder_forward.14} parent=50 // pred_check_branch
        %630 = sbr.rel (%p628) target = $region55
      $region54: #{encoder_forward.14} parent=50 // pred_region
        %p631 = scmp.lt.s32.totalorder %s16, 1
        %s632 = scalar_select %p631, %s16, 1
        %s633 = smul.addr %s632, 4
        %s634 = smul.addr %s633, 4
        %s635 = scalar_lea.vmem %s4, %s634
      $region55: #{encoder_forward.14} parent=50 // pred_fallthru
        _
    $region51: #{encoder_forward.14} parent=5 // pred_fallthru
      _
  $region6: #{encoder_forward.14} parent=0 // loop_footer
    %s14 = sadd.s32 1, %s10
  $region7: #{encoder_forward.14} parent=0 // loop_footer_branch
    %9 = sbr.rel target = $region3
  $region8: #{encoder_forward.14} parent=0 // loop_exit
    _

// kernel: encoder_forward.16
$region0: #{encoder_forward.16}
  #allocation0 [shape = 'u32[]', space=smem, size = 0x4, offset = 0x4, fixed_abs, tag = 'smem constant byte address 0x4 - core index']
  #allocation1 [shape = 'u32[144,128]{1,0:T(1,128)}', space=vmem, size = 0x12000, scoped, tag = 'internal scratch']
  %s0 = inlined_call_operand.vmem [shape: bf16[8,64], index: 0, kind: input, shape index: {}]
  %s1 = inlined_call_operand.vmem [shape: bf16[64,128], index: 1, kind: input, shape index: {}]
  %s2 = inlined_call_operand.vmem [shape: f32[1,128], index: 2, kind: input, shape index: {}]
  %s3 = inlined_call_operand.vmem [shape: bf16[8,128], index: 3, kind: output, shape index: {}]
  %s4 = sld [smem:[#allocation0]]
  $region22: #{encoder_forward.16} parent=0
    _
  %s6 = ssub.s32 1, %s4
  %s7 = scalar_select 0, %s6, %s4
  // Predicated region
  $region2: #{encoder_forward.16} parent=0 // pred_check
    _
  $region3: #{encoder_forward.16} parent=0 // pred_check_branch
    %9 = sbr.rel (0) target = $region5
  $region4: #{encoder_forward.16} parent=0 // pred_region
    _
  $region5: #{encoder_forward.16} parent=0 // pred_fallthru
    _
  // Predicated region
  $region6: #{encoder_forward.16} parent=0 // pred_check
    _
  $region7: #{encoder_forward.16} parent=0 // pred_check_branch
    %11 = sbr.rel (0) target = $region9
  $region8: #{encoder_forward.16} parent=0 // pred_region
    _
  $region9: #{encoder_forward.16} parent=0 // pred_fallthru
    _
  // Predicated region
  $region10: #{encoder_forward.16} parent=0 // pred_check
    _
  $region11: #{encoder_forward.16} parent=0 // pred_check_branch
    %13 = sbr.rel (0) target = $region13
  $region12: #{encoder_forward.16} parent=0 // pred_region
    _
  $region13: #{encoder_forward.16} parent=0 // pred_fallthru
    _
  %v15 = vld [vmem:[%s0] sm:$0xf]
  %v16 = vld [vmem:[%s1] sm:$0xf]
  %v17 = vld [vmem:[%s1 + $0x4] sm:$0xf]
  %v18 = vld [vmem:[%s1 + $0x8] sm:$0xf]
  %v19 = vld [vmem:[%s1 + $0xc] sm:$0xf]
  %v20 = vld [vmem:[%s1 + $0x10] sm:$0xf]
  %v21 = vld [vmem:[%s1 + $0x14] sm:$0xf]
  %v22 = vld [vmem:[%s1 + $0x18] sm:$0xf]
  %v23 = vld [vmem:[%s1 + $0x1c] sm:$0xf]
  %v24 = vld [vmem:[%s2] sm:$0x1]
  %v26 = vlaneseq
  %v27 = vshrl.u32 %v26, 7
  %v28 = vsub.s32 0, %v27
  %v29 = vrot.slane %v24, %v28
  %v39 = vunpack.c.l.b16 %v16
  %v40 = vunpack.c.l.b16 %v17
  %v41 = vunpack.c.l.b16 %v18
  %v42 = vunpack.c.l.b16 %v19
  %v43 = vunpack.c.l.b16 %v20
  %v44 = vunpack.c.l.b16 %v21
  %v45 = vunpack.c.l.b16 %v22
  %v46 = vunpack.c.l.b16 %v23
  %v47 = vpack.c.b16 %v40, %v39
  %v48 = vpack.c.b16 %v42, %v41
  %v49 = vpack.c.b16 %v44, %v43
  %v50 = vpack.c.b16 %v46, %v45
  %vm55 = vcmask 523264
  %v57 = vsel %vm55, %v15, 0
  %59 = vmatprep.subr.bf16.mxu0 0
  %60 = vmatpush1.bf16.msra.mxu0 %v47
  %61 = vmatprep.subr.bf16.mxu0 0
  %62 = vmatpush1.bf16.msra.mxu0 %v48
  %63 = vmatprep.subr.bf16.mxu0 0
  %64 = vmatpush1.bf16.msra.mxu0 %v49
  %65 = vmatprep.subr.bf16.mxu0 0
  %66 = vmatpush1.bf16.msra.mxu0 %v50
  %67 = vmatprep.subr.bf16.mxu0 0
  %68 = vmatpush1.bf16.msra.mxu0 0
  %69 = vmatprep.subr.bf16.mxu0 0
  %70 = vmatpush1.bf16.msra.mxu0 0
  %71 = vmatprep.subr.bf16.mxu0 0
  %72 = vmatpush1.bf16.msra.mxu0 0
  %73 = vmatprep.subr.bf16.mxu0 0
  %74 = vmatpush1.bf16.msra.mxu0 0
  %75 = vmatprep.subr.bf16.mxu0 0
  %76 = vmatpush1.bf16.msra.mxu0 0
  %77 = vmatprep.subr.bf16.mxu0 0
  %78 = vmatpush1.bf16.msra.mxu0 0
  %79 = vmatprep.subr.bf16.mxu0 0
  %80 = vmatpush1.bf16.msra.mxu0 0
  %81 = vmatprep.subr.bf16.mxu0 0
  %82 = vmatpush1.bf16.msra.mxu0 0
  %83 = vmatprep.subr.bf16.mxu0 0
  %84 = vmatpush1.bf16.msra.mxu0 0
  %85 = vmatprep.subr.bf16.mxu0 0
  %86 = vmatpush1.bf16.msra.mxu0 0
  %87 = vmatprep.subr.bf16.mxu0 0
  %88 = vmatpush1.bf16.msra.mxu0 0
  %89 = vmatprep.subr.bf16.mxu0 0
  %90 = vmatpush1.bf16.msra.mxu0 0
  %91 = vmatprep.mubr.bf16.mxu0 0
  %92 = vmatmul.mubr.bf16.gmra.mrb[0].mxu0 %v57
  %v93 = vpop.f32.mrb[0].mxu0
  %v94 = vadd.f32 %v29, %v93
  %v95 = vpop.f32.mrb[0].mxu0
  %v96 = vpop.f32.mrb[0].mxu0
  %v97 = vpop.f32.mrb[0].mxu0
  %98 = vdwg.mxu0
  %v99 = vpack.c.bf16 %v94, %v94
  %100 = vst [vmem:[%s3] sm:$0xf] %v99
  // Predicated region
  $region14: #{encoder_forward.16} parent=0 // pred_check
    _
  $region15: #{encoder_forward.16} parent=0 // pred_check_branch
    %102 = sbr.rel (0) target = $region17
  $region16: #{encoder_forward.16} parent=0 // pred_region
    _
  $region17: #{encoder_forward.16} parent=0 // pred_fallthru
    _
  // Predicated region
  $region18: #{encoder_forward.16} parent=0 // pred_check
    _
  $region19: #{encoder_forward.16} parent=0 // pred_check_branch
    %104 = sbr.rel (0) target = $region21
  $region20: #{encoder_forward.16} parent=0 // pred_region
    _
  $region21: #{encoder_forward.16} parent=0 // pred_fallthru
    _

// kernel: encoder_forward.15
$region0: #{encoder_forward.15}
  #allocation0 [shape = 'u32[]', space=smem, size = 0x4, offset = 0x4, fixed_abs, tag = 'smem constant byte address 0x4 - core index']
  #allocation1 [shape = 'u32[144,128]{1,0:T(1,128)}', space=vmem, size = 0x12000, scoped, tag = 'internal scratch']
  %s0 = inlined_call_operand.vmem [shape: bf16[2,6,5,48], index: 0, kind: input, shape index: {}]
  %s1 = inlined_call_operand.vmem [shape: bf16[3,48,32], index: 1, kind: input, shape index: {}]
  %s2 = inlined_call_operand.vmem [shape: bf16[3,24,32], index: 2, kind: input, shape index: {}]
  %s3 = inlined_call_operand.vmem [shape: f32[1,32], index: 3, kind: input, shape index: {}]
  %s4 = inlined_call_operand.vmem [shape: bf16[2,2,4,32], index: 4, kind: output, shape index: {}]
  %s5 = sld [smem:[#allocation0]]
  $region56: #{encoder_forward.15} parent=0
    _
  %s7 = ssub.s32 1, %s5
  %s8 = scalar_select 0, %s7, %s5
  loop: start=0, step=1, limit=4
  $region2: #{encoder_forward.15} parent=0 // loop_pre_header
    _
  $region3: #{encoder_forward.15} parent=0 // loop_header
    %s10 = sphi 0, %s14
    %p11 = scmp.ge.s32.totalorder %s10, 4
    %s20 = sphi 0, %s22
    %s23 = sphi 0, %s20
    %s24 = sphi 0, %s23
    %s40 = sphi 0, %s24
    %s44 = sphi 0, %s44
    %s46 = sphi 0, %s44
    %s47 = sphi 0, %s46
    %s61 = sphi 0, %s47
    %s65 = sphi 0, %s65
    %s67 = sphi 0, %s65
    %s68 = sphi 0, %s67
    %s82 = sphi 0, %s68
    %s86 = sphi 0, %s86
    %s88 = sphi 0, %s86
    %s89 = sphi 0, %s88
    %s103 = sphi 0, %s89
    %s109 = sphi 0, %s111
    %s112 = sphi 0, %s109
    %s113 = sphi 0, %s112
    %s129 = sphi 0, %s113
  $region4: #{encoder_forward.15} parent=0 // loop_header_branch
    %13 = sbr.rel (%p11) target = $region8
  $region5: #{encoder_forward.15} parent=0 // loop_body
    %s15 = ssub.s32 %s10, 1
    %s16 = ssub.s32 %s10, 2
    %s17 = sadd.s32 %s10, 1
    %s18 = ssub.s32 %s10, %s17
    %p19 = scmp.eq.s32.totalorder %s18, 0
    %s21 = sadd.s32 %s20, 1
    %s22 = scalar_select %p19, %s20, %s21
    %p25 = pneg %p19
    %p26 = scmp.eq.s32.totalorder %s10, 1
    %p27 = por %p25, %p26
    %p28 = scmp.ne.s32.totalorder %s20, %s23
    %p29 = scmp.eq.s32.totalorder %s10, 0
    %p30 = por %p28, %p29
    %p31 = scmp.ne.s32.totalorder %s20, %s23
    %p32 = scmp.eq.s32.totalorder %s15, 1
    %p33 = por %p31, %p32
    %p34 = scmp.ne.s32.totalorder %s23, %s24
    %p35 = scmp.eq.s32.totalorder %s15, 0
    %p36 = por %p34, %p35
    %p37 = scmp.ne.s32.totalorder %s23, %s24
    %p38 = scmp.eq.s32.totalorder %s16, 1
    %p39 = por %p37, %p38
    %p41 = scmp.ne.s32.totalorder %s24, %s40
    %p42 = scmp.eq.s32.totalorder %s16, 0
    %p43 = por %p41, %p42
    %s45 = sadd.s32 %s44, 1
    %p48 = scmp.eq.s32.totalorder %s10, 1
    %p49 = scmp.ne.s32.totalorder %s44, %s46
    %p50 = scmp.eq.s32.totalorder %s10, 0
    %p51 = por %p49, %p50
    %p52 = scmp.ne.s32.totalorder %s44, %s46
    %p53 = scmp.eq.s32.totalorder %s15, 1
    %p54 = por %p52, %p53
    %p55 = scmp.ne.s32.totalorder %s46, %s47
    %p56 = scmp.eq.s32.totalorder %s15, 0
    %p57 = por %p55, %p56
    %p58 = scmp.ne.s32.totalorder %s46, %s47
    %p59 = scmp.eq.s32.totalorder %s16, 1
    %p60 = por %p58, %p59
    %p62 = scmp.ne.s32.totalorder %s47, %s61
    %p63 = scmp.eq.s32.totalorder %s16, 0
    %p64 = por %p62, %p63
    %s66 = sadd.s32 %s65, 1
    %p69 = scmp.eq.s32.totalorder %s10, 1
    %p70 = scmp.ne.s32.totalorder %s65, %s67
    %p71 = scmp.eq.s32.totalorder %s10, 0
    %p72 = por %p70, %p71
    %p73 = scmp.ne.s32.totalorder %s65, %s67
    %p74 = scmp.eq.s32.totalorder %s15, 1
    %p75 = por %p73, %p74
    %p76 = scmp.ne.s32.totalorder %s67, %s68
    %p77 = scmp.eq.s32.totalorder %s15, 0
    %p78 = por %p76, %p77
    %p79 = scmp.ne.s32.totalorder %s67, %s68
    %p80 = scmp.eq.s32.totalorder %s16, 1
    %p81 = por %p79, %p80
    %p83 = scmp.ne.s32.totalorder %s68, %s82
    %p84 = scmp.eq.s32.totalorder %s16, 0
    %p85 = por %p83, %p84
    %s87 = sadd.s32 %s86, 1
    %p90 = scmp.eq.s32.totalorder %s10, 1
    %p91 = scmp.ne.s32.totalorder %s86, %s88
    %p92 = scmp.eq.s32.totalorder %s10, 0
    %p93 = por %p91, %p92
    %p94 = scmp.ne.s32.totalorder %s86, %s88
    %p95 = scmp.eq.s32.totalorder %s15, 1
    %p96 = por %p94, %p95
    %p97 = scmp.ne.s32.totalorder %s88, %s89
    %p98 = scmp.eq.s32.totalorder %s15, 0
    %p99 = por %p97, %p98
    %p100 = scmp.ne.s32.totalorder %s88, %s89
    %p101 = scmp.eq.s32.totalorder %s16, 1
    %p102 = por %p100, %p101
    %p104 = scmp.ne.s32.totalorder %s89, %s103
    %p105 = scmp.eq.s32.totalorder %s16, 0
    %p106 = por %p104, %p105
    %s107 = ssub.s32 %s10, %s17
    %p108 = scmp.eq.s32.totalorder %s107, 0
    %s110 = sadd.s32 %s109, 1
    %s111 = scalar_select %p108, %s109, %s110
    %p114 = pneg %p108
    %p115 = scmp.eq.s32.totalorder %s10, 1
    %p116 = por %p114, %p115
    %p117 = scmp.ne.s32.totalorder %s109, %s112
    %p118 = scmp.eq.s32.totalorder %s10, 0
    %p119 = por %p117, %p118
    %p120 = scmp.ne.s32.totalorder %s109, %s112
    %p121 = scmp.eq.s32.totalorder %s15, 1
    %p122 = por %p120, %p121
    %p123 = scmp.ne.s32.totalorder %s112, %s113
    %p124 = scmp.eq.s32.totalorder %s15, 0
    %p125 = por %p123, %p124
    %p126 = scmp.ne.s32.totalorder %s112, %s113
    %p127 = scmp.eq.s32.totalorder %s16, 1
    %p128 = por %p126, %p127
    %p130 = scmp.ne.s32.totalorder %s113, %s129
    %p131 = scmp.eq.s32.totalorder %s16, 0
    %p132 = por %p130, %p131
    %p133 = scmp.le.s32.totalorder 1, %s10
    %p134 = scmp.lt.s32.totalorder %s10, 3
    %p135 = pnand %p133, %p134
    %p136 = pneg %p135
    // Predicated region
    $region9: #{encoder_forward.15} parent=5 // pred_check
      _
    $region10: #{encoder_forward.15} parent=5 // pred_check_branch
      %138 = sbr.rel (%p135) target = $region12
    $region11: #{encoder_forward.15} parent=5 // pred_region
      %s139 = ssub.s32 %s10, 1
      // Predicated region
      $region13: #{encoder_forward.15} parent=11 // pred_check
        %p140 = pneg %p57
      $region14: #{encoder_forward.15} parent=11 // pred_check_branch
        %142 = sbr.rel (%p140) target = $region16
      $region15: #{encoder_forward.15} parent=11 // pred_region
        _
      $region16: #{encoder_forward.15} parent=11 // pred_fallthru
        _
      // Predicated region
      $region17: #{encoder_forward.15} parent=11 // pred_check
        %p143 = pneg %p78
      $region18: #{encoder_forward.15} parent=11 // pred_check_branch
        %145 = sbr.rel (%p143) target = $region20
      $region19: #{encoder_forward.15} parent=11 // pred_region
        _
      $region20: #{encoder_forward.15} parent=11 // pred_fallthru
        _
      // Predicated region
      $region21: #{encoder_forward.15} parent=11 // pred_check
        %p146 = pneg %p99
      $region22: #{encoder_forward.15} parent=11 // pred_check_branch
        %148 = sbr.rel (%p146) target = $region24
      $region23: #{encoder_forward.15} parent=11 // pred_region
        _
      $region24: #{encoder_forward.15} parent=11 // pred_fallthru
        _
    $region12: #{encoder_forward.15} parent=5 // pred_fallthru
      _
    %p149 = scmp.lt.s32.totalorder %s10, 2
    // Predicated region
    $region25: #{encoder_forward.15} parent=5 // pred_check
      %p150 = pneg %p149
    $region26: #{encoder_forward.15} parent=5 // pred_check_branch
      %152 = sbr.rel (%p150) target = $region28
    $region27: #{encoder_forward.15} parent=5 // pred_region
      // Predicated region
      $region29: #{encoder_forward.15} parent=27 // pred_check
        %p153 = pneg %p30
      $region30: #{encoder_forward.15} parent=27 // pred_check_branch
        %155 = sbr.rel (%p153) target = $region32
      $region31: #{encoder_forward.15} parent=27 // pred_region
        %p156 = scmp.lt.s32.totalorder %s10, 1
        %s157 = scalar_select %p156, %s10, 1
        %s158 = smul.addr %s157, 6
        %s159 = smul.addr %s158, 4
        %s160 = scalar_lea.vmem %s0, %s159
      $region32: #{encoder_forward.15} parent=27 // pred_fallthru
        _
    $region28: #{encoder_forward.15} parent=5 // pred_fallthru
      _
    %p161 = scmp.le.s32.totalorder 1, %s10
    %p162 = scmp.lt.s32.totalorder %s10, 3
    %p163 = pnand %p161, %p162
    %p164 = pneg %p163
    // Predicated region
    $region33: #{encoder_forward.15} parent=5 // pred_check
      _
    $region34: #{encoder_forward.15} parent=5 // pred_check_branch
      %166 = sbr.rel (%p163) target = $region36
    $region35: #{encoder_forward.15} parent=5 // pred_region
      %s167 = ssub.s32 %s10, 1
      %p168 = scmp.lt.s32.totalorder %s15, 1
      %s169 = scalar_select %p168, %s15, 1
      %s170 = smul.addr %s169, 6
      %s171 = smul.addr %s170, 4
      %s172 = scalar_lea.vmem %s0, %s171
      %p173 = pneg %p36
      %p174 = pneg %p33
      %p175 = pneg %p57
      %p176 = pneg %p54
      %p177 = pneg %p78
      %p178 = pneg %p75
      %p179 = pneg %p99
      %p180 = pneg %p96
      %p181 = pneg %p125
      %p182 = pneg %p122
      %p183 = scmp.lt.s32.totalorder %s15, 1
      %s184 = scalar_select %p183, %s15, 1
      %s185 = smul.addr %s184, 2
      %s186 = smul.addr %s185, 2
      %s187 = scalar_lea.vmem %s4, %s186
      %p188 = scmp.lt.s32.totalorder %s15, 1
      %s189 = scalar_select %p188, %s15, 1
      %s190 = smul.addr %s189, 6
      %s191 = smul.addr %s190, 4
      %s192 = scalar_lea.vmem %s0, %s191
      %p193 = scmp.lt.s32.totalorder %s15, 1
      %s194 = scalar_select %p193, %s15, 1
      %s195 = smul.addr %s194, 2
      %s196 = smul.addr %s195, 2
      %s197 = scalar_lea.vmem %s4, %s196
      %v199 = vld [vmem:[%s3] sm:$0x1]
      %v200 = vld [vmem:[%s1] sm:$0xf]
      %v201 = vld [vmem:[%s1 + $0x4] sm:$0xf]
      %v202 = vld [vmem:[%s1 + $0x8] sm:$0xf]
      %v203 = vld [vmem:[%s1 + $0xc] sm:$0xf]
      %v204 = vld [vmem:[%s1 + $0x10] sm:$0xf]
      %v205 = vld [vmem:[%s1 + $0x14] sm:$0xf]
      %v206 = vld [vmem:[%s1 + $0x18] sm:$0xf]
      %v207 = vld [vmem:[%s1 + $0x1c] sm:$0xf]
      %v208 = vld [vmem:[%s1 + $0x20] sm:$0xf]
      %v209 = vld [vmem:[%s1 + $0x24] sm:$0xf]
      %v210 = vld [vmem:[%s1 + $0x28] sm:$0xf]
      %v211 = vld [vmem:[%s1 + $0x2c] sm:$0xf]
      %v212 = vld [vmem:[%s1 + $0x30] sm:$0xf]
      %v213 = vld [vmem:[%s1 + $0x34] sm:$0xf]
      %v214 = vld [vmem:[%s1 + $0x38] sm:$0xf]
      %v215 = vld [vmem:[%s1 + $0x3c] sm:$0xf]
      %v216 = vld [vmem:[%s1 + $0x40] sm:$0xf]
      %v217 = vld [vmem:[%s1 + $0x44] sm:$0xf]
      %v218 = vld [vmem:[%s2] sm:$0xf]
      %v219 = vld [vmem:[%s2 + $0x4] sm:$0xf]
      %v220 = vld [vmem:[%s2 + $0x8] sm:$0xf]
      %v221 = vld [vmem:[%s2 + $0xc] sm:$0xf]
      %v222 = vld [vmem:[%s2 + $0x10] sm:$0xf]
      %v223 = vld [vmem:[%s2 + $0x14] sm:$0xf]
      %v224 = vld [vmem:[%s2 + $0x18] sm:$0xf]
      %v225 = vld [vmem:[%s2 + $0x1c] sm:$0xf]
      %v226 = vld [vmem:[%s2 + $0x20] sm:$0xf]
      loop: start=0, step=1, limit=2
      $region37: #{encoder_forward.15} parent=35 // loop_pre_header
        _
      $region38: #{encoder_forward.15} parent=35 // loop_header
        %s228 = sphi 0, %s232
        %p229 = scmp.ge.s32.totalorder %s228, 2
      $region39: #{encoder_forward.15} parent=35 // loop_header_branch
        %231 = sbr.rel (%p229) target = $region43
      $region40: #{encoder_forward.15} parent=35 // loop_body
        %s233 = smul.u32 %s228, 2
        %s234 = smul.addr %s233, 4
        %s235 = scalar_lea.vmem %s192, %s234
        %v236 = vld [vmem:[%s235] sm:$0x7]
        %v238 = vunpack.c.l.b16 %v236
        %v239 = vpack.c.b16 %v238, %v238
        %v241 = vshrl.u32 %v239, 16
        %v243 = vshll.u32 %v239, 16
        %v245 = vrot.slane %v243, 1
        %v246 = vor.u32 %v241, %v245
        %v250 = vunpack.c.l.b16 %v218
        %v251 = vunpack.c.l.b16 %v219
        %v252 = vunpack.c.l.b16 %v220
        %v253 = vpack.c.b16 %v251, %v250
        %v254 = vpack.c.b16 %v252, %v252
        %vm256 = vcmask 195584
        %v258 = vsel %vm256, %v246, 0
        %vm260 = vcmask 1043456
        %v262 = vsel %vm260, %v254, 0
        %264 = vmatprep.subr.bf16.mxu0 0
        %265 = vmatpush1.bf16.msra.mxu0 %v253
        %266 = vmatprep.subr.bf16.mxu0 0
        %267 = vmatpush1.bf16.msra.mxu0 %v262
        %268 = vmatprep.subr.bf16.mxu0 0
        %269 = vmatpush1.bf16.msra.mxu0 0
        %270 = vmatprep.subr.bf16.mxu0 0
        %271 = vmatpush1.bf16.msra.mxu0 0
        %272 = vmatprep.subr.bf16.mxu0 0
        %273 = vmatpush1.bf16.msra.mxu0 0
        %274 = vmatprep.subr.bf16.mxu0 0
        %275 = vmatpush1.bf16.msra.mxu0 0
        %276 = vmatprep.subr.bf16.mxu0 0
        %277 = vmatpush1.bf16.msra.mxu0 0
        %278 = vmatprep.subr.bf16.mxu0 0
        %279 = vmatpush1.bf16.msra.mxu0 0
        %280 = vmatprep.subr.bf16.mxu0 0
        %281 = vmatpush1.bf16.msra.mxu0 0
        %282 = vmatprep.subr.bf16.mxu0 0
        %283 = vmatpush1.bf16.msra.mxu0 0
        %284 = vmatprep.subr.bf16.mxu0 0
        %285 = vmatpush1.bf16.msra.mxu0 0
        %286 = vmatprep.subr.bf16.mxu0 0
        %287 = vmatpush1.bf16.msra.mxu0 0
        %288 = vmatprep.subr.bf16.mxu0 0
        %289 = vmatpush1.bf16.msra.mxu0 0
        %290 = vmatprep.subr.bf16.mxu0 0
        %291 = vmatpush1.bf16.msra.mxu0 0
        %292 = vmatprep.subr.bf16.mxu0 0
        %293 = vmatpush1.bf16.msra.mxu0 0
        %294 = vmatprep.subr.bf16.mxu0 0
        %295 = vmatpush1.bf16.msra.mxu0 0
        %296 = vmatprep.mubr.bf16.mxu0 0
        %297 = vmatmul.mubr.bf16.gmra.mrb[0].mxu0 %v258
        %v298 = vpop.f32.mrb[0].mxu0
        %v299 = vadd.f32 0.0, %v298
        %v300 = vpop.f32.mrb[0].mxu0
        %v301 = vpop.f32.mrb[0].mxu0
        %v302 = vpop.f32.mrb[0].mxu0
        %303 = vdwg.mxu0
        %v310 = vunpack.c.l.b16 %v200
        %v311 = vunpack.c.l.b16 %v201
        %v312 = vunpack.c.l.b16 %v202
        %v313 = vunpack.c.l.b16 %v203
        %v314 = vunpack.c.l.b16 %v204
        %v315 = vunpack.c.l.b16 %v205
        %v316 = vpack.c.b16 %v311, %v310
        %v317 = vpack.c.b16 %v313, %v312
        %v318 = vpack.c.b16 %v315, %v314
        %vm322 = vcmask 392192
        %v324 = vsel %vm322, %v236, 0
        %326 = vmatprep.subr.bf16.mxu0 0
        %327 = vmatpush1.bf16.msra.mxu0 %v316
        %328 = vmatprep.subr.bf16.mxu0 0
        %329 = vmatpush1.bf16.msra.mxu0 %v317
        %330 = vmatprep.subr.bf16.mxu0 0
        %331 = vmatpush1.bf16.msra.mxu0 %v318
        %332 = vmatprep.subr.bf16.mxu0 0
        %333 = vmatpush1.bf16.msra.mxu0 0
        %334 = vmatprep.subr.bf16.mxu0 0
        %335 = vmatpush1.bf16.msra.mxu0 0
        %336 = vmatprep.subr.bf16.mxu0 0
        %337 = vmatpush1.bf16.msra.mxu0 0
        %338 = vmatprep.subr.bf16.mxu0 0
        %339 = vmatpush1.bf16.msra.mxu0 0
        %340 = vmatprep.subr.bf16.mxu0 0
        %341 = vmatpush1.bf16.msra.mxu0 0
        %342 = vmatprep.subr.bf16.mxu0 0
        %343 = vmatpush1.bf16.msra.mxu0 0
        %344 = vmatprep.subr.bf16.mxu0 0
        %345 = vmatpush1.bf16.msra.mxu0 0
        %346 = vmatprep.subr.bf16.mxu0 0
        %347 = vmatpush1.bf16.msra.mxu0 0
        %348 = vmatprep.subr.bf16.mxu0 0
        %349 = vmatpush1.bf16.msra.mxu0 0
        %350 = vmatprep.subr.bf16.mxu0 0
        %351 = vmatpush1.bf16.msra.mxu0 0
        %352 = vmatprep.subr.bf16.mxu0 0
        %353 = vmatpush1.bf16.msra.mxu0 0
        %354 = vmatprep.subr.bf16.mxu0 0
        %355 = vmatpush1.bf16.msra.mxu0 0
        %356 = vmatprep.subr.bf16.mxu0 0
        %357 = vmatpush1.bf16.msra.mxu0 0
        %358 = vmatprep.mubr.bf16.mxu0 0
        %359 = vmatmul.mubr.bf16.gmra.mrb[0].mxu0 %v324
        %v360 = vpop.f32.mrb[0].mxu0
        %v361 = vadd.f32 %v299, %v360
        %v362 = vpop.f32.mrb[0].mxu0
        %v363 = vpop.f32.mrb[0].mxu0
        %v364 = vpop.f32.mrb[0].mxu0
        %365 = vdwg.mxu0
        %s366 = sadd.s32 %s233, 1
        %s367 = smul.addr %s366, 4
        %s368 = scalar_lea.vmem %s192, %s367
        %v369 = vld [vmem:[%s368] sm:$0x7]
        %v376 = vunpack.c.l.b16 %v206
        %v377 = vunpack.c.l.b16 %v207
        %v378 = vunpack.c.l.b16 %v208
        %v379 = vunpack.c.l.b16 %v209
        %v380 = vunpack.c.l.b16 %v210
        %v381 = vunpack.c.l.b16 %v211
        %v382 = vpack.c.b16 %v377, %v376
        %v383 = vpack.c.b16 %v379, %v378
        %v384 = vpack.c.b16 %v381, %v380
        %v389 = vsel %vm322, %v369, 0
        %391 = vmatprep.subr.bf16.mxu0 0
        %392 = vmatpush1.bf16.msra.mxu0 %v382
        %393 = vmatprep.subr.bf16.mxu0 0
        %394 = vmatpush1.bf16.msra.mxu0 %v383
        %395 = vmatprep.subr.bf16.mxu0 0
        %396 = vmatpush1.bf16.msra.mxu0 %v384
        %397 = vmatprep.subr.bf16.mxu0 0
        %398 = vmatpush1.bf16.msra.mxu0 0
        %399 = vmatprep.subr.bf16.mxu0 0
        %400 = vmatpush1.bf16.msra.mxu0 0
        %401 = vmatprep.subr.bf16.mxu0 0
        %402 = vmatpush1.bf16.msra.mxu0 0
        %403 = vmatprep.subr.bf16.mxu0 0
        %404 = vmatpush1.bf16.msra.mxu0 0
        %405 = vmatprep.subr.bf16.mxu0 0
        %406 = vmatpush1.bf16.msra.mxu0 0
        %407 = vmatprep.subr.bf16.mxu0 0
        %408 = vmatpush1.bf16.msra.mxu0 0
        %409 = vmatprep.subr.bf16.mxu0 0
        %410 = vmatpush1.bf16.msra.mxu0 0
        %411 = vmatprep.subr.bf16.mxu0 0
        %412 = vmatpush1.bf16.msra.mxu0 0
        %413 = vmatprep.subr.bf16.mxu0 0
        %414 = vmatpush1.bf16.msra.mxu0 0
        %415 = vmatprep.subr.bf16.mxu0 0
        %416 = vmatpush1.bf16.msra.mxu0 0
        %417 = vmatprep.subr.bf16.mxu0 0
        %418 = vmatpush1.bf16.msra.mxu0 0
        %419 = vmatprep.subr.bf16.mxu0 0
        %420 = vmatpush1.bf16.msra.mxu0 0
        %421 = vmatprep.subr.bf16.mxu0 0
        %422 = vmatpush1.bf16.msra.mxu0 0
        %423 = vmatprep.mubr.bf16.mxu0 0
        %424 = vmatmul.mubr.bf16.gmra.mrb[0].mxu0 %v389
        %v425 = vpop.f32.mrb[0].mxu0
        %v426 = vadd.f32 0.0, %v425
        %v427 = vpop.f32.mrb[0].mxu0
        %v428 = vpop.f32.mrb[0].mxu0
        %v429 = vpop.f32.mrb[0].mxu0
        %430 = vdwg.mxu0
        %v431 = vadd.f32 %v361, %v426
        %v433 = vunpack.c.l.b16 %v369
        %v434 = vpack.c.b16 %v433, %v433
        %v436 = vshrl.u32 %v434, 16
        %v438 = vshll.u32 %v434, 16
        %v440 = vrot.slane %v438, 1
        %v441 = vor.u32 %v436, %v440
        %v445 = vunpack.c.l.b16 %v221
        %v446 = vunpack.c.l.b16 %v222
        %v447 = vunpack.c.l.b16 %v223
        %v448 = vpack.c.b16 %v446, %v445
        %v449 = vpack.c.b16 %v447, %v447
        %v452 = vsel %vm256, %v441, 0
        %v455 = vsel %vm260, %v449, 0
        %457 = vmatprep.subr.bf16.mxu0 0
        %458 = vmatpush1.bf16.msra.mxu0 %v448
        %459 = vmatprep.subr.bf16.mxu0 0
        %460 = vmatpush1.bf16.msra.mxu0 %v455
        %461 = vmatprep.subr.bf16.mxu0 0
        %462 = vmatpush1.bf16.msra.mxu0 0
        %463 = vmatprep.subr.bf16.mxu0 0
        %464 = vmatpush1.bf16.msra.mxu0 0
        %465 = vmatprep.subr.bf16.mxu0 0
        %466 = vmatpush1.bf16.msra.mxu0 0
        %467 = vmatprep.subr.bf16.mxu0 0
        %468 = vmatpush1.bf16.msra.mxu0 0
        %469 = vmatprep.subr.bf16.mxu0 0
        %470 = vmatpush1.bf16.msra.mxu0 0
        %471 = vmatprep.subr.bf16.mxu0 0
        %472 = vmatpush1.bf16.msra.mxu0 0
        %473 = vmatprep.subr.bf16.mxu0 0
        %474 = vmatpush1.bf16.msra.mxu0 0
        %475 = vmatprep.subr.bf16.mxu0 0
        %476 = vmatpush1.bf16.msra.mxu0 0
        %477 = vmatprep.subr.bf16.mxu0 0
        %478 = vmatpush1.bf16.msra.mxu0 0
        %479 = vmatprep.subr.bf16.mxu0 0
        %480 = vmatpush1.bf16.msra.mxu0 0
        %481 = vmatprep.subr.bf16.mxu0 0
        %482 = vmatpush1.bf16.msra.mxu0 0
        %483 = vmatprep.subr.bf16.mxu0 0
        %484 = vmatpush1.bf16.msra.mxu0 0
        %485 = vmatprep.subr.bf16.mxu0 0
        %486 = vmatpush1.bf16.msra.mxu0 0
        %487 = vmatprep.subr.bf16.mxu0 0
        %488 = vmatpush1.bf16.msra.mxu0 0
        %489 = vmatprep.mubr.bf16.mxu0 0
        %490 = vmatmul.mubr.bf16.gmra.mrb[0].mxu0 %v452
        %v491 = vpop.f32.mrb[0].mxu0
        %v492 = vadd.f32 0.0, %v491
        %v493 = vpop.f32.mrb[0].mxu0
        %v494 = vpop.f32.mrb[0].mxu0
        %v495 = vpop.f32.mrb[0].mxu0
        %496 = vdwg.mxu0
        %v497 = vadd.f32 %v431, %v492
        %s498 = sadd.s32 %s233, 2
        %s499 = smul.addr %s498, 4
        %s500 = scalar_lea.vmem %s192, %s499
        %v501 = vld [vmem:[%s500] sm:$0x7]
        %v508 = vunpack.c.l.b16 %v212
        %v509 = vunpack.c.l.b16 %v213
        %v510 = vunpack.c.l.b16 %v214
        %v511 = vunpack.c.l.b16 %v215
        %v512 = vunpack.c.l.b16 %v216
        %v513 = vunpack.c.l.b16 %v217
        %v514 = vpack.c.b16 %v509, %v508
        %v515 = vpack.c.b16 %v511, %v510
        %v516 = vpack.c.b16 %v513, %v512
        %v521 = vsel %vm322, %v501, 0
        %523 = vmatprep.subr.bf16.mxu0 0
        %524 = vmatpush1.bf16.msra.mxu0 %v514
        %525 = vmatprep.subr.bf16.mxu0 0
        %526 = vmatpush1.bf16.msra.mxu0 %v515
        %527 = vmatprep.subr.bf16.mxu0 0
        %528 = vmatpush1.bf16.msra.mxu0 %v516
        %529 = vmatprep.subr.bf16.mxu0 0
        %530 = vmatpush1.bf16.msra.mxu0 0
        %531 = vmatprep.subr.bf16.mxu0 0
        %532 = vmatpush1.bf16.msra.mxu0 0
        %533 = vmatprep.subr.bf16.mxu0 0
        %534 = vmatpush1.bf16.msra.mxu0 0
        %535 = vmatprep.subr.bf16.mxu0 0
        %536 = vmatpush1.bf16.msra.mxu0 0
        %537 = vmatprep.subr.bf16.mxu0 0
        %538 = vmatpush1.bf16.msra.mxu0 0
        %539 = vmatprep.subr.bf16.mxu0 0
        %540 = vmatpush1.bf16.msra.mxu0 0
        %541 = vmatprep.subr.bf16.mxu0 0
        %542 = vmatpush1.bf16.msra.mxu0 0
        %543 = vmatprep.subr.bf16.mxu0 0
        %544 = vmatpush1.bf16.msra.mxu0 0
        %545 = vmatprep.subr.bf16.mxu0 0
        %546 = vmatpush1.bf16.msra.mxu0 0
        %547 = vmatprep.subr.bf16.mxu0 0
        %548 = vmatpush1.bf16.msra.mxu0 0
        %549 = vmatprep.subr.bf16.mxu0 0
        %550 = vmatpush1.bf16.msra.mxu0 0
        %551 = vmatprep.subr.bf16.mxu0 0
        %552 = vmatpush1.bf16.msra.mxu0 0
        %553 = vmatprep.subr.bf16.mxu0 0
        %554 = vmatpush1.bf16.msra.mxu0 0
        %555 = vmatprep.mubr.bf16.mxu0 0
        %556 = vmatmul.mubr.bf16.gmra.mrb[0].mxu0 %v521
        %v557 = vpop.f32.mrb[0].mxu0
        %v558 = vadd.f32 0.0, %v557
        %v559 = vpop.f32.mrb[0].mxu0
        %v560 = vpop.f32.mrb[0].mxu0
        %v561 = vpop.f32.mrb[0].mxu0
        %562 = vdwg.mxu0
        %v563 = vadd.f32 %v497, %v558
        %v565 = vunpack.c.l.b16 %v501
        %v566 = vpack.c.b16 %v565, %v565
        %v568 = vshrl.u32 %v566, 16
        %v570 = vshll.u32 %v566, 16
        %v572 = vrot.slane %v570, 1
        %v573 = vor.u32 %v568, %v572
        %v577 = vunpack.c.l.b16 %v224
        %v578 = vunpack.c.l.b16 %v225
        %v579 = vunpack.c.l.b16 %v226
        %v580 = vpack.c.b16 %v578, %v577
        %v581 = vpack.c.b16 %v579, %v579
        %v584 = vsel %vm256, %v573, 0
        %v587 = vsel %vm260, %v581, 0
        %589 = vmatprep.subr.bf16.mxu0 0
        %590 = vmatpush1.bf16.msra.mxu0 %v580
        %591 = vmatprep.subr.bf16.mxu0 0
        %592 = vmatpush1.bf16.msra.mxu0 %v587
        %593 = vmatprep.subr.bf16.mxu0 0
        %594 = vmatpush1.bf16.msra.mxu0 0
        %595 = vmatprep.subr.bf16.mxu0 0
        %596 = vmatpush1.bf16.msra.mxu0 0
        %597 = vmatprep.subr.bf16.mxu0 0
        %598 = vmatpush1.bf16.msra.mxu0 0
        %599 = vmatprep.subr.bf16.mxu0 0
        %600 = vmatpush1.bf16.msra.mxu0 0
        %601 = vmatprep.subr.bf16.mxu0 0
        %602 = vmatpush1.bf16.msra.mxu0 0
        %603 = vmatprep.subr.bf16.mxu0 0
        %604 = vmatpush1.bf16.msra.mxu0 0
        %605 = vmatprep.subr.bf16.mxu0 0
        %606 = vmatpush1.bf16.msra.mxu0 0
        %607 = vmatprep.subr.bf16.mxu0 0
        %608 = vmatpush1.bf16.msra.mxu0 0
        %609 = vmatprep.subr.bf16.mxu0 0
        %610 = vmatpush1.bf16.msra.mxu0 0
        %611 = vmatprep.subr.bf16.mxu0 0
        %612 = vmatpush1.bf16.msra.mxu0 0
        %613 = vmatprep.subr.bf16.mxu0 0
        %614 = vmatpush1.bf16.msra.mxu0 0
        %615 = vmatprep.subr.bf16.mxu0 0
        %616 = vmatpush1.bf16.msra.mxu0 0
        %617 = vmatprep.subr.bf16.mxu0 0
        %618 = vmatpush1.bf16.msra.mxu0 0
        %619 = vmatprep.subr.bf16.mxu0 0
        %620 = vmatpush1.bf16.msra.mxu0 0
        %621 = vmatprep.mubr.bf16.mxu0 0
        %622 = vmatmul.mubr.bf16.gmra.mrb[0].mxu0 %v584
        %v623 = vpop.f32.mrb[0].mxu0
        %v624 = vadd.f32 0.0, %v623
        %v625 = vpop.f32.mrb[0].mxu0
        %v626 = vpop.f32.mrb[0].mxu0
        %v627 = vpop.f32.mrb[0].mxu0
        %628 = vdwg.mxu0
        %v629 = vadd.f32 %v563, %v624
        %v631 = vlaneseq
        %v632 = vshrl.u32 %v631, 7
        %v633 = vsub.s32 0, %v632
        %v634 = vrot.slane %v199, %v633
        %v636 = vadd.f32 %v629, %v634
        %v637 = vxor.u32 %v636, 2147483648
        %v638 = vmul.f32 %v637, 1.442695
        %v639 = vpow.pop %v638
        %v640 = vadd.f32 %v639, 1.0
        %v641 = vrcp.pop %v640
        %v642 = vmul.f32 1.0, %v641
        %v643 = vmul.f32 %v636, %v642
        %v644 = vpack.c.bf16 %v643, %v643
        %s645 = smul.addr %s228, 2
        %s646 = scalar_lea.vmem %s197, %s645
        %vm647 = vcmask 254976
        %648 = vst.msk [vmem:[%s646] sm:$0x3] %vm647, %v644
      $region41: #{encoder_forward.15} parent=35 // loop_footer
        %s232 = sadd.s32 1, %s228
      $region42: #{encoder_forward.15} parent=35 // loop_footer_branch
        %227 = sbr.rel target = $region38
      $region43: #{encoder_forward.15} parent=35 // loop_exit
        _
      %p649 = scmp.lt.s32.totalorder %s15, 1
      %s650 = scalar_select %p649, %s15, 1
      %s651 = smul.addr %s650, 2
      %s652 = smul.addr %s651, 2
      %s653 = scalar_lea.vmem %s4, %s652
      // Predicated region
      $region44: #{encoder_forward.15} parent=35 // pred_check
        %p654 = pneg %p122
      $region45: #{encoder_forward.15} parent=35 // pred_check_branch
        %656 = sbr.rel (%p654) target = $region47
      $region46: #{encoder_forward.15} parent=35 // pred_region
        _
      $region47: #{encoder_forward.15} parent=35 // pred_fallthru
        _
    $region36: #{encoder_forward.15} parent=5 // pred_fallthru
      _
    %p657 = scmp.le.s32.totalorder 2, %s10
    // Predicated region
    $region48: #{encoder_forward.15} parent=5 // pred_check
      %p658 = pneg %p657
    $region49: #{encoder_forward.15} parent=5 // pred_check_branch
      %660 = sbr.rel (%p658) target = $region51
    $region50: #{encoder_forward.15} parent=5 // pred_region
      %s661 = ssub.s32 %s10, 2
      // Predicated region
      $region52: #{encoder_forward.15} parent=50 // pred_check
        %p662 = pneg %p128
      $region53: #{encoder_forward.15} parent=50 // pred_check_branch
        %664 = sbr.rel (%p662) target = $region55
      $region54: #{encoder_forward.15} parent=50 // pred_region
        %p665 = scmp.lt.s32.totalorder %s16, 1
        %s666 = scalar_select %p665, %s16, 1
        %s667 = smul.addr %s666, 2
        %s668 = smul.addr %s667, 2
        %s669 = scalar_lea.vmem %s4, %s668
      $region55: #{encoder_forward.15} parent=50 // pred_fallthru
        _
    $region51: #{encoder_forward.15} parent=5 // pred_fallthru
      _
  $region6: #{encoder_forward.15} parent=0 // loop_footer
    %s14 = sadd.s32 1, %s10
  $region7: #{encoder_forward.15} parent=0 // loop_footer_branch
    %9 = sbr.rel target = $region3
  $region8: #{encoder_forward.15} parent=0 // loop_exit
    _

// kernel: encoder_forward.20
$region0: #{encoder_forward.20}
  #allocation0 [shape = 'u32[]', space=smem, size = 0x4, offset = 0x4, fixed_abs, tag = 'smem constant byte address 0x4 - core index']
  #allocation1 [shape = 'u32[144,128]{1,0:T(1,128)}', space=vmem, size = 0x12000, scoped, tag = 'internal scratch']
  %s0 = inlined_call_operand.vmem [shape: bf16[8,32], index: 0, kind: input, shape index: {}]
  %s1 = inlined_call_operand.vmem [shape: bf16[32,128], index: 1, kind: input, shape index: {}]
  %s2 = inlined_call_operand.vmem [shape: bf16[8,32], index: 2, kind: input, shape index: {}]
  %s3 = inlined_call_operand.vmem [shape: bf16[32,128], index: 3, kind: input, shape index: {}]
  %s4 = inlined_call_operand.vmem [shape: f32[1,128], index: 4, kind: input, shape index: {}]
  %s5 = inlined_call_operand.vmem [shape: bf16[8,128], index: 5, kind: output, shape index: {}]
  %s6 = sld [smem:[#allocation0]]
  $region30: #{encoder_forward.20} parent=0
    _
  %s8 = ssub.s32 1, %s6
  %s9 = scalar_select 0, %s8, %s6
  // Predicated region
  $region2: #{encoder_forward.20} parent=0 // pred_check
    _
  $region3: #{encoder_forward.20} parent=0 // pred_check_branch
    %11 = sbr.rel (0) target = $region5
  $region4: #{encoder_forward.20} parent=0 // pred_region
    _
  $region5: #{encoder_forward.20} parent=0 // pred_fallthru
    _
  // Predicated region
  $region6: #{encoder_forward.20} parent=0 // pred_check
    _
  $region7: #{encoder_forward.20} parent=0 // pred_check_branch
    %13 = sbr.rel (0) target = $region9
  $region8: #{encoder_forward.20} parent=0 // pred_region
    _
  $region9: #{encoder_forward.20} parent=0 // pred_fallthru
    _
  // Predicated region
  $region10: #{encoder_forward.20} parent=0 // pred_check
    _
  $region11: #{encoder_forward.20} parent=0 // pred_check_branch
    %15 = sbr.rel (0) target = $region13
  $region12: #{encoder_forward.20} parent=0 // pred_region
    _
  $region13: #{encoder_forward.20} parent=0 // pred_fallthru
    _
  // Predicated region
  $region14: #{encoder_forward.20} parent=0 // pred_check
    _
  $region15: #{encoder_forward.20} parent=0 // pred_check_branch
    %17 = sbr.rel (0) target = $region17
  $region16: #{encoder_forward.20} parent=0 // pred_region
    _
  $region17: #{encoder_forward.20} parent=0 // pred_fallthru
    _
  // Predicated region
  $region18: #{encoder_forward.20} parent=0 // pred_check
    _
  $region19: #{encoder_forward.20} parent=0 // pred_check_branch
    %19 = sbr.rel (0) target = $region21
  $region20: #{encoder_forward.20} parent=0 // pred_region
    _
  $region21: #{encoder_forward.20} parent=0 // pred_fallthru
    _
  %v21 = vld [vmem:[%s0] sm:$0xf]
  %v22 = vld [vmem:[%s1] sm:$0xf]
  %v23 = vld [vmem:[%s1 + $0x4] sm:$0xf]
  %v24 = vld [vmem:[%s1 + $0x8] sm:$0xf]
  %v25 = vld [vmem:[%s1 + $0xc] sm:$0xf]
  %v26 = vld [vmem:[%s2] sm:$0xf]
  %v27 = vld [vmem:[%s3] sm:$0xf]
  %v28 = vld [vmem:[%s3 + $0x4] sm:$0xf]
  %v29 = vld [vmem:[%s3 + $0x8] sm:$0xf]
  %v30 = vld [vmem:[%s3 + $0xc] sm:$0xf]
  %v35 = vunpack.c.l.b16 %v27
  %v36 = vunpack.c.l.b16 %v28
  %v37 = vunpack.c.l.b16 %v29
  %v38 = vunpack.c.l.b16 %v30
  %v39 = vpack.c.b16 %v36, %v35
  %v40 = vpack.c.b16 %v38, %v37
  %vm43 = vcmask 261120
  %v45 = vsel %vm43, %v26, 0
  %47 = vmatprep.subr.bf16.mxu0 0
  %48 = vmatpush1.bf16.msra.mxu0 %v39
  %49 = vmatprep.subr.bf16.mxu0 0
  %50 = vmatpush1.bf16.msra.mxu0 %v40
  %51 = vmatprep.subr.bf16.mxu0 0
  %52 = vmatpush1.bf16.msra.mxu0 0
  %53 = vmatprep.subr.bf16.mxu0 0
  %54 = vmatpush1.bf16.msra.mxu0 0
  %55 = vmatprep.subr.bf16.mxu0 0
  %56 = vmatpush1.bf16.msra.mxu0 0
  %57 = vmatprep.subr.bf16.mxu0 0
  %58 = vmatpush1.bf16.msra.mxu0 0
  %59 = vmatprep.subr.bf16.mxu0 0
  %60 = vmatpush1.bf16.msra.mxu0 0
  %61 = vmatprep.subr.bf16.mxu0 0
  %62 = vmatpush1.bf16.msra.mxu0 0
  %63 = vmatprep.subr.bf16.mxu0 0
  %64 = vmatpush1.bf16.msra.mxu0 0
  %65 = vmatprep.subr.bf16.mxu0 0
  %66 = vmatpush1.bf16.msra.mxu0 0
  %67 = vmatprep.subr.bf16.mxu0 0
  %68 = vmatpush1.bf16.msra.mxu0 0
  %69 = vmatprep.subr.bf16.mxu0 0
  %70 = vmatpush1.bf16.msra.mxu0 0
  %71 = vmatprep.subr.bf16.mxu0 0
  %72 = vmatpush1.bf16.msra.mxu0 0
  %73 = vmatprep.subr.bf16.mxu0 0
  %74 = vmatpush1.bf16.msra.mxu0 0
  %75 = vmatprep.subr.bf16.mxu0 0
  %76 = vmatpush1.bf16.msra.mxu0 0
  %77 = vmatprep.subr.bf16.mxu0 0
  %78 = vmatpush1.bf16.msra.mxu0 0
  %79 = vmatprep.mubr.bf16.mxu0 0
  %80 = vmatmul.mubr.bf16.gmra.mrb[0].mxu0 %v45
  %v81 = vpop.f32.mrb[0].mxu0
  %v82 = vadd.f32 0.0, %v81
  %v83 = vpop.f32.mrb[0].mxu0
  %v84 = vpop.f32.mrb[0].mxu0
  %v85 = vpop.f32.mrb[0].mxu0
  %86 = vdwg.mxu0
  %v91 = vunpack.c.l.b16 %v22
  %v92 = vunpack.c.l.b16 %v23
  %v93 = vunpack.c.l.b16 %v24
  %v94 = vunpack.c.l.b16 %v25
  %v95 = vpack.c.b16 %v92, %v91
  %v96 = vpack.c.b16 %v94, %v93
  %v100 = vsel %vm43, %v21, 0
  %102 = vmatprep.subr.bf16.mxu0 0
  %103 = vmatpush1.bf16.msra.mxu0 %v95
  %104 = vmatprep.subr.bf16.mxu0 0
  %105 = vmatpush1.bf16.msra.mxu0 %v96
  %106 = vmatprep.subr.bf16.mxu0 0
  %107 = vmatpush1.bf16.msra.mxu0 0
  %108 = vmatprep.subr.bf16.mxu0 0
  %109 = vmatpush1.bf16.msra.mxu0 0
  %110 = vmatprep.subr.bf16.mxu0 0
  %111 = vmatpush1.bf16.msra.mxu0 0
  %112 = vmatprep.subr.bf16.mxu0 0
  %113 = vmatpush1.bf16.msra.mxu0 0
  %114 = vmatprep.subr.bf16.mxu0 0
  %115 = vmatpush1.bf16.msra.mxu0 0
  %116 = vmatprep.subr.bf16.mxu0 0
  %117 = vmatpush1.bf16.msra.mxu0 0
  %118 = vmatprep.subr.bf16.mxu0 0
  %119 = vmatpush1.bf16.msra.mxu0 0
  %120 = vmatprep.subr.bf16.mxu0 0
  %121 = vmatpush1.bf16.msra.mxu0 0
  %122 = vmatprep.subr.bf16.mxu0 0
  %123 = vmatpush1.bf16.msra.mxu0 0
  %124 = vmatprep.subr.bf16.mxu0 0
  %125 = vmatpush1.bf16.msra.mxu0 0
  %126 = vmatprep.subr.bf16.mxu0 0
  %127 = vmatpush1.bf16.msra.mxu0 0
  %128 = vmatprep.subr.bf16.mxu0 0
  %129 = vmatpush1.bf16.msra.mxu0 0
  %130 = vmatprep.subr.bf16.mxu0 0
  %131 = vmatpush1.bf16.msra.mxu0 0
  %132 = vmatprep.subr.bf16.mxu0 0
  %133 = vmatpush1.bf16.msra.mxu0 0
  %134 = vmatprep.mubr.bf16.mxu0 0
  %135 = vmatmul.mubr.bf16.gmra.mrb[0].mxu0 %v100
  %v136 = vpop.f32.mrb[0].mxu0
  %v137 = vadd.f32 %v82, %v136
  %v138 = vpop.f32.mrb[0].mxu0
  %v139 = vpop.f32.mrb[0].mxu0
  %v140 = vpop.f32.mrb[0].mxu0
  %141 = vdwg.mxu0
  %v142 = vld [vmem:[%s4] sm:$0x1]
  %v144 = vlaneseq
  %v145 = vshrl.u32 %v144, 7
  %v146 = vsub.s32 0, %v145
  %v147 = vrot.slane %v142, %v146
  %v149 = vadd.f32 %v137, %v147
  %v150 = vpack.c.bf16 %v149, %v149
  %151 = vst [vmem:[%s5] sm:$0xf] %v150
  // Predicated region
  $region22: #{encoder_forward.20} parent=0 // pred_check
    _
  $region23: #{encoder_forward.20} parent=0 // pred_check_branch
    %153 = sbr.rel (0) target = $region25
  $region24: #{encoder_forward.20} parent=0 // pred_region
    _
  $region25: #{encoder_forward.20} parent=0 // pred_fallthru
    _
  // Predicated region
  $region26: #{encoder_forward.20} parent=0 // pred_check
    _
  $region27: #{encoder_forward.20} parent=0 // pred_check_branch
    %155 = sbr.rel (0) target = $region29
  $region28: #{encoder_forward.20} parent=0 // pred_region
    _
  $region29: #{encoder_forward.20} parent=0 // pred_fallthru
    _

// kernel: encoder_forward.18
$region0: #{encoder_forward.18}
  #allocation0 [shape = 'u32[]', space=smem, size = 0x4, offset = 0x4, fixed_abs, tag = 'smem constant byte address 0x4 - core index']
  #allocation1 [shape = 'u32[144,128]{1,0:T(1,128)}', space=vmem, size = 0x12000, scoped, tag = 'internal scratch']
  #allocation2 [shape = 'f32[2,32]{1,0:T(2,128)}', space=vmem, size = 0x400, scoped, tag = 'scratch operand']
  #allocation3 [shape = 'f32[2,32]{1,0:T(2,128)}', space=vmem, size = 0x400, scoped, tag = 'scratch operand']
  #allocation4 [shape = 'f32[2,32]{1,0:T(2,128)}', space=vmem, size = 0x400, scoped, tag = 'scratch operand']
  #allocation5 [shape = 'f32[2,32]{1,0:T(2,128)}', space=vmem, size = 0x400, scoped, tag = 'scratch operand']
  %s0 = inlined_call_operand.vmem [shape: bf16[4,2,128], index: 0, kind: input, shape index: {}]
  %s1 = inlined_call_operand.vmem [shape: bf16[4,2,128], index: 1, kind: input, shape index: {}]
  %s2 = inlined_call_operand.vmem [shape: bf16[32,128], index: 2, kind: input, shape index: {}]
  %s3 = inlined_call_operand.vmem [shape: bf16[32,128], index: 3, kind: input, shape index: {}]
  %s4 = inlined_call_operand.vmem [shape: bf16[4,2,32], index: 4, kind: output, shape index: {0}]
  %s5 = inlined_call_operand.vmem [shape: bf16[4,2,32], index: 5, kind: output, shape index: {1}]
  %s6 = inlined_call_operand.hbm [shape: f32[2,2,32], index: 6, kind: output, shape index: {2}]
  %7 = xla_tuple %s4, %s5, %s6
  %s8 = sld [smem:[#allocation0]]
  $region46: #{encoder_forward.18} parent=0
    _
  %s10 = ssub.s32 1, %s8
  %s11 = scalar_select 0, %s10, %s8
  $region1: #{encoder_forward.18} parent=0
    #allocation6 [shape = 'u8[2048]{0}', space=vmem, size = 0x800, scoped, tag = 'output window, operand 2, single buffered']
    #allocation7 [shape = 's32[1]{0}', space=sflag, size = 0x4, scoped, tag = 'scoped memory for encoder_forward.18']
    %12 = vsyncpa [#allocation7], 0
    // Predicated region
    $region2: #{encoder_forward.18} parent=1 // pred_check
      _
    $region3: #{encoder_forward.18} parent=1 // pred_check_branch
      %14 = sbr.rel (0) target = $region5
    $region4: #{encoder_forward.18} parent=1 // pred_region
      _
    $region5: #{encoder_forward.18} parent=1 // pred_fallthru
      _
    // Predicated region
    $region6: #{encoder_forward.18} parent=1 // pred_check
      _
    $region7: #{encoder_forward.18} parent=1 // pred_check_branch
      %16 = sbr.rel (0) target = $region9
    $region8: #{encoder_forward.18} parent=1 // pred_region
      %s17 = ssub.s32 0, 0
      %s18 = smul.u32 4, %s17
      %p19 = scmp.lt.s32.totalorder %s18, 3
      %s20 = scalar_select %p19, %s18, 3
      %s21 = scalar_lea.vmem %s1, %s20
      %s22 = ssub.s32 0, 0
      %s23 = smul.u32 4, %s22
    $region9: #{encoder_forward.18} parent=1 // pred_fallthru
      _
    // Predicated region
    $region10: #{encoder_forward.18} parent=1 // pred_check
      _
    $region11: #{encoder_forward.18} parent=1 // pred_check_branch
      %25 = sbr.rel (0) target = $region13
    $region12: #{encoder_forward.18} parent=1 // pred_region
      _
    $region13: #{encoder_forward.18} parent=1 // pred_fallthru
      _
    // Predicated region
    $region14: #{encoder_forward.18} parent=1 // pred_check
      _
    $region15: #{encoder_forward.18} parent=1 // pred_check_branch
      %27 = sbr.rel (0) target = $region17
    $region16: #{encoder_forward.18} parent=1 // pred_region
      _
    $region17: #{encoder_forward.18} parent=1 // pred_fallthru
      _
    %s28 = ssub.s32 0, 0
    %s29 = smul.u32 4, %s28
    %p30 = scmp.lt.s32.totalorder %s29, 3
    %s31 = scalar_select %p30, %s29, 3
    %s32 = scalar_lea.vmem %s1, %s31
    %s33 = ssub.s32 0, 0
    %s34 = smul.u32 4, %s33
    %p35 = scmp.lt.s32.totalorder %s34, 3
    %s36 = scalar_select %p35, %s34, 3
    %s37 = scalar_lea.vmem %s5, %s36
    %s38 = ssub.s32 0, 0
    %s39 = smul.u32 4, %s38
    %p40 = scmp.lt.s32.totalorder %s39, 3
    %s41 = scalar_select %p40, %s39, 3
    %s42 = scalar_lea.vmem %s1, %s41
    %s43 = ssub.s32 0, 0
    %s44 = smul.u32 4, %s43
    %s45 = ssub.s32 0, 0
    %s46 = smul.u32 4, %s45
    %p47 = scmp.lt.s32.totalorder %s46, 3
    %s48 = scalar_select %p47, %s46, 3
    %s49 = scalar_lea.vmem %s5, %s48
    %s50 = ssub.s32 0, 0
    %s51 = smul.u32 4, %s50
    %p53 = scmp.eq.s32.totalorder 0, 0
    // Predicated region
    $region18: #{encoder_forward.18} parent=1 // pred_check
      %p54 = pneg %p53
    $region19: #{encoder_forward.18} parent=1 // pred_check_branch
      %56 = sbr.rel (%p54) target = $region21
    $region20: #{encoder_forward.18} parent=1 // pred_region
      %vm57 = vcmask 254976
      %58 = vst.msk [vmem:[#allocation2] sm:$0x3] %vm57, 0.0
      %59 = vst.msk [vmem:[#allocation3] sm:$0x3] %vm57, 0.0
      %60 = vst.msk [vmem:[#allocation4] sm:$0x3] %vm57, 0.0
      %61 = vst.msk [vmem:[#allocation5] sm:$0x3] %vm57, 0.0
    $region21: #{encoder_forward.18} parent=1 // pred_fallthru
      _
    %v62 = vld [vmem:[%s0] sm:$0x1]
    %v63 = vunpack.c.l.bf16 %v62
    %v64 = vld [vmem:[#allocation2] sm:$0x3]
    %v65 = vpack.c.bf16 %v64, %v64
    %v66 = vld [vmem:[%s2] sm:$0xf]
    %v67 = vld [vmem:[%s2 + $0x4] sm:$0xf]
    %v68 = vld [vmem:[%s2 + $0x8] sm:$0xf]
    %v69 = vld [vmem:[%s2 + $0xc] sm:$0xf]
    %v74 = vunpack.c.l.b16 %v66
    %v75 = vunpack.c.l.b16 %v67
    %v76 = vunpack.c.l.b16 %v68
    %v77 = vunpack.c.l.b16 %v69
    %v78 = vpack.c.b16 %v75, %v74
    %v79 = vpack.c.b16 %v77, %v76
    %vm82 = vcmask 261120
    %v84 = vsel %vm82, %v65, 0
    %86 = vmatprep.subr.bf16.mxu0 0
    %87 = vmatpush1.bf16.msra.mxu0 %v78
    %88 = vmatprep.subr.bf16.mxu0 0
    %89 = vmatpush1.bf16.msra.mxu0 %v79
    %90 = vmatprep.subr.bf16.mxu0 0
    %91 = vmatpush1.bf16.msra.mxu0 0
    %92 = vmatprep.subr.bf16.mxu0 0
    %93 = vmatpush1.bf16.msra.mxu0 0
    %94 = vmatprep.subr.bf16.mxu0 0
    %95 = vmatpush1.bf16.msra.mxu0 0
    %96 = vmatprep.subr.bf16.mxu0 0
    %97 = vmatpush1.bf16.msra.mxu0 0
    %98 = vmatprep.subr.bf16.mxu0 0
    %99 = vmatpush1.bf16.msra.mxu0 0
    %100 = vmatprep.subr.bf16.mxu0 0
    %101 = vmatpush1.bf16.msra.mxu0 0
    %102 = vmatprep.subr.bf16.mxu0 0
    %103 = vmatpush1.bf16.msra.mxu0 0
    %104 = vmatprep.subr.bf16.mxu0 0
    %105 = vmatpush1.bf16.msra.mxu0 0
    %106 = vmatprep.subr.bf16.mxu0 0
    %107 = vmatpush1.bf16.msra.mxu0 0
    %108 = vmatprep.subr.bf16.mxu0 0
    %109 = vmatpush1.bf16.msra.mxu0 0
    %110 = vmatprep.subr.bf16.mxu0 0
    %111 = vmatpush1.bf16.msra.mxu0 0
    %112 = vmatprep.subr.bf16.mxu0 0
    %113 = vmatpush1.bf16.msra.mxu0 0
    %114 = vmatprep.subr.bf16.mxu0 0
    %115 = vmatpush1.bf16.msra.mxu0 0
    %116 = vmatprep.subr.bf16.mxu0 0
    %117 = vmatpush1.bf16.msra.mxu0 0
    %118 = vmatprep.mubr.bf16.mxu0 0
    %119 = vmatmul.mubr.bf16.gmra.mrb[0].mxu0 %v84
    %v120 = vpop.f32.mrb[0].mxu0
    %v121 = vadd.f32 0.0, %v120
    %v122 = vpop.f32.mrb[0].mxu0
    %v123 = vpop.f32.mrb[0].mxu0
    %v124 = vpop.f32.mrb[0].mxu0
    %125 = vdwg.mxu0
    %v126 = vadd.f32 %v63, %v121
    %s127 = scalar_lea.vmem %s42, 3
    %v128 = vld [vmem:[%s127] sm:$0x1]
    %v129 = vunpack.c.l.bf16 %v128
    %v130 = vld [vmem:[#allocation4] sm:$0x3]
    %v131 = vpack.c.bf16 %v130, %v130
    %v132 = vld [vmem:[%s3] sm:$0xf]
    %v133 = vld [vmem:[%s3 + $0x4] sm:$0xf]
    %v134 = vld [vmem:[%s3 + $0x8] sm:$0xf]
    %v135 = vld [vmem:[%s3 + $0xc] sm:$0xf]
    %v140 = vunpack.c.l.b16 %v132
    %v141 = vunpack.c.l.b16 %v133
    %v142 = vunpack.c.l.b16 %v134
    %v143 = vunpack.c.l.b16 %v135
    %v144 = vpack.c.b16 %v141, %v140
    %v145 = vpack.c.b16 %v143, %v142
    %v149 = vsel %vm82, %v131, 0
    %151 = vmatprep.subr.bf16.mxu0 0
    %152 = vmatpush1.bf16.msra.mxu0 %v144
    %153 = vmatprep.subr.bf16.mxu0 0
    %154 = vmatpush1.bf16.msra.mxu0 %v145
    %155 = vmatprep.subr.bf16.mxu0 0
    %156 = vmatpush1.bf16.msra.mxu0 0
    %157 = vmatprep.subr.bf16.mxu0 0
    %158 = vmatpush1.bf16.msra.mxu0 0
    %159 = vmatprep.subr.bf16.mxu0 0
    %160 = vmatpush1.bf16.msra.mxu0 0
    %161 = vmatprep.subr.bf16.mxu0 0
    %162 = vmatpush1.bf16.msra.mxu0 0
    %163 = vmatprep.subr.bf16.mxu0 0
    %164 = vmatpush1.bf16.msra.mxu0 0
    %165 = vmatprep.subr.bf16.mxu0 0
    %166 = vmatpush1.bf16.msra.mxu0 0
    %167 = vmatprep.subr.bf16.mxu0 0
    %168 = vmatpush1.bf16.msra.mxu0 0
    %169 = vmatprep.subr.bf16.mxu0 0
    %170 = vmatpush1.bf16.msra.mxu0 0
    %171 = vmatprep.subr.bf16.mxu0 0
    %172 = vmatpush1.bf16.msra.mxu0 0
    %173 = vmatprep.subr.bf16.mxu0 0
    %174 = vmatpush1.bf16.msra.mxu0 0
    %175 = vmatprep.subr.bf16.mxu0 0
    %176 = vmatpush1.bf16.msra.mxu0 0
    %177 = vmatprep.subr.bf16.mxu0 0
    %178 = vmatpush1.bf16.msra.mxu0 0
    %179 = vmatprep.subr.bf16.mxu0 0
    %180 = vmatpush1.bf16.msra.mxu0 0
    %181 = vmatprep.subr.bf16.mxu0 0
    %182 = vmatpush1.bf16.msra.mxu0 0
    %183 = vmatprep.mubr.bf16.mxu0 0
    %184 = vmatmul.mubr.bf16.gmra.mrb[0].mxu0 %v149
    %v185 = vpop.f32.mrb[0].mxu0
    %v186 = vadd.f32 0.0, %v185
    %v187 = vpop.f32.mrb[0].mxu0
    %v188 = vpop.f32.mrb[0].mxu0
    %v189 = vpop.f32.mrb[0].mxu0
    %190 = vdwg.mxu0
    %v191 = vadd.f32 %v129, %v186
    %v192 = vld [vmem:[#allocation3] sm:$0x3]
    %v193 = vxor.u32 %v126, 2147483648
    %v194 = vmul.f32 %v193, 1.442695
    %v195 = vpow.pop %v194
    %v196 = vadd.f32 %v195, 1.0
    %v197 = vrcp.pop %v196
    %v198 = vmul.f32 1.0, %v197
    %v199 = vtanh.pop %v126
    %v202 = vunpack.c.l.s4 1983009808
    %v203 = vunpack.c.0.s8 %v202
    %v204 = vlaneseq
    %v205 = vshrl.u32 %v204, 7
    %v206 = vsub.s32 %v203, %v205
    %v207 = vrot.slane %v192, %v206
    %208 = vrot.lane.b32.xlu0 %v207, 32
    %v209 = vpop.permute.xlu0 %208
    %v211 = vmul.f32 %v198, %v209
    %213 = vrot.lane.b32.xlu0 %v199, 64
    %v214 = vpop.permute.xlu0 %213
    %v216 = vmul.f32 %v198, %v214
    %218 = vrot.lane.b32.xlu0 %v216, 32
    %v219 = vpop.permute.xlu0 %218
    %v221 = vadd.f32 %v211, %v219
    %v222 = vtanh.pop %v221
    %224 = vrot.lane.b32.xlu0 %v222, 64
    %v225 = vpop.permute.xlu0 %224
    %v227 = vmul.f32 %v198, %v225
    %v228 = vld [vmem:[#allocation5] sm:$0x3]
    %v229 = vxor.u32 %v191, 2147483648
    %v230 = vmul.f32 %v229, 1.442695
    %v231 = vpow.pop %v230
    %v232 = vadd.f32 %v231, 1.0
    %v233 = vrcp.pop %v232
    %v234 = vmul.f32 1.0, %v233
    %v235 = vtanh.pop %v191
    %v238 = vunpack.c.l.s4 1983009808
    %v239 = vunpack.c.0.s8 %v238
    %v240 = vlaneseq
    %v241 = vshrl.u32 %v240, 7
    %v242 = vsub.s32 %v239, %v241
    %v243 = vrot.slane %v228, %v242
    %244 = vrot.lane.b32.xlu0 %v243, 32
    %v245 = vpop.permute.xlu0 %244
    %v247 = vmul.f32 %v234, %v245
    %249 = vrot.lane.b32.xlu0 %v235, 64
    %v250 = vpop.permute.xlu0 %249
    %v252 = vmul.f32 %v234, %v250
    %254 = vrot.lane.b32.xlu0 %v252, 32
    %v255 = vpop.permute.xlu0 %254
    %v257 = vadd.f32 %v247, %v255
    %v258 = vtanh.pop %v257
    %260 = vrot.lane.b32.xlu0 %v258, 64
    %v261 = vpop.permute.xlu0 %260
    %v263 = vmul.f32 %v234, %v261
    %v266 = vunpack.c.l.s4 1983009808
    %v267 = vunpack.c.0.s8 %v266
    %v268 = vlaneseq
    %v269 = vshrl.u32 %v268, 7
    %v270 = vsub.s32 %v267, %v269
    %v271 = vrot.slane %v227, %v270
    %272 = vrot.lane.b32.xlu0 %v271, 32
    %v273 = vpop.permute.xlu0 %272
    %vm275 = vcmask 254976
    %276 = vst.msk [vmem:[#allocation2] sm:$0x3] %vm275, %v273
    %v279 = vunpack.c.l.s4 1983009808
    %v280 = vunpack.c.0.s8 %v279
    %v281 = vlaneseq
    %v282 = vshrl.u32 %v281, 7
    %v283 = vsub.s32 %v280, %v282
    %v284 = vrot.slane %v221, %v283
    %285 = vrot.lane.b32.xlu0 %v284, 96
    %v286 = vpop.permute.xlu0 %285
    %288 = vst.msk [vmem:[#allocation3] sm:$0x3] %vm275, %v286
    %v291 = vunpack.c.l.s4 1983009808
    %v292 = vunpack.c.0.s8 %v291
    %v293 = vlaneseq
    %v294 = vshrl.u32 %v293, 7
    %v295 = vsub.s32 %v292, %v294
    %v296 = vrot.slane %v263, %v295
    %297 = vrot.lane.b32.xlu0 %v296, 32
    %v298 = vpop.permute.xlu0 %297
    %300 = vst.msk [vmem:[#allocation4] sm:$0x3] %vm275, %v298
    %v303 = vunpack.c.l.s4 1983009808
    %v304 = vunpack.c.0.s8 %v303
    %v305 = vlaneseq
    %v306 = vshrl.u32 %v305, 7
    %v307 = vsub.s32 %v304, %v306
    %v308 = vrot.slane %v257, %v307
    %309 = vrot.lane.b32.xlu0 %v308, 96
    %v310 = vpop.permute.xlu0 %309
    %312 = vst.msk [vmem:[#allocation5] sm:$0x3] %vm275, %v310
    %v313 = vpack.c.bf16 %v227, %v227
    %v316 = vunpack.c.l.s4 1966171168
    %v317 = vunpack.c.0.s8 %v316
    %v318 = vlaneseq
    %v319 = vshrl.u32 %v318, 7
    %v320 = vsub.s32 %v317, %v319
    %v321 = vrot.slane %v313, %v320
    %v323 = vunpack.c.l.s4 1966171168
    %v324 = vunpack.c.0.s8 %v323
    %v325 = vlaneseq
    %v326 = vshrl.u32 %v325, 7
    %v327 = vsub.s32 %v324, %v326
    %v328 = vrot.slane %v321, %v327
    %329 = vrot.lane.b32.xlu0 %v328, 32
    %v330 = vpop.permute.xlu0 %329
    %vm332 = vcmask 253952
    %333 = vst.msk [vmem:[%s4] sm:$0x1] %vm332, %v330
    %v334 = vpack.c.bf16 %v263, %v263
    %v337 = vunpack.c.l.s4 1966171168
    %v338 = vunpack.c.0.s8 %v337
    %v339 = vlaneseq
    %v340 = vshrl.u32 %v339, 7
    %v341 = vsub.s32 %v338, %v340
    %v342 = vrot.slane %v334, %v341
    %v344 = vunpack.c.l.s4 1966171168
    %v345 = vunpack.c.0.s8 %v344
    %v346 = vlaneseq
    %v347 = vshrl.u32 %v346, 7
    %v348 = vsub.s32 %v345, %v347
    %v349 = vrot.slane %v342, %v348
    %350 = vrot.lane.b32.xlu0 %v349, 32
    %v351 = vpop.permute.xlu0 %350
    %s353 = scalar_lea.vmem %s49, 3
    %354 = vst.msk [vmem:[%s353] sm:$0x1] %vm332, %v351
    %s355 = scalar_lea.vmem %s0, 1
    %v356 = vld [vmem:[%s355] sm:$0x1]
    %v357 = vunpack.c.l.bf16 %v356
    %v358 = vld [vmem:[#allocation2] sm:$0x3]
    %v359 = vpack.c.bf16 %v358, %v358
    %v360 = vld [vmem:[%s2] sm:$0xf]
    %v361 = vld [vmem:[%s2 + $0x4] sm:$0xf]
    %v362 = vld [vmem:[%s2 + $0x8] sm:$0xf]
    %v363 = vld [vmem:[%s2 + $0xc] sm:$0xf]
    %v368 = vunpack.c.l.b16 %v360
    %v369 = vunpack.c.l.b16 %v361
    %v370 = vunpack.c.l.b16 %v362
    %v371 = vunpack.c.l.b16 %v363
    %v372 = vpack.c.b16 %v369, %v368
    %v373 = vpack.c.b16 %v371, %v370
    %v377 = vsel %vm82, %v359, 0
    %379 = vmatprep.subr.bf16.mxu0 0
    %380 = vmatpush1.bf16.msra.mxu0 %v372
    %381 = vmatprep.subr.bf16.mxu0 0
    %382 = vmatpush1.bf16.msra.mxu0 %v373
    %383 = vmatprep.subr.bf16.mxu0 0
    %384 = vmatpush1.bf16.msra.mxu0 0
    %385 = vmatprep.subr.bf16.mxu0 0
    %386 = vmatpush1.bf16.msra.mxu0 0
    %387 = vmatprep.subr.bf16.mxu0 0
    %388 = vmatpush1.bf16.msra.mxu0 0
    %389 = vmatprep.subr.bf16.mxu0 0
    %390 = vmatpush1.bf16.msra.mxu0 0
    %391 = vmatprep.subr.bf16.mxu0 0
    %392 = vmatpush1.bf16.msra.mxu0 0
    %393 = vmatprep.subr.bf16.mxu0 0
    %394 = vmatpush1.bf16.msra.mxu0 0
    %395 = vmatprep.subr.bf16.mxu0 0
    %396 = vmatpush1.bf16.msra.mxu0 0
    %397 = vmatprep.subr.bf16.mxu0 0
    %398 = vmatpush1.bf16.msra.mxu0 0
    %399 = vmatprep.subr.bf16.mxu0 0
    %400 = vmatpush1.bf16.msra.mxu0 0
    %401 = vmatprep.subr.bf16.mxu0 0
    %402 = vmatpush1.bf16.msra.mxu0 0
    %403 = vmatprep.subr.bf16.mxu0 0
    %404 = vmatpush1.bf16.msra.mxu0 0
    %405 = vmatprep.subr.bf16.mxu0 0
    %406 = vmatpush1.bf16.msra.mxu0 0
    %407 = vmatprep.subr.bf16.mxu0 0
    %408 = vmatpush1.bf16.msra.mxu0 0
    %409 = vmatprep.subr.bf16.mxu0 0
    %410 = vmatpush1.bf16.msra.mxu0 0
    %411 = vmatprep.mubr.bf16.mxu0 0
    %412 = vmatmul.mubr.bf16.gmra.mrb[0].mxu0 %v377
    %v413 = vpop.f32.mrb[0].mxu0
    %v414 = vadd.f32 0.0, %v413
    %v415 = vpop.f32.mrb[0].mxu0
    %v416 = vpop.f32.mrb[0].mxu0
    %v417 = vpop.f32.mrb[0].mxu0
    %418 = vdwg.mxu0
    %v419 = vadd.f32 %v357, %v414
    %s420 = scalar_lea.vmem %s42, 2
    %v421 = vld [vmem:[%s420] sm:$0x1]
    %v422 = vunpack.c.l.bf16 %v421
    %v423 = vld [vmem:[#allocation4] sm:$0x3]
    %v424 = vpack.c.bf16 %v423, %v423
    %v425 = vld [vmem:[%s3] sm:$0xf]
    %v426 = vld [vmem:[%s3 + $0x4] sm:$0xf]
    %v427 = vld [vmem:[%s3 + $0x8] sm:$0xf]
    %v428 = vld [vmem:[%s3 + $0xc] sm:$0xf]
    %v433 = vunpack.c.l.b16 %v425
    %v434 = vunpack.c.l.b16 %v426
    %v435 = vunpack.c.l.b16 %v427
    %v436 = vunpack.c.l.b16 %v428
    %v437 = vpack.c.b16 %v434, %v433
    %v438 = vpack.c.b16 %v436, %v435
    %v442 = vsel %vm82, %v424, 0
    %444 = vmatprep.subr.bf16.mxu0 0
    %445 = vmatpush1.bf16.msra.mxu0 %v437
    %446 = vmatprep.subr.bf16.mxu0 0
    %447 = vmatpush1.bf16.msra.mxu0 %v438
    %448 = vmatprep.subr.bf16.mxu0 0
    %449 = vmatpush1.bf16.msra.mxu0 0
    %450 = vmatprep.subr.bf16.mxu0 0
    %451 = vmatpush1.bf16.msra.mxu0 0
    %452 = vmatprep.subr.bf16.mxu0 0
    %453 = vmatpush1.bf16.msra.mxu0 0
    %454 = vmatprep.subr.bf16.mxu0 0
    %455 = vmatpush1.bf16.msra.mxu0 0
    %456 = vmatprep.subr.bf16.mxu0 0
    %457 = vmatpush1.bf16.msra.mxu0 0
    %458 = vmatprep.subr.bf16.mxu0 0
    %459 = vmatpush1.bf16.msra.mxu0 0
    %460 = vmatprep.subr.bf16.mxu0 0
    %461 = vmatpush1.bf16.msra.mxu0 0
    %462 = vmatprep.subr.bf16.mxu0 0
    %463 = vmatpush1.bf16.msra.mxu0 0
    %464 = vmatprep.subr.bf16.mxu0 0
    %465 = vmatpush1.bf16.msra.mxu0 0
    %466 = vmatprep.subr.bf16.mxu0 0
    %467 = vmatpush1.bf16.msra.mxu0 0
    %468 = vmatprep.subr.bf16.mxu0 0
    %469 = vmatpush1.bf16.msra.mxu0 0
    %470 = vmatprep.subr.bf16.mxu0 0
    %471 = vmatpush1.bf16.msra.mxu0 0
    %472 = vmatprep.subr.bf16.mxu0 0
    %473 = vmatpush1.bf16.msra.mxu0 0
    %474 = vmatprep.subr.bf16.mxu0 0
    %475 = vmatpush1.bf16.msra.mxu0 0
    %476 = vmatprep.mubr.bf16.mxu0 0
    %477 = vmatmul.mubr.bf16.gmra.mrb[0].mxu0 %v442
    %v478 = vpop.f32.mrb[0].mxu0
    %v479 = vadd.f32 0.0, %v478
    %v480 = vpop.f32.mrb[0].mxu0
    %v481 = vpop.f32.mrb[0].mxu0
    %v482 = vpop.f32.mrb[0].mxu0
    %483 = vdwg.mxu0
    %v484 = vadd.f32 %v422, %v479
    %v485 = vld [vmem:[#allocation3] sm:$0x3]
    %v486 = vxor.u32 %v419, 2147483648
    %v487 = vmul.f32 %v486, 1.442695
    %v488 = vpow.pop %v487
    %v489 = vadd.f32 %v488, 1.0
    %v490 = vrcp.pop %v489
    %v491 = vmul.f32 1.0, %v490
    %v492 = vtanh.pop %v419
    %v495 = vunpack.c.l.s4 1983009808
    %v496 = vunpack.c.0.s8 %v495
    %v497 = vlaneseq
    %v498 = vshrl.u32 %v497, 7
    %v499 = vsub.s32 %v496, %v498
    %v500 = vrot.slane %v485, %v499
    %501 = vrot.lane.b32.xlu0 %v500, 32
    %v502 = vpop.permute.xlu0 %501
    %v504 = vmul.f32 %v491, %v502
    %506 = vrot.lane.b32.xlu0 %v492, 64
    %v507 = vpop.permute.xlu0 %506
    %v509 = vmul.f32 %v491, %v507
    %511 = vrot.lane.b32.xlu0 %v509, 32
    %v512 = vpop.permute.xlu0 %511
    %v514 = vadd.f32 %v504, %v512
    %v515 = vtanh.pop %v514
    %517 = vrot.lane.b32.xlu0 %v515, 64
    %v518 = vpop.permute.xlu0 %517
    %v520 = vmul.f32 %v491, %v518
    %v521 = vld [vmem:[#allocation5] sm:$0x3]
    %v522 = vxor.u32 %v484, 2147483648
    %v523 = vmul.f32 %v522, 1.442695
    %v524 = vpow.pop %v523
    %v525 = vadd.f32 %v524, 1.0
    %v526 = vrcp.pop %v525
    %v527 = vmul.f32 1.0, %v526
    %v528 = vtanh.pop %v484
    %v531 = vunpack.c.l.s4 1983009808
    %v532 = vunpack.c.0.s8 %v531
    %v533 = vlaneseq
    %v534 = vshrl.u32 %v533, 7
    %v535 = vsub.s32 %v532, %v534
    %v536 = vrot.slane %v521, %v535
    %537 = vrot.lane.b32.xlu0 %v536, 32
    %v538 = vpop.permute.xlu0 %537
    %v540 = vmul.f32 %v527, %v538
    %542 = vrot.lane.b32.xlu0 %v528, 64
    %v543 = vpop.permute.xlu0 %542
    %v545 = vmul.f32 %v527, %v543
    %547 = vrot.lane.b32.xlu0 %v545, 32
    %v548 = vpop.permute.xlu0 %547
    %v550 = vadd.f32 %v540, %v548
    %v551 = vtanh.pop %v550
    %553 = vrot.lane.b32.xlu0 %v551, 64
    %v554 = vpop.permute.xlu0 %553
    %v556 = vmul.f32 %v527, %v554
    %v559 = vunpack.c.l.s4 1983009808
    %v560 = vunpack.c.0.s8 %v559
    %v561 = vlaneseq
    %v562 = vshrl.u32 %v561, 7
    %v563 = vsub.s32 %v560, %v562
    %v564 = vrot.slane %v520, %v563
    %565 = vrot.lane.b32.xlu0 %v564, 32
    %v566 = vpop.permute.xlu0 %565
    %568 = vst.msk [vmem:[#allocation2] sm:$0x3] %vm275, %v566
    %v571 = vunpack.c.l.s4 1983009808
    %v572 = vunpack.c.0.s8 %v571
    %v573 = vlaneseq
    %v574 = vshrl.u32 %v573, 7
    %v575 = vsub.s32 %v572, %v574
    %v576 = vrot.slane %v514, %v575
    %577 = vrot.lane.b32.xlu0 %v576, 96
    %v578 = vpop.permute.xlu0 %577
    %580 = vst.msk [vmem:[#allocation3] sm:$0x3] %vm275, %v578
    %v583 = vunpack.c.l.s4 1983009808
    %v584 = vunpack.c.0.s8 %v583
    %v585 = vlaneseq
    %v586 = vshrl.u32 %v585, 7
    %v587 = vsub.s32 %v584, %v586
    %v588 = vrot.slane %v556, %v587
    %589 = vrot.lane.b32.xlu0 %v588, 32
    %v590 = vpop.permute.xlu0 %589
    %592 = vst.msk [vmem:[#allocation4] sm:$0x3] %vm275, %v590
    %v595 = vunpack.c.l.s4 1983009808
    %v596 = vunpack.c.0.s8 %v595
    %v597 = vlaneseq
    %v598 = vshrl.u32 %v597, 7
    %v599 = vsub.s32 %v596, %v598
    %v600 = vrot.slane %v550, %v599
    %601 = vrot.lane.b32.xlu0 %v600, 96
    %v602 = vpop.permute.xlu0 %601
    %604 = vst.msk [vmem:[#allocation5] sm:$0x3] %vm275, %v602
    %v605 = vpack.c.bf16 %v520, %v520
    %v608 = vunpack.c.l.s4 1966171168
    %v609 = vunpack.c.0.s8 %v608
    %v610 = vlaneseq
    %v611 = vshrl.u32 %v610, 7
    %v612 = vsub.s32 %v609, %v611
    %v613 = vrot.slane %v605, %v612
    %v615 = vunpack.c.l.s4 1966171168
    %v616 = vunpack.c.0.s8 %v615
    %v617 = vlaneseq
    %v618 = vshrl.u32 %v617, 7
    %v619 = vsub.s32 %v616, %v618
    %v620 = vrot.slane %v613, %v619
    %621 = vrot.lane.b32.xlu0 %v620, 32
    %v622 = vpop.permute.xlu0 %621
    %s624 = scalar_lea.vmem %s4, 1
    %625 = vst.msk [vmem:[%s624] sm:$0x1] %vm332, %v622
    %v626 = vpack.c.bf16 %v556, %v556
    %v629 = vunpack.c.l.s4 1966171168
    %v630 = vunpack.c.0.s8 %v629
    %v631 = vlaneseq
    %v632 = vshrl.u32 %v631, 7
    %v633 = vsub.s32 %v630, %v632
    %v634 = vrot.slane %v626, %v633
    %v636 = vunpack.c.l.s4 1966171168
    %v637 = vunpack.c.0.s8 %v636
    %v638 = vlaneseq
    %v639 = vshrl.u32 %v638, 7
    %v640 = vsub.s32 %v637, %v639
    %v641 = vrot.slane %v634, %v640
    %642 = vrot.lane.b32.xlu0 %v641, 32
    %v643 = vpop.permute.xlu0 %642
    %s645 = scalar_lea.vmem %s49, 2
    %646 = vst.msk [vmem:[%s645] sm:$0x1] %vm332, %v643
    %s647 = scalar_lea.vmem %s0, 2
    %v648 = vld [vmem:[%s647] sm:$0x1]
    %v649 = vunpack.c.l.bf16 %v648
    %v650 = vld [vmem:[#allocation2] sm:$0x3]
    %v651 = vpack.c.bf16 %v650, %v650
    %v652 = vld [vmem:[%s2] sm:$0xf]
    %v653 = vld [vmem:[%s2 + $0x4] sm:$0xf]
    %v654 = vld [vmem:[%s2 + $0x8] sm:$0xf]
    %v655 = vld [vmem:[%s2 + $0xc] sm:$0xf]
    %v660 = vunpack.c.l.b16 %v652
    %v661 = vunpack.c.l.b16 %v653
    %v662 = vunpack.c.l.b16 %v654
    %v663 = vunpack.c.l.b16 %v655
    %v664 = vpack.c.b16 %v661, %v660
    %v665 = vpack.c.b16 %v663, %v662
    %v669 = vsel %vm82, %v651, 0
    %671 = vmatprep.subr.bf16.mxu0 0
    %672 = vmatpush1.bf16.msra.mxu0 %v664
    %673 = vmatprep.subr.bf16.mxu0 0
    %674 = vmatpush1.bf16.msra.mxu0 %v665
    %675 = vmatprep.subr.bf16.mxu0 0
    %676 = vmatpush1.bf16.msra.mxu0 0
    %677 = vmatprep.subr.bf16.mxu0 0
    %678 = vmatpush1.bf16.msra.mxu0 0
    %679 = vmatprep.subr.bf16.mxu0 0
    %680 = vmatpush1.bf16.msra.mxu0 0
    %681 = vmatprep.subr.bf16.mxu0 0
    %682 = vmatpush1.bf16.msra.mxu0 0
    %683 = vmatprep.subr.bf16.mxu0 0
    %684 = vmatpush1.bf16.msra.mxu0 0
    %685 = vmatprep.subr.bf16.mxu0 0
    %686 = vmatpush1.bf16.msra.mxu0 0
    %687 = vmatprep.subr.bf16.mxu0 0
    %688 = vmatpush1.bf16.msra.mxu0 0
    %689 = vmatprep.subr.bf16.mxu0 0
    %690 = vmatpush1.bf16.msra.mxu0 0
    %691 = vmatprep.subr.bf16.mxu0 0
    %692 = vmatpush1.bf16.msra.mxu0 0
    %693 = vmatprep.subr.bf16.mxu0 0
    %694 = vmatpush1.bf16.msra.mxu0 0
    %695 = vmatprep.subr.bf16.mxu0 0
    %696 = vmatpush1.bf16.msra.mxu0 0
    %697 = vmatprep.subr.bf16.mxu0 0
    %698 = vmatpush1.bf16.msra.mxu0 0
    %699 = vmatprep.subr.bf16.mxu0 0
    %700 = vmatpush1.bf16.msra.mxu0 0
    %701 = vmatprep.subr.bf16.mxu0 0
    %702 = vmatpush1.bf16.msra.mxu0 0
    %703 = vmatprep.mubr.bf16.mxu0 0
    %704 = vmatmul.mubr.bf16.gmra.mrb[0].mxu0 %v669
    %v705 = vpop.f32.mrb[0].mxu0
    %v706 = vadd.f32 0.0, %v705
    %v707 = vpop.f32.mrb[0].mxu0
    %v708 = vpop.f32.mrb[0].mxu0
    %v709 = vpop.f32.mrb[0].mxu0
    %710 = vdwg.mxu0
    %v711 = vadd.f32 %v649, %v706
    %s712 = scalar_lea.vmem %s42, 1
    %v713 = vld [vmem:[%s712] sm:$0x1]
    %v714 = vunpack.c.l.bf16 %v713
    %v715 = vld [vmem:[#allocation4] sm:$0x3]
    %v716 = vpack.c.bf16 %v715, %v715
    %v717 = vld [vmem:[%s3] sm:$0xf]
    %v718 = vld [vmem:[%s3 + $0x4] sm:$0xf]
    %v719 = vld [vmem:[%s3 + $0x8] sm:$0xf]
    %v720 = vld [vmem:[%s3 + $0xc] sm:$0xf]
    %v725 = vunpack.c.l.b16 %v717
    %v726 = vunpack.c.l.b16 %v718
    %v727 = vunpack.c.l.b16 %v719
    %v728 = vunpack.c.l.b16 %v720
    %v729 = vpack.c.b16 %v726, %v725
    %v730 = vpack.c.b16 %v728, %v727
    %v734 = vsel %vm82, %v716, 0
    %736 = vmatprep.subr.bf16.mxu0 0
    %737 = vmatpush1.bf16.msra.mxu0 %v729
    %738 = vmatprep.subr.bf16.mxu0 0
    %739 = vmatpush1.bf16.msra.mxu0 %v730
    %740 = vmatprep.subr.bf16.mxu0 0
    %741 = vmatpush1.bf16.msra.mxu0 0
    %742 = vmatprep.subr.bf16.mxu0 0
    %743 = vmatpush1.bf16.msra.mxu0 0
    %744 = vmatprep.subr.bf16.mxu0 0
    %745 = vmatpush1.bf16.msra.mxu0 0
    %746 = vmatprep.subr.bf16.mxu0 0
    %747 = vmatpush1.bf16.msra.mxu0 0
    %748 = vmatprep.subr.bf16.mxu0 0
    %749 = vmatpush1.bf16.msra.mxu0 0
    %750 = vmatprep.subr.bf16.mxu0 0
    %751 = vmatpush1.bf16.msra.mxu0 0
    %752 = vmatprep.subr.bf16.mxu0 0
    %753 = vmatpush1.bf16.msra.mxu0 0
    %754 = vmatprep.subr.bf16.mxu0 0
    %755 = vmatpush1.bf16.msra.mxu0 0
    %756 = vmatprep.subr.bf16.mxu0 0
    %757 = vmatpush1.bf16.msra.mxu0 0
    %758 = vmatprep.subr.bf16.mxu0 0
    %759 = vmatpush1.bf16.msra.mxu0 0
    %760 = vmatprep.subr.bf16.mxu0 0
    %761 = vmatpush1.bf16.msra.mxu0 0
    %762 = vmatprep.subr.bf16.mxu0 0
    %763 = vmatpush1.bf16.msra.mxu0 0
    %764 = vmatprep.subr.bf16.mxu0 0
    %765 = vmatpush1.bf16.msra.mxu0 0
    %766 = vmatprep.subr.bf16.mxu0 0
    %767 = vmatpush1.bf16.msra.mxu0 0
    %768 = vmatprep.mubr.bf16.mxu0 0
    %769 = vmatmul.mubr.bf16.gmra.mrb[0].mxu0 %v734
    %v770 = vpop.f32.mrb[0].mxu0
    %v771 = vadd.f32 0.0, %v770
    %v772 = vpop.f32.mrb[0].mxu0
    %v773 = vpop.f32.mrb[0].mxu0
    %v774 = vpop.f32.mrb[0].mxu0
    %775 = vdwg.mxu0
    %v776 = vadd.f32 %v714, %v771
    %v777 = vld [vmem:[#allocation3] sm:$0x3]
    %v778 = vxor.u32 %v711, 2147483648
    %v779 = vmul.f32 %v778, 1.442695
    %v780 = vpow.pop %v779
    %v781 = vadd.f32 %v780, 1.0
    %v782 = vrcp.pop %v781
    %v783 = vmul.f32 1.0, %v782
    %v784 = vtanh.pop %v711
    %v787 = vunpack.c.l.s4 1983009808
    %v788 = vunpack.c.0.s8 %v787
    %v789 = vlaneseq
    %v790 = vshrl.u32 %v789, 7
    %v791 = vsub.s32 %v788, %v790
    %v792 = vrot.slane %v777, %v791
    %793 = vrot.lane.b32.xlu0 %v792, 32
    %v794 = vpop.permute.xlu0 %793
    %v796 = vmul.f32 %v783, %v794
    %798 = vrot.lane.b32.xlu0 %v784, 64
    %v799 = vpop.permute.xlu0 %798
    %v801 = vmul.f32 %v783, %v799
    %803 = vrot.lane.b32.xlu0 %v801, 32
    %v804 = vpop.permute.xlu0 %803
    %v806 = vadd.f32 %v796, %v804
    %v807 = vtanh.pop %v806
    %809 = vrot.lane.b32.xlu0 %v807, 64
    %v810 = vpop.permute.xlu0 %809
    %v812 = vmul.f32 %v783, %v810
    %v813 = vld [vmem:[#allocation5] sm:$0x3]
    %v814 = vxor.u32 %v776, 2147483648
    %v815 = vmul.f32 %v814, 1.442695
    %v816 = vpow.pop %v815
    %v817 = vadd.f32 %v816, 1.0
    %v818 = vrcp.pop %v817
    %v819 = vmul.f32 1.0, %v818
    %v820 = vtanh.pop %v776
    %v823 = vunpack.c.l.s4 1983009808
    %v824 = vunpack.c.0.s8 %v823
    %v825 = vlaneseq
    %v826 = vshrl.u32 %v825, 7
    %v827 = vsub.s32 %v824, %v826
    %v828 = vrot.slane %v813, %v827
    %829 = vrot.lane.b32.xlu0 %v828, 32
    %v830 = vpop.permute.xlu0 %829
    %v832 = vmul.f32 %v819, %v830
    %834 = vrot.lane.b32.xlu0 %v820, 64
    %v835 = vpop.permute.xlu0 %834
    %v837 = vmul.f32 %v819, %v835
    %839 = vrot.lane.b32.xlu0 %v837, 32
    %v840 = vpop.permute.xlu0 %839
    %v842 = vadd.f32 %v832, %v840
    %v843 = vtanh.pop %v842
    %845 = vrot.lane.b32.xlu0 %v843, 64
    %v846 = vpop.permute.xlu0 %845
    %v848 = vmul.f32 %v819, %v846
    %v851 = vunpack.c.l.s4 1983009808
    %v852 = vunpack.c.0.s8 %v851
    %v853 = vlaneseq
    %v854 = vshrl.u32 %v853, 7
    %v855 = vsub.s32 %v852, %v854
    %v856 = vrot.slane %v812, %v855
    %857 = vrot.lane.b32.xlu0 %v856, 32
    %v858 = vpop.permute.xlu0 %857
    %860 = vst.msk [vmem:[#allocation2] sm:$0x3] %vm275, %v858
    %v863 = vunpack.c.l.s4 1983009808
    %v864 = vunpack.c.0.s8 %v863
    %v865 = vlaneseq
    %v866 = vshrl.u32 %v865, 7
    %v867 = vsub.s32 %v864, %v866
    %v868 = vrot.slane %v806, %v867
    %869 = vrot.lane.b32.xlu0 %v868, 96
    %v870 = vpop.permute.xlu0 %869
    %872 = vst.msk [vmem:[#allocation3] sm:$0x3] %vm275, %v870
    %v875 = vunpack.c.l.s4 1983009808
    %v876 = vunpack.c.0.s8 %v875
    %v877 = vlaneseq
    %v878 = vshrl.u32 %v877, 7
    %v879 = vsub.s32 %v876, %v878
    %v880 = vrot.slane %v848, %v879
    %881 = vrot.lane.b32.xlu0 %v880, 32
    %v882 = vpop.permute.xlu0 %881
    %884 = vst.msk [vmem:[#allocation4] sm:$0x3] %vm275, %v882
    %v887 = vunpack.c.l.s4 1983009808
    %v888 = vunpack.c.0.s8 %v887
    %v889 = vlaneseq
    %v890 = vshrl.u32 %v889, 7
    %v891 = vsub.s32 %v888, %v890
    %v892 = vrot.slane %v842, %v891
    %893 = vrot.lane.b32.xlu0 %v892, 96
    %v894 = vpop.permute.xlu0 %893
    %896 = vst.msk [vmem:[#allocation5] sm:$0x3] %vm275, %v894
    %v897 = vpack.c.bf16 %v812, %v812
    %v900 = vunpack.c.l.s4 1966171168
    %v901 = vunpack.c.0.s8 %v900
    %v902 = vlaneseq
    %v903 = vshrl.u32 %v902, 7
    %v904 = vsub.s32 %v901, %v903
    %v905 = vrot.slane %v897, %v904
    %v907 = vunpack.c.l.s4 1966171168
    %v908 = vunpack.c.0.s8 %v907
    %v909 = vlaneseq
    %v910 = vshrl.u32 %v909, 7
    %v911 = vsub.s32 %v908, %v910
    %v912 = vrot.slane %v905, %v911
    %913 = vrot.lane.b32.xlu0 %v912, 32
    %v914 = vpop.permute.xlu0 %913
    %s916 = scalar_lea.vmem %s4, 2
    %917 = vst.msk [vmem:[%s916] sm:$0x1] %vm332, %v914
    %v918 = vpack.c.bf16 %v848, %v848
    %v921 = vunpack.c.l.s4 1966171168
    %v922 = vunpack.c.0.s8 %v921
    %v923 = vlaneseq
    %v924 = vshrl.u32 %v923, 7
    %v925 = vsub.s32 %v922, %v924
    %v926 = vrot.slane %v918, %v925
    %v928 = vunpack.c.l.s4 1966171168
    %v929 = vunpack.c.0.s8 %v928
    %v930 = vlaneseq
    %v931 = vshrl.u32 %v930, 7
    %v932 = vsub.s32 %v929, %v931
    %v933 = vrot.slane %v926, %v932
    %934 = vrot.lane.b32.xlu0 %v933, 32
    %v935 = vpop.permute.xlu0 %934
    %s937 = scalar_lea.vmem %s49, 1
    %938 = vst.msk [vmem:[%s937] sm:$0x1] %vm332, %v935
    %s939 = scalar_lea.vmem %s0, 3
    %v940 = vld [vmem:[%s939] sm:$0x1]
    %v941 = vunpack.c.l.bf16 %v940
    %v942 = vld [vmem:[#allocation2] sm:$0x3]
    %v943 = vpack.c.bf16 %v942, %v942
    %v944 = vld [vmem:[%s2] sm:$0xf]
    %v945 = vld [vmem:[%s2 + $0x4] sm:$0xf]
    %v946 = vld [vmem:[%s2 + $0x8] sm:$0xf]
    %v947 = vld [vmem:[%s2 + $0xc] sm:$0xf]
    %v952 = vunpack.c.l.b16 %v944
    %v953 = vunpack.c.l.b16 %v945
    %v954 = vunpack.c.l.b16 %v946
    %v955 = vunpack.c.l.b16 %v947
    %v956 = vpack.c.b16 %v953, %v952
    %v957 = vpack.c.b16 %v955, %v954
    %v961 = vsel %vm82, %v943, 0
    %963 = vmatprep.subr.bf16.mxu0 0
    %964 = vmatpush1.bf16.msra.mxu0 %v956
    %965 = vmatprep.subr.bf16.mxu0 0
    %966 = vmatpush1.bf16.msra.mxu0 %v957
    %967 = vmatprep.subr.bf16.mxu0 0
    %968 = vmatpush1.bf16.msra.mxu0 0
    %969 = vmatprep.subr.bf16.mxu0 0
    %970 = vmatpush1.bf16.msra.mxu0 0
    %971 = vmatprep.subr.bf16.mxu0 0
    %972 = vmatpush1.bf16.msra.mxu0 0
    %973 = vmatprep.subr.bf16.mxu0 0
    %974 = vmatpush1.bf16.msra.mxu0 0
    %975 = vmatprep.subr.bf16.mxu0 0
    %976 = vmatpush1.bf16.msra.mxu0 0
    %977 = vmatprep.subr.bf16.mxu0 0
    %978 = vmatpush1.bf16.msra.mxu0 0
    %979 = vmatprep.subr.bf16.mxu0 0
    %980 = vmatpush1.bf16.msra.mxu0 0
    %981 = vmatprep.subr.bf16.mxu0 0
    %982 = vmatpush1.bf16.msra.mxu0 0
    %983 = vmatprep.subr.bf16.mxu0 0
    %984 = vmatpush1.bf16.msra.mxu0 0
    %985 = vmatprep.subr.bf16.mxu0 0
    %986 = vmatpush1.bf16.msra.mxu0 0
    %987 = vmatprep.subr.bf16.mxu0 0
    %988 = vmatpush1.bf16.msra.mxu0 0
    %989 = vmatprep.subr.bf16.mxu0 0
    %990 = vmatpush1.bf16.msra.mxu0 0
    %991 = vmatprep.subr.bf16.mxu0 0
    %992 = vmatpush1.bf16.msra.mxu0 0
    %993 = vmatprep.subr.bf16.mxu0 0
    %994 = vmatpush1.bf16.msra.mxu0 0
    %995 = vmatprep.mubr.bf16.mxu0 0
    %996 = vmatmul.mubr.bf16.gmra.mrb[0].mxu0 %v961
    %v997 = vpop.f32.mrb[0].mxu0
    %v998 = vadd.f32 0.0, %v997
    %v999 = vpop.f32.mrb[0].mxu0
    %v1000 = vpop.f32.mrb[0].mxu0
    %v1001 = vpop.f32.mrb[0].mxu0
    %1002 = vdwg.mxu0
    %v1003 = vadd.f32 %v941, %v998
    %v1004 = vld [vmem:[%s42] sm:$0x1]
    %v1005 = vunpack.c.l.bf16 %v1004
    %v1006 = vld [vmem:[#allocation4] sm:$0x3]
    %v1007 = vpack.c.bf16 %v1006, %v1006
    %v1008 = vld [vmem:[%s3] sm:$0xf]
    %v1009 = vld [vmem:[%s3 + $0x4] sm:$0xf]
    %v1010 = vld [vmem:[%s3 + $0x8] sm:$0xf]
    %v1011 = vld [vmem:[%s3 + $0xc] sm:$0xf]
    %v1016 = vunpack.c.l.b16 %v1008
    %v1017 = vunpack.c.l.b16 %v1009
    %v1018 = vunpack.c.l.b16 %v1010
    %v1019 = vunpack.c.l.b16 %v1011
    %v1020 = vpack.c.b16 %v1017, %v1016
    %v1021 = vpack.c.b16 %v1019, %v1018
    %v1025 = vsel %vm82, %v1007, 0
    %1027 = vmatprep.subr.bf16.mxu0 0
    %1028 = vmatpush1.bf16.msra.mxu0 %v1020
    %1029 = vmatprep.subr.bf16.mxu0 0
    %1030 = vmatpush1.bf16.msra.mxu0 %v1021
    %1031 = vmatprep.subr.bf16.mxu0 0
    %1032 = vmatpush1.bf16.msra.mxu0 0
    %1033 = vmatprep.subr.bf16.mxu0 0
    %1034 = vmatpush1.bf16.msra.mxu0 0
    %1035 = vmatprep.subr.bf16.mxu0 0
    %1036 = vmatpush1.bf16.msra.mxu0 0
    %1037 = vmatprep.subr.bf16.mxu0 0
    %1038 = vmatpush1.bf16.msra.mxu0 0
    %1039 = vmatprep.subr.bf16.mxu0 0
    %1040 = vmatpush1.bf16.msra.mxu0 0
    %1041 = vmatprep.subr.bf16.mxu0 0
    %1042 = vmatpush1.bf16.msra.mxu0 0
    %1043 = vmatprep.subr.bf16.mxu0 0
    %1044 = vmatpush1.bf16.msra.mxu0 0
    %1045 = vmatprep.subr.bf16.mxu0 0
    %1046 = vmatpush1.bf16.msra.mxu0 0
    %1047 = vmatprep.subr.bf16.mxu0 0
    %1048 = vmatpush1.bf16.msra.mxu0 0
    %1049 = vmatprep.subr.bf16.mxu0 0
    %1050 = vmatpush1.bf16.msra.mxu0 0
    %1051 = vmatprep.subr.bf16.mxu0 0
    %1052 = vmatpush1.bf16.msra.mxu0 0
    %1053 = vmatprep.subr.bf16.mxu0 0
    %1054 = vmatpush1.bf16.msra.mxu0 0
    %1055 = vmatprep.subr.bf16.mxu0 0
    %1056 = vmatpush1.bf16.msra.mxu0 0
    %1057 = vmatprep.subr.bf16.mxu0 0
    %1058 = vmatpush1.bf16.msra.mxu0 0
    %1059 = vmatprep.mubr.bf16.mxu0 0
    %1060 = vmatmul.mubr.bf16.gmra.mrb[0].mxu0 %v1025
    %v1061 = vpop.f32.mrb[0].mxu0
    %v1062 = vadd.f32 0.0, %v1061
    %v1063 = vpop.f32.mrb[0].mxu0
    %v1064 = vpop.f32.mrb[0].mxu0
    %v1065 = vpop.f32.mrb[0].mxu0
    %1066 = vdwg.mxu0
    %v1067 = vadd.f32 %v1005, %v1062
    %v1068 = vld [vmem:[#allocation3] sm:$0x3]
    %v1069 = vxor.u32 %v1003, 2147483648
    %v1070 = vmul.f32 %v1069, 1.442695
    %v1071 = vpow.pop %v1070
    %v1072 = vadd.f32 %v1071, 1.0
    %v1073 = vrcp.pop %v1072
    %v1074 = vmul.f32 1.0, %v1073
    %v1075 = vtanh.pop %v1003
    %v1078 = vunpack.c.l.s4 1983009808
    %v1079 = vunpack.c.0.s8 %v1078
    %v1080 = vlaneseq
    %v1081 = vshrl.u32 %v1080, 7
    %v1082 = vsub.s32 %v1079, %v1081
    %v1083 = vrot.slane %v1068, %v1082
    %1084 = vrot.lane.b32.xlu0 %v1083, 32
    %v1085 = vpop.permute.xlu0 %1084
    %v1087 = vmul.f32 %v1074, %v1085
    %1089 = vrot.lane.b32.xlu0 %v1075, 64
    %v1090 = vpop.permute.xlu0 %1089
    %v1092 = vmul.f32 %v1074, %v1090
    %1094 = vrot.lane.b32.xlu0 %v1092, 32
    %v1095 = vpop.permute.xlu0 %1094
    %v1097 = vadd.f32 %v1087, %v1095
    %v1098 = vtanh.pop %v1097
    %1100 = vrot.lane.b32.xlu0 %v1098, 64
    %v1101 = vpop.permute.xlu0 %1100
    %v1103 = vmul.f32 %v1074, %v1101
    %v1104 = vld [vmem:[#allocation5] sm:$0x3]
    %v1105 = vxor.u32 %v1067, 2147483648
    %v1106 = vmul.f32 %v1105, 1.442695
    %v1107 = vpow.pop %v1106
    %v1108 = vadd.f32 %v1107, 1.0
    %v1109 = vrcp.pop %v1108
    %v1110 = vmul.f32 1.0, %v1109
    %v1111 = vtanh.pop %v1067
    %v1114 = vunpack.c.l.s4 1983009808
    %v1115 = vunpack.c.0.s8 %v1114
    %v1116 = vlaneseq
    %v1117 = vshrl.u32 %v1116, 7
    %v1118 = vsub.s32 %v1115, %v1117
    %v1119 = vrot.slane %v1104, %v1118
    %1120 = vrot.lane.b32.xlu0 %v1119, 32
    %v1121 = vpop.permute.xlu0 %1120
    %v1123 = vmul.f32 %v1110, %v1121
    %1125 = vrot.lane.b32.xlu0 %v1111, 64
    %v1126 = vpop.permute.xlu0 %1125
    %v1128 = vmul.f32 %v1110, %v1126
    %1130 = vrot.lane.b32.xlu0 %v1128, 32
    %v1131 = vpop.permute.xlu0 %1130
    %v1133 = vadd.f32 %v1123, %v1131
    %v1134 = vtanh.pop %v1133
    %1136 = vrot.lane.b32.xlu0 %v1134, 64
    %v1137 = vpop.permute.xlu0 %1136
    %v1139 = vmul.f32 %v1110, %v1137
    %v1142 = vunpack.c.l.s4 1983009808
    %v1143 = vunpack.c.0.s8 %v1142
    %v1144 = vlaneseq
    %v1145 = vshrl.u32 %v1144, 7
    %v1146 = vsub.s32 %v1143, %v1145
    %v1147 = vrot.slane %v1103, %v1146
    %1148 = vrot.lane.b32.xlu0 %v1147, 32
    %v1149 = vpop.permute.xlu0 %1148
    %1151 = vst.msk [vmem:[#allocation2] sm:$0x3] %vm275, %v1149
    %v1154 = vunpack.c.l.s4 1983009808
    %v1155 = vunpack.c.0.s8 %v1154
    %v1156 = vlaneseq
    %v1157 = vshrl.u32 %v1156, 7
    %v1158 = vsub.s32 %v1155, %v1157
    %v1159 = vrot.slane %v1097, %v1158
    %1160 = vrot.lane.b32.xlu0 %v1159, 96
    %v1161 = vpop.permute.xlu0 %1160
    %1163 = vst.msk [vmem:[#allocation3] sm:$0x3] %vm275, %v1161
    %v1166 = vunpack.c.l.s4 1983009808
    %v1167 = vunpack.c.0.s8 %v1166
    %v1168 = vlaneseq
    %v1169 = vshrl.u32 %v1168, 7
    %v1170 = vsub.s32 %v1167, %v1169
    %v1171 = vrot.slane %v1139, %v1170
    %1172 = vrot.lane.b32.xlu0 %v1171, 32
    %v1173 = vpop.permute.xlu0 %1172
    %1175 = vst.msk [vmem:[#allocation4] sm:$0x3] %vm275, %v1173
    %v1178 = vunpack.c.l.s4 1983009808
    %v1179 = vunpack.c.0.s8 %v1178
    %v1180 = vlaneseq
    %v1181 = vshrl.u32 %v1180, 7
    %v1182 = vsub.s32 %v1179, %v1181
    %v1183 = vrot.slane %v1133, %v1182
    %1184 = vrot.lane.b32.xlu0 %v1183, 96
    %v1185 = vpop.permute.xlu0 %1184
    %1187 = vst.msk [vmem:[#allocation5] sm:$0x3] %vm275, %v1185
    %v1188 = vpack.c.bf16 %v1103, %v1103
    %v1191 = vunpack.c.l.s4 1966171168
    %v1192 = vunpack.c.0.s8 %v1191
    %v1193 = vlaneseq
    %v1194 = vshrl.u32 %v1193, 7
    %v1195 = vsub.s32 %v1192, %v1194
    %v1196 = vrot.slane %v1188, %v1195
    %v1198 = vunpack.c.l.s4 1966171168
    %v1199 = vunpack.c.0.s8 %v1198
    %v1200 = vlaneseq
    %v1201 = vshrl.u32 %v1200, 7
    %v1202 = vsub.s32 %v1199, %v1201
    %v1203 = vrot.slane %v1196, %v1202
    %1204 = vrot.lane.b32.xlu0 %v1203, 32
    %v1205 = vpop.permute.xlu0 %1204
    %s1207 = scalar_lea.vmem %s4, 3
    %1208 = vst.msk [vmem:[%s1207] sm:$0x1] %vm332, %v1205
    %v1209 = vpack.c.bf16 %v1139, %v1139
    %v1212 = vunpack.c.l.s4 1966171168
    %v1213 = vunpack.c.0.s8 %v1212
    %v1214 = vlaneseq
    %v1215 = vshrl.u32 %v1214, 7
    %v1216 = vsub.s32 %v1213, %v1215
    %v1217 = vrot.slane %v1209, %v1216
    %v1219 = vunpack.c.l.s4 1966171168
    %v1220 = vunpack.c.0.s8 %v1219
    %v1221 = vlaneseq
    %v1222 = vshrl.u32 %v1221, 7
    %v1223 = vsub.s32 %v1220, %v1222
    %v1224 = vrot.slane %v1217, %v1223
    %1225 = vrot.lane.b32.xlu0 %v1224, 32
    %v1226 = vpop.permute.xlu0 %1225
    %1228 = vst.msk [vmem:[%s49] sm:$0x1] %vm332, %v1226
    %v1229 = vld [vmem:[#allocation2] sm:$0x3]
    %1230 = vst.msk [vmem:[#allocation6] sm:$0x3] %vm275, %v1229
    %v1231 = vld [vmem:[#allocation4] sm:$0x3]
    %s1232 = scalar_lea.vmem [#allocation6], 2
    %1233 = vst.msk [vmem:[%s1232] sm:$0x3] %vm275, %v1231
    %s1234 = ssub.s32 0, 0
    %s1235 = smul.u32 4, %s1234
    %p1236 = scmp.lt.s32.totalorder %s1235, 3
    %s1237 = scalar_select %p1236, %s1235, 3
    %s1238 = scalar_lea.vmem %s5, %s1237
    // Predicated region
    $region22: #{encoder_forward.18} parent=1 // pred_check
      _
    $region23: #{encoder_forward.18} parent=1 // pred_check_branch
      %1240 = sbr.rel (0) target = $region25
    $region24: #{encoder_forward.18} parent=1 // pred_region
      _
    $region25: #{encoder_forward.18} parent=1 // pred_fallthru
      _
    // Predicated region
    $region26: #{encoder_forward.18} parent=1 // pred_check
      _
    $region27: #{encoder_forward.18} parent=1 // pred_check_branch
      %1242 = sbr.rel (0) target = $region29
    $region28: #{encoder_forward.18} parent=1 // pred_region
      %s1243 = ssub.s32 0, 0
      %s1244 = smul.u32 4, %s1243
    $region29: #{encoder_forward.18} parent=1 // pred_fallthru
      _
    // Predicated region
    $region30: #{encoder_forward.18} parent=1 // pred_check
      _
    $region31: #{encoder_forward.18} parent=1 // pred_check_branch
      %1246 = sbr.rel (0) target = $region33
    $region32: #{encoder_forward.18} parent=1 // pred_region
      %s1248 = ssub.s32 64, 64
      %1249 = vsyncadd [#allocation7], %s1248
      %s1250 = sshll.u32 [#allocation6], 4
      %s1251 = int_to_ptr.vmem [resolvable:$true] %s1250
      %1256 = dma.vmem_to_hbm [thread:$0]  %s1251, 64, %s6, [#allocation7], 32, 32, 2
    $region33: #{encoder_forward.18} parent=1 // pred_fallthru
      _
    // Predicated region
    $region34: #{encoder_forward.18} parent=1 // pred_check
      _
    $region35: #{encoder_forward.18} parent=1 // pred_check_branch
      %1258 = sbr.rel (0) target = $region37
    $region36: #{encoder_forward.18} parent=1 // pred_region
      _
    $region37: #{encoder_forward.18} parent=1 // pred_fallthru
      _
    // Predicated region
    $region38: #{encoder_forward.18} parent=1 // pred_check
      _
    $region39: #{encoder_forward.18} parent=1 // pred_check_branch
      %1260 = sbr.rel (0) target = $region41
    $region40: #{encoder_forward.18} parent=1 // pred_region
      %s1261 = ssub.s32 0, 0
      %s1262 = smul.u32 4, %s1261
      %p1263 = scmp.lt.s32.totalorder %s1262, 3
      %s1264 = scalar_select %p1263, %s1262, 3
      %s1265 = scalar_lea.vmem %s5, %s1264
    $region41: #{encoder_forward.18} parent=1 // pred_fallthru
      _
    // Predicated region
    $region42: #{encoder_forward.18} parent=1 // pred_check
      _
    $region43: #{encoder_forward.18} parent=1 // pred_check_branch
      %1267 = sbr.rel (0) target = $region45
    $region44: #{encoder_forward.18} parent=1 // pred_region
      %1268 = dma.done [#allocation7], 64
    $region45: #{encoder_forward.18} parent=1 // pred_fallthru
      _
    %1269 = vsyncpa [#allocation7], 1

// kernel: encoder_forward.21
$region0: #{encoder_forward.21}
  #allocation0 [shape = 'u32[]', space=smem, size = 0x4, offset = 0x4, fixed_abs, tag = 'smem constant byte address 0x4 - core index']
  #allocation1 [shape = 'u32[144,128]{1,0:T(1,128)}', space=vmem, size = 0x12000, scoped, tag = 'internal scratch']
  #allocation2 [shape = 'f32[2,32]{1,0:T(2,128)}', space=vmem, size = 0x400, scoped, tag = 'scratch operand']
  #allocation3 [shape = 'f32[2,32]{1,0:T(2,128)}', space=vmem, size = 0x400, scoped, tag = 'scratch operand']
  #allocation4 [shape = 'f32[2,32]{1,0:T(2,128)}', space=vmem, size = 0x400, scoped, tag = 'scratch operand']
  #allocation5 [shape = 'f32[2,32]{1,0:T(2,128)}', space=vmem, size = 0x400, scoped, tag = 'scratch operand']
  %s0 = inlined_call_operand.vmem [shape: bf16[4,2,128], index: 0, kind: input, shape index: {}]
  %s1 = inlined_call_operand.vmem [shape: bf16[4,2,128], index: 1, kind: input, shape index: {}]
  %s2 = inlined_call_operand.vmem [shape: bf16[32,128], index: 2, kind: input, shape index: {}]
  %s3 = inlined_call_operand.vmem [shape: bf16[32,128], index: 3, kind: input, shape index: {}]
  %s4 = inlined_call_operand.hbm [shape: bf16[4,2,32], index: 4, kind: output, shape index: {0}]
  %s5 = inlined_call_operand.hbm [shape: bf16[4,2,32], index: 5, kind: output, shape index: {1}]
  %s6 = inlined_call_operand.vmem [shape: f32[2,2,32], index: 6, kind: output, shape index: {2}]
  %7 = xla_tuple %s4, %s5, %s6
  %s8 = sld [smem:[#allocation0]]
  $region46: #{encoder_forward.21} parent=0
    _
  %s10 = ssub.s32 1, %s8
  %s11 = scalar_select 0, %s10, %s8
  $region1: #{encoder_forward.21} parent=0
    #allocation6 [shape = 'u8[2048]{0}', space=vmem, size = 0x800, scoped, tag = 'output window, operand 0, single buffered']
    #allocation7 [shape = 's32[1]{0}', space=sflag, size = 0x4, scoped, tag = 'scoped memory for encoder_forward.21']
    #allocation8 [shape = 'u8[2048]{0}', space=vmem, size = 0x800, scoped, tag = 'output window, operand 1, single buffered']
    #allocation9 [shape = 's32[1]{0}', space=sflag, size = 0x4, scoped, tag = 'scoped memory for encoder_forward.21']
    %12 = vsyncpa [#allocation7], 0
    %13 = vsyncpa [#allocation9], 0
    // Predicated region
    $region2: #{encoder_forward.21} parent=1 // pred_check
      _
    $region3: #{encoder_forward.21} parent=1 // pred_check_branch
      %15 = sbr.rel (0) target = $region5
    $region4: #{encoder_forward.21} parent=1 // pred_region
      _
    $region5: #{encoder_forward.21} parent=1 // pred_fallthru
      _
    // Predicated region
    $region6: #{encoder_forward.21} parent=1 // pred_check
      _
    $region7: #{encoder_forward.21} parent=1 // pred_check_branch
      %17 = sbr.rel (0) target = $region9
    $region8: #{encoder_forward.21} parent=1 // pred_region
      %s18 = ssub.s32 0, 0
      %s19 = smul.u32 4, %s18
      %p20 = scmp.lt.s32.totalorder %s19, 3
      %s21 = scalar_select %p20, %s19, 3
      %s22 = scalar_lea.vmem %s1, %s21
      %s23 = ssub.s32 0, 0
      %s24 = smul.u32 4, %s23
    $region9: #{encoder_forward.21} parent=1 // pred_fallthru
      _
    // Predicated region
    $region10: #{encoder_forward.21} parent=1 // pred_check
      _
    $region11: #{encoder_forward.21} parent=1 // pred_check_branch
      %26 = sbr.rel (0) target = $region13
    $region12: #{encoder_forward.21} parent=1 // pred_region
      _
    $region13: #{encoder_forward.21} parent=1 // pred_fallthru
      _
    // Predicated region
    $region14: #{encoder_forward.21} parent=1 // pred_check
      _
    $region15: #{encoder_forward.21} parent=1 // pred_check_branch
      %28 = sbr.rel (0) target = $region17
    $region16: #{encoder_forward.21} parent=1 // pred_region
      _
    $region17: #{encoder_forward.21} parent=1 // pred_fallthru
      _
    %s29 = ssub.s32 0, 0
    %s30 = smul.u32 4, %s29
    %p31 = scmp.lt.s32.totalorder %s30, 3
    %s32 = scalar_select %p31, %s30, 3
    %s33 = scalar_lea.vmem %s1, %s32
    %s34 = ssub.s32 0, 0
    %s35 = smul.u32 4, %s34
    %p36 = scmp.lt.s32.totalorder %s35, 3
    %s37 = scalar_select %p36, %s35, 3
    %s38 = scalar_lea.vmem %s1, %s37
    %s39 = ssub.s32 0, 0
    %s40 = smul.u32 4, %s39
    %s41 = ssub.s32 0, 0
    %s42 = smul.u32 4, %s41
    %p44 = scmp.eq.s32.totalorder 0, 0
    // Predicated region
    $region18: #{encoder_forward.21} parent=1 // pred_check
      %p45 = pneg %p44
    $region19: #{encoder_forward.21} parent=1 // pred_check_branch
      %47 = sbr.rel (%p45) target = $region21
    $region20: #{encoder_forward.21} parent=1 // pred_region
      %vm48 = vcmask 254976
      %49 = vst.msk [vmem:[#allocation2] sm:$0x3] %vm48, 0.0
      %50 = vst.msk [vmem:[#allocation3] sm:$0x3] %vm48, 0.0
      %51 = vst.msk [vmem:[#allocation4] sm:$0x3] %vm48, 0.0
      %52 = vst.msk [vmem:[#allocation5] sm:$0x3] %vm48, 0.0
    $region21: #{encoder_forward.21} parent=1 // pred_fallthru
      _
    %v53 = vld [vmem:[%s0] sm:$0x1]
    %v54 = vunpack.c.l.bf16 %v53
    %v55 = vld [vmem:[#allocation2] sm:$0x3]
    %v56 = vpack.c.bf16 %v55, %v55
    %v57 = vld [vmem:[%s2] sm:$0xf]
    %v58 = vld [vmem:[%s2 + $0x4] sm:$0xf]
    %v59 = vld [vmem:[%s2 + $0x8] sm:$0xf]
    %v60 = vld [vmem:[%s2 + $0xc] sm:$0xf]
    %v65 = vunpack.c.l.b16 %v57
    %v66 = vunpack.c.l.b16 %v58
    %v67 = vunpack.c.l.b16 %v59
    %v68 = vunpack.c.l.b16 %v60
    %v69 = vpack.c.b16 %v66, %v65
    %v70 = vpack.c.b16 %v68, %v67
    %vm73 = vcmask 261120
    %v75 = vsel %vm73, %v56, 0
    %77 = vmatprep.subr.bf16.mxu0 0
    %78 = vmatpush1.bf16.msra.mxu0 %v69
    %79 = vmatprep.subr.bf16.mxu0 0
    %80 = vmatpush1.bf16.msra.mxu0 %v70
    %81 = vmatprep.subr.bf16.mxu0 0
    %82 = vmatpush1.bf16.msra.mxu0 0
    %83 = vmatprep.subr.bf16.mxu0 0
    %84 = vmatpush1.bf16.msra.mxu0 0
    %85 = vmatprep.subr.bf16.mxu0 0
    %86 = vmatpush1.bf16.msra.mxu0 0
    %87 = vmatprep.subr.bf16.mxu0 0
    %88 = vmatpush1.bf16.msra.mxu0 0
    %89 = vmatprep.subr.bf16.mxu0 0
    %90 = vmatpush1.bf16.msra.mxu0 0
    %91 = vmatprep.subr.bf16.mxu0 0
    %92 = vmatpush1.bf16.msra.mxu0 0
    %93 = vmatprep.subr.bf16.mxu0 0
    %94 = vmatpush1.bf16.msra.mxu0 0
    %95 = vmatprep.subr.bf16.mxu0 0
    %96 = vmatpush1.bf16.msra.mxu0 0
    %97 = vmatprep.subr.bf16.mxu0 0
    %98 = vmatpush1.bf16.msra.mxu0 0
    %99 = vmatprep.subr.bf16.mxu0 0
    %100 = vmatpush1.bf16.msra.mxu0 0
    %101 = vmatprep.subr.bf16.mxu0 0
    %102 = vmatpush1.bf16.msra.mxu0 0
    %103 = vmatprep.subr.bf16.mxu0 0
    %104 = vmatpush1.bf16.msra.mxu0 0
    %105 = vmatprep.subr.bf16.mxu0 0
    %106 = vmatpush1.bf16.msra.mxu0 0
    %107 = vmatprep.subr.bf16.mxu0 0
    %108 = vmatpush1.bf16.msra.mxu0 0
    %109 = vmatprep.mubr.bf16.mxu0 0
    %110 = vmatmul.mubr.bf16.gmra.mrb[0].mxu0 %v75
    %v111 = vpop.f32.mrb[0].mxu0
    %v112 = vadd.f32 0.0, %v111
    %v113 = vpop.f32.mrb[0].mxu0
    %v114 = vpop.f32.mrb[0].mxu0
    %v115 = vpop.f32.mrb[0].mxu0
    %116 = vdwg.mxu0
    %v117 = vadd.f32 %v54, %v112
    %s118 = scalar_lea.vmem %s38, 3
    %v119 = vld [vmem:[%s118] sm:$0x1]
    %v120 = vunpack.c.l.bf16 %v119
    %v121 = vld [vmem:[#allocation4] sm:$0x3]
    %v122 = vpack.c.bf16 %v121, %v121
    %v123 = vld [vmem:[%s3] sm:$0xf]
    %v124 = vld [vmem:[%s3 + $0x4] sm:$0xf]
    %v125 = vld [vmem:[%s3 + $0x8] sm:$0xf]
    %v126 = vld [vmem:[%s3 + $0xc] sm:$0xf]
    %v131 = vunpack.c.l.b16 %v123
    %v132 = vunpack.c.l.b16 %v124
    %v133 = vunpack.c.l.b16 %v125
    %v134 = vunpack.c.l.b16 %v126
    %v135 = vpack.c.b16 %v132, %v131
    %v136 = vpack.c.b16 %v134, %v133
    %v140 = vsel %vm73, %v122, 0
    %142 = vmatprep.subr.bf16.mxu0 0
    %143 = vmatpush1.bf16.msra.mxu0 %v135
    %144 = vmatprep.subr.bf16.mxu0 0
    %145 = vmatpush1.bf16.msra.mxu0 %v136
    %146 = vmatprep.subr.bf16.mxu0 0
    %147 = vmatpush1.bf16.msra.mxu0 0
    %148 = vmatprep.subr.bf16.mxu0 0
    %149 = vmatpush1.bf16.msra.mxu0 0
    %150 = vmatprep.subr.bf16.mxu0 0
    %151 = vmatpush1.bf16.msra.mxu0 0
    %152 = vmatprep.subr.bf16.mxu0 0
    %153 = vmatpush1.bf16.msra.mxu0 0
    %154 = vmatprep.subr.bf16.mxu0 0
    %155 = vmatpush1.bf16.msra.mxu0 0
    %156 = vmatprep.subr.bf16.mxu0 0
    %157 = vmatpush1.bf16.msra.mxu0 0
    %158 = vmatprep.subr.bf16.mxu0 0
    %159 = vmatpush1.bf16.msra.mxu0 0
    %160 = vmatprep.subr.bf16.mxu0 0
    %161 = vmatpush1.bf16.msra.mxu0 0
    %162 = vmatprep.subr.bf16.mxu0 0
    %163 = vmatpush1.bf16.msra.mxu0 0
    %164 = vmatprep.subr.bf16.mxu0 0
    %165 = vmatpush1.bf16.msra.mxu0 0
    %166 = vmatprep.subr.bf16.mxu0 0
    %167 = vmatpush1.bf16.msra.mxu0 0
    %168 = vmatprep.subr.bf16.mxu0 0
    %169 = vmatpush1.bf16.msra.mxu0 0
    %170 = vmatprep.subr.bf16.mxu0 0
    %171 = vmatpush1.bf16.msra.mxu0 0
    %172 = vmatprep.subr.bf16.mxu0 0
    %173 = vmatpush1.bf16.msra.mxu0 0
    %174 = vmatprep.mubr.bf16.mxu0 0
    %175 = vmatmul.mubr.bf16.gmra.mrb[0].mxu0 %v140
    %v176 = vpop.f32.mrb[0].mxu0
    %v177 = vadd.f32 0.0, %v176
    %v178 = vpop.f32.mrb[0].mxu0
    %v179 = vpop.f32.mrb[0].mxu0
    %v180 = vpop.f32.mrb[0].mxu0
    %181 = vdwg.mxu0
    %v182 = vadd.f32 %v120, %v177
    %v183 = vld [vmem:[#allocation3] sm:$0x3]
    %v184 = vxor.u32 %v117, 2147483648
    %v185 = vmul.f32 %v184, 1.442695
    %v186 = vpow.pop %v185
    %v187 = vadd.f32 %v186, 1.0
    %v188 = vrcp.pop %v187
    %v189 = vmul.f32 1.0, %v188
    %v190 = vtanh.pop %v117
    %v193 = vunpack.c.l.s4 1983009808
    %v194 = vunpack.c.0.s8 %v193
    %v195 = vlaneseq
    %v196 = vshrl.u32 %v195, 7
    %v197 = vsub.s32 %v194, %v196
    %v198 = vrot.slane %v183, %v197
    %199 = vrot.lane.b32.xlu0 %v198, 32
    %v200 = vpop.permute.xlu0 %199
    %v202 = vmul.f32 %v189, %v200
    %204 = vrot.lane.b32.xlu0 %v190, 64
    %v205 = vpop.permute.xlu0 %204
    %v207 = vmul.f32 %v189, %v205
    %209 = vrot.lane.b32.xlu0 %v207, 32
    %v210 = vpop.permute.xlu0 %209
    %v212 = vadd.f32 %v202, %v210
    %v213 = vtanh.pop %v212
    %215 = vrot.lane.b32.xlu0 %v213, 64
    %v216 = vpop.permute.xlu0 %215
    %v218 = vmul.f32 %v189, %v216
    %v219 = vld [vmem:[#allocation5] sm:$0x3]
    %v220 = vxor.u32 %v182, 2147483648
    %v221 = vmul.f32 %v220, 1.442695
    %v222 = vpow.pop %v221
    %v223 = vadd.f32 %v222, 1.0
    %v224 = vrcp.pop %v223
    %v225 = vmul.f32 1.0, %v224
    %v226 = vtanh.pop %v182
    %v229 = vunpack.c.l.s4 1983009808
    %v230 = vunpack.c.0.s8 %v229
    %v231 = vlaneseq
    %v232 = vshrl.u32 %v231, 7
    %v233 = vsub.s32 %v230, %v232
    %v234 = vrot.slane %v219, %v233
    %235 = vrot.lane.b32.xlu0 %v234, 32
    %v236 = vpop.permute.xlu0 %235
    %v238 = vmul.f32 %v225, %v236
    %240 = vrot.lane.b32.xlu0 %v226, 64
    %v241 = vpop.permute.xlu0 %240
    %v243 = vmul.f32 %v225, %v241
    %245 = vrot.lane.b32.xlu0 %v243, 32
    %v246 = vpop.permute.xlu0 %245
    %v248 = vadd.f32 %v238, %v246
    %v249 = vtanh.pop %v248
    %251 = vrot.lane.b32.xlu0 %v249, 64
    %v252 = vpop.permute.xlu0 %251
    %v254 = vmul.f32 %v225, %v252
    %v257 = vunpack.c.l.s4 1983009808
    %v258 = vunpack.c.0.s8 %v257
    %v259 = vlaneseq
    %v260 = vshrl.u32 %v259, 7
    %v261 = vsub.s32 %v258, %v260
    %v262 = vrot.slane %v218, %v261
    %263 = vrot.lane.b32.xlu0 %v262, 32
    %v264 = vpop.permute.xlu0 %263
    %vm266 = vcmask 254976
    %267 = vst.msk [vmem:[#allocation2] sm:$0x3] %vm266, %v264
    %v270 = vunpack.c.l.s4 1983009808
    %v271 = vunpack.c.0.s8 %v270
    %v272 = vlaneseq
    %v273 = vshrl.u32 %v272, 7
    %v274 = vsub.s32 %v271, %v273
    %v275 = vrot.slane %v212, %v274
    %276 = vrot.lane.b32.xlu0 %v275, 96
    %v277 = vpop.permute.xlu0 %276
    %279 = vst.msk [vmem:[#allocation3] sm:$0x3] %vm266, %v277
    %v282 = vunpack.c.l.s4 1983009808
    %v283 = vunpack.c.0.s8 %v282
    %v284 = vlaneseq
    %v285 = vshrl.u32 %v284, 7
    %v286 = vsub.s32 %v283, %v285
    %v287 = vrot.slane %v254, %v286
    %288 = vrot.lane.b32.xlu0 %v287, 32
    %v289 = vpop.permute.xlu0 %288
    %291 = vst.msk [vmem:[#allocation4] sm:$0x3] %vm266, %v289
    %v294 = vunpack.c.l.s4 1983009808
    %v295 = vunpack.c.0.s8 %v294
    %v296 = vlaneseq
    %v297 = vshrl.u32 %v296, 7
    %v298 = vsub.s32 %v295, %v297
    %v299 = vrot.slane %v248, %v298
    %300 = vrot.lane.b32.xlu0 %v299, 96
    %v301 = vpop.permute.xlu0 %300
    %303 = vst.msk [vmem:[#allocation5] sm:$0x3] %vm266, %v301
    %v304 = vpack.c.bf16 %v218, %v218
    %v307 = vunpack.c.l.s4 1966171168
    %v308 = vunpack.c.0.s8 %v307
    %v309 = vlaneseq
    %v310 = vshrl.u32 %v309, 7
    %v311 = vsub.s32 %v308, %v310
    %v312 = vrot.slane %v304, %v311
    %v314 = vunpack.c.l.s4 1966171168
    %v315 = vunpack.c.0.s8 %v314
    %v316 = vlaneseq
    %v317 = vshrl.u32 %v316, 7
    %v318 = vsub.s32 %v315, %v317
    %v319 = vrot.slane %v312, %v318
    %320 = vrot.lane.b32.xlu0 %v319, 32
    %v321 = vpop.permute.xlu0 %320
    %vm323 = vcmask 253952
    %324 = vst.msk [vmem:[#allocation6] sm:$0x1] %vm323, %v321
    %v325 = vpack.c.bf16 %v254, %v254
    %v328 = vunpack.c.l.s4 1966171168
    %v329 = vunpack.c.0.s8 %v328
    %v330 = vlaneseq
    %v331 = vshrl.u32 %v330, 7
    %v332 = vsub.s32 %v329, %v331
    %v333 = vrot.slane %v325, %v332
    %v335 = vunpack.c.l.s4 1966171168
    %v336 = vunpack.c.0.s8 %v335
    %v337 = vlaneseq
    %v338 = vshrl.u32 %v337, 7
    %v339 = vsub.s32 %v336, %v338
    %v340 = vrot.slane %v333, %v339
    %341 = vrot.lane.b32.xlu0 %v340, 32
    %v342 = vpop.permute.xlu0 %341
    %s344 = scalar_lea.vmem [#allocation8], 3
    %345 = vst.msk [vmem:[%s344] sm:$0x1] %vm323, %v342
    %s346 = scalar_lea.vmem %s0, 1
    %v347 = vld [vmem:[%s346] sm:$0x1]
    %v348 = vunpack.c.l.bf16 %v347
    %v349 = vld [vmem:[#allocation2] sm:$0x3]
    %v350 = vpack.c.bf16 %v349, %v349
    %v351 = vld [vmem:[%s2] sm:$0xf]
    %v352 = vld [vmem:[%s2 + $0x4] sm:$0xf]
    %v353 = vld [vmem:[%s2 + $0x8] sm:$0xf]
    %v354 = vld [vmem:[%s2 + $0xc] sm:$0xf]
    %v359 = vunpack.c.l.b16 %v351
    %v360 = vunpack.c.l.b16 %v352
    %v361 = vunpack.c.l.b16 %v353
    %v362 = vunpack.c.l.b16 %v354
    %v363 = vpack.c.b16 %v360, %v359
    %v364 = vpack.c.b16 %v362, %v361
    %v368 = vsel %vm73, %v350, 0
    %370 = vmatprep.subr.bf16.mxu0 0
    %371 = vmatpush1.bf16.msra.mxu0 %v363
    %372 = vmatprep.subr.bf16.mxu0 0
    %373 = vmatpush1.bf16.msra.mxu0 %v364
    %374 = vmatprep.subr.bf16.mxu0 0
    %375 = vmatpush1.bf16.msra.mxu0 0
    %376 = vmatprep.subr.bf16.mxu0 0
    %377 = vmatpush1.bf16.msra.mxu0 0
    %378 = vmatprep.subr.bf16.mxu0 0
    %379 = vmatpush1.bf16.msra.mxu0 0
    %380 = vmatprep.subr.bf16.mxu0 0
    %381 = vmatpush1.bf16.msra.mxu0 0
    %382 = vmatprep.subr.bf16.mxu0 0
    %383 = vmatpush1.bf16.msra.mxu0 0
    %384 = vmatprep.subr.bf16.mxu0 0
    %385 = vmatpush1.bf16.msra.mxu0 0
    %386 = vmatprep.subr.bf16.mxu0 0
    %387 = vmatpush1.bf16.msra.mxu0 0
    %388 = vmatprep.subr.bf16.mxu0 0
    %389 = vmatpush1.bf16.msra.mxu0 0
    %390 = vmatprep.subr.bf16.mxu0 0
    %391 = vmatpush1.bf16.msra.mxu0 0
    %392 = vmatprep.subr.bf16.mxu0 0
    %393 = vmatpush1.bf16.msra.mxu0 0
    %394 = vmatprep.subr.bf16.mxu0 0
    %395 = vmatpush1.bf16.msra.mxu0 0
    %396 = vmatprep.subr.bf16.mxu0 0
    %397 = vmatpush1.bf16.msra.mxu0 0
    %398 = vmatprep.subr.bf16.mxu0 0
    %399 = vmatpush1.bf16.msra.mxu0 0
    %400 = vmatprep.subr.bf16.mxu0 0
    %401 = vmatpush1.bf16.msra.mxu0 0
    %402 = vmatprep.mubr.bf16.mxu0 0
    %403 = vmatmul.mubr.bf16.gmra.mrb[0].mxu0 %v368
    %v404 = vpop.f32.mrb[0].mxu0
    %v405 = vadd.f32 0.0, %v404
    %v406 = vpop.f32.mrb[0].mxu0
    %v407 = vpop.f32.mrb[0].mxu0
    %v408 = vpop.f32.mrb[0].mxu0
    %409 = vdwg.mxu0
    %v410 = vadd.f32 %v348, %v405
    %s411 = scalar_lea.vmem %s38, 2
    %v412 = vld [vmem:[%s411] sm:$0x1]
    %v413 = vunpack.c.l.bf16 %v412
    %v414 = vld [vmem:[#allocation4] sm:$0x3]
    %v415 = vpack.c.bf16 %v414, %v414
    %v416 = vld [vmem:[%s3] sm:$0xf]
    %v417 = vld [vmem:[%s3 + $0x4] sm:$0xf]
    %v418 = vld [vmem:[%s3 + $0x8] sm:$0xf]
    %v419 = vld [vmem:[%s3 + $0xc] sm:$0xf]
    %v424 = vunpack.c.l.b16 %v416
    %v425 = vunpack.c.l.b16 %v417
    %v426 = vunpack.c.l.b16 %v418
    %v427 = vunpack.c.l.b16 %v419
    %v428 = vpack.c.b16 %v425, %v424
    %v429 = vpack.c.b16 %v427, %v426
    %v433 = vsel %vm73, %v415, 0
    %435 = vmatprep.subr.bf16.mxu0 0
    %436 = vmatpush1.bf16.msra.mxu0 %v428
    %437 = vmatprep.subr.bf16.mxu0 0
    %438 = vmatpush1.bf16.msra.mxu0 %v429
    %439 = vmatprep.subr.bf16.mxu0 0
    %440 = vmatpush1.bf16.msra.mxu0 0
    %441 = vmatprep.subr.bf16.mxu0 0
    %442 = vmatpush1.bf16.msra.mxu0 0
    %443 = vmatprep.subr.bf16.mxu0 0
    %444 = vmatpush1.bf16.msra.mxu0 0
    %445 = vmatprep.subr.bf16.mxu0 0
    %446 = vmatpush1.bf16.msra.mxu0 0
    %447 = vmatprep.subr.bf16.mxu0 0
    %448 = vmatpush1.bf16.msra.mxu0 0
    %449 = vmatprep.subr.bf16.mxu0 0
    %450 = vmatpush1.bf16.msra.mxu0 0
    %451 = vmatprep.subr.bf16.mxu0 0
    %452 = vmatpush1.bf16.msra.mxu0 0
    %453 = vmatprep.subr.bf16.mxu0 0
    %454 = vmatpush1.bf16.msra.mxu0 0
    %455 = vmatprep.subr.bf16.mxu0 0
    %456 = vmatpush1.bf16.msra.mxu0 0
    %457 = vmatprep.subr.bf16.mxu0 0
    %458 = vmatpush1.bf16.msra.mxu0 0
    %459 = vmatprep.subr.bf16.mxu0 0
    %460 = vmatpush1.bf16.msra.mxu0 0
    %461 = vmatprep.subr.bf16.mxu0 0
    %462 = vmatpush1.bf16.msra.mxu0 0
    %463 = vmatprep.subr.bf16.mxu0 0
    %464 = vmatpush1.bf16.msra.mxu0 0
    %465 = vmatprep.subr.bf16.mxu0 0
    %466 = vmatpush1.bf16.msra.mxu0 0
    %467 = vmatprep.mubr.bf16.mxu0 0
    %468 = vmatmul.mubr.bf16.gmra.mrb[0].mxu0 %v433
    %v469 = vpop.f32.mrb[0].mxu0
    %v470 = vadd.f32 0.0, %v469
    %v471 = vpop.f32.mrb[0].mxu0
    %v472 = vpop.f32.mrb[0].mxu0
    %v473 = vpop.f32.mrb[0].mxu0
    %474 = vdwg.mxu0
    %v475 = vadd.f32 %v413, %v470
    %v476 = vld [vmem:[#allocation3] sm:$0x3]
    %v477 = vxor.u32 %v410, 2147483648
    %v478 = vmul.f32 %v477, 1.442695
    %v479 = vpow.pop %v478
    %v480 = vadd.f32 %v479, 1.0
    %v481 = vrcp.pop %v480
    %v482 = vmul.f32 1.0, %v481
    %v483 = vtanh.pop %v410
    %v486 = vunpack.c.l.s4 1983009808
    %v487 = vunpack.c.0.s8 %v486
    %v488 = vlaneseq
    %v489 = vshrl.u32 %v488, 7
    %v490 = vsub.s32 %v487, %v489
    %v491 = vrot.slane %v476, %v490
    %492 = vrot.lane.b32.xlu0 %v491, 32
    %v493 = vpop.permute.xlu0 %492
    %v495 = vmul.f32 %v482, %v493
    %497 = vrot.lane.b32.xlu0 %v483, 64
    %v498 = vpop.permute.xlu0 %497
    %v500 = vmul.f32 %v482, %v498
    %502 = vrot.lane.b32.xlu0 %v500, 32
    %v503 = vpop.permute.xlu0 %502
    %v505 = vadd.f32 %v495, %v503
    %v506 = vtanh.pop %v505
    %508 = vrot.lane.b32.xlu0 %v506, 64
    %v509 = vpop.permute.xlu0 %508
    %v511 = vmul.f32 %v482, %v509
    %v512 = vld [vmem:[#allocation5] sm:$0x3]
    %v513 = vxor.u32 %v475, 2147483648
    %v514 = vmul.f32 %v513, 1.442695
    %v515 = vpow.pop %v514
    %v516 = vadd.f32 %v515, 1.0
    %v517 = vrcp.pop %v516
    %v518 = vmul.f32 1.0, %v517
    %v519 = vtanh.pop %v475
    %v522 = vunpack.c.l.s4 1983009808
    %v523 = vunpack.c.0.s8 %v522
    %v524 = vlaneseq
    %v525 = vshrl.u32 %v524, 7
    %v526 = vsub.s32 %v523, %v525
    %v527 = vrot.slane %v512, %v526
    %528 = vrot.lane.b32.xlu0 %v527, 32
    %v529 = vpop.permute.xlu0 %528
    %v531 = vmul.f32 %v518, %v529
    %533 = vrot.lane.b32.xlu0 %v519, 64
    %v534 = vpop.permute.xlu0 %533
    %v536 = vmul.f32 %v518, %v534
    %538 = vrot.lane.b32.xlu0 %v536, 32
    %v539 = vpop.permute.xlu0 %538
    %v541 = vadd.f32 %v531, %v539
    %v542 = vtanh.pop %v541
    %544 = vrot.lane.b32.xlu0 %v542, 64
    %v545 = vpop.permute.xlu0 %544
    %v547 = vmul.f32 %v518, %v545
    %v550 = vunpack.c.l.s4 1983009808
    %v551 = vunpack.c.0.s8 %v550
    %v552 = vlaneseq
    %v553 = vshrl.u32 %v552, 7
    %v554 = vsub.s32 %v551, %v553
    %v555 = vrot.slane %v511, %v554
    %556 = vrot.lane.b32.xlu0 %v555, 32
    %v557 = vpop.permute.xlu0 %556
    %559 = vst.msk [vmem:[#allocation2] sm:$0x3] %vm266, %v557
    %v562 = vunpack.c.l.s4 1983009808
    %v563 = vunpack.c.0.s8 %v562
    %v564 = vlaneseq
    %v565 = vshrl.u32 %v564, 7
    %v566 = vsub.s32 %v563, %v565
    %v567 = vrot.slane %v505, %v566
    %568 = vrot.lane.b32.xlu0 %v567, 96
    %v569 = vpop.permute.xlu0 %568
    %571 = vst.msk [vmem:[#allocation3] sm:$0x3] %vm266, %v569
    %v574 = vunpack.c.l.s4 1983009808
    %v575 = vunpack.c.0.s8 %v574
    %v576 = vlaneseq
    %v577 = vshrl.u32 %v576, 7
    %v578 = vsub.s32 %v575, %v577
    %v579 = vrot.slane %v547, %v578
    %580 = vrot.lane.b32.xlu0 %v579, 32
    %v581 = vpop.permute.xlu0 %580
    %583 = vst.msk [vmem:[#allocation4] sm:$0x3] %vm266, %v581
    %v586 = vunpack.c.l.s4 1983009808
    %v587 = vunpack.c.0.s8 %v586
    %v588 = vlaneseq
    %v589 = vshrl.u32 %v588, 7
    %v590 = vsub.s32 %v587, %v589
    %v591 = vrot.slane %v541, %v590
    %592 = vrot.lane.b32.xlu0 %v591, 96
    %v593 = vpop.permute.xlu0 %592
    %595 = vst.msk [vmem:[#allocation5] sm:$0x3] %vm266, %v593
    %v596 = vpack.c.bf16 %v511, %v511
    %v599 = vunpack.c.l.s4 1966171168
    %v600 = vunpack.c.0.s8 %v599
    %v601 = vlaneseq
    %v602 = vshrl.u32 %v601, 7
    %v603 = vsub.s32 %v600, %v602
    %v604 = vrot.slane %v596, %v603
    %v606 = vunpack.c.l.s4 1966171168
    %v607 = vunpack.c.0.s8 %v606
    %v608 = vlaneseq
    %v609 = vshrl.u32 %v608, 7
    %v610 = vsub.s32 %v607, %v609
    %v611 = vrot.slane %v604, %v610
    %612 = vrot.lane.b32.xlu0 %v611, 32
    %v613 = vpop.permute.xlu0 %612
    %s615 = scalar_lea.vmem [#allocation6], 1
    %616 = vst.msk [vmem:[%s615] sm:$0x1] %vm323, %v613
    %v617 = vpack.c.bf16 %v547, %v547
    %v620 = vunpack.c.l.s4 1966171168
    %v621 = vunpack.c.0.s8 %v620
    %v622 = vlaneseq
    %v623 = vshrl.u32 %v622, 7
    %v624 = vsub.s32 %v621, %v623
    %v625 = vrot.slane %v617, %v624
    %v627 = vunpack.c.l.s4 1966171168
    %v628 = vunpack.c.0.s8 %v627
    %v629 = vlaneseq
    %v630 = vshrl.u32 %v629, 7
    %v631 = vsub.s32 %v628, %v630
    %v632 = vrot.slane %v625, %v631
    %633 = vrot.lane.b32.xlu0 %v632, 32
    %v634 = vpop.permute.xlu0 %633
    %s636 = scalar_lea.vmem [#allocation8], 2
    %637 = vst.msk [vmem:[%s636] sm:$0x1] %vm323, %v634
    %s638 = scalar_lea.vmem %s0, 2
    %v639 = vld [vmem:[%s638] sm:$0x1]
    %v640 = vunpack.c.l.bf16 %v639
    %v641 = vld [vmem:[#allocation2] sm:$0x3]
    %v642 = vpack.c.bf16 %v641, %v641
    %v643 = vld [vmem:[%s2] sm:$0xf]
    %v644 = vld [vmem:[%s2 + $0x4] sm:$0xf]
    %v645 = vld [vmem:[%s2 + $0x8] sm:$0xf]
    %v646 = vld [vmem:[%s2 + $0xc] sm:$0xf]
    %v651 = vunpack.c.l.b16 %v643
    %v652 = vunpack.c.l.b16 %v644
    %v653 = vunpack.c.l.b16 %v645
    %v654 = vunpack.c.l.b16 %v646
    %v655 = vpack.c.b16 %v652, %v651
    %v656 = vpack.c.b16 %v654, %v653
    %v660 = vsel %vm73, %v642, 0
    %662 = vmatprep.subr.bf16.mxu0 0
    %663 = vmatpush1.bf16.msra.mxu0 %v655
    %664 = vmatprep.subr.bf16.mxu0 0
    %665 = vmatpush1.bf16.msra.mxu0 %v656
    %666 = vmatprep.subr.bf16.mxu0 0
    %667 = vmatpush1.bf16.msra.mxu0 0
    %668 = vmatprep.subr.bf16.mxu0 0
    %669 = vmatpush1.bf16.msra.mxu0 0
    %670 = vmatprep.subr.bf16.mxu0 0
    %671 = vmatpush1.bf16.msra.mxu0 0
    %672 = vmatprep.subr.bf16.mxu0 0
    %673 = vmatpush1.bf16.msra.mxu0 0
    %674 = vmatprep.subr.bf16.mxu0 0
    %675 = vmatpush1.bf16.msra.mxu0 0
    %676 = vmatprep.subr.bf16.mxu0 0
    %677 = vmatpush1.bf16.msra.mxu0 0
    %678 = vmatprep.subr.bf16.mxu0 0
    %679 = vmatpush1.bf16.msra.mxu0 0
    %680 = vmatprep.subr.bf16.mxu0 0
    %681 = vmatpush1.bf16.msra.mxu0 0
    %682 = vmatprep.subr.bf16.mxu0 0
    %683 = vmatpush1.bf16.msra.mxu0 0
    %684 = vmatprep.subr.bf16.mxu0 0
    %685 = vmatpush1.bf16.msra.mxu0 0
    %686 = vmatprep.subr.bf16.mxu0 0
    %687 = vmatpush1.bf16.msra.mxu0 0
    %688 = vmatprep.subr.bf16.mxu0 0
    %689 = vmatpush1.bf16.msra.mxu0 0
    %690 = vmatprep.subr.bf16.mxu0 0
    %691 = vmatpush1.bf16.msra.mxu0 0
    %692 = vmatprep.subr.bf16.mxu0 0
    %693 = vmatpush1.bf16.msra.mxu0 0
    %694 = vmatprep.mubr.bf16.mxu0 0
    %695 = vmatmul.mubr.bf16.gmra.mrb[0].mxu0 %v660
    %v696 = vpop.f32.mrb[0].mxu0
    %v697 = vadd.f32 0.0, %v696
    %v698 = vpop.f32.mrb[0].mxu0
    %v699 = vpop.f32.mrb[0].mxu0
    %v700 = vpop.f32.mrb[0].mxu0
    %701 = vdwg.mxu0
    %v702 = vadd.f32 %v640, %v697
    %s703 = scalar_lea.vmem %s38, 1
    %v704 = vld [vmem:[%s703] sm:$0x1]
    %v705 = vunpack.c.l.bf16 %v704
    %v706 = vld [vmem:[#allocation4] sm:$0x3]
    %v707 = vpack.c.bf16 %v706, %v706
    %v708 = vld [vmem:[%s3] sm:$0xf]
    %v709 = vld [vmem:[%s3 + $0x4] sm:$0xf]
    %v710 = vld [vmem:[%s3 + $0x8] sm:$0xf]
    %v711 = vld [vmem:[%s3 + $0xc] sm:$0xf]
    %v716 = vunpack.c.l.b16 %v708
    %v717 = vunpack.c.l.b16 %v709
    %v718 = vunpack.c.l.b16 %v710
    %v719 = vunpack.c.l.b16 %v711
    %v720 = vpack.c.b16 %v717, %v716
    %v721 = vpack.c.b16 %v719, %v718
    %v725 = vsel %vm73, %v707, 0
    %727 = vmatprep.subr.bf16.mxu0 0
    %728 = vmatpush1.bf16.msra.mxu0 %v720
    %729 = vmatprep.subr.bf16.mxu0 0
    %730 = vmatpush1.bf16.msra.mxu0 %v721
    %731 = vmatprep.subr.bf16.mxu0 0
    %732 = vmatpush1.bf16.msra.mxu0 0
    %733 = vmatprep.subr.bf16.mxu0 0
    %734 = vmatpush1.bf16.msra.mxu0 0
    %735 = vmatprep.subr.bf16.mxu0 0
    %736 = vmatpush1.bf16.msra.mxu0 0
    %737 = vmatprep.subr.bf16.mxu0 0
    %738 = vmatpush1.bf16.msra.mxu0 0
    %739 = vmatprep.subr.bf16.mxu0 0
    %740 = vmatpush1.bf16.msra.mxu0 0
    %741 = vmatprep.subr.bf16.mxu0 0
    %742 = vmatpush1.bf16.msra.mxu0 0
    %743 = vmatprep.subr.bf16.mxu0 0
    %744 = vmatpush1.bf16.msra.mxu0 0
    %745 = vmatprep.subr.bf16.mxu0 0
    %746 = vmatpush1.bf16.msra.mxu0 0
    %747 = vmatprep.subr.bf16.mxu0 0
    %748 = vmatpush1.bf16.msra.mxu0 0
    %749 = vmatprep.subr.bf16.mxu0 0
    %750 = vmatpush1.bf16.msra.mxu0 0
    %751 = vmatprep.subr.bf16.mxu0 0
    %752 = vmatpush1.bf16.msra.mxu0 0
    %753 = vmatprep.subr.bf16.mxu0 0
    %754 = vmatpush1.bf16.msra.mxu0 0
    %755 = vmatprep.subr.bf16.mxu0 0
    %756 = vmatpush1.bf16.msra.mxu0 0
    %757 = vmatprep.subr.bf16.mxu0 0
    %758 = vmatpush1.bf16.msra.mxu0 0
    %759 = vmatprep.mubr.bf16.mxu0 0
    %760 = vmatmul.mubr.bf16.gmra.mrb[0].mxu0 %v725
    %v761 = vpop.f32.mrb[0].mxu0
    %v762 = vadd.f32 0.0, %v761
    %v763 = vpop.f32.mrb[0].mxu0
    %v764 = vpop.f32.mrb[0].mxu0
    %v765 = vpop.f32.mrb[0].mxu0
    %766 = vdwg.mxu0
    %v767 = vadd.f32 %v705, %v762
    %v768 = vld [vmem:[#allocation3] sm:$0x3]
    %v769 = vxor.u32 %v702, 2147483648
    %v770 = vmul.f32 %v769, 1.442695
    %v771 = vpow.pop %v770
    %v772 = vadd.f32 %v771, 1.0
    %v773 = vrcp.pop %v772
    %v774 = vmul.f32 1.0, %v773
    %v775 = vtanh.pop %v702
    %v778 = vunpack.c.l.s4 1983009808
    %v779 = vunpack.c.0.s8 %v778
    %v780 = vlaneseq
    %v781 = vshrl.u32 %v780, 7
    %v782 = vsub.s32 %v779, %v781
    %v783 = vrot.slane %v768, %v782
    %784 = vrot.lane.b32.xlu0 %v783, 32
    %v785 = vpop.permute.xlu0 %784
    %v787 = vmul.f32 %v774, %v785
    %789 = vrot.lane.b32.xlu0 %v775, 64
    %v790 = vpop.permute.xlu0 %789
    %v792 = vmul.f32 %v774, %v790
    %794 = vrot.lane.b32.xlu0 %v792, 32
    %v795 = vpop.permute.xlu0 %794
    %v797 = vadd.f32 %v787, %v795
    %v798 = vtanh.pop %v797
    %800 = vrot.lane.b32.xlu0 %v798, 64
    %v801 = vpop.permute.xlu0 %800
    %v803 = vmul.f32 %v774, %v801
    %v804 = vld [vmem:[#allocation5] sm:$0x3]
    %v805 = vxor.u32 %v767, 2147483648
    %v806 = vmul.f32 %v805, 1.442695
    %v807 = vpow.pop %v806
    %v808 = vadd.f32 %v807, 1.0
    %v809 = vrcp.pop %v808
    %v810 = vmul.f32 1.0, %v809
    %v811 = vtanh.pop %v767
    %v814 = vunpack.c.l.s4 1983009808
    %v815 = vunpack.c.0.s8 %v814
    %v816 = vlaneseq
    %v817 = vshrl.u32 %v816, 7
    %v818 = vsub.s32 %v815, %v817
    %v819 = vrot.slane %v804, %v818
    %820 = vrot.lane.b32.xlu0 %v819, 32
    %v821 = vpop.permute.xlu0 %820
    %v823 = vmul.f32 %v810, %v821
    %825 = vrot.lane.b32.xlu0 %v811, 64
    %v826 = vpop.permute.xlu0 %825
    %v828 = vmul.f32 %v810, %v826
    %830 = vrot.lane.b32.xlu0 %v828, 32
    %v831 = vpop.permute.xlu0 %830
    %v833 = vadd.f32 %v823, %v831
    %v834 = vtanh.pop %v833
    %836 = vrot.lane.b32.xlu0 %v834, 64
    %v837 = vpop.permute.xlu0 %836
    %v839 = vmul.f32 %v810, %v837
    %v842 = vunpack.c.l.s4 1983009808
    %v843 = vunpack.c.0.s8 %v842
    %v844 = vlaneseq
    %v845 = vshrl.u32 %v844, 7
    %v846 = vsub.s32 %v843, %v845
    %v847 = vrot.slane %v803, %v846
    %848 = vrot.lane.b32.xlu0 %v847, 32
    %v849 = vpop.permute.xlu0 %848
    %851 = vst.msk [vmem:[#allocation2] sm:$0x3] %vm266, %v849
    %v854 = vunpack.c.l.s4 1983009808
    %v855 = vunpack.c.0.s8 %v854
    %v856 = vlaneseq
    %v857 = vshrl.u32 %v856, 7
    %v858 = vsub.s32 %v855, %v857
    %v859 = vrot.slane %v797, %v858
    %860 = vrot.lane.b32.xlu0 %v859, 96
    %v861 = vpop.permute.xlu0 %860
    %863 = vst.msk [vmem:[#allocation3] sm:$0x3] %vm266, %v861
    %v866 = vunpack.c.l.s4 1983009808
    %v867 = vunpack.c.0.s8 %v866
    %v868 = vlaneseq
    %v869 = vshrl.u32 %v868, 7
    %v870 = vsub.s32 %v867, %v869
    %v871 = vrot.slane %v839, %v870
    %872 = vrot.lane.b32.xlu0 %v871, 32
    %v873 = vpop.permute.xlu0 %872
    %875 = vst.msk [vmem:[#allocation4] sm:$0x3] %vm266, %v873
    %v878 = vunpack.c.l.s4 1983009808
    %v879 = vunpack.c.0.s8 %v878
    %v880 = vlaneseq
    %v881 = vshrl.u32 %v880, 7
    %v882 = vsub.s32 %v879, %v881
    %v883 = vrot.slane %v833, %v882
    %884 = vrot.lane.b32.xlu0 %v883, 96
    %v885 = vpop.permute.xlu0 %884
    %887 = vst.msk [vmem:[#allocation5] sm:$0x3] %vm266, %v885
    %v888 = vpack.c.bf16 %v803, %v803
    %v891 = vunpack.c.l.s4 1966171168
    %v892 = vunpack.c.0.s8 %v891
    %v893 = vlaneseq
    %v894 = vshrl.u32 %v893, 7
    %v895 = vsub.s32 %v892, %v894
    %v896 = vrot.slane %v888, %v895
    %v898 = vunpack.c.l.s4 1966171168
    %v899 = vunpack.c.0.s8 %v898
    %v900 = vlaneseq
    %v901 = vshrl.u32 %v900, 7
    %v902 = vsub.s32 %v899, %v901
    %v903 = vrot.slane %v896, %v902
    %904 = vrot.lane.b32.xlu0 %v903, 32
    %v905 = vpop.permute.xlu0 %904
    %s907 = scalar_lea.vmem [#allocation6], 2
    %908 = vst.msk [vmem:[%s907] sm:$0x1] %vm323, %v905
    %v909 = vpack.c.bf16 %v839, %v839
    %v912 = vunpack.c.l.s4 1966171168
    %v913 = vunpack.c.0.s8 %v912
    %v914 = vlaneseq
    %v915 = vshrl.u32 %v914, 7
    %v916 = vsub.s32 %v913, %v915
    %v917 = vrot.slane %v909, %v916
    %v919 = vunpack.c.l.s4 1966171168
    %v920 = vunpack.c.0.s8 %v919
    %v921 = vlaneseq
    %v922 = vshrl.u32 %v921, 7
    %v923 = vsub.s32 %v920, %v922
    %v924 = vrot.slane %v917, %v923
    %925 = vrot.lane.b32.xlu0 %v924, 32
    %v926 = vpop.permute.xlu0 %925
    %s928 = scalar_lea.vmem [#allocation8], 1
    %929 = vst.msk [vmem:[%s928] sm:$0x1] %vm323, %v926
    %s930 = scalar_lea.vmem %s0, 3
    %v931 = vld [vmem:[%s930] sm:$0x1]
    %v932 = vunpack.c.l.bf16 %v931
    %v933 = vld [vmem:[#allocation2] sm:$0x3]
    %v934 = vpack.c.bf16 %v933, %v933
    %v935 = vld [vmem:[%s2] sm:$0xf]
    %v936 = vld [vmem:[%s2 + $0x4] sm:$0xf]
    %v937 = vld [vmem:[%s2 + $0x8] sm:$0xf]
    %v938 = vld [vmem:[%s2 + $0xc] sm:$0xf]
    %v943 = vunpack.c.l.b16 %v935
    %v944 = vunpack.c.l.b16 %v936
    %v945 = vunpack.c.l.b16 %v937
    %v946 = vunpack.c.l.b16 %v938
    %v947 = vpack.c.b16 %v944, %v943
    %v948 = vpack.c.b16 %v946, %v945
    %v952 = vsel %vm73, %v934, 0
    %954 = vmatprep.subr.bf16.mxu0 0
    %955 = vmatpush1.bf16.msra.mxu0 %v947
    %956 = vmatprep.subr.bf16.mxu0 0
    %957 = vmatpush1.bf16.msra.mxu0 %v948
    %958 = vmatprep.subr.bf16.mxu0 0
    %959 = vmatpush1.bf16.msra.mxu0 0
    %960 = vmatprep.subr.bf16.mxu0 0
    %961 = vmatpush1.bf16.msra.mxu0 0
    %962 = vmatprep.subr.bf16.mxu0 0
    %963 = vmatpush1.bf16.msra.mxu0 0
    %964 = vmatprep.subr.bf16.mxu0 0
    %965 = vmatpush1.bf16.msra.mxu0 0
    %966 = vmatprep.subr.bf16.mxu0 0
    %967 = vmatpush1.bf16.msra.mxu0 0
    %968 = vmatprep.subr.bf16.mxu0 0
    %969 = vmatpush1.bf16.msra.mxu0 0
    %970 = vmatprep.subr.bf16.mxu0 0
    %971 = vmatpush1.bf16.msra.mxu0 0
    %972 = vmatprep.subr.bf16.mxu0 0
    %973 = vmatpush1.bf16.msra.mxu0 0
    %974 = vmatprep.subr.bf16.mxu0 0
    %975 = vmatpush1.bf16.msra.mxu0 0
    %976 = vmatprep.subr.bf16.mxu0 0
    %977 = vmatpush1.bf16.msra.mxu0 0
    %978 = vmatprep.subr.bf16.mxu0 0
    %979 = vmatpush1.bf16.msra.mxu0 0
    %980 = vmatprep.subr.bf16.mxu0 0
    %981 = vmatpush1.bf16.msra.mxu0 0
    %982 = vmatprep.subr.bf16.mxu0 0
    %983 = vmatpush1.bf16.msra.mxu0 0
    %984 = vmatprep.subr.bf16.mxu0 0
    %985 = vmatpush1.bf16.msra.mxu0 0
    %986 = vmatprep.mubr.bf16.mxu0 0
    %987 = vmatmul.mubr.bf16.gmra.mrb[0].mxu0 %v952
    %v988 = vpop.f32.mrb[0].mxu0
    %v989 = vadd.f32 0.0, %v988
    %v990 = vpop.f32.mrb[0].mxu0
    %v991 = vpop.f32.mrb[0].mxu0
    %v992 = vpop.f32.mrb[0].mxu0
    %993 = vdwg.mxu0
    %v994 = vadd.f32 %v932, %v989
    %v995 = vld [vmem:[%s38] sm:$0x1]
    %v996 = vunpack.c.l.bf16 %v995
    %v997 = vld [vmem:[#allocation4] sm:$0x3]
    %v998 = vpack.c.bf16 %v997, %v997
    %v999 = vld [vmem:[%s3] sm:$0xf]
    %v1000 = vld [vmem:[%s3 + $0x4] sm:$0xf]
    %v1001 = vld [vmem:[%s3 + $0x8] sm:$0xf]
    %v1002 = vld [vmem:[%s3 + $0xc] sm:$0xf]
    %v1007 = vunpack.c.l.b16 %v999
    %v1008 = vunpack.c.l.b16 %v1000
    %v1009 = vunpack.c.l.b16 %v1001
    %v1010 = vunpack.c.l.b16 %v1002
    %v1011 = vpack.c.b16 %v1008, %v1007
    %v1012 = vpack.c.b16 %v1010, %v1009
    %v1016 = vsel %vm73, %v998, 0
    %1018 = vmatprep.subr.bf16.mxu0 0
    %1019 = vmatpush1.bf16.msra.mxu0 %v1011
    %1020 = vmatprep.subr.bf16.mxu0 0
    %1021 = vmatpush1.bf16.msra.mxu0 %v1012
    %1022 = vmatprep.subr.bf16.mxu0 0
    %1023 = vmatpush1.bf16.msra.mxu0 0
    %1024 = vmatprep.subr.bf16.mxu0 0
    %1025 = vmatpush1.bf16.msra.mxu0 0
    %1026 = vmatprep.subr.bf16.mxu0 0
    %1027 = vmatpush1.bf16.msra.mxu0 0
    %1028 = vmatprep.subr.bf16.mxu0 0
    %1029 = vmatpush1.bf16.msra.mxu0 0
    %1030 = vmatprep.subr.bf16.mxu0 0
    %1031 = vmatpush1.bf16.msra.mxu0 0
    %1032 = vmatprep.subr.bf16.mxu0 0
    %1033 = vmatpush1.bf16.msra.mxu0 0
    %1034 = vmatprep.subr.bf16.mxu0 0
    %1035 = vmatpush1.bf16.msra.mxu0 0
    %1036 = vmatprep.subr.bf16.mxu0 0
    %1037 = vmatpush1.bf16.msra.mxu0 0
    %1038 = vmatprep.subr.bf16.mxu0 0
    %1039 = vmatpush1.bf16.msra.mxu0 0
    %1040 = vmatprep.subr.bf16.mxu0 0
    %1041 = vmatpush1.bf16.msra.mxu0 0
    %1042 = vmatprep.subr.bf16.mxu0 0
    %1043 = vmatpush1.bf16.msra.mxu0 0
    %1044 = vmatprep.subr.bf16.mxu0 0
    %1045 = vmatpush1.bf16.msra.mxu0 0
    %1046 = vmatprep.subr.bf16.mxu0 0
    %1047 = vmatpush1.bf16.msra.mxu0 0
    %1048 = vmatprep.subr.bf16.mxu0 0
    %1049 = vmatpush1.bf16.msra.mxu0 0
    %1050 = vmatprep.mubr.bf16.mxu0 0
    %1051 = vmatmul.mubr.bf16.gmra.mrb[0].mxu0 %v1016
    %v1052 = vpop.f32.mrb[0].mxu0
    %v1053 = vadd.f32 0.0, %v1052
    %v1054 = vpop.f32.mrb[0].mxu0
    %v1055 = vpop.f32.mrb[0].mxu0
    %v1056 = vpop.f32.mrb[0].mxu0
    %1057 = vdwg.mxu0
    %v1058 = vadd.f32 %v996, %v1053
    %v1059 = vld [vmem:[#allocation3] sm:$0x3]
    %v1060 = vxor.u32 %v994, 2147483648
    %v1061 = vmul.f32 %v1060, 1.442695
    %v1062 = vpow.pop %v1061
    %v1063 = vadd.f32 %v1062, 1.0
    %v1064 = vrcp.pop %v1063
    %v1065 = vmul.f32 1.0, %v1064
    %v1066 = vtanh.pop %v994
    %v1069 = vunpack.c.l.s4 1983009808
    %v1070 = vunpack.c.0.s8 %v1069
    %v1071 = vlaneseq
    %v1072 = vshrl.u32 %v1071, 7
    %v1073 = vsub.s32 %v1070, %v1072
    %v1074 = vrot.slane %v1059, %v1073
    %1075 = vrot.lane.b32.xlu0 %v1074, 32
    %v1076 = vpop.permute.xlu0 %1075
    %v1078 = vmul.f32 %v1065, %v1076
    %1080 = vrot.lane.b32.xlu0 %v1066, 64
    %v1081 = vpop.permute.xlu0 %1080
    %v1083 = vmul.f32 %v1065, %v1081
    %1085 = vrot.lane.b32.xlu0 %v1083, 32
    %v1086 = vpop.permute.xlu0 %1085
    %v1088 = vadd.f32 %v1078, %v1086
    %v1089 = vtanh.pop %v1088
    %1091 = vrot.lane.b32.xlu0 %v1089, 64
    %v1092 = vpop.permute.xlu0 %1091
    %v1094 = vmul.f32 %v1065, %v1092
    %v1095 = vld [vmem:[#allocation5] sm:$0x3]
    %v1096 = vxor.u32 %v1058, 2147483648
    %v1097 = vmul.f32 %v1096, 1.442695
    %v1098 = vpow.pop %v1097
    %v1099 = vadd.f32 %v1098, 1.0
    %v1100 = vrcp.pop %v1099
    %v1101 = vmul.f32 1.0, %v1100
    %v1102 = vtanh.pop %v1058
    %v1105 = vunpack.c.l.s4 1983009808
    %v1106 = vunpack.c.0.s8 %v1105
    %v1107 = vlaneseq
    %v1108 = vshrl.u32 %v1107, 7
    %v1109 = vsub.s32 %v1106, %v1108
    %v1110 = vrot.slane %v1095, %v1109
    %1111 = vrot.lane.b32.xlu0 %v1110, 32
    %v1112 = vpop.permute.xlu0 %1111
    %v1114 = vmul.f32 %v1101, %v1112
    %1116 = vrot.lane.b32.xlu0 %v1102, 64
    %v1117 = vpop.permute.xlu0 %1116
    %v1119 = vmul.f32 %v1101, %v1117
    %1121 = vrot.lane.b32.xlu0 %v1119, 32
    %v1122 = vpop.permute.xlu0 %1121
    %v1124 = vadd.f32 %v1114, %v1122
    %v1125 = vtanh.pop %v1124
    %1127 = vrot.lane.b32.xlu0 %v1125, 64
    %v1128 = vpop.permute.xlu0 %1127
    %v1130 = vmul.f32 %v1101, %v1128
    %v1133 = vunpack.c.l.s4 1983009808
    %v1134 = vunpack.c.0.s8 %v1133
    %v1135 = vlaneseq
    %v1136 = vshrl.u32 %v1135, 7
    %v1137 = vsub.s32 %v1134, %v1136
    %v1138 = vrot.slane %v1094, %v1137
    %1139 = vrot.lane.b32.xlu0 %v1138, 32
    %v1140 = vpop.permute.xlu0 %1139
    %1142 = vst.msk [vmem:[#allocation2] sm:$0x3] %vm266, %v1140
    %v1145 = vunpack.c.l.s4 1983009808
    %v1146 = vunpack.c.0.s8 %v1145
    %v1147 = vlaneseq
    %v1148 = vshrl.u32 %v1147, 7
    %v1149 = vsub.s32 %v1146, %v1148
    %v1150 = vrot.slane %v1088, %v1149
    %1151 = vrot.lane.b32.xlu0 %v1150, 96
    %v1152 = vpop.permute.xlu0 %1151
    %1154 = vst.msk [vmem:[#allocation3] sm:$0x3] %vm266, %v1152
    %v1157 = vunpack.c.l.s4 1983009808
    %v1158 = vunpack.c.0.s8 %v1157
    %v1159 = vlaneseq
    %v1160 = vshrl.u32 %v1159, 7
    %v1161 = vsub.s32 %v1158, %v1160
    %v1162 = vrot.slane %v1130, %v1161
    %1163 = vrot.lane.b32.xlu0 %v1162, 32
    %v1164 = vpop.permute.xlu0 %1163
    %1166 = vst.msk [vmem:[#allocation4] sm:$0x3] %vm266, %v1164
    %v1169 = vunpack.c.l.s4 1983009808
    %v1170 = vunpack.c.0.s8 %v1169
    %v1171 = vlaneseq
    %v1172 = vshrl.u32 %v1171, 7
    %v1173 = vsub.s32 %v1170, %v1172
    %v1174 = vrot.slane %v1124, %v1173
    %1175 = vrot.lane.b32.xlu0 %v1174, 96
    %v1176 = vpop.permute.xlu0 %1175
    %1178 = vst.msk [vmem:[#allocation5] sm:$0x3] %vm266, %v1176
    %v1179 = vpack.c.bf16 %v1094, %v1094
    %v1182 = vunpack.c.l.s4 1966171168
    %v1183 = vunpack.c.0.s8 %v1182
    %v1184 = vlaneseq
    %v1185 = vshrl.u32 %v1184, 7
    %v1186 = vsub.s32 %v1183, %v1185
    %v1187 = vrot.slane %v1179, %v1186
    %v1189 = vunpack.c.l.s4 1966171168
    %v1190 = vunpack.c.0.s8 %v1189
    %v1191 = vlaneseq
    %v1192 = vshrl.u32 %v1191, 7
    %v1193 = vsub.s32 %v1190, %v1192
    %v1194 = vrot.slane %v1187, %v1193
    %1195 = vrot.lane.b32.xlu0 %v1194, 32
    %v1196 = vpop.permute.xlu0 %1195
    %s1198 = scalar_lea.vmem [#allocation6], 3
    %1199 = vst.msk [vmem:[%s1198] sm:$0x1] %vm323, %v1196
    %v1200 = vpack.c.bf16 %v1130, %v1130
    %v1203 = vunpack.c.l.s4 1966171168
    %v1204 = vunpack.c.0.s8 %v1203
    %v1205 = vlaneseq
    %v1206 = vshrl.u32 %v1205, 7
    %v1207 = vsub.s32 %v1204, %v1206
    %v1208 = vrot.slane %v1200, %v1207
    %v1210 = vunpack.c.l.s4 1966171168
    %v1211 = vunpack.c.0.s8 %v1210
    %v1212 = vlaneseq
    %v1213 = vshrl.u32 %v1212, 7
    %v1214 = vsub.s32 %v1211, %v1213
    %v1215 = vrot.slane %v1208, %v1214
    %1216 = vrot.lane.b32.xlu0 %v1215, 32
    %v1217 = vpop.permute.xlu0 %1216
    %1219 = vst.msk [vmem:[#allocation8] sm:$0x1] %vm323, %v1217
    %v1220 = vld [vmem:[#allocation2] sm:$0x3]
    %1221 = vst.msk [vmem:[%s6] sm:$0x3] %vm266, %v1220
    %v1222 = vld [vmem:[#allocation4] sm:$0x3]
    %s1223 = scalar_lea.vmem %s6, 2
    %1224 = vst.msk [vmem:[%s1223] sm:$0x3] %vm266, %v1222
    // Predicated region
    $region22: #{encoder_forward.21} parent=1 // pred_check
      _
    $region23: #{encoder_forward.21} parent=1 // pred_check_branch
      %1226 = sbr.rel (0) target = $region25
    $region24: #{encoder_forward.21} parent=1 // pred_region
      %s1228 = ssub.s32 64, 64
      %1229 = vsyncadd [#allocation7], %s1228
      %s1230 = sshll.u32 [#allocation6], 4
      %s1231 = int_to_ptr.vmem [resolvable:$true] %s1230
      %1236 = dma.vmem_to_hbm [thread:$0]  %s1231, 64, %s4, [#allocation7], 16, 16, 1
    $region25: #{encoder_forward.21} parent=1 // pred_fallthru
      _
    // Predicated region
    $region26: #{encoder_forward.21} parent=1 // pred_check
      _
    $region27: #{encoder_forward.21} parent=1 // pred_check_branch
      %1238 = sbr.rel (0) target = $region29
    $region28: #{encoder_forward.21} parent=1 // pred_region
      %s1239 = ssub.s32 0, 0
      %s1240 = smul.u32 4, %s1239
      %s1242 = ssub.s32 64, 64
      %1243 = vsyncadd [#allocation9], %s1242
      %s1244 = smul.addr %s1240, 16
      %s1245 = scalar_lea.hbm %s5, %s1244
      %s1246 = sshll.u32 [#allocation8], 4
      %s1247 = int_to_ptr.vmem [resolvable:$true] %s1246
      %1252 = dma.vmem_to_hbm [thread:$0]  %s1247, 64, %s1245, [#allocation9], 16, 16, 1
    $region29: #{encoder_forward.21} parent=1 // pred_fallthru
      _
    // Predicated region
    $region30: #{encoder_forward.21} parent=1 // pred_check
      _
    $region31: #{encoder_forward.21} parent=1 // pred_check_branch
      %1254 = sbr.rel (0) target = $region33
    $region32: #{encoder_forward.21} parent=1 // pred_region
      _
    $region33: #{encoder_forward.21} parent=1 // pred_fallthru
      _
    // Predicated region
    $region34: #{encoder_forward.21} parent=1 // pred_check
      _
    $region35: #{encoder_forward.21} parent=1 // pred_check_branch
      %1256 = sbr.rel (0) target = $region37
    $region36: #{encoder_forward.21} parent=1 // pred_region
      %1257 = dma.done [#allocation7], 64
    $region37: #{encoder_forward.21} parent=1 // pred_fallthru
      _
    // Predicated region
    $region38: #{encoder_forward.21} parent=1 // pred_check
      _
    $region39: #{encoder_forward.21} parent=1 // pred_check_branch
      %1259 = sbr.rel (0) target = $region41
    $region40: #{encoder_forward.21} parent=1 // pred_region
      %1260 = dma.done [#allocation9], 64
    $region41: #{encoder_forward.21} parent=1 // pred_fallthru
      _
    // Predicated region
    $region42: #{encoder_forward.21} parent=1 // pred_check
      _
    $region43: #{encoder_forward.21} parent=1 // pred_check_branch
      %1262 = sbr.rel (0) target = $region45
    $region44: #{encoder_forward.21} parent=1 // pred_region
      _
    $region45: #{encoder_forward.21} parent=1 // pred_fallthru
      _
    %1263 = vsyncpa [#allocation7], 1
    %1264 = vsyncpa [#allocation9], 1

</llo_original>
